<compile_context>
chip_gen: v7x
topology: tpu7x:2x2x1
jax: 0.10.0
libtpu: 0.0.40
codegen_flags: <defaults>
</compile_context>

<pallas_src>
import functools

import jax
import jax.numpy as jnp
import numpy as np
from jax.experimental import pallas as pl
from jax.experimental.pallas import tpu as pltpu


# ----------------------------------------------------------------------------
# Fused Inception kernel (one image per grid step)
# ----------------------------------------------------------------------------
def _inception_kernel(
    x_ref,                         # (1, H, W, Cin)  NHWC input tile
    w1_ref, b1_ref,                # (c1, Cin), (c1, 1)
    w21_ref, b21_ref,              # (Cin, c2_0), (1, c2_0)
    w22_ref, b22_ref,              # (c2_1, 9*c2_0), (c2_1, 1)
    w31_ref, b31_ref,              # (Cin, c3_0), (1, c3_0)
    w32_ref, b32_ref,              # (c3_1, 25*c3_0), (c3_1, 1)
    w42_ref, b42_ref,              # (c4, Cin), (c4, 1)
    o_ref,                         # (1, Ctot, H*W)  channel-major output
    pad2_ref, pad3_ref, pad4_ref,  # VMEM scratch: padded features (halo)
    patch2_ref, patch3_ref,        # VMEM scratch: im2col patch matrices
):
    _, H, W, Cin = x_ref.shape
    HW = H * W

    x = x_ref[0]                          # (H, W, Cin)
    x_flat = x.reshape(HW, Cin)           # spatial-major features

    def relu(v):
        return jnp.maximum(v, 0.0)

    def conv1x1_cm(feat_flat, w_ref, b_ref):
        # feat_flat: (HW, C); w: (Cout, C)  ->  channel-major (Cout, HW).
        y = jnp.dot(w_ref[...], feat_flat.T,
                    preferred_element_type=jnp.float32)
        return relu(y + b_ref[...])

    def conv_kxk_cm(feat_flat, K, pad_ref, patch_ref, w_ref, b_ref):
        # 'same' KxK conv on a spatial-major (HW, C) feature, zero padding.
        C = feat_flat.shape[1]
        p = K // 2
        # Halo padding entirely in VMEM (no HBM round trip).
        pad_ref[...] = jnp.zeros(pad_ref.shape, pad_ref.dtype)
        pad_ref[p:p + H, p:p + W, :] = feat_flat.reshape(H, W, C)
        # im2col: build ONE (HW, K*K*C) patch matrix -> single MXU matmul.
        for dy in range(K):
            for dx in range(K):
                col = (dy * K + dx) * C
                patch_ref[:, col:col + C] = (
                    pad_ref[dy:dy + H, dx:dx + W, :].reshape(HW, C))
        y = jnp.dot(w_ref[...], patch_ref[...].T,
                    preferred_element_type=jnp.float32)
        return relu(y + b_ref[...])          # (Cout, HW), lane-dense

    c1 = w1_ref.shape[0]
    c2_1 = w22_ref.shape[0]
    c3_1 = w32_ref.shape[0]
    c4 = w42_ref.shape[0]

    # ---- Branch 1: 1x1 conv + ReLU --------------------------------------
    o_ref[0, 0:c1, :] = conv1x1_cm(x_flat, w1_ref, b1_ref)

    # ---- Branch 2: 1x1 conv + ReLU -> 3x3 conv (pad 1) + ReLU ------------
    t2 = relu(jnp.dot(x_flat, w21_ref[...],
                      preferred_element_type=jnp.float32) + b21_ref[...])
    o_ref[0, c1:c1 + c2_1, :] = conv_kxk_cm(
        t2, 3, pad2_ref, patch2_ref, w22_ref, b22_ref)

    # ---- Branch 3: 1x1 conv + ReLU -> 5x5 conv (pad 2) + ReLU ------------
    t3 = relu(jnp.dot(x_flat, w31_ref[...],
                      preferred_element_type=jnp.float32) + b31_ref[...])
    o_ref[0, c1 + c2_1:c1 + c2_1 + c3_1, :] = conv_kxk_cm(
        t3, 5, pad3_ref, patch3_ref, w32_ref, b32_ref)

    # ---- Branch 4: 3x3 max-pool (stride 1, pad 1) -> 1x1 conv + ReLU -----
    pad4_ref[...] = jnp.full(pad4_ref.shape, -jnp.inf, pad4_ref.dtype)
    pad4_ref[1:1 + H, 1:1 + W, :] = x
    m = pad4_ref[0:H, 0:W, :]
    for dy in range(3):
        for dx in range(3):
            if dy == 0 and dx == 0:
                continue
            m = jnp.maximum(m, pad4_ref[dy:dy + H, dx:dx + W, :])
    off4 = c1 + c2_1 + c3_1
    o_ref[0, off4:off4 + c4, :] = conv1x1_cm(m.reshape(HW, Cin),
                                             w42_ref, b42_ref)


# ----------------------------------------------------------------------------
# Weight re-layout helpers (wrapper side, trace-time only)
# ----------------------------------------------------------------------------
def _w_1x1(w_oihw):
    # (Cout, Cin, 1, 1) -> (Cout, Cin)
    return w_oihw[:, :, 0, 0]


def _w_kxk(w_oihw):
    # (Cout, Cin, K, K) -> (Cout, K*K*Cin), column order = (dy, dx, cin),
    # matching the im2col patch-matrix column layout built in the kernel.
    cout, cin, K, _ = w_oihw.shape
    return jnp.transpose(w_oihw, (0, 2, 3, 1)).reshape(cout, K * K * cin)


# ----------------------------------------------------------------------------
# Inception forward (single fused pallas_call)
# ----------------------------------------------------------------------------
def inception_forward(params, x_nchw):
    """x_nchw: (N, Cin, H, W) f32 -> (N, c1 + c2[1] + c3[1] + c4, H, W)."""
    N, Cin, H, W = x_nchw.shape
    x_nhwc = jnp.transpose(x_nchw, (0, 2, 3, 1)).astype(jnp.float32)

    w1, b1 = params["p1_1"]
    w21, b21 = params["p2_1"]
    w22, b22 = params["p2_2"]
    w31, b31 = params["p3_1"]
    w32, b32 = params["p3_2"]
    w42, b42 = params["p4_2"]

    c1 = w1.shape[0]
    c2_0, c2_1 = w21.shape[0], w22.shape[0]
    c3_0, c3_1 = w31.shape[0], w32.shape[0]
    c4 = w42.shape[0]
    c_total = c1 + c2_1 + c3_1 + c4
    HW = H * W

    # Kernel-layout weights / biases.
    w1_k = _w_1x1(w1)
    b1_k = b1.reshape(c1, 1)
    w21_k = _w_1x1(w21).T                    # (Cin, c2_0) for spatial-major dot
    b21_k = b21.reshape(1, c2_0)
    w22_k = _w_kxk(w22)                      # (c2_1, 9*c2_0)
    b22_k = b22.reshape(c2_1, 1)
    w31_k = _w_1x1(w31).T
    b31_k = b31.reshape(1, c3_0)
    w32_k = _w_kxk(w32)                      # (c3_1, 25*c3_0)
    b32_k = b32.reshape(c3_1, 1)
    w42_k = _w_1x1(w42)
    b42_k = b42.reshape(c4, 1)

    def const2(shape):
        return pl.BlockSpec(shape, lambda n: (0, 0))

    out = pl.pallas_call(
        _inception_kernel,
        out_shape=jax.ShapeDtypeStruct((N, c_total, HW), jnp.float32),
        grid_spec=pltpu.PrefetchScalarGridSpec(
            num_scalar_prefetch=0,
            grid=(N,),
            in_specs=[
                pl.BlockSpec((1, H, W, Cin), lambda n: (n, 0, 0, 0)),
                const2((c1, Cin)), const2((c1, 1)),
                const2((Cin, c2_0)), const2((1, c2_0)),
                const2((c2_1, 9 * c2_0)), const2((c2_1, 1)),
                const2((Cin, c3_0)), const2((1, c3_0)),
                const2((c3_1, 25 * c3_0)), const2((c3_1, 1)),
                const2((c4, Cin)), const2((c4, 1)),
            ],
            out_specs=pl.BlockSpec((1, c_total, HW), lambda n: (n, 0, 0)),
            scratch_shapes=[
                pltpu.VMEM((H + 2, W + 2, c2_0), jnp.float32),   # pad2 (3x3)
                pltpu.VMEM((H + 4, W + 4, c3_0), jnp.float32),   # pad3 (5x5)
                pltpu.VMEM((H + 2, W + 2, Cin), jnp.float32),    # pad4 (pool)
                pltpu.VMEM((HW, 9 * c2_0), jnp.float32),         # im2col 3x3
                pltpu.VMEM((HW, 25 * c3_0), jnp.float32),        # im2col 5x5
            ],
        ),
        compiler_params=pltpu.CompilerParams(
            dimension_semantics=("parallel",)),
    )(x_nhwc,
      w1_k, b1_k, w21_k, b21_k, w22_k, b22_k,
      w31_k, b31_k, w32_k, b32_k, w42_k, b42_k)

    # (N, Ctot, H*W) is already channel-major -> NCHW via a free reshape.
    return out.reshape(N, c_total, H, W)


# ----------------------------------------------------------------------------
# Parameter init (PyTorch OIHW layout) and plain-JAX reference
# ----------------------------------------------------------------------------
def init_inception_params(key, in_c, c1, c2, c3, c4):
    ks = jax.random.split(key, 12)

    def conv(kw, kb, cout, cin, K):
        w = jax.random.normal(kw, (cout, cin, K, K), jnp.float32) * 0.1
        b = jax.random.normal(kb, (cout,), jnp.float32) * 0.1
        return w, b

    return {
        "p1_1": conv(ks[0], ks[1], c1, in_c, 1),
        "p2_1": conv(ks[2], ks[3], c2[0], in_c, 1),
        "p2_2": conv(ks[4], ks[5], c2[1], c2[0], 3),
        "p3_1": conv(ks[6], ks[7], c3[0], in_c, 1),
        "p3_2": conv(ks[8], ks[9], c3[1], c3[0], 5),
        "p4_2": conv(ks[10], ks[11], c4, in_c, 1),
    }


def _ref_conv_relu(x_nchw, w_oihw, b, K):
    pad = K // 2
    y = jax.lax.conv_general_dilated(
        x_nchw, w_oihw, window_strides=(1, 1),
        padding=((pad, pad), (pad, pad)),
        dimension_numbers=("NCHW", "OIHW", "NCHW"))
    return jnp.maximum(y + b.reshape(1, -1, 1, 1), 0.0)


def inception_ref(params, x_nchw):
    p1 = _ref_conv_relu(x_nchw, *params["p1_1"], K=1)
    p2 = _ref_conv_relu(_ref_conv_relu(x_nchw, *params["p2_1"], K=1),
                        *params["p2_2"], K=3)
    p3 = _ref_conv_relu(_ref_conv_relu(x_nchw, *params["p3_1"], K=1),
                        *params["p3_2"], K=5)
    pooled = jax.lax.reduce_window(
        x_nchw, -jnp.inf, jax.lax.max,
        window_dimensions=(1, 1, 3, 3), window_strides=(1, 1, 1, 1),
        padding=((0, 0), (0, 0), (1, 1), (1, 1)))
    p4 = _ref_conv_relu(pooled, *params["p4_2"], K=1)
    return jnp.concatenate([p1, p2, p3, p4], axis=1)


# ----------------------------------------------------------------------------
if __name__ == "__main__":
    key = jax.random.PRNGKey(0)
    k_x, k_p = jax.random.split(key)

    # Small shapes consistent with the module (NCHW input).
    N, in_c, H, W = 2, 4, 16, 16
    c1, c2, c3, c4 = 8, (4, 8), (4, 8), 8

    x = jax.random.normal(k_x, (N, in_c, H, W), jnp.float32)
    params = init_inception_params(k_p, in_c, c1, c2, c3, c4)

    fwd = jax.jit(inception_forward)
    out = jax.block_until_ready(fwd(params, x))

    expected_shape = (N, c1 + c2[1] + c3[1] + c4, H, W)
    assert out.shape == expected_shape, (out.shape, expected_shape)

    ref = jax.block_until_ready(inception_ref(params, x))
    assert np.allclose(np.asarray(out), np.asarray(ref), atol=1e-4), (
        "mismatch vs. reference")

    print("KERNEL_OK")
</pallas_src>

<mosaic_0001>
module attributes {stable_mosaic.version = 11 : i64} {
  func.func @_inception_kernel(%arg0: i32, %arg1: memref<1x16x16x4xf32, #tpu.memory_space<vmem>>, %arg2: memref<8x4xf32, #tpu.memory_space<vmem>>, %arg3: memref<8x1xf32, #tpu.memory_space<vmem>>, %arg4: memref<4x4xf32, #tpu.memory_space<vmem>>, %arg5: memref<1x4xf32, #tpu.memory_space<vmem>>, %arg6: memref<8x36xf32, #tpu.memory_space<vmem>>, %arg7: memref<8x1xf32, #tpu.memory_space<vmem>>, %arg8: memref<4x4xf32, #tpu.memory_space<vmem>>, %arg9: memref<1x4xf32, #tpu.memory_space<vmem>>, %arg10: memref<8x100xf32, #tpu.memory_space<vmem>>, %arg11: memref<8x1xf32, #tpu.memory_space<vmem>>, %arg12: memref<8x4xf32, #tpu.memory_space<vmem>>, %arg13: memref<8x1xf32, #tpu.memory_space<vmem>>, %arg14: memref<1x32x256xf32, #tpu.memory_space<vmem>>, %arg15: memref<18x18x4xf32, #tpu.memory_space<vmem>>, %arg16: memref<20x20x4xf32, #tpu.memory_space<vmem>>, %arg17: memref<18x18x4xf32, #tpu.memory_space<vmem>>, %arg18: memref<256x36xf32, #tpu.memory_space<vmem>>, %arg19: memref<256x100xf32, #tpu.memory_space<vmem>>) attributes {dimension_semantics = [#tpu.dimension_semantics<parallel>], iteration_bounds = array<i64: 2>, scalar_prefetch = 0 : i64, scratch_operands = 5 : i64, tpu.core_type = #tpu.core_type<tc>, window_params = [{transform_indices = @transform_0, window_bounds = array<i64: 1, 16, 16, 4>}, {pipeline_mode = #tpu.pipeline_mode<synchronous>, transform_indices = @transform_1, window_bounds = array<i64: 8, 4>}, {pipeline_mode = #tpu.pipeline_mode<synchronous>, transform_indices = @transform_2, window_bounds = array<i64: 8, 1>}, {pipeline_mode = #tpu.pipeline_mode<synchronous>, transform_indices = @transform_3, window_bounds = array<i64: 4, 4>}, {pipeline_mode = #tpu.pipeline_mode<synchronous>, transform_indices = @transform_4, window_bounds = array<i64: 1, 4>}, {pipeline_mode = #tpu.pipeline_mode<synchronous>, transform_indices = @transform_5, window_bounds = array<i64: 8, 36>}, {pipeline_mode = #tpu.pipeline_mode<synchronous>, transform_indices = @transform_6, window_bounds = array<i64: 8, 1>}, {pipeline_mode = #tpu.pipeline_mode<synchronous>, transform_indices = @transform_7, window_bounds = array<i64: 4, 4>}, {pipeline_mode = #tpu.pipeline_mode<synchronous>, transform_indices = @transform_8, window_bounds = array<i64: 1, 4>}, {pipeline_mode = #tpu.pipeline_mode<synchronous>, transform_indices = @transform_9, window_bounds = array<i64: 8, 100>}, {pipeline_mode = #tpu.pipeline_mode<synchronous>, transform_indices = @transform_10, window_bounds = array<i64: 8, 1>}, {pipeline_mode = #tpu.pipeline_mode<synchronous>, transform_indices = @transform_11, window_bounds = array<i64: 8, 4>}, {pipeline_mode = #tpu.pipeline_mode<synchronous>, transform_indices = @transform_12, window_bounds = array<i64: 8, 1>}, {transform_indices = @transform_13, window_bounds = array<i64: 1, 32, 256>}]} {
    %c0 = arith.constant 0 : index
    %c0_0 = arith.constant 0 : index
    %c0_1 = arith.constant 0 : index
    %c0_2 = arith.constant 0 : index
    %0 = vector.load %arg1[%c0, %c0_0, %c0_1, %c0_2] : memref<1x16x16x4xf32, #tpu.memory_space<vmem>>, vector<1x16x16x4xf32>
    %1 = vector.shape_cast %0 : vector<1x16x16x4xf32> to vector<16x16x4xf32>
    %2 = vector.shape_cast %1 : vector<16x16x4xf32> to vector<256x4xf32>
    %c0_3 = arith.constant 0 : index
    %c0_4 = arith.constant 0 : index
    %3 = vector.load %arg2[%c0_3, %c0_4] : memref<8x4xf32, #tpu.memory_space<vmem>>, vector<8x4xf32>
    %4 = tpu.transpose %2, [1, 0] : vector<256x4xf32> -> vector<4x256xf32>
    %cst = arith.constant dense<0.000000e+00> : vector<8x256xf32>
    %5 = tpu.matmul %3, %4, %cst {dimension_numbers = #tpu.dot_dimension_numbers<[1], [0], [0], [1], [0, 0, 1, 1], [], []>} : vector<8x4xf32>, vector<4x256xf32>, vector<8x256xf32> -> vector<8x256xf32>
    %c0_5 = arith.constant 0 : index
    %c0_6 = arith.constant 0 : index
    %6 = vector.load %arg3[%c0_5, %c0_6] : memref<8x1xf32, #tpu.memory_space<vmem>>, vector<8x1xf32>
    %7 = vector.broadcast %6 : vector<8x1xf32> to vector<8x256xf32>
    %8 = arith.addf %5, %7 : vector<8x256xf32>
    %cst_7 = arith.constant 0.000000e+00 : f32
    %9 = vector.broadcast %cst_7 : f32 to vector<8x256xf32>
    %10 = arith.maximumf %8, %9 : vector<8x256xf32>
    %c0_8 = arith.constant 0 : index
    %c0_9 = arith.constant 0 : index
    %c0_10 = arith.constant 0 : index
    %11 = vector.load %arg14[%c0_8, %c0_9, %c0_10] : memref<1x32x256xf32, #tpu.memory_space<vmem>>, vector<1x8x256xf32>
    %12 = vector.shape_cast %11 : vector<1x8x256xf32> to vector<8x256xf32>
    %13 = vector.shape_cast %10 : vector<8x256xf32> to vector<1x8x256xf32>
    tpu.vector_store %arg14[%c0_8, %c0_9, %c0_10], %13 {strides = array<i32>} : memref<1x32x256xf32, #tpu.memory_space<vmem>>, vector<1x8x256xf32>,
    %c0_11 = arith.constant 0 : index
    %c0_12 = arith.constant 0 : index
    %14 = vector.load %arg4[%c0_11, %c0_12] : memref<4x4xf32, #tpu.memory_space<vmem>>, vector<4x4xf32>
    %cst_13 = arith.constant dense<0.000000e+00> : vector<256x4xf32>
    %15 = tpu.matmul %2, %14, %cst_13 {dimension_numbers = #tpu.dot_dimension_numbers<[1], [0], [0], [1], [0, 0, 1, 1], [], []>} : vector<256x4xf32>, vector<4x4xf32>, vector<256x4xf32> -> vector<256x4xf32>
    %c0_14 = arith.constant 0 : index
    %c0_15 = arith.constant 0 : index
    %16 = vector.load %arg5[%c0_14, %c0_15] : memref<1x4xf32, #tpu.memory_space<vmem>>, vector<1x4xf32>
    %17 = vector.broadcast %16 : vector<1x4xf32> to vector<256x4xf32>
    %18 = arith.addf %15, %17 : vector<256x4xf32>
    %cst_16 = arith.constant 0.000000e+00 : f32
    %19 = vector.broadcast %cst_16 : f32 to vector<256x4xf32>
    %20 = arith.maximumf %18, %19 : vector<256x4xf32>
    %cst_17 = arith.constant 0.000000e+00 : f32
    %21 = vector.broadcast %cst_17 : f32 to vector<18x18x4xf32>
    %c0_18 = arith.constant 0 : index
    %c0_19 = arith.constant 0 : index
    %c0_20 = arith.constant 0 : index
    %22 = vector.load %arg15[%c0_18, %c0_19, %c0_20] : memref<18x18x4xf32, #tpu.memory_space<vmem>>, vector<18x18x4xf32>
    tpu.vector_store %arg15[%c0_18, %c0_19, %c0_20], %21 {strides = array<i32>} : memref<18x18x4xf32, #tpu.memory_space<vmem>>, vector<18x18x4xf32>,
    %23 = vector.shape_cast %20 : vector<256x4xf32> to vector<16x16x4xf32>
    %c1 = arith.constant 1 : index
    %c1_21 = arith.constant 1 : index
    %c0_22 = arith.constant 0 : index
    %24 = vector.load %arg15[%c1, %c1_21, %c0_22] : memref<18x18x4xf32, #tpu.memory_space<vmem>>, vector<16x16x4xf32>
    tpu.vector_store %arg15[%c1, %c1_21, %c0_22], %23 {strides = array<i32>} : memref<18x18x4xf32, #tpu.memory_space<vmem>>, vector<16x16x4xf32>,
    %c0_23 = arith.constant 0 : index
    %c0_24 = arith.constant 0 : index
    %c0_25 = arith.constant 0 : index
    %25 = vector.load %arg15[%c0_23, %c0_24, %c0_25] : memref<18x18x4xf32, #tpu.memory_space<vmem>>, vector<16x16x4xf32>
    %26 = vector.shape_cast %25 : vector<16x16x4xf32> to vector<256x4xf32>
    %c0_26 = arith.constant 0 : index
    %c0_27 = arith.constant 0 : index
    %27 = vector.load %arg18[%c0_26, %c0_27] : memref<256x36xf32, #tpu.memory_space<vmem>>, vector<256x4xf32>
    tpu.vector_store %arg18[%c0_26, %c0_27], %26 {strides = array<i32>} : memref<256x36xf32, #tpu.memory_space<vmem>>, vector<256x4xf32>,
    %c0_28 = arith.constant 0 : index
    %c1_29 = arith.constant 1 : index
    %c0_30 = arith.constant 0 : index
    %28 = vector.load %arg15[%c0_28, %c1_29, %c0_30] : memref<18x18x4xf32, #tpu.memory_space<vmem>>, vector<16x16x4xf32>
    %29 = vector.shape_cast %28 : vector<16x16x4xf32> to vector<256x4xf32>
    %c0_31 = arith.constant 0 : index
    %c4 = arith.constant 4 : index
    %30 = vector.load %arg18[%c0_31, %c4] : memref<256x36xf32, #tpu.memory_space<vmem>>, vector<256x4xf32>
    tpu.vector_store %arg18[%c0_31, %c4], %29 {strides = array<i32>} : memref<256x36xf32, #tpu.memory_space<vmem>>, vector<256x4xf32>,
    %c0_32 = arith.constant 0 : index
    %c2 = arith.constant 2 : index
    %c0_33 = arith.constant 0 : index
    %31 = vector.load %arg15[%c0_32, %c2, %c0_33] : memref<18x18x4xf32, #tpu.memory_space<vmem>>, vector<16x16x4xf32>
    %32 = vector.shape_cast %31 : vector<16x16x4xf32> to vector<256x4xf32>
    %c0_34 = arith.constant 0 : index
    %c8 = arith.constant 8 : index
    %33 = vector.load %arg18[%c0_34, %c8] : memref<256x36xf32, #tpu.memory_space<vmem>>, vector<256x4xf32>
    tpu.vector_store %arg18[%c0_34, %c8], %32 {strides = array<i32>} : memref<256x36xf32, #tpu.memory_space<vmem>>, vector<256x4xf32>,
    %c1_35 = arith.constant 1 : index
    %c0_36 = arith.constant 0 : index
    %c0_37 = arith.constant 0 : index
    %34 = vector.load %arg15[%c1_35, %c0_36, %c0_37] : memref<18x18x4xf32, #tpu.memory_space<vmem>>, vector<16x16x4xf32>
    %35 = vector.shape_cast %34 : vector<16x16x4xf32> to vector<256x4xf32>
    %c0_38 = arith.constant 0 : index
    %c12 = arith.constant 12 : index
    %36 = vector.load %arg18[%c0_38, %c12] : memref<256x36xf32, #tpu.memory_space<vmem>>, vector<256x4xf32>
    tpu.vector_store %arg18[%c0_38, %c12], %35 {strides = array<i32>} : memref<256x36xf32, #tpu.memory_space<vmem>>, vector<256x4xf32>,
    %c1_39 = arith.constant 1 : index
    %c1_40 = arith.constant 1 : index
    %c0_41 = arith.constant 0 : index
    %37 = vector.load %arg15[%c1_39, %c1_40, %c0_41] : memref<18x18x4xf32, #tpu.memory_space<vmem>>, vector<16x16x4xf32>
    %38 = vector.shape_cast %37 : vector<16x16x4xf32> to vector<256x4xf32>
    %c0_42 = arith.constant 0 : index
    %c16 = arith.constant 16 : index
    %39 = vector.load %arg18[%c0_42, %c16] : memref<256x36xf32, #tpu.memory_space<vmem>>, vector<256x4xf32>
    tpu.vector_store %arg18[%c0_42, %c16], %38 {strides = array<i32>} : memref<256x36xf32, #tpu.memory_space<vmem>>, vector<256x4xf32>,
    %c1_43 = arith.constant 1 : index
    %c2_44 = arith.constant 2 : index
    %c0_45 = arith.constant 0 : index
    %40 = vector.load %arg15[%c1_43, %c2_44, %c0_45] : memref<18x18x4xf32, #tpu.memory_space<vmem>>, vector<16x16x4xf32>
    %41 = vector.shape_cast %40 : vector<16x16x4xf32> to vector<256x4xf32>
    %c0_46 = arith.constant 0 : index
    %c20 = arith.constant 20 : index
    %42 = vector.load %arg18[%c0_46, %c20] : memref<256x36xf32, #tpu.memory_space<vmem>>, vector<256x4xf32>
    tpu.vector_store %arg18[%c0_46, %c20], %41 {strides = array<i32>} : memref<256x36xf32, #tpu.memory_space<vmem>>, vector<256x4xf32>,
    %c2_47 = arith.constant 2 : index
    %c0_48 = arith.constant 0 : index
    %c0_49 = arith.constant 0 : index
    %43 = vector.load %arg15[%c2_47, %c0_48, %c0_49] : memref<18x18x4xf32, #tpu.memory_space<vmem>>, vector<16x16x4xf32>
    %44 = vector.shape_cast %43 : vector<16x16x4xf32> to vector<256x4xf32>
    %c0_50 = arith.constant 0 : index
    %c24 = arith.constant 24 : index
    %45 = vector.load %arg18[%c0_50, %c24] : memref<256x36xf32, #tpu.memory_space<vmem>>, vector<256x4xf32>
    tpu.vector_store %arg18[%c0_50, %c24], %44 {strides = array<i32>} : memref<256x36xf32, #tpu.memory_space<vmem>>, vector<256x4xf32>,
    %c2_51 = arith.constant 2 : index
    %c1_52 = arith.constant 1 : index
    %c0_53 = arith.constant 0 : index
    %46 = vector.load %arg15[%c2_51, %c1_52, %c0_53] : memref<18x18x4xf32, #tpu.memory_space<vmem>>, vector<16x16x4xf32>
    %47 = vector.shape_cast %46 : vector<16x16x4xf32> to vector<256x4xf32>
    %c0_54 = arith.constant 0 : index
    %c28 = arith.constant 28 : index
    %48 = vector.load %arg18[%c0_54, %c28] : memref<256x36xf32, #tpu.memory_space<vmem>>, vector<256x4xf32>
    tpu.vector_store %arg18[%c0_54, %c28], %47 {strides = array<i32>} : memref<256x36xf32, #tpu.memory_space<vmem>>, vector<256x4xf32>,
    %c2_55 = arith.constant 2 : index
    %c2_56 = arith.constant 2 : index
    %c0_57 = arith.constant 0 : index
    %49 = vector.load %arg15[%c2_55, %c2_56, %c0_57] : memref<18x18x4xf32, #tpu.memory_space<vmem>>, vector<16x16x4xf32>
    %50 = vector.shape_cast %49 : vector<16x16x4xf32> to vector<256x4xf32>
    %c0_58 = arith.constant 0 : index
    %c32 = arith.constant 32 : index
    %51 = vector.load %arg18[%c0_58, %c32] : memref<256x36xf32, #tpu.memory_space<vmem>>, vector<256x4xf32>
    tpu.vector_store %arg18[%c0_58, %c32], %50 {strides = array<i32>} : memref<256x36xf32, #tpu.memory_space<vmem>>, vector<256x4xf32>,
    %c0_59 = arith.constant 0 : index
    %c0_60 = arith.constant 0 : index
    %52 = vector.load %arg6[%c0_59, %c0_60] : memref<8x36xf32, #tpu.memory_space<vmem>>, vector<8x36xf32>
    %c0_61 = arith.constant 0 : index
    %c0_62 = arith.constant 0 : index
    %53 = vector.load %arg18[%c0_61, %c0_62] : memref<256x36xf32, #tpu.memory_space<vmem>>, vector<256x36xf32>
    %54 = tpu.transpose %53, [1, 0] : vector<256x36xf32> -> vector<36x256xf32>
    %cst_63 = arith.constant dense<0.000000e+00> : vector<8x256xf32>
    %55 = tpu.matmul %52, %54, %cst_63 {dimension_numbers = #tpu.dot_dimension_numbers<[1], [0], [0], [1], [0, 0, 1, 1], [], []>} : vector<8x36xf32>, vector<36x256xf32>, vector<8x256xf32> -> vector<8x256xf32>
    %c0_64 = arith.constant 0 : index
    %c0_65 = arith.constant 0 : index
    %56 = vector.load %arg7[%c0_64, %c0_65] : memref<8x1xf32, #tpu.memory_space<vmem>>, vector<8x1xf32>
    %57 = vector.broadcast %56 : vector<8x1xf32> to vector<8x256xf32>
    %58 = arith.addf %55, %57 : vector<8x256xf32>
    %cst_66 = arith.constant 0.000000e+00 : f32
    %59 = vector.broadcast %cst_66 : f32 to vector<8x256xf32>
    %60 = arith.maximumf %58, %59 : vector<8x256xf32>
    %c0_67 = arith.constant 0 : index
    %c8_68 = arith.constant 8 : index
    %c0_69 = arith.constant 0 : index
    %61 = vector.load %arg14[%c0_67, %c8_68, %c0_69] : memref<1x32x256xf32, #tpu.memory_space<vmem>>, vector<1x8x256xf32>
    %62 = vector.shape_cast %61 : vector<1x8x256xf32> to vector<8x256xf32>
    %63 = vector.shape_cast %60 : vector<8x256xf32> to vector<1x8x256xf32>
    tpu.vector_store %arg14[%c0_67, %c8_68, %c0_69], %63 {strides = array<i32>} : memref<1x32x256xf32, #tpu.memory_space<vmem>>, vector<1x8x256xf32>,
    %c0_70 = arith.constant 0 : index
    %c0_71 = arith.constant 0 : index
    %64 = vector.load %arg8[%c0_70, %c0_71] : memref<4x4xf32, #tpu.memory_space<vmem>>, vector<4x4xf32>
    %cst_72 = arith.constant dense<0.000000e+00> : vector<256x4xf32>
    %65 = tpu.matmul %2, %64, %cst_72 {dimension_numbers = #tpu.dot_dimension_numbers<[1], [0], [0], [1], [0, 0, 1, 1], [], []>} : vector<256x4xf32>, vector<4x4xf32>, vector<256x4xf32> -> vector<256x4xf32>
    %c0_73 = arith.constant 0 : index
    %c0_74 = arith.constant 0 : index
    %66 = vector.load %arg9[%c0_73, %c0_74] : memref<1x4xf32, #tpu.memory_space<vmem>>, vector<1x4xf32>
    %67 = vector.broadcast %66 : vector<1x4xf32> to vector<256x4xf32>
    %68 = arith.addf %65, %67 : vector<256x4xf32>
    %cst_75 = arith.constant 0.000000e+00 : f32
    %69 = vector.broadcast %cst_75 : f32 to vector<256x4xf32>
    %70 = arith.maximumf %68, %69 : vector<256x4xf32>
    %cst_76 = arith.constant 0.000000e+00 : f32
    %71 = vector.broadcast %cst_76 : f32 to vector<20x20x4xf32>
    %c0_77 = arith.constant 0 : index
    %c0_78 = arith.constant 0 : index
    %c0_79 = arith.constant 0 : index
    %72 = vector.load %arg16[%c0_77, %c0_78, %c0_79] : memref<20x20x4xf32, #tpu.memory_space<vmem>>, vector<20x20x4xf32>
    tpu.vector_store %arg16[%c0_77, %c0_78, %c0_79], %71 {strides = array<i32>} : memref<20x20x4xf32, #tpu.memory_space<vmem>>, vector<20x20x4xf32>,
    %73 = vector.shape_cast %70 : vector<256x4xf32> to vector<16x16x4xf32>
    %c2_80 = arith.constant 2 : index
    %c2_81 = arith.constant 2 : index
    %c0_82 = arith.constant 0 : index
    %74 = vector.load %arg16[%c2_80, %c2_81, %c0_82] : memref<20x20x4xf32, #tpu.memory_space<vmem>>, vector<16x16x4xf32>
    tpu.vector_store %arg16[%c2_80, %c2_81, %c0_82], %73 {strides = array<i32>} : memref<20x20x4xf32, #tpu.memory_space<vmem>>, vector<16x16x4xf32>,
    %c0_83 = arith.constant 0 : index
    %c0_84 = arith.constant 0 : index
    %c0_85 = arith.constant 0 : index
    %75 = vector.load %arg16[%c0_83, %c0_84, %c0_85] : memref<20x20x4xf32, #tpu.memory_space<vmem>>, vector<16x16x4xf32>
    %76 = vector.shape_cast %75 : vector<16x16x4xf32> to vector<256x4xf32>
    %c0_86 = arith.constant 0 : index
    %c0_87 = arith.constant 0 : index
    %77 = vector.load %arg19[%c0_86, %c0_87] : memref<256x100xf32, #tpu.memory_space<vmem>>, vector<256x4xf32>
    tpu.vector_store %arg19[%c0_86, %c0_87], %76 {strides = array<i32>} : memref<256x100xf32, #tpu.memory_space<vmem>>, vector<256x4xf32>,
    %c0_88 = arith.constant 0 : index
    %c1_89 = arith.constant 1 : index
    %c0_90 = arith.constant 0 : index
    %78 = vector.load %arg16[%c0_88, %c1_89, %c0_90] : memref<20x20x4xf32, #tpu.memory_space<vmem>>, vector<16x16x4xf32>
    %79 = vector.shape_cast %78 : vector<16x16x4xf32> to vector<256x4xf32>
    %c0_91 = arith.constant 0 : index
    %c4_92 = arith.constant 4 : index
    %80 = vector.load %arg19[%c0_91, %c4_92] : memref<256x100xf32, #tpu.memory_space<vmem>>, vector<256x4xf32>
    tpu.vector_store %arg19[%c0_91, %c4_92], %79 {strides = array<i32>} : memref<256x100xf32, #tpu.memory_space<vmem>>, vector<256x4xf32>,
    %c0_93 = arith.constant 0 : index
    %c2_94 = arith.constant 2 : index
    %c0_95 = arith.constant 0 : index
    %81 = vector.load %arg16[%c0_93, %c2_94, %c0_95] : memref<20x20x4xf32, #tpu.memory_space<vmem>>, vector<16x16x4xf32>
    %82 = vector.shape_cast %81 : vector<16x16x4xf32> to vector<256x4xf32>
    %c0_96 = arith.constant 0 : index
    %c8_97 = arith.constant 8 : index
    %83 = vector.load %arg19[%c0_96, %c8_97] : memref<256x100xf32, #tpu.memory_space<vmem>>, vector<256x4xf32>
    tpu.vector_store %arg19[%c0_96, %c8_97], %82 {strides = array<i32>} : memref<256x100xf32, #tpu.memory_space<vmem>>, vector<256x4xf32>,
    %c0_98 = arith.constant 0 : index
    %c3 = arith.constant 3 : index
    %c0_99 = arith.constant 0 : index
    %84 = vector.load %arg16[%c0_98, %c3, %c0_99] : memref<20x20x4xf32, #tpu.memory_space<vmem>>, vector<16x16x4xf32>
    %85 = vector.shape_cast %84 : vector<16x16x4xf32> to vector<256x4xf32>
    %c0_100 = arith.constant 0 : index
    %c12_101 = arith.constant 12 : index
    %86 = vector.load %arg19[%c0_100, %c12_101] : memref<256x100xf32, #tpu.memory_space<vmem>>, vector<256x4xf32>
    tpu.vector_store %arg19[%c0_100, %c12_101], %85 {strides = array<i32>} : memref<256x100xf32, #tpu.memory_space<vmem>>, vector<256x4xf32>,
    %c0_102 = arith.constant 0 : index
    %c4_103 = arith.constant 4 : index
    %c0_104 = arith.constant 0 : index
    %87 = vector.load %arg16[%c0_102, %c4_103, %c0_104] : memref<20x20x4xf32, #tpu.memory_space<vmem>>, vector<16x16x4xf32>
    %88 = vector.shape_cast %87 : vector<16x16x4xf32> to vector<256x4xf32>
    %c0_105 = arith.constant 0 : index
    %c16_106 = arith.constant 16 : index
    %89 = vector.load %arg19[%c0_105, %c16_106] : memref<256x100xf32, #tpu.memory_space<vmem>>, vector<256x4xf32>
    tpu.vector_store %arg19[%c0_105, %c16_106], %88 {strides = array<i32>} : memref<256x100xf32, #tpu.memory_space<vmem>>, vector<256x4xf32>,
    %c1_107 = arith.constant 1 : index
    %c0_108 = arith.constant 0 : index
    %c0_109 = arith.constant 0 : index
    %90 = vector.load %arg16[%c1_107, %c0_108, %c0_109] : memref<20x20x4xf32, #tpu.memory_space<vmem>>, vector<16x16x4xf32>
    %91 = vector.shape_cast %90 : vector<16x16x4xf32> to vector<256x4xf32>
    %c0_110 = arith.constant 0 : index
    %c20_111 = arith.constant 20 : index
    %92 = vector.load %arg19[%c0_110, %c20_111] : memref<256x100xf32, #tpu.memory_space<vmem>>, vector<256x4xf32>
    tpu.vector_store %arg19[%c0_110, %c20_111], %91 {strides = array<i32>} : memref<256x100xf32, #tpu.memory_space<vmem>>, vector<256x4xf32>,
    %c1_112 = arith.constant 1 : index
    %c1_113 = arith.constant 1 : index
    %c0_114 = arith.constant 0 : index
    %93 = vector.load %arg16[%c1_112, %c1_113, %c0_114] : memref<20x20x4xf32, #tpu.memory_space<vmem>>, vector<16x16x4xf32>
    %94 = vector.shape_cast %93 : vector<16x16x4xf32> to vector<256x4xf32>
    %c0_115 = arith.constant 0 : index
    %c24_116 = arith.constant 24 : index
    %95 = vector.load %arg19[%c0_115, %c24_116] : memref<256x100xf32, #tpu.memory_space<vmem>>, vector<256x4xf32>
    tpu.vector_store %arg19[%c0_115, %c24_116], %94 {strides = array<i32>} : memref<256x100xf32, #tpu.memory_space<vmem>>, vector<256x4xf32>,
    %c1_117 = arith.constant 1 : index
    %c2_118 = arith.constant 2 : index
    %c0_119 = arith.constant 0 : index
    %96 = vector.load %arg16[%c1_117, %c2_118, %c0_119] : memref<20x20x4xf32, #tpu.memory_space<vmem>>, vector<16x16x4xf32>
    %97 = vector.shape_cast %96 : vector<16x16x4xf32> to vector<256x4xf32>
    %c0_120 = arith.constant 0 : index
    %c28_121 = arith.constant 28 : index
    %98 = vector.load %arg19[%c0_120, %c28_121] : memref<256x100xf32, #tpu.memory_space<vmem>>, vector<256x4xf32>
    tpu.vector_store %arg19[%c0_120, %c28_121], %97 {strides = array<i32>} : memref<256x100xf32, #tpu.memory_space<vmem>>, vector<256x4xf32>,
    %c1_122 = arith.constant 1 : index
    %c3_123 = arith.constant 3 : index
    %c0_124 = arith.constant 0 : index
    %99 = vector.load %arg16[%c1_122, %c3_123, %c0_124] : memref<20x20x4xf32, #tpu.memory_space<vmem>>, vector<16x16x4xf32>
    %100 = vector.shape_cast %99 : vector<16x16x4xf32> to vector<256x4xf32>
    %c0_125 = arith.constant 0 : index
    %c32_126 = arith.constant 32 : index
    %101 = vector.load %arg19[%c0_125, %c32_126] : memref<256x100xf32, #tpu.memory_space<vmem>>, vector<256x4xf32>
    tpu.vector_store %arg19[%c0_125, %c32_126], %100 {strides = array<i32>} : memref<256x100xf32, #tpu.memory_space<vmem>>, vector<256x4xf32>,
    %c1_127 = arith.constant 1 : index
    %c4_128 = arith.constant 4 : index
    %c0_129 = arith.constant 0 : index
    %102 = vector.load %arg16[%c1_127, %c4_128, %c0_129] : memref<20x20x4xf32, #tpu.memory_space<vmem>>, vector<16x16x4xf32>
    %103 = vector.shape_cast %102 : vector<16x16x4xf32> to vector<256x4xf32>
    %c0_130 = arith.constant 0 : index
    %c36 = arith.constant 36 : index
    %104 = vector.load %arg19[%c0_130, %c36] : memref<256x100xf32, #tpu.memory_space<vmem>>, vector<256x4xf32>
    tpu.vector_store %arg19[%c0_130, %c36], %103 {strides = array<i32>} : memref<256x100xf32, #tpu.memory_space<vmem>>, vector<256x4xf32>,
    %c2_131 = arith.constant 2 : index
    %c0_132 = arith.constant 0 : index
    %c0_133 = arith.constant 0 : index
    %105 = vector.load %arg16[%c2_131, %c0_132, %c0_133] : memref<20x20x4xf32, #tpu.memory_space<vmem>>, vector<16x16x4xf32>
    %106 = vector.shape_cast %105 : vector<16x16x4xf32> to vector<256x4xf32>
    %c0_134 = arith.constant 0 : index
    %c40 = arith.constant 40 : index
    %107 = vector.load %arg19[%c0_134, %c40] : memref<256x100xf32, #tpu.memory_space<vmem>>, vector<256x4xf32>
    tpu.vector_store %arg19[%c0_134, %c40], %106 {strides = array<i32>} : memref<256x100xf32, #tpu.memory_space<vmem>>, vector<256x4xf32>,
    %c2_135 = arith.constant 2 : index
    %c1_136 = arith.constant 1 : index
    %c0_137 = arith.constant 0 : index
    %108 = vector.load %arg16[%c2_135, %c1_136, %c0_137] : memref<20x20x4xf32, #tpu.memory_space<vmem>>, vector<16x16x4xf32>
    %109 = vector.shape_cast %108 : vector<16x16x4xf32> to vector<256x4xf32>
    %c0_138 = arith.constant 0 : index
    %c44 = arith.constant 44 : index
    %110 = vector.load %arg19[%c0_138, %c44] : memref<256x100xf32, #tpu.memory_space<vmem>>, vector<256x4xf32>
    tpu.vector_store %arg19[%c0_138, %c44], %109 {strides = array<i32>} : memref<256x100xf32, #tpu.memory_space<vmem>>, vector<256x4xf32>,
    %c2_139 = arith.constant 2 : index
    %c2_140 = arith.constant 2 : index
    %c0_141 = arith.constant 0 : index
    %111 = vector.load %arg16[%c2_139, %c2_140, %c0_141] : memref<20x20x4xf32, #tpu.memory_space<vmem>>, vector<16x16x4xf32>
    %112 = vector.shape_cast %111 : vector<16x16x4xf32> to vector<256x4xf32>
    %c0_142 = arith.constant 0 : index
    %c48 = arith.constant 48 : index
    %113 = vector.load %arg19[%c0_142, %c48] : memref<256x100xf32, #tpu.memory_space<vmem>>, vector<256x4xf32>
    tpu.vector_store %arg19[%c0_142, %c48], %112 {strides = array<i32>} : memref<256x100xf32, #tpu.memory_space<vmem>>, vector<256x4xf32>,
    %c2_143 = arith.constant 2 : index
    %c3_144 = arith.constant 3 : index
    %c0_145 = arith.constant 0 : index
    %114 = vector.load %arg16[%c2_143, %c3_144, %c0_145] : memref<20x20x4xf32, #tpu.memory_space<vmem>>, vector<16x16x4xf32>
    %115 = vector.shape_cast %114 : vector<16x16x4xf32> to vector<256x4xf32>
    %c0_146 = arith.constant 0 : index
    %c52 = arith.constant 52 : index
    %116 = vector.load %arg19[%c0_146, %c52] : memref<256x100xf32, #tpu.memory_space<vmem>>, vector<256x4xf32>
    tpu.vector_store %arg19[%c0_146, %c52], %115 {strides = array<i32>} : memref<256x100xf32, #tpu.memory_space<vmem>>, vector<256x4xf32>,
    %c2_147 = arith.constant 2 : index
    %c4_148 = arith.constant 4 : index
    %c0_149 = arith.constant 0 : index
    %117 = vector.load %arg16[%c2_147, %c4_148, %c0_149] : memref<20x20x4xf32, #tpu.memory_space<vmem>>, vector<16x16x4xf32>
    %118 = vector.shape_cast %117 : vector<16x16x4xf32> to vector<256x4xf32>
    %c0_150 = arith.constant 0 : index
    %c56 = arith.constant 56 : index
    %119 = vector.load %arg19[%c0_150, %c56] : memref<256x100xf32, #tpu.memory_space<vmem>>, vector<256x4xf32>
    tpu.vector_store %arg19[%c0_150, %c56], %118 {strides = array<i32>} : memref<256x100xf32, #tpu.memory_space<vmem>>, vector<256x4xf32>,
    %c3_151 = arith.constant 3 : index
    %c0_152 = arith.constant 0 : index
    %c0_153 = arith.constant 0 : index
    %120 = vector.load %arg16[%c3_151, %c0_152, %c0_153] : memref<20x20x4xf32, #tpu.memory_space<vmem>>, vector<16x16x4xf32>
    %121 = vector.shape_cast %120 : vector<16x16x4xf32> to vector<256x4xf32>
    %c0_154 = arith.constant 0 : index
    %c60 = arith.constant 60 : index
    %122 = vector.load %arg19[%c0_154, %c60] : memref<256x100xf32, #tpu.memory_space<vmem>>, vector<256x4xf32>
    tpu.vector_store %arg19[%c0_154, %c60], %121 {strides = array<i32>} : memref<256x100xf32, #tpu.memory_space<vmem>>, vector<256x4xf32>,
    %c3_155 = arith.constant 3 : index
    %c1_156 = arith.constant 1 : index
    %c0_157 = arith.constant 0 : index
    %123 = vector.load %arg16[%c3_155, %c1_156, %c0_157] : memref<20x20x4xf32, #tpu.memory_space<vmem>>, vector<16x16x4xf32>
    %124 = vector.shape_cast %123 : vector<16x16x4xf32> to vector<256x4xf32>
    %c0_158 = arith.constant 0 : index
    %c64 = arith.constant 64 : index
    %125 = vector.load %arg19[%c0_158, %c64] : memref<256x100xf32, #tpu.memory_space<vmem>>, vector<256x4xf32>
    tpu.vector_store %arg19[%c0_158, %c64], %124 {strides = array<i32>} : memref<256x100xf32, #tpu.memory_space<vmem>>, vector<256x4xf32>,
    %c3_159 = arith.constant 3 : index
    %c2_160 = arith.constant 2 : index
    %c0_161 = arith.constant 0 : index
    %126 = vector.load %arg16[%c3_159, %c2_160, %c0_161] : memref<20x20x4xf32, #tpu.memory_space<vmem>>, vector<16x16x4xf32>
    %127 = vector.shape_cast %126 : vector<16x16x4xf32> to vector<256x4xf32>
    %c0_162 = arith.constant 0 : index
    %c68 = arith.constant 68 : index
    %128 = vector.load %arg19[%c0_162, %c68] : memref<256x100xf32, #tpu.memory_space<vmem>>, vector<256x4xf32>
    tpu.vector_store %arg19[%c0_162, %c68], %127 {strides = array<i32>} : memref<256x100xf32, #tpu.memory_space<vmem>>, vector<256x4xf32>,
    %c3_163 = arith.constant 3 : index
    %c3_164 = arith.constant 3 : index
    %c0_165 = arith.constant 0 : index
    %129 = vector.load %arg16[%c3_163, %c3_164, %c0_165] : memref<20x20x4xf32, #tpu.memory_space<vmem>>, vector<16x16x4xf32>
    %130 = vector.shape_cast %129 : vector<16x16x4xf32> to vector<256x4xf32>
    %c0_166 = arith.constant 0 : index
    %c72 = arith.constant 72 : index
    %131 = vector.load %arg19[%c0_166, %c72] : memref<256x100xf32, #tpu.memory_space<vmem>>, vector<256x4xf32>
    tpu.vector_store %arg19[%c0_166, %c72], %130 {strides = array<i32>} : memref<256x100xf32, #tpu.memory_space<vmem>>, vector<256x4xf32>,
    %c3_167 = arith.constant 3 : index
    %c4_168 = arith.constant 4 : index
    %c0_169 = arith.constant 0 : index
    %132 = vector.load %arg16[%c3_167, %c4_168, %c0_169] : memref<20x20x4xf32, #tpu.memory_space<vmem>>, vector<16x16x4xf32>
    %133 = vector.shape_cast %132 : vector<16x16x4xf32> to vector<256x4xf32>
    %c0_170 = arith.constant 0 : index
    %c76 = arith.constant 76 : index
    %134 = vector.load %arg19[%c0_170, %c76] : memref<256x100xf32, #tpu.memory_space<vmem>>, vector<256x4xf32>
    tpu.vector_store %arg19[%c0_170, %c76], %133 {strides = array<i32>} : memref<256x100xf32, #tpu.memory_space<vmem>>, vector<256x4xf32>,
    %c4_171 = arith.constant 4 : index
    %c0_172 = arith.constant 0 : index
    %c0_173 = arith.constant 0 : index
    %135 = vector.load %arg16[%c4_171, %c0_172, %c0_173] : memref<20x20x4xf32, #tpu.memory_space<vmem>>, vector<16x16x4xf32>
    %136 = vector.shape_cast %135 : vector<16x16x4xf32> to vector<256x4xf32>
    %c0_174 = arith.constant 0 : index
    %c80 = arith.constant 80 : index
    %137 = vector.load %arg19[%c0_174, %c80] : memref<256x100xf32, #tpu.memory_space<vmem>>, vector<256x4xf32>
    tpu.vector_store %arg19[%c0_174, %c80], %136 {strides = array<i32>} : memref<256x100xf32, #tpu.memory_space<vmem>>, vector<256x4xf32>,
    %c4_175 = arith.constant 4 : index
    %c1_176 = arith.constant 1 : index
    %c0_177 = arith.constant 0 : index
    %138 = vector.load %arg16[%c4_175, %c1_176, %c0_177] : memref<20x20x4xf32, #tpu.memory_space<vmem>>, vector<16x16x4xf32>
    %139 = vector.shape_cast %138 : vector<16x16x4xf32> to vector<256x4xf32>
    %c0_178 = arith.constant 0 : index
    %c84 = arith.constant 84 : index
    %140 = vector.load %arg19[%c0_178, %c84] : memref<256x100xf32, #tpu.memory_space<vmem>>, vector<256x4xf32>
    tpu.vector_store %arg19[%c0_178, %c84], %139 {strides = array<i32>} : memref<256x100xf32, #tpu.memory_space<vmem>>, vector<256x4xf32>,
    %c4_179 = arith.constant 4 : index
    %c2_180 = arith.constant 2 : index
    %c0_181 = arith.constant 0 : index
    %141 = vector.load %arg16[%c4_179, %c2_180, %c0_181] : memref<20x20x4xf32, #tpu.memory_space<vmem>>, vector<16x16x4xf32>
    %142 = vector.shape_cast %141 : vector<16x16x4xf32> to vector<256x4xf32>
    %c0_182 = arith.constant 0 : index
    %c88 = arith.constant 88 : index
    %143 = vector.load %arg19[%c0_182, %c88] : memref<256x100xf32, #tpu.memory_space<vmem>>, vector<256x4xf32>
    tpu.vector_store %arg19[%c0_182, %c88], %142 {strides = array<i32>} : memref<256x100xf32, #tpu.memory_space<vmem>>, vector<256x4xf32>,
    %c4_183 = arith.constant 4 : index
    %c3_184 = arith.constant 3 : index
    %c0_185 = arith.constant 0 : index
    %144 = vector.load %arg16[%c4_183, %c3_184, %c0_185] : memref<20x20x4xf32, #tpu.memory_space<vmem>>, vector<16x16x4xf32>
    %145 = vector.shape_cast %144 : vector<16x16x4xf32> to vector<256x4xf32>
    %c0_186 = arith.constant 0 : index
    %c92 = arith.constant 92 : index
    %146 = vector.load %arg19[%c0_186, %c92] : memref<256x100xf32, #tpu.memory_space<vmem>>, vector<256x4xf32>
    tpu.vector_store %arg19[%c0_186, %c92], %145 {strides = array<i32>} : memref<256x100xf32, #tpu.memory_space<vmem>>, vector<256x4xf32>,
    %c4_187 = arith.constant 4 : index
    %c4_188 = arith.constant 4 : index
    %c0_189 = arith.constant 0 : index
    %147 = vector.load %arg16[%c4_187, %c4_188, %c0_189] : memref<20x20x4xf32, #tpu.memory_space<vmem>>, vector<16x16x4xf32>
    %148 = vector.shape_cast %147 : vector<16x16x4xf32> to vector<256x4xf32>
    %c0_190 = arith.constant 0 : index
    %c96 = arith.constant 96 : index
    %149 = vector.load %arg19[%c0_190, %c96] : memref<256x100xf32, #tpu.memory_space<vmem>>, vector<256x4xf32>
    tpu.vector_store %arg19[%c0_190, %c96], %148 {strides = array<i32>} : memref<256x100xf32, #tpu.memory_space<vmem>>, vector<256x4xf32>,
    %c0_191 = arith.constant 0 : index
    %c0_192 = arith.constant 0 : index
    %150 = vector.load %arg10[%c0_191, %c0_192] : memref<8x100xf32, #tpu.memory_space<vmem>>, vector<8x100xf32>
    %c0_193 = arith.constant 0 : index
    %c0_194 = arith.constant 0 : index
    %151 = vector.load %arg19[%c0_193, %c0_194] : memref<256x100xf32, #tpu.memory_space<vmem>>, vector<256x100xf32>
    %152 = tpu.transpose %151, [1, 0] : vector<256x100xf32> -> vector<100x256xf32>
    %cst_195 = arith.constant dense<0.000000e+00> : vector<8x256xf32>
    %153 = tpu.matmul %150, %152, %cst_195 {dimension_numbers = #tpu.dot_dimension_numbers<[1], [0], [0], [1], [0, 0, 1, 1], [], []>} : vector<8x100xf32>, vector<100x256xf32>, vector<8x256xf32> -> vector<8x256xf32>
    %c0_196 = arith.constant 0 : index
    %c0_197 = arith.constant 0 : index
    %154 = vector.load %arg11[%c0_196, %c0_197] : memref<8x1xf32, #tpu.memory_space<vmem>>, vector<8x1xf32>
    %155 = vector.broadcast %154 : vector<8x1xf32> to vector<8x256xf32>
    %156 = arith.addf %153, %155 : vector<8x256xf32>
    %cst_198 = arith.constant 0.000000e+00 : f32
    %157 = vector.broadcast %cst_198 : f32 to vector<8x256xf32>
    %158 = arith.maximumf %156, %157 : vector<8x256xf32>
    %c0_199 = arith.constant 0 : index
    %c16_200 = arith.constant 16 : index
    %c0_201 = arith.constant 0 : index
    %159 = vector.load %arg14[%c0_199, %c16_200, %c0_201] : memref<1x32x256xf32, #tpu.memory_space<vmem>>, vector<1x8x256xf32>
    %160 = vector.shape_cast %159 : vector<1x8x256xf32> to vector<8x256xf32>
    %161 = vector.shape_cast %158 : vector<8x256xf32> to vector<1x8x256xf32>
    tpu.vector_store %arg14[%c0_199, %c16_200, %c0_201], %161 {strides = array<i32>} : memref<1x32x256xf32, #tpu.memory_space<vmem>>, vector<1x8x256xf32>,
    %cst_202 = arith.constant 0xFF800000 : f32
    %162 = vector.broadcast %cst_202 : f32 to vector<18x18x4xf32>
    %c0_203 = arith.constant 0 : index
    %c0_204 = arith.constant 0 : index
    %c0_205 = arith.constant 0 : index
    %163 = vector.load %arg17[%c0_203, %c0_204, %c0_205] : memref<18x18x4xf32, #tpu.memory_space<vmem>>, vector<18x18x4xf32>
    tpu.vector_store %arg17[%c0_203, %c0_204, %c0_205], %162 {strides = array<i32>} : memref<18x18x4xf32, #tpu.memory_space<vmem>>, vector<18x18x4xf32>,
    %c1_206 = arith.constant 1 : index
    %c1_207 = arith.constant 1 : index
    %c0_208 = arith.constant 0 : index
    %164 = vector.load %arg17[%c1_206, %c1_207, %c0_208] : memref<18x18x4xf32, #tpu.memory_space<vmem>>, vector<16x16x4xf32>
    tpu.vector_store %arg17[%c1_206, %c1_207, %c0_208], %1 {strides = array<i32>} : memref<18x18x4xf32, #tpu.memory_space<vmem>>, vector<16x16x4xf32>,
    %c0_209 = arith.constant 0 : index
    %c0_210 = arith.constant 0 : index
    %c0_211 = arith.constant 0 : index
    %165 = vector.load %arg17[%c0_209, %c0_210, %c0_211] : memref<18x18x4xf32, #tpu.memory_space<vmem>>, vector<16x16x4xf32>
    %c0_212 = arith.constant 0 : index
    %c1_213 = arith.constant 1 : index
    %c0_214 = arith.constant 0 : index
    %166 = vector.load %arg17[%c0_212, %c1_213, %c0_214] : memref<18x18x4xf32, #tpu.memory_space<vmem>>, vector<16x16x4xf32>
    %167 = arith.maximumf %165, %166 : vector<16x16x4xf32>
    %c0_215 = arith.constant 0 : index
    %c2_216 = arith.constant 2 : index
    %c0_217 = arith.constant 0 : index
    %168 = vector.load %arg17[%c0_215, %c2_216, %c0_217] : memref<18x18x4xf32, #tpu.memory_space<vmem>>, vector<16x16x4xf32>
    %169 = arith.maximumf %167, %168 : vector<16x16x4xf32>
    %c1_218 = arith.constant 1 : index
    %c0_219 = arith.constant 0 : index
    %c0_220 = arith.constant 0 : index
    %170 = vector.load %arg17[%c1_218, %c0_219, %c0_220] : memref<18x18x4xf32, #tpu.memory_space<vmem>>, vector<16x16x4xf32>
    %171 = arith.maximumf %169, %170 : vector<16x16x4xf32>
    %c1_221 = arith.constant 1 : index
    %c1_222 = arith.constant 1 : index
    %c0_223 = arith.constant 0 : index
    %172 = vector.load %arg17[%c1_221, %c1_222, %c0_223] : memref<18x18x4xf32, #tpu.memory_space<vmem>>, vector<16x16x4xf32>
    %173 = arith.maximumf %171, %172 : vector<16x16x4xf32>
    %c1_224 = arith.constant 1 : index
    %c2_225 = arith.constant 2 : index
    %c0_226 = arith.constant 0 : index
    %174 = vector.load %arg17[%c1_224, %c2_225, %c0_226] : memref<18x18x4xf32, #tpu.memory_space<vmem>>, vector<16x16x4xf32>
    %175 = arith.maximumf %173, %174 : vector<16x16x4xf32>
    %c2_227 = arith.constant 2 : index
    %c0_228 = arith.constant 0 : index
    %c0_229 = arith.constant 0 : index
    %176 = vector.load %arg17[%c2_227, %c0_228, %c0_229] : memref<18x18x4xf32, #tpu.memory_space<vmem>>, vector<16x16x4xf32>
    %177 = arith.maximumf %175, %176 : vector<16x16x4xf32>
    %c2_230 = arith.constant 2 : index
    %c1_231 = arith.constant 1 : index
    %c0_232 = arith.constant 0 : index
    %178 = vector.load %arg17[%c2_230, %c1_231, %c0_232] : memref<18x18x4xf32, #tpu.memory_space<vmem>>, vector<16x16x4xf32>
    %179 = arith.maximumf %177, %178 : vector<16x16x4xf32>
    %c2_233 = arith.constant 2 : index
    %c2_234 = arith.constant 2 : index
    %c0_235 = arith.constant 0 : index
    %180 = vector.load %arg17[%c2_233, %c2_234, %c0_235] : memref<18x18x4xf32, #tpu.memory_space<vmem>>, vector<16x16x4xf32>
    %181 = arith.maximumf %179, %180 : vector<16x16x4xf32>
    %182 = vector.shape_cast %181 : vector<16x16x4xf32> to vector<256x4xf32>
    %c0_236 = arith.constant 0 : index
    %c0_237 = arith.constant 0 : index
    %183 = vector.load %arg12[%c0_236, %c0_237] : memref<8x4xf32, #tpu.memory_space<vmem>>, vector<8x4xf32>
    %184 = tpu.transpose %182, [1, 0] : vector<256x4xf32> -> vector<4x256xf32>
    %cst_238 = arith.constant dense<0.000000e+00> : vector<8x256xf32>
    %185 = tpu.matmul %183, %184, %cst_238 {dimension_numbers = #tpu.dot_dimension_numbers<[1], [0], [0], [1], [0, 0, 1, 1], [], []>} : vector<8x4xf32>, vector<4x256xf32>, vector<8x256xf32> -> vector<8x256xf32>
    %c0_239 = arith.constant 0 : index
    %c0_240 = arith.constant 0 : index
    %186 = vector.load %arg13[%c0_239, %c0_240] : memref<8x1xf32, #tpu.memory_space<vmem>>, vector<8x1xf32>
    %187 = vector.broadcast %186 : vector<8x1xf32> to vector<8x256xf32>
    %188 = arith.addf %185, %187 : vector<8x256xf32>
    %cst_241 = arith.constant 0.000000e+00 : f32
    %189 = vector.broadcast %cst_241 : f32 to vector<8x256xf32>
    %190 = arith.maximumf %188, %189 : vector<8x256xf32>
    %c0_242 = arith.constant 0 : index
    %c24_243 = arith.constant 24 : index
    %c0_244 = arith.constant 0 : index
    %191 = vector.load %arg14[%c0_242, %c24_243, %c0_244] : memref<1x32x256xf32, #tpu.memory_space<vmem>>, vector<1x8x256xf32>
    %192 = vector.shape_cast %191 : vector<1x8x256xf32> to vector<8x256xf32>
    %193 = vector.shape_cast %190 : vector<8x256xf32> to vector<1x8x256xf32>
    tpu.vector_store %arg14[%c0_242, %c24_243, %c0_244], %193 {strides = array<i32>} : memref<1x32x256xf32, #tpu.memory_space<vmem>>, vector<1x8x256xf32>,
    return
  }
  func.func @transform_0(%arg0: i32) -> (i32, i32, i32, i32) {
    %c0_i32 = arith.constant 0 : i32
    %c0_i32_0 = arith.constant 0 : i32
    %c0_i32_1 = arith.constant 0 : i32
    %c0_i32_2 = arith.constant 0 : i32
    return %arg0, %c0_i32, %c0_i32_0, %c0_i32_1 : i32, i32, i32, i32
  }
  func.func @transform_1(%arg0: i32) -> (i32, i32) {
    %c0_i32 = arith.constant 0 : i32
    %c0_i32_0 = arith.constant 0 : i32
    %c0_i32_1 = arith.constant 0 : i32
    return %c0_i32, %c0_i32_0 : i32, i32
  }
  func.func @transform_2(%arg0: i32) -> (i32, i32) {
    %c0_i32 = arith.constant 0 : i32
    %c0_i32_0 = arith.constant 0 : i32
    %c0_i32_1 = arith.constant 0 : i32
    return %c0_i32, %c0_i32_0 : i32, i32
  }
  func.func @transform_3(%arg0: i32) -> (i32, i32) {
    %c0_i32 = arith.constant 0 : i32
    %c0_i32_0 = arith.constant 0 : i32
    %c0_i32_1 = arith.constant 0 : i32
    return %c0_i32, %c0_i32_0 : i32, i32
  }
  func.func @transform_4(%arg0: i32) -> (i32, i32) {
    %c0_i32 = arith.constant 0 : i32
    %c0_i32_0 = arith.constant 0 : i32
    %c0_i32_1 = arith.constant 0 : i32
    return %c0_i32, %c0_i32_0 : i32, i32
  }
  func.func @transform_5(%arg0: i32) -> (i32, i32) {
    %c0_i32 = arith.constant 0 : i32
    %c0_i32_0 = arith.constant 0 : i32
    %c0_i32_1 = arith.constant 0 : i32
    return %c0_i32, %c0_i32_0 : i32, i32
  }
  func.func @transform_6(%arg0: i32) -> (i32, i32) {
    %c0_i32 = arith.constant 0 : i32
    %c0_i32_0 = arith.constant 0 : i32
    %c0_i32_1 = arith.constant 0 : i32
    return %c0_i32, %c0_i32_0 : i32, i32
  }
  func.func @transform_7(%arg0: i32) -> (i32, i32) {
    %c0_i32 = arith.constant 0 : i32
    %c0_i32_0 = arith.constant 0 : i32
    %c0_i32_1 = arith.constant 0 : i32
    return %c0_i32, %c0_i32_0 : i32, i32
  }
  func.func @transform_8(%arg0: i32) -> (i32, i32) {
    %c0_i32 = arith.constant 0 : i32
    %c0_i32_0 = arith.constant 0 : i32
    %c0_i32_1 = arith.constant 0 : i32
    return %c0_i32, %c0_i32_0 : i32, i32
  }
  func.func @transform_9(%arg0: i32) -> (i32, i32) {
    %c0_i32 = arith.constant 0 : i32
    %c0_i32_0 = arith.constant 0 : i32
    %c0_i32_1 = arith.constant 0 : i32
    return %c0_i32, %c0_i32_0 : i32, i32
  }
  func.func @transform_10(%arg0: i32) -> (i32, i32) {
    %c0_i32 = arith.constant 0 : i32
    %c0_i32_0 = arith.constant 0 : i32
    %c0_i32_1 = arith.constant 0 : i32
    return %c0_i32, %c0_i32_0 : i32, i32
  }
  func.func @transform_11(%arg0: i32) -> (i32, i32) {
    %c0_i32 = arith.constant 0 : i32
    %c0_i32_0 = arith.constant 0 : i32
    %c0_i32_1 = arith.constant 0 : i32
    return %c0_i32, %c0_i32_0 : i32, i32
  }
  func.func @transform_12(%arg0: i32) -> (i32, i32) {
    %c0_i32 = arith.constant 0 : i32
    %c0_i32_0 = arith.constant 0 : i32
    %c0_i32_1 = arith.constant 0 : i32
    return %c0_i32, %c0_i32_0 : i32, i32
  }
  func.func @transform_13(%arg0: i32) -> (i32, i32, i32) {
    %c0_i32 = arith.constant 0 : i32
    %c0_i32_0 = arith.constant 0 : i32
    %c0_i32_1 = arith.constant 0 : i32
    return %arg0, %c0_i32, %c0_i32_0 : i32, i32, i32
  }
}

</mosaic_0001>

<llo_original>
// kernel: inception_forward.1
$region0: #{inception_forward.1}
  #allocation0 [shape = 'u32[]', space=smem, size = 0x4, offset = 0x4, fixed_abs, tag = 'smem constant byte address 0x4 - core index']
  #allocation1 [shape = 'u32[144,128]{1,0:T(1,128)}', space=vmem, size = 0x12000, scoped, tag = 'internal scratch']
  #allocation2 [shape = 'f32[18,18,4]{2,1,0:T(8,128)}', space=vmem, size = 0x36000, scoped, tag = 'scratch operand']
  #allocation3 [shape = 'f32[20,20,4]{2,1,0:T(8,128)}', space=vmem, size = 0x3c000, scoped, tag = 'scratch operand']
  #allocation4 [shape = 'f32[18,18,4]{2,1,0:T(8,128)}', space=vmem, size = 0x36000, scoped, tag = 'scratch operand']
  #allocation5 [shape = 'f32[256,36]{1,0:T(8,128)}', space=vmem, size = 0x20000, scoped, tag = 'scratch operand']
  #allocation6 [shape = 'f32[256,100]{1,0:T(8,128)}', space=vmem, size = 0x20000, scoped, tag = 'scratch operand']
  %s0 = inlined_call_operand.vmem [shape: f32[2,16,16,4], index: 0, kind: input, shape index: {}]
  %s1 = inlined_call_operand.vmem [shape: f32[8,4], index: 1, kind: input, shape index: {}]
  %s2 = inlined_call_operand.vmem [shape: f32[8,1], index: 2, kind: input, shape index: {}]
  %s3 = inlined_call_operand.vmem [shape: f32[4,4], index: 3, kind: input, shape index: {}]
  %s4 = inlined_call_operand.vmem [shape: f32[1,4], index: 4, kind: input, shape index: {}]
  %s5 = inlined_call_operand.vmem [shape: f32[8,36], index: 5, kind: input, shape index: {}]
  %s6 = inlined_call_operand.vmem [shape: f32[8,1], index: 6, kind: input, shape index: {}]
  %s7 = inlined_call_operand.vmem [shape: f32[4,4], index: 7, kind: input, shape index: {}]
  %s8 = inlined_call_operand.vmem [shape: f32[1,4], index: 8, kind: input, shape index: {}]
  %s9 = inlined_call_operand.vmem [shape: f32[8,100], index: 9, kind: input, shape index: {}]
  %s10 = inlined_call_operand.vmem [shape: f32[8,1], index: 10, kind: input, shape index: {}]
  %s11 = inlined_call_operand.vmem [shape: f32[8,4], index: 11, kind: input, shape index: {}]
  %s12 = inlined_call_operand.vmem [shape: f32[8,1], index: 12, kind: input, shape index: {}]
  %s13 = inlined_call_operand.vmem [shape: f32[2,32,256], index: 13, kind: output, shape index: {}]
  %s14 = sld [smem:[#allocation0]]
  $region85: #{inception_forward.1} parent=0
    _
  %s16 = ssub.s32 1, %s14
  %s17 = scalar_select 0, %s16, %s14
  loop: start=0, step=1, limit=4
  $region2: #{inception_forward.1} parent=0 // loop_pre_header
    _
  $region3: #{inception_forward.1} parent=0 // loop_header
    %s19 = sphi 0, %s23
    %p20 = scmp.ge.s32.totalorder %s19, 4
    %s29 = sphi 0, %s31
    %s32 = sphi 0, %s29
    %s33 = sphi 0, %s32
    %s49 = sphi 0, %s33
    %s53 = sphi 0, %s53
    %s55 = sphi 0, %s53
    %s56 = sphi 0, %s55
    %s70 = sphi 0, %s56
    %s74 = sphi 0, %s74
    %s76 = sphi 0, %s74
    %s77 = sphi 0, %s76
    %s91 = sphi 0, %s77
    %s95 = sphi 0, %s95
    %s97 = sphi 0, %s95
    %s98 = sphi 0, %s97
    %s112 = sphi 0, %s98
    %s116 = sphi 0, %s116
    %s118 = sphi 0, %s116
    %s119 = sphi 0, %s118
    %s133 = sphi 0, %s119
    %s137 = sphi 0, %s137
    %s139 = sphi 0, %s137
    %s140 = sphi 0, %s139
    %s154 = sphi 0, %s140
    %s158 = sphi 0, %s158
    %s160 = sphi 0, %s158
    %s161 = sphi 0, %s160
    %s175 = sphi 0, %s161
    %s179 = sphi 0, %s179
    %s181 = sphi 0, %s179
    %s182 = sphi 0, %s181
    %s196 = sphi 0, %s182
    %s200 = sphi 0, %s200
    %s202 = sphi 0, %s200
    %s203 = sphi 0, %s202
    %s217 = sphi 0, %s203
    %s221 = sphi 0, %s221
    %s223 = sphi 0, %s221
    %s224 = sphi 0, %s223
    %s238 = sphi 0, %s224
    %s242 = sphi 0, %s242
    %s244 = sphi 0, %s242
    %s245 = sphi 0, %s244
    %s259 = sphi 0, %s245
    %s263 = sphi 0, %s263
    %s265 = sphi 0, %s263
    %s266 = sphi 0, %s265
    %s280 = sphi 0, %s266
    %s284 = sphi 0, %s284
    %s286 = sphi 0, %s284
    %s287 = sphi 0, %s286
    %s301 = sphi 0, %s287
    %s307 = sphi 0, %s309
    %s310 = sphi 0, %s307
    %s311 = sphi 0, %s310
    %s327 = sphi 0, %s311
  $region4: #{inception_forward.1} parent=0 // loop_header_branch
    %22 = sbr.rel (%p20) target = $region8
  $region5: #{inception_forward.1} parent=0 // loop_body
    %s24 = ssub.s32 %s19, 1
    %s25 = ssub.s32 %s19, 2
    %s26 = sadd.s32 %s19, 1
    %s27 = ssub.s32 %s19, %s26
    %p28 = scmp.eq.s32.totalorder %s27, 0
    %s30 = sadd.s32 %s29, 1
    %s31 = scalar_select %p28, %s29, %s30
    %p34 = pneg %p28
    %p35 = scmp.eq.s32.totalorder %s19, 1
    %p36 = por %p34, %p35
    %p37 = scmp.ne.s32.totalorder %s29, %s32
    %p38 = scmp.eq.s32.totalorder %s19, 0
    %p39 = por %p37, %p38
    %p40 = scmp.ne.s32.totalorder %s29, %s32
    %p41 = scmp.eq.s32.totalorder %s24, 1
    %p42 = por %p40, %p41
    %p43 = scmp.ne.s32.totalorder %s32, %s33
    %p44 = scmp.eq.s32.totalorder %s24, 0
    %p45 = por %p43, %p44
    %p46 = scmp.ne.s32.totalorder %s32, %s33
    %p47 = scmp.eq.s32.totalorder %s25, 1
    %p48 = por %p46, %p47
    %p50 = scmp.ne.s32.totalorder %s33, %s49
    %p51 = scmp.eq.s32.totalorder %s25, 0
    %p52 = por %p50, %p51
    %s54 = sadd.s32 %s53, 1
    %p57 = scmp.eq.s32.totalorder %s19, 1
    %p58 = scmp.ne.s32.totalorder %s53, %s55
    %p59 = scmp.eq.s32.totalorder %s19, 0
    %p60 = por %p58, %p59
    %p61 = scmp.ne.s32.totalorder %s53, %s55
    %p62 = scmp.eq.s32.totalorder %s24, 1
    %p63 = por %p61, %p62
    %p64 = scmp.ne.s32.totalorder %s55, %s56
    %p65 = scmp.eq.s32.totalorder %s24, 0
    %p66 = por %p64, %p65
    %p67 = scmp.ne.s32.totalorder %s55, %s56
    %p68 = scmp.eq.s32.totalorder %s25, 1
    %p69 = por %p67, %p68
    %p71 = scmp.ne.s32.totalorder %s56, %s70
    %p72 = scmp.eq.s32.totalorder %s25, 0
    %p73 = por %p71, %p72
    %s75 = sadd.s32 %s74, 1
    %p78 = scmp.eq.s32.totalorder %s19, 1
    %p79 = scmp.ne.s32.totalorder %s74, %s76
    %p80 = scmp.eq.s32.totalorder %s19, 0
    %p81 = por %p79, %p80
    %p82 = scmp.ne.s32.totalorder %s74, %s76
    %p83 = scmp.eq.s32.totalorder %s24, 1
    %p84 = por %p82, %p83
    %p85 = scmp.ne.s32.totalorder %s76, %s77
    %p86 = scmp.eq.s32.totalorder %s24, 0
    %p87 = por %p85, %p86
    %p88 = scmp.ne.s32.totalorder %s76, %s77
    %p89 = scmp.eq.s32.totalorder %s25, 1
    %p90 = por %p88, %p89
    %p92 = scmp.ne.s32.totalorder %s77, %s91
    %p93 = scmp.eq.s32.totalorder %s25, 0
    %p94 = por %p92, %p93
    %s96 = sadd.s32 %s95, 1
    %p99 = scmp.eq.s32.totalorder %s19, 1
    %p100 = scmp.ne.s32.totalorder %s95, %s97
    %p101 = scmp.eq.s32.totalorder %s19, 0
    %p102 = por %p100, %p101
    %p103 = scmp.ne.s32.totalorder %s95, %s97
    %p104 = scmp.eq.s32.totalorder %s24, 1
    %p105 = por %p103, %p104
    %p106 = scmp.ne.s32.totalorder %s97, %s98
    %p107 = scmp.eq.s32.totalorder %s24, 0
    %p108 = por %p106, %p107
    %p109 = scmp.ne.s32.totalorder %s97, %s98
    %p110 = scmp.eq.s32.totalorder %s25, 1
    %p111 = por %p109, %p110
    %p113 = scmp.ne.s32.totalorder %s98, %s112
    %p114 = scmp.eq.s32.totalorder %s25, 0
    %p115 = por %p113, %p114
    %s117 = sadd.s32 %s116, 1
    %p120 = scmp.eq.s32.totalorder %s19, 1
    %p121 = scmp.ne.s32.totalorder %s116, %s118
    %p122 = scmp.eq.s32.totalorder %s19, 0
    %p123 = por %p121, %p122
    %p124 = scmp.ne.s32.totalorder %s116, %s118
    %p125 = scmp.eq.s32.totalorder %s24, 1
    %p126 = por %p124, %p125
    %p127 = scmp.ne.s32.totalorder %s118, %s119
    %p128 = scmp.eq.s32.totalorder %s24, 0
    %p129 = por %p127, %p128
    %p130 = scmp.ne.s32.totalorder %s118, %s119
    %p131 = scmp.eq.s32.totalorder %s25, 1
    %p132 = por %p130, %p131
    %p134 = scmp.ne.s32.totalorder %s119, %s133
    %p135 = scmp.eq.s32.totalorder %s25, 0
    %p136 = por %p134, %p135
    %s138 = sadd.s32 %s137, 1
    %p141 = scmp.eq.s32.totalorder %s19, 1
    %p142 = scmp.ne.s32.totalorder %s137, %s139
    %p143 = scmp.eq.s32.totalorder %s19, 0
    %p144 = por %p142, %p143
    %p145 = scmp.ne.s32.totalorder %s137, %s139
    %p146 = scmp.eq.s32.totalorder %s24, 1
    %p147 = por %p145, %p146
    %p148 = scmp.ne.s32.totalorder %s139, %s140
    %p149 = scmp.eq.s32.totalorder %s24, 0
    %p150 = por %p148, %p149
    %p151 = scmp.ne.s32.totalorder %s139, %s140
    %p152 = scmp.eq.s32.totalorder %s25, 1
    %p153 = por %p151, %p152
    %p155 = scmp.ne.s32.totalorder %s140, %s154
    %p156 = scmp.eq.s32.totalorder %s25, 0
    %p157 = por %p155, %p156
    %s159 = sadd.s32 %s158, 1
    %p162 = scmp.eq.s32.totalorder %s19, 1
    %p163 = scmp.ne.s32.totalorder %s158, %s160
    %p164 = scmp.eq.s32.totalorder %s19, 0
    %p165 = por %p163, %p164
    %p166 = scmp.ne.s32.totalorder %s158, %s160
    %p167 = scmp.eq.s32.totalorder %s24, 1
    %p168 = por %p166, %p167
    %p169 = scmp.ne.s32.totalorder %s160, %s161
    %p170 = scmp.eq.s32.totalorder %s24, 0
    %p171 = por %p169, %p170
    %p172 = scmp.ne.s32.totalorder %s160, %s161
    %p173 = scmp.eq.s32.totalorder %s25, 1
    %p174 = por %p172, %p173
    %p176 = scmp.ne.s32.totalorder %s161, %s175
    %p177 = scmp.eq.s32.totalorder %s25, 0
    %p178 = por %p176, %p177
    %s180 = sadd.s32 %s179, 1
    %p183 = scmp.eq.s32.totalorder %s19, 1
    %p184 = scmp.ne.s32.totalorder %s179, %s181
    %p185 = scmp.eq.s32.totalorder %s19, 0
    %p186 = por %p184, %p185
    %p187 = scmp.ne.s32.totalorder %s179, %s181
    %p188 = scmp.eq.s32.totalorder %s24, 1
    %p189 = por %p187, %p188
    %p190 = scmp.ne.s32.totalorder %s181, %s182
    %p191 = scmp.eq.s32.totalorder %s24, 0
    %p192 = por %p190, %p191
    %p193 = scmp.ne.s32.totalorder %s181, %s182
    %p194 = scmp.eq.s32.totalorder %s25, 1
    %p195 = por %p193, %p194
    %p197 = scmp.ne.s32.totalorder %s182, %s196
    %p198 = scmp.eq.s32.totalorder %s25, 0
    %p199 = por %p197, %p198
    %s201 = sadd.s32 %s200, 1
    %p204 = scmp.eq.s32.totalorder %s19, 1
    %p205 = scmp.ne.s32.totalorder %s200, %s202
    %p206 = scmp.eq.s32.totalorder %s19, 0
    %p207 = por %p205, %p206
    %p208 = scmp.ne.s32.totalorder %s200, %s202
    %p209 = scmp.eq.s32.totalorder %s24, 1
    %p210 = por %p208, %p209
    %p211 = scmp.ne.s32.totalorder %s202, %s203
    %p212 = scmp.eq.s32.totalorder %s24, 0
    %p213 = por %p211, %p212
    %p214 = scmp.ne.s32.totalorder %s202, %s203
    %p215 = scmp.eq.s32.totalorder %s25, 1
    %p216 = por %p214, %p215
    %p218 = scmp.ne.s32.totalorder %s203, %s217
    %p219 = scmp.eq.s32.totalorder %s25, 0
    %p220 = por %p218, %p219
    %s222 = sadd.s32 %s221, 1
    %p225 = scmp.eq.s32.totalorder %s19, 1
    %p226 = scmp.ne.s32.totalorder %s221, %s223
    %p227 = scmp.eq.s32.totalorder %s19, 0
    %p228 = por %p226, %p227
    %p229 = scmp.ne.s32.totalorder %s221, %s223
    %p230 = scmp.eq.s32.totalorder %s24, 1
    %p231 = por %p229, %p230
    %p232 = scmp.ne.s32.totalorder %s223, %s224
    %p233 = scmp.eq.s32.totalorder %s24, 0
    %p234 = por %p232, %p233
    %p235 = scmp.ne.s32.totalorder %s223, %s224
    %p236 = scmp.eq.s32.totalorder %s25, 1
    %p237 = por %p235, %p236
    %p239 = scmp.ne.s32.totalorder %s224, %s238
    %p240 = scmp.eq.s32.totalorder %s25, 0
    %p241 = por %p239, %p240
    %s243 = sadd.s32 %s242, 1
    %p246 = scmp.eq.s32.totalorder %s19, 1
    %p247 = scmp.ne.s32.totalorder %s242, %s244
    %p248 = scmp.eq.s32.totalorder %s19, 0
    %p249 = por %p247, %p248
    %p250 = scmp.ne.s32.totalorder %s242, %s244
    %p251 = scmp.eq.s32.totalorder %s24, 1
    %p252 = por %p250, %p251
    %p253 = scmp.ne.s32.totalorder %s244, %s245
    %p254 = scmp.eq.s32.totalorder %s24, 0
    %p255 = por %p253, %p254
    %p256 = scmp.ne.s32.totalorder %s244, %s245
    %p257 = scmp.eq.s32.totalorder %s25, 1
    %p258 = por %p256, %p257
    %p260 = scmp.ne.s32.totalorder %s245, %s259
    %p261 = scmp.eq.s32.totalorder %s25, 0
    %p262 = por %p260, %p261
    %s264 = sadd.s32 %s263, 1
    %p267 = scmp.eq.s32.totalorder %s19, 1
    %p268 = scmp.ne.s32.totalorder %s263, %s265
    %p269 = scmp.eq.s32.totalorder %s19, 0
    %p270 = por %p268, %p269
    %p271 = scmp.ne.s32.totalorder %s263, %s265
    %p272 = scmp.eq.s32.totalorder %s24, 1
    %p273 = por %p271, %p272
    %p274 = scmp.ne.s32.totalorder %s265, %s266
    %p275 = scmp.eq.s32.totalorder %s24, 0
    %p276 = por %p274, %p275
    %p277 = scmp.ne.s32.totalorder %s265, %s266
    %p278 = scmp.eq.s32.totalorder %s25, 1
    %p279 = por %p277, %p278
    %p281 = scmp.ne.s32.totalorder %s266, %s280
    %p282 = scmp.eq.s32.totalorder %s25, 0
    %p283 = por %p281, %p282
    %s285 = sadd.s32 %s284, 1
    %p288 = scmp.eq.s32.totalorder %s19, 1
    %p289 = scmp.ne.s32.totalorder %s284, %s286
    %p290 = scmp.eq.s32.totalorder %s19, 0
    %p291 = por %p289, %p290
    %p292 = scmp.ne.s32.totalorder %s284, %s286
    %p293 = scmp.eq.s32.totalorder %s24, 1
    %p294 = por %p292, %p293
    %p295 = scmp.ne.s32.totalorder %s286, %s287
    %p296 = scmp.eq.s32.totalorder %s24, 0
    %p297 = por %p295, %p296
    %p298 = scmp.ne.s32.totalorder %s286, %s287
    %p299 = scmp.eq.s32.totalorder %s25, 1
    %p300 = por %p298, %p299
    %p302 = scmp.ne.s32.totalorder %s287, %s301
    %p303 = scmp.eq.s32.totalorder %s25, 0
    %p304 = por %p302, %p303
    %s305 = ssub.s32 %s19, %s26
    %p306 = scmp.eq.s32.totalorder %s305, 0
    %s308 = sadd.s32 %s307, 1
    %s309 = scalar_select %p306, %s307, %s308
    %p312 = pneg %p306
    %p313 = scmp.eq.s32.totalorder %s19, 1
    %p314 = por %p312, %p313
    %p315 = scmp.ne.s32.totalorder %s307, %s310
    %p316 = scmp.eq.s32.totalorder %s19, 0
    %p317 = por %p315, %p316
    %p318 = scmp.ne.s32.totalorder %s307, %s310
    %p319 = scmp.eq.s32.totalorder %s24, 1
    %p320 = por %p318, %p319
    %p321 = scmp.ne.s32.totalorder %s310, %s311
    %p322 = scmp.eq.s32.totalorder %s24, 0
    %p323 = por %p321, %p322
    %p324 = scmp.ne.s32.totalorder %s310, %s311
    %p325 = scmp.eq.s32.totalorder %s25, 1
    %p326 = por %p324, %p325
    %p328 = scmp.ne.s32.totalorder %s311, %s327
    %p329 = scmp.eq.s32.totalorder %s25, 0
    %p330 = por %p328, %p329
    %p331 = scmp.le.s32.totalorder 1, %s19
    %p332 = scmp.lt.s32.totalorder %s19, 3
    %p333 = pnand %p331, %p332
    %p334 = pneg %p333
    // Predicated region
    $region9: #{inception_forward.1} parent=5 // pred_check
      _
    $region10: #{inception_forward.1} parent=5 // pred_check_branch
      %336 = sbr.rel (%p333) target = $region12
    $region11: #{inception_forward.1} parent=5 // pred_region
      %s337 = ssub.s32 %s19, 1
      // Predicated region
      $region13: #{inception_forward.1} parent=11 // pred_check
        %p338 = pneg %p66
      $region14: #{inception_forward.1} parent=11 // pred_check_branch
        %340 = sbr.rel (%p338) target = $region16
      $region15: #{inception_forward.1} parent=11 // pred_region
        _
      $region16: #{inception_forward.1} parent=11 // pred_fallthru
        _
      // Predicated region
      $region17: #{inception_forward.1} parent=11 // pred_check
        %p341 = pneg %p87
      $region18: #{inception_forward.1} parent=11 // pred_check_branch
        %343 = sbr.rel (%p341) target = $region20
      $region19: #{inception_forward.1} parent=11 // pred_region
        _
      $region20: #{inception_forward.1} parent=11 // pred_fallthru
        _
      // Predicated region
      $region21: #{inception_forward.1} parent=11 // pred_check
        %p344 = pneg %p108
      $region22: #{inception_forward.1} parent=11 // pred_check_branch
        %346 = sbr.rel (%p344) target = $region24
      $region23: #{inception_forward.1} parent=11 // pred_region
        _
      $region24: #{inception_forward.1} parent=11 // pred_fallthru
        _
      // Predicated region
      $region25: #{inception_forward.1} parent=11 // pred_check
        %p347 = pneg %p129
      $region26: #{inception_forward.1} parent=11 // pred_check_branch
        %349 = sbr.rel (%p347) target = $region28
      $region27: #{inception_forward.1} parent=11 // pred_region
        _
      $region28: #{inception_forward.1} parent=11 // pred_fallthru
        _
      // Predicated region
      $region29: #{inception_forward.1} parent=11 // pred_check
        %p350 = pneg %p150
      $region30: #{inception_forward.1} parent=11 // pred_check_branch
        %352 = sbr.rel (%p350) target = $region32
      $region31: #{inception_forward.1} parent=11 // pred_region
        _
      $region32: #{inception_forward.1} parent=11 // pred_fallthru
        _
      // Predicated region
      $region33: #{inception_forward.1} parent=11 // pred_check
        %p353 = pneg %p171
      $region34: #{inception_forward.1} parent=11 // pred_check_branch
        %355 = sbr.rel (%p353) target = $region36
      $region35: #{inception_forward.1} parent=11 // pred_region
        _
      $region36: #{inception_forward.1} parent=11 // pred_fallthru
        _
      // Predicated region
      $region37: #{inception_forward.1} parent=11 // pred_check
        %p356 = pneg %p192
      $region38: #{inception_forward.1} parent=11 // pred_check_branch
        %358 = sbr.rel (%p356) target = $region40
      $region39: #{inception_forward.1} parent=11 // pred_region
        _
      $region40: #{inception_forward.1} parent=11 // pred_fallthru
        _
      // Predicated region
      $region41: #{inception_forward.1} parent=11 // pred_check
        %p359 = pneg %p213
      $region42: #{inception_forward.1} parent=11 // pred_check_branch
        %361 = sbr.rel (%p359) target = $region44
      $region43: #{inception_forward.1} parent=11 // pred_region
        _
      $region44: #{inception_forward.1} parent=11 // pred_fallthru
        _
      // Predicated region
      $region45: #{inception_forward.1} parent=11 // pred_check
        %p362 = pneg %p234
      $region46: #{inception_forward.1} parent=11 // pred_check_branch
        %364 = sbr.rel (%p362) target = $region48
      $region47: #{inception_forward.1} parent=11 // pred_region
        _
      $region48: #{inception_forward.1} parent=11 // pred_fallthru
        _
      // Predicated region
      $region49: #{inception_forward.1} parent=11 // pred_check
        %p365 = pneg %p255
      $region50: #{inception_forward.1} parent=11 // pred_check_branch
        %367 = sbr.rel (%p365) target = $region52
      $region51: #{inception_forward.1} parent=11 // pred_region
        _
      $region52: #{inception_forward.1} parent=11 // pred_fallthru
        _
      // Predicated region
      $region53: #{inception_forward.1} parent=11 // pred_check
        %p368 = pneg %p276
      $region54: #{inception_forward.1} parent=11 // pred_check_branch
        %370 = sbr.rel (%p368) target = $region56
      $region55: #{inception_forward.1} parent=11 // pred_region
        _
      $region56: #{inception_forward.1} parent=11 // pred_fallthru
        _
      // Predicated region
      $region57: #{inception_forward.1} parent=11 // pred_check
        %p371 = pneg %p297
      $region58: #{inception_forward.1} parent=11 // pred_check_branch
        %373 = sbr.rel (%p371) target = $region60
      $region59: #{inception_forward.1} parent=11 // pred_region
        _
      $region60: #{inception_forward.1} parent=11 // pred_fallthru
        _
    $region12: #{inception_forward.1} parent=5 // pred_fallthru
      _
    %p374 = scmp.lt.s32.totalorder %s19, 2
    // Predicated region
    $region61: #{inception_forward.1} parent=5 // pred_check
      %p375 = pneg %p374
    $region62: #{inception_forward.1} parent=5 // pred_check_branch
      %377 = sbr.rel (%p375) target = $region64
    $region63: #{inception_forward.1} parent=5 // pred_region
      // Predicated region
      $region65: #{inception_forward.1} parent=63 // pred_check
        %p378 = pneg %p39
      $region66: #{inception_forward.1} parent=63 // pred_check_branch
        %380 = sbr.rel (%p378) target = $region68
      $region67: #{inception_forward.1} parent=63 // pred_region
        %p381 = scmp.lt.s32.totalorder %s19, 1
        %s382 = scalar_select %p381, %s19, 1
        %s383 = smul.addr %s382, 32
        %s384 = smul.addr %s383, 8
        %s385 = scalar_lea.vmem %s0, %s384
      $region68: #{inception_forward.1} parent=63 // pred_fallthru
        _
    $region64: #{inception_forward.1} parent=5 // pred_fallthru
      _
    %p386 = scmp.le.s32.totalorder 1, %s19
    %p387 = scmp.lt.s32.totalorder %s19, 3
    %p388 = pnand %p386, %p387
    %p389 = pneg %p388
    // Predicated region
    $region69: #{inception_forward.1} parent=5 // pred_check
      _
    $region70: #{inception_forward.1} parent=5 // pred_check_branch
      %391 = sbr.rel (%p388) target = $region72
    $region71: #{inception_forward.1} parent=5 // pred_region
      %s392 = ssub.s32 %s19, 1
      %p393 = scmp.lt.s32.totalorder %s24, 1
      %s394 = scalar_select %p393, %s24, 1
      %s395 = smul.addr %s394, 32
      %s396 = smul.addr %s395, 8
      %s397 = scalar_lea.vmem %s0, %s396
      %p398 = pneg %p45
      %p399 = pneg %p42
      %p400 = pneg %p66
      %p401 = pneg %p63
      %p402 = pneg %p87
      %p403 = pneg %p84
      %p404 = pneg %p108
      %p405 = pneg %p105
      %p406 = pneg %p129
      %p407 = pneg %p126
      %p408 = pneg %p150
      %p409 = pneg %p147
      %p410 = pneg %p171
      %p411 = pneg %p168
      %p412 = pneg %p192
      %p413 = pneg %p189
      %p414 = pneg %p213
      %p415 = pneg %p210
      %p416 = pneg %p234
      %p417 = pneg %p231
      %p418 = pneg %p255
      %p419 = pneg %p252
      %p420 = pneg %p276
      %p421 = pneg %p273
      %p422 = pneg %p297
      %p423 = pneg %p294
      %p424 = pneg %p323
      %p425 = pneg %p320
      %p426 = scmp.lt.s32.totalorder %s24, 1
      %s427 = scalar_select %p426, %s24, 1
      %s428 = smul.addr %s427, 8
      %s429 = smul.addr %s428, 8
      %s430 = scalar_lea.vmem %s13, %s429
      %p431 = scmp.lt.s32.totalorder %s24, 1
      %s432 = scalar_select %p431, %s24, 1
      %s433 = smul.addr %s432, 32
      %s434 = smul.addr %s433, 8
      %s435 = scalar_lea.vmem %s0, %s434
      %p436 = scmp.lt.s32.totalorder %s24, 1
      %s437 = scalar_select %p436, %s24, 1
      %s438 = smul.addr %s437, 8
      %s439 = smul.addr %s438, 8
      %s440 = scalar_lea.vmem %s13, %s439
      %v441 = vld [vmem:[%s435] sm:$0xff]
      %v442 = vld [vmem:[%s435 + $0x8] sm:$0xff]
      %v443 = vld [vmem:[%s435 + $0x10] sm:$0xff]
      %v444 = vld [vmem:[%s435 + $0x18] sm:$0xff]
      %v445 = vld [vmem:[%s435 + $0x20] sm:$0xff]
      %v446 = vld [vmem:[%s435 + $0x28] sm:$0xff]
      %v447 = vld [vmem:[%s435 + $0x30] sm:$0xff]
      %v448 = vld [vmem:[%s435 + $0x38] sm:$0xff]
      %v449 = vld [vmem:[%s435 + $0x40] sm:$0xff]
      %v450 = vld [vmem:[%s435 + $0x48] sm:$0xff]
      %v451 = vld [vmem:[%s435 + $0x50] sm:$0xff]
      %v452 = vld [vmem:[%s435 + $0x58] sm:$0xff]
      %v453 = vld [vmem:[%s435 + $0x60] sm:$0xff]
      %v454 = vld [vmem:[%s435 + $0x68] sm:$0xff]
      %v455 = vld [vmem:[%s435 + $0x70] sm:$0xff]
      %v456 = vld [vmem:[%s435 + $0x78] sm:$0xff]
      %v457 = vld [vmem:[%s435 + $0x80] sm:$0xff]
      %v458 = vld [vmem:[%s435 + $0x88] sm:$0xff]
      %v459 = vld [vmem:[%s435 + $0x90] sm:$0xff]
      %v460 = vld [vmem:[%s435 + $0x98] sm:$0xff]
      %v461 = vld [vmem:[%s435 + $0xa0] sm:$0xff]
      %v462 = vld [vmem:[%s435 + $0xa8] sm:$0xff]
      %v463 = vld [vmem:[%s435 + $0xb0] sm:$0xff]
      %v464 = vld [vmem:[%s435 + $0xb8] sm:$0xff]
      %v465 = vld [vmem:[%s435 + $0xc0] sm:$0xff]
      %v466 = vld [vmem:[%s435 + $0xc8] sm:$0xff]
      %v467 = vld [vmem:[%s435 + $0xd0] sm:$0xff]
      %v468 = vld [vmem:[%s435 + $0xd8] sm:$0xff]
      %v469 = vld [vmem:[%s435 + $0xe0] sm:$0xff]
      %v470 = vld [vmem:[%s435 + $0xe8] sm:$0xff]
      %v471 = vld [vmem:[%s435 + $0xf0] sm:$0xff]
      %v472 = vld [vmem:[%s435 + $0xf8] sm:$0xff]
      %v473 = vld [vmem:[%s1] sm:$0xff]
      %v474 = vld [vmem:[%s2] sm:$0xff]
      %476 = vset.pattern.permute.xlu0 0
      %477 = vperm.xlu0 %476, %v474
      %v478 = vpop.permute.xlu0 %477
      %vm480 = vcmask 31744
      %v482 = vsel %vm480, %v473, 0
      %v485 = vsel %vm480, %v441, 0
      %v488 = vsel %vm480, %v442, 0
      %v491 = vsel %vm480, %v443, 0
      %v494 = vsel %vm480, %v444, 0
      %v497 = vsel %vm480, %v445, 0
      %v500 = vsel %vm480, %v446, 0
      %v503 = vsel %vm480, %v447, 0
      %v506 = vsel %vm480, %v448, 0
      %v509 = vsel %vm480, %v449, 0
      %v512 = vsel %vm480, %v450, 0
      %v515 = vsel %vm480, %v451, 0
      %v518 = vsel %vm480, %v452, 0
      %v521 = vsel %vm480, %v453, 0
      %v524 = vsel %vm480, %v454, 0
      %v527 = vsel %vm480, %v455, 0
      %v530 = vsel %vm480, %v456, 0
      %v533 = vsel %vm480, %v457, 0
      %v536 = vsel %vm480, %v458, 0
      %v539 = vsel %vm480, %v459, 0
      %v542 = vsel %vm480, %v460, 0
      %v545 = vsel %vm480, %v461, 0
      %v548 = vsel %vm480, %v462, 0
      %v551 = vsel %vm480, %v463, 0
      %v554 = vsel %vm480, %v464, 0
      %v557 = vsel %vm480, %v465, 0
      %v560 = vsel %vm480, %v466, 0
      %v563 = vsel %vm480, %v467, 0
      %v566 = vsel %vm480, %v468, 0
      %v569 = vsel %vm480, %v469, 0
      %v572 = vsel %vm480, %v470, 0
      %v575 = vsel %vm480, %v471, 0
      %v578 = vsel %vm480, %v472, 0
      %580 = vmatprep.subr.mxu0 0.0
      %581 = vmatpush1.xpose.msra.mxu0 %v485
      %582 = vmatprep.subr.mxu0 0.0
      %583 = vmatpush1.xpose.msra.mxu0 %v488
      %584 = vmatprep.subr.mxu0 0.0
      %585 = vmatpush1.xpose.msra.mxu0 %v491
      %586 = vmatprep.subr.mxu0 0.0
      %587 = vmatpush1.xpose.msra.mxu0 %v494
      %588 = vmatprep.subr.mxu0 0.0
      %589 = vmatpush1.xpose.msra.mxu0 %v497
      %590 = vmatprep.subr.mxu0 0.0
      %591 = vmatpush1.xpose.msra.mxu0 %v500
      %592 = vmatprep.subr.mxu0 0.0
      %593 = vmatpush1.xpose.msra.mxu0 %v503
      %594 = vmatprep.subr.mxu0 0.0
      %595 = vmatpush1.xpose.msra.mxu0 %v506
      %596 = vmatprep.subr.mxu0 0.0
      %597 = vmatpush1.xpose.msra.mxu0 %v509
      %598 = vmatprep.subr.mxu0 0.0
      %599 = vmatpush1.xpose.msra.mxu0 %v512
      %600 = vmatprep.subr.mxu0 0.0
      %601 = vmatpush1.xpose.msra.mxu0 %v515
      %602 = vmatprep.subr.mxu0 0.0
      %603 = vmatpush1.xpose.msra.mxu0 %v518
      %604 = vmatprep.subr.mxu0 0.0
      %605 = vmatpush1.xpose.msra.mxu0 %v521
      %606 = vmatprep.subr.mxu0 0.0
      %607 = vmatpush1.xpose.msra.mxu0 %v524
      %608 = vmatprep.subr.mxu0 0.0
      %609 = vmatpush1.xpose.msra.mxu0 %v527
      %610 = vmatprep.subr.mxu0 0.0
      %611 = vmatpush1.xpose.msra.mxu0 %v530
      %612 = vmatprep.subr.mxu0 0.0
      %613 = vmatpush1.xpose.msra.mxu0 %v533
      %614 = vmatprep.subr.mxu0 0.0
      %615 = vmatpush1.xpose.msra.mxu0 %v536
      %616 = vmatprep.subr.mxu0 0.0
      %617 = vmatpush1.xpose.msra.mxu0 %v539
      %618 = vmatprep.subr.mxu0 0.0
      %619 = vmatpush1.xpose.msra.mxu0 %v542
      %620 = vmatprep.subr.mxu0 0.0
      %621 = vmatpush1.xpose.msra.mxu0 %v545
      %622 = vmatprep.subr.mxu0 0.0
      %623 = vmatpush1.xpose.msra.mxu0 %v548
      %624 = vmatprep.subr.mxu0 0.0
      %625 = vmatpush1.xpose.msra.mxu0 %v551
      %626 = vmatprep.subr.mxu0 0.0
      %627 = vmatpush1.xpose.msra.mxu0 %v554
      %628 = vmatprep.subr.mxu0 0.0
      %629 = vmatpush1.xpose.msra.mxu0 %v557
      %630 = vmatprep.subr.mxu0 0.0
      %631 = vmatpush1.xpose.msra.mxu0 %v560
      %632 = vmatprep.subr.mxu0 0.0
      %633 = vmatpush1.xpose.msra.mxu0 %v563
      %634 = vmatprep.subr.mxu0 0.0
      %635 = vmatpush1.xpose.msra.mxu0 %v566
      %636 = vmatprep.subr.mxu0 0.0
      %637 = vmatpush1.xpose.msra.mxu0 %v569
      %638 = vmatprep.subr.mxu0 0.0
      %639 = vmatpush1.xpose.msra.mxu0 %v572
      %640 = vmatprep.subr.mxu0 0.0
      %641 = vmatpush1.xpose.msra.mxu0 %v575
      %642 = vmatprep.subr.mxu0 0.0
      %643 = vmatpush1.xpose.msra.mxu0 %v578
      %644 = vmatprep.mubr.f32.mxu0 0.0
      %645 = vmatmul.mubr.f32.gmra.mrb[0].mxu0 %v482
      %v646 = vpop.f32.mrb[0].mxu0
      %v647 = vadd.f32 %v478, %v646
      %v648 = vpop.f32.mrb[0].mxu0
      %v649 = vadd.f32 %v478, %v648
      %650 = vdwg.mxu0
      %v651 = vmax.f32 %v647, 0.0
      %v652 = vmax.f32 %v649, 0.0
      %653 = vst [vmem:[%s440] sm:$0xff] %v651
      %654 = vst [vmem:[%s440 + $0x8] sm:$0xff] %v652
      %v655 = vld [vmem:[%s3] sm:$0xf]
      %v656 = vld [vmem:[%s4] sm:$0x1]
      %v658 = vlaneseq
      %v659 = vshrl.u32 %v658, 7
      %v660 = vsub.s32 0, %v659
      %v661 = vrot.slane %v656, %v660
      %vm663 = vcmask 1043456
      %v665 = vsel %vm663, %v655, 0
      %667 = vmatprep.subr.mxu0 0.0
      %668 = vmatpush1.msra.mxu0 %v665
      %669 = vmatprep.subr.mxu0 0.0
      %670 = vmatpush1.msra.mxu0 0.0
      %671 = vmatprep.subr.mxu0 0.0
      %672 = vmatpush1.msra.mxu0 0.0
      %673 = vmatprep.subr.mxu0 0.0
      %674 = vmatpush1.msra.mxu0 0.0
      %675 = vmatprep.subr.mxu0 0.0
      %676 = vmatpush1.msra.mxu0 0.0
      %677 = vmatprep.subr.mxu0 0.0
      %678 = vmatpush1.msra.mxu0 0.0
      %679 = vmatprep.subr.mxu0 0.0
      %680 = vmatpush1.msra.mxu0 0.0
      %681 = vmatprep.subr.mxu0 0.0
      %682 = vmatpush1.msra.mxu0 0.0
      %683 = vmatprep.subr.mxu0 0.0
      %684 = vmatpush1.msra.mxu0 0.0
      %685 = vmatprep.subr.mxu0 0.0
      %686 = vmatpush1.msra.mxu0 0.0
      %687 = vmatprep.subr.mxu0 0.0
      %688 = vmatpush1.msra.mxu0 0.0
      %689 = vmatprep.subr.mxu0 0.0
      %690 = vmatpush1.msra.mxu0 0.0
      %691 = vmatprep.subr.mxu0 0.0
      %692 = vmatpush1.msra.mxu0 0.0
      %693 = vmatprep.subr.mxu0 0.0
      %694 = vmatpush1.msra.mxu0 0.0
      %695 = vmatprep.subr.mxu0 0.0
      %696 = vmatpush1.msra.mxu0 0.0
      %697 = vmatprep.subr.mxu0 0.0
      %698 = vmatpush1.msra.mxu0 0.0
      %699 = vmatprep.subr.mxu0 0.0
      %700 = vmatpush1.msra.mxu0 0.0
      %701 = vmatprep.subr.mxu0 0.0
      %702 = vmatpush1.msra.mxu0 0.0
      %703 = vmatprep.subr.mxu0 0.0
      %704 = vmatpush1.msra.mxu0 0.0
      %705 = vmatprep.subr.mxu0 0.0
      %706 = vmatpush1.msra.mxu0 0.0
      %707 = vmatprep.subr.mxu0 0.0
      %708 = vmatpush1.msra.mxu0 0.0
      %709 = vmatprep.subr.mxu0 0.0
      %710 = vmatpush1.msra.mxu0 0.0
      %711 = vmatprep.subr.mxu0 0.0
      %712 = vmatpush1.msra.mxu0 0.0
      %713 = vmatprep.subr.mxu0 0.0
      %714 = vmatpush1.msra.mxu0 0.0
      %715 = vmatprep.subr.mxu0 0.0
      %716 = vmatpush1.msra.mxu0 0.0
      %717 = vmatprep.subr.mxu0 0.0
      %718 = vmatpush1.msra.mxu0 0.0
      %719 = vmatprep.subr.mxu0 0.0
      %720 = vmatpush1.msra.mxu0 0.0
      %721 = vmatprep.subr.mxu0 0.0
      %722 = vmatpush1.msra.mxu0 0.0
      %723 = vmatprep.subr.mxu0 0.0
      %724 = vmatpush1.msra.mxu0 0.0
      %725 = vmatprep.subr.mxu0 0.0
      %726 = vmatpush1.msra.mxu0 0.0
      %727 = vmatprep.subr.mxu0 0.0
      %728 = vmatpush1.msra.mxu0 0.0
      %729 = vmatprep.subr.mxu0 0.0
      %730 = vmatpush1.msra.mxu0 0.0
      %731 = vmatprep.mubr.f32.mxu0 0.0
      %732 = vmatmul.mubr.f32.gmra.mrb[0].mxu0 %v485
      %v733 = vpop.f32.mrb[0].mxu0
      %v734 = vadd.f32 %v661, %v733
      %v735 = vpop.f32.mrb[0].mxu0
      %736 = vmatprep.mubr.f32.mxu0 0.0
      %737 = vmatmul.mubr.f32.gmra.mrb[0].mxu0 %v488
      %v738 = vpop.f32.mrb[0].mxu0
      %v739 = vadd.f32 %v661, %v738
      %v740 = vpop.f32.mrb[0].mxu0
      %741 = vmatprep.mubr.f32.mxu0 0.0
      %742 = vmatmul.mubr.f32.gmra.mrb[0].mxu0 %v491
      %v743 = vpop.f32.mrb[0].mxu0
      %v744 = vadd.f32 %v661, %v743
      %v745 = vpop.f32.mrb[0].mxu0
      %746 = vmatprep.mubr.f32.mxu0 0.0
      %747 = vmatmul.mubr.f32.gmra.mrb[0].mxu0 %v494
      %v748 = vpop.f32.mrb[0].mxu0
      %v749 = vadd.f32 %v661, %v748
      %v750 = vpop.f32.mrb[0].mxu0
      %751 = vmatprep.mubr.f32.mxu0 0.0
      %752 = vmatmul.mubr.f32.gmra.mrb[0].mxu0 %v497
      %v753 = vpop.f32.mrb[0].mxu0
      %v754 = vadd.f32 %v661, %v753
      %v755 = vpop.f32.mrb[0].mxu0
      %756 = vmatprep.mubr.f32.mxu0 0.0
      %757 = vmatmul.mubr.f32.gmra.mrb[0].mxu0 %v500
      %v758 = vpop.f32.mrb[0].mxu0
      %v759 = vadd.f32 %v661, %v758
      %v760 = vpop.f32.mrb[0].mxu0
      %761 = vmatprep.mubr.f32.mxu0 0.0
      %762 = vmatmul.mubr.f32.gmra.mrb[0].mxu0 %v503
      %v763 = vpop.f32.mrb[0].mxu0
      %v764 = vadd.f32 %v661, %v763
      %v765 = vpop.f32.mrb[0].mxu0
      %766 = vmatprep.mubr.f32.mxu0 0.0
      %767 = vmatmul.mubr.f32.gmra.mrb[0].mxu0 %v506
      %v768 = vpop.f32.mrb[0].mxu0
      %v769 = vadd.f32 %v661, %v768
      %v770 = vpop.f32.mrb[0].mxu0
      %771 = vmatprep.mubr.f32.mxu0 0.0
      %772 = vmatmul.mubr.f32.gmra.mrb[0].mxu0 %v509
      %v773 = vpop.f32.mrb[0].mxu0
      %v774 = vadd.f32 %v661, %v773
      %v775 = vpop.f32.mrb[0].mxu0
      %776 = vmatprep.mubr.f32.mxu0 0.0
      %777 = vmatmul.mubr.f32.gmra.mrb[0].mxu0 %v512
      %v778 = vpop.f32.mrb[0].mxu0
      %v779 = vadd.f32 %v661, %v778
      %v780 = vpop.f32.mrb[0].mxu0
      %781 = vmatprep.mubr.f32.mxu0 0.0
      %782 = vmatmul.mubr.f32.gmra.mrb[0].mxu0 %v515
      %v783 = vpop.f32.mrb[0].mxu0
      %v784 = vadd.f32 %v661, %v783
      %v785 = vpop.f32.mrb[0].mxu0
      %786 = vmatprep.mubr.f32.mxu0 0.0
      %787 = vmatmul.mubr.f32.gmra.mrb[0].mxu0 %v518
      %v788 = vpop.f32.mrb[0].mxu0
      %v789 = vadd.f32 %v661, %v788
      %v790 = vpop.f32.mrb[0].mxu0
      %791 = vmatprep.mubr.f32.mxu0 0.0
      %792 = vmatmul.mubr.f32.gmra.mrb[0].mxu0 %v521
      %v793 = vpop.f32.mrb[0].mxu0
      %v794 = vadd.f32 %v661, %v793
      %v795 = vpop.f32.mrb[0].mxu0
      %796 = vmatprep.mubr.f32.mxu0 0.0
      %797 = vmatmul.mubr.f32.gmra.mrb[0].mxu0 %v524
      %v798 = vpop.f32.mrb[0].mxu0
      %v799 = vadd.f32 %v661, %v798
      %v800 = vpop.f32.mrb[0].mxu0
      %801 = vmatprep.mubr.f32.mxu0 0.0
      %802 = vmatmul.mubr.f32.gmra.mrb[0].mxu0 %v527
      %v803 = vpop.f32.mrb[0].mxu0
      %v804 = vadd.f32 %v661, %v803
      %v805 = vpop.f32.mrb[0].mxu0
      %806 = vmatprep.mubr.f32.mxu0 0.0
      %807 = vmatmul.mubr.f32.gmra.mrb[0].mxu0 %v530
      %v808 = vpop.f32.mrb[0].mxu0
      %v809 = vadd.f32 %v661, %v808
      %v810 = vpop.f32.mrb[0].mxu0
      %811 = vmatprep.mubr.f32.mxu0 0.0
      %812 = vmatmul.mubr.f32.gmra.mrb[0].mxu0 %v533
      %v813 = vpop.f32.mrb[0].mxu0
      %v814 = vadd.f32 %v661, %v813
      %v815 = vpop.f32.mrb[0].mxu0
      %816 = vmatprep.mubr.f32.mxu0 0.0
      %817 = vmatmul.mubr.f32.gmra.mrb[0].mxu0 %v536
      %v818 = vpop.f32.mrb[0].mxu0
      %v819 = vadd.f32 %v661, %v818
      %v820 = vpop.f32.mrb[0].mxu0
      %821 = vmatprep.mubr.f32.mxu0 0.0
      %822 = vmatmul.mubr.f32.gmra.mrb[0].mxu0 %v539
      %v823 = vpop.f32.mrb[0].mxu0
      %v824 = vadd.f32 %v661, %v823
      %v825 = vpop.f32.mrb[0].mxu0
      %826 = vmatprep.mubr.f32.mxu0 0.0
      %827 = vmatmul.mubr.f32.gmra.mrb[0].mxu0 %v542
      %v828 = vpop.f32.mrb[0].mxu0
      %v829 = vadd.f32 %v661, %v828
      %v830 = vpop.f32.mrb[0].mxu0
      %831 = vmatprep.mubr.f32.mxu0 0.0
      %832 = vmatmul.mubr.f32.gmra.mrb[0].mxu0 %v545
      %v833 = vpop.f32.mrb[0].mxu0
      %v834 = vadd.f32 %v661, %v833
      %v835 = vpop.f32.mrb[0].mxu0
      %836 = vmatprep.mubr.f32.mxu0 0.0
      %837 = vmatmul.mubr.f32.gmra.mrb[0].mxu0 %v548
      %v838 = vpop.f32.mrb[0].mxu0
      %v839 = vadd.f32 %v661, %v838
      %v840 = vpop.f32.mrb[0].mxu0
      %841 = vmatprep.mubr.f32.mxu0 0.0
      %842 = vmatmul.mubr.f32.gmra.mrb[0].mxu0 %v551
      %v843 = vpop.f32.mrb[0].mxu0
      %v844 = vadd.f32 %v661, %v843
      %v845 = vpop.f32.mrb[0].mxu0
      %846 = vmatprep.mubr.f32.mxu0 0.0
      %847 = vmatmul.mubr.f32.gmra.mrb[0].mxu0 %v554
      %v848 = vpop.f32.mrb[0].mxu0
      %v849 = vadd.f32 %v661, %v848
      %v850 = vpop.f32.mrb[0].mxu0
      %851 = vmatprep.mubr.f32.mxu0 0.0
      %852 = vmatmul.mubr.f32.gmra.mrb[0].mxu0 %v557
      %v853 = vpop.f32.mrb[0].mxu0
      %v854 = vadd.f32 %v661, %v853
      %v855 = vpop.f32.mrb[0].mxu0
      %856 = vmatprep.mubr.f32.mxu0 0.0
      %857 = vmatmul.mubr.f32.gmra.mrb[0].mxu0 %v560
      %v858 = vpop.f32.mrb[0].mxu0
      %v859 = vadd.f32 %v661, %v858
      %v860 = vpop.f32.mrb[0].mxu0
      %861 = vmatprep.mubr.f32.mxu0 0.0
      %862 = vmatmul.mubr.f32.gmra.mrb[0].mxu0 %v563
      %v863 = vpop.f32.mrb[0].mxu0
      %v864 = vadd.f32 %v661, %v863
      %v865 = vpop.f32.mrb[0].mxu0
      %866 = vmatprep.mubr.f32.mxu0 0.0
      %867 = vmatmul.mubr.f32.gmra.mrb[0].mxu0 %v566
      %v868 = vpop.f32.mrb[0].mxu0
      %v869 = vadd.f32 %v661, %v868
      %v870 = vpop.f32.mrb[0].mxu0
      %871 = vmatprep.mubr.f32.mxu0 0.0
      %872 = vmatmul.mubr.f32.gmra.mrb[0].mxu0 %v569
      %v873 = vpop.f32.mrb[0].mxu0
      %v874 = vadd.f32 %v661, %v873
      %v875 = vpop.f32.mrb[0].mxu0
      %876 = vmatprep.mubr.f32.mxu0 0.0
      %877 = vmatmul.mubr.f32.gmra.mrb[0].mxu0 %v572
      %v878 = vpop.f32.mrb[0].mxu0
      %v879 = vadd.f32 %v661, %v878
      %v880 = vpop.f32.mrb[0].mxu0
      %881 = vmatprep.mubr.f32.mxu0 0.0
      %882 = vmatmul.mubr.f32.gmra.mrb[0].mxu0 %v575
      %v883 = vpop.f32.mrb[0].mxu0
      %v884 = vadd.f32 %v661, %v883
      %v885 = vpop.f32.mrb[0].mxu0
      %886 = vmatprep.mubr.f32.mxu0 0.0
      %887 = vmatmul.mubr.f32.gmra.mrb[0].mxu0 %v578
      %v888 = vpop.f32.mrb[0].mxu0
      %v889 = vadd.f32 %v661, %v888
      %v890 = vpop.f32.mrb[0].mxu0
      %891 = vdwg.mxu0
      %v892 = vmax.f32 %v734, 0.0
      %v893 = vmax.f32 %v739, 0.0
      %v894 = vmax.f32 %v744, 0.0
      %v895 = vmax.f32 %v749, 0.0
      %v896 = vmax.f32 %v754, 0.0
      %v897 = vmax.f32 %v759, 0.0
      %v898 = vmax.f32 %v764, 0.0
      %v899 = vmax.f32 %v769, 0.0
      %v900 = vmax.f32 %v774, 0.0
      %v901 = vmax.f32 %v779, 0.0
      %v902 = vmax.f32 %v784, 0.0
      %v903 = vmax.f32 %v789, 0.0
      %v904 = vmax.f32 %v794, 0.0
      %v905 = vmax.f32 %v799, 0.0
      %v906 = vmax.f32 %v804, 0.0
      %v907 = vmax.f32 %v809, 0.0
      %v908 = vmax.f32 %v814, 0.0
      %v909 = vmax.f32 %v819, 0.0
      %v910 = vmax.f32 %v824, 0.0
      %v911 = vmax.f32 %v829, 0.0
      %v912 = vmax.f32 %v834, 0.0
      %v913 = vmax.f32 %v839, 0.0
      %v914 = vmax.f32 %v844, 0.0
      %v915 = vmax.f32 %v849, 0.0
      %v916 = vmax.f32 %v854, 0.0
      %v917 = vmax.f32 %v859, 0.0
      %v918 = vmax.f32 %v864, 0.0
      %v919 = vmax.f32 %v869, 0.0
      %v920 = vmax.f32 %v874, 0.0
      %v921 = vmax.f32 %v879, 0.0
      %v922 = vmax.f32 %v884, 0.0
      %v923 = vmax.f32 %v889, 0.0
      %924 = vst.msk [vmem:[#allocation2] sm:$0xff] %vm480, 0.0
      %925 = vst.msk [vmem:[#allocation2 + $0x8] sm:$0xff] %vm480, 0.0
      %vm926 = vcmask 25600
      %927 = vst.msk [vmem:[#allocation2 + $0x10] sm:$0x3] %vm926, 0.0
      %928 = vst.msk [vmem:[#allocation2 + $0x18] sm:$0xff] %vm480, 0.0
      %929 = vst.msk [vmem:[#allocation2 + $0x20] sm:$0xff] %vm480, 0.0
      %930 = vst.msk [vmem:[#allocation2 + $0x28] sm:$0x3] %vm926, 0.0
      %931 = vst.msk [vmem:[#allocation2 + $0x30] sm:$0xff] %vm480, 0.0
      %932 = vst.msk [vmem:[#allocation2 + $0x38] sm:$0xff] %vm480, 0.0
      %933 = vst.msk [vmem:[#allocation2 + $0x40] sm:$0x3] %vm926, 0.0
      %934 = vst.msk [vmem:[#allocation2 + $0x48] sm:$0xff] %vm480, 0.0
      %935 = vst.msk [vmem:[#allocation2 + $0x50] sm:$0xff] %vm480, 0.0
      %936 = vst.msk [vmem:[#allocation2 + $0x58] sm:$0x3] %vm926, 0.0
      %937 = vst.msk [vmem:[#allocation2 + $0x60] sm:$0xff] %vm480, 0.0
      %938 = vst.msk [vmem:[#allocation2 + $0x68] sm:$0xff] %vm480, 0.0
      %939 = vst.msk [vmem:[#allocation2 + $0x70] sm:$0x3] %vm926, 0.0
      %940 = vst.msk [vmem:[#allocation2 + $0x78] sm:$0xff] %vm480, 0.0
      %941 = vst.msk [vmem:[#allocation2 + $0x80] sm:$0xff] %vm480, 0.0
      %942 = vst.msk [vmem:[#allocation2 + $0x88] sm:$0x3] %vm926, 0.0
      %943 = vst.msk [vmem:[#allocation2 + $0x90] sm:$0xff] %vm480, 0.0
      %944 = vst.msk [vmem:[#allocation2 + $0x98] sm:$0xff] %vm480, 0.0
      %945 = vst.msk [vmem:[#allocation2 + $0xa0] sm:$0x3] %vm926, 0.0
      %946 = vst.msk [vmem:[#allocation2 + $0xa8] sm:$0xff] %vm480, 0.0
      %947 = vst.msk [vmem:[#allocation2 + $0xb0] sm:$0xff] %vm480, 0.0
      %948 = vst.msk [vmem:[#allocation2 + $0xb8] sm:$0x3] %vm926, 0.0
      %949 = vst.msk [vmem:[#allocation2 + $0xc0] sm:$0xff] %vm480, 0.0
      %950 = vst.msk [vmem:[#allocation2 + $0xc8] sm:$0xff] %vm480, 0.0
      %951 = vst.msk [vmem:[#allocation2 + $0xd0] sm:$0x3] %vm926, 0.0
      %952 = vst.msk [vmem:[#allocation2 + $0xd8] sm:$0xff] %vm480, 0.0
      %953 = vst.msk [vmem:[#allocation2 + $0xe0] sm:$0xff] %vm480, 0.0
      %954 = vst.msk [vmem:[#allocation2 + $0xe8] sm:$0x3] %vm926, 0.0
      %955 = vst.msk [vmem:[#allocation2 + $0xf0] sm:$0xff] %vm480, 0.0
      %956 = vst.msk [vmem:[#allocation2 + $0xf8] sm:$0xff] %vm480, 0.0
      %957 = vst.msk [vmem:[#allocation2 + $0x100] sm:$0x3] %vm926, 0.0
      %958 = vst.msk [vmem:[#allocation2 + $0x108] sm:$0xff] %vm480, 0.0
      %959 = vst.msk [vmem:[#allocation2 + $0x110] sm:$0xff] %vm480, 0.0
      %960 = vst.msk [vmem:[#allocation2 + $0x118] sm:$0x3] %vm926, 0.0
      %961 = vst.msk [vmem:[#allocation2 + $0x120] sm:$0xff] %vm480, 0.0
      %962 = vst.msk [vmem:[#allocation2 + $0x128] sm:$0xff] %vm480, 0.0
      %963 = vst.msk [vmem:[#allocation2 + $0x130] sm:$0x3] %vm926, 0.0
      %964 = vst.msk [vmem:[#allocation2 + $0x138] sm:$0xff] %vm480, 0.0
      %965 = vst.msk [vmem:[#allocation2 + $0x140] sm:$0xff] %vm480, 0.0
      %966 = vst.msk [vmem:[#allocation2 + $0x148] sm:$0x3] %vm926, 0.0
      %967 = vst.msk [vmem:[#allocation2 + $0x150] sm:$0xff] %vm480, 0.0
      %968 = vst.msk [vmem:[#allocation2 + $0x158] sm:$0xff] %vm480, 0.0
      %969 = vst.msk [vmem:[#allocation2 + $0x160] sm:$0x3] %vm926, 0.0
      %970 = vst.msk [vmem:[#allocation2 + $0x168] sm:$0xff] %vm480, 0.0
      %971 = vst.msk [vmem:[#allocation2 + $0x170] sm:$0xff] %vm480, 0.0
      %972 = vst.msk [vmem:[#allocation2 + $0x178] sm:$0x3] %vm926, 0.0
      %973 = vst.msk [vmem:[#allocation2 + $0x180] sm:$0xff] %vm480, 0.0
      %974 = vst.msk [vmem:[#allocation2 + $0x188] sm:$0xff] %vm480, 0.0
      %975 = vst.msk [vmem:[#allocation2 + $0x190] sm:$0x3] %vm926, 0.0
      %976 = vst.msk [vmem:[#allocation2 + $0x198] sm:$0xff] %vm480, 0.0
      %977 = vst.msk [vmem:[#allocation2 + $0x1a0] sm:$0xff] %vm480, 0.0
      %978 = vst.msk [vmem:[#allocation2 + $0x1a8] sm:$0x3] %vm926, 0.0
      %s979 = scalar_lea.vmem [#allocation2], 24
      %980 = vst.msk [vmem:[%s979 + $0x1] sm:$0xff] %vm480, %v892
      %981 = vst.msk [vmem:[%s979 + $0x9] sm:$0xff] %vm480, %v893
      %982 = vst.msk [vmem:[%s979 + $0x19] sm:$0xff] %vm480, %v894
      %983 = vst.msk [vmem:[%s979 + $0x21] sm:$0xff] %vm480, %v895
      %984 = vst.msk [vmem:[%s979 + $0x31] sm:$0xff] %vm480, %v896
      %985 = vst.msk [vmem:[%s979 + $0x39] sm:$0xff] %vm480, %v897
      %986 = vst.msk [vmem:[%s979 + $0x49] sm:$0xff] %vm480, %v898
      %987 = vst.msk [vmem:[%s979 + $0x51] sm:$0xff] %vm480, %v899
      %988 = vst.msk [vmem:[%s979 + $0x61] sm:$0xff] %vm480, %v900
      %989 = vst.msk [vmem:[%s979 + $0x69] sm:$0xff] %vm480, %v901
      %990 = vst.msk [vmem:[%s979 + $0x79] sm:$0xff] %vm480, %v902
      %991 = vst.msk [vmem:[%s979 + $0x81] sm:$0xff] %vm480, %v903
      %992 = vst.msk [vmem:[%s979 + $0x91] sm:$0xff] %vm480, %v904
      %993 = vst.msk [vmem:[%s979 + $0x99] sm:$0xff] %vm480, %v905
      %994 = vst.msk [vmem:[%s979 + $0xa9] sm:$0xff] %vm480, %v906
      %995 = vst.msk [vmem:[%s979 + $0xb1] sm:$0xff] %vm480, %v907
      %996 = vst.msk [vmem:[%s979 + $0xc1] sm:$0xff] %vm480, %v908
      %997 = vst.msk [vmem:[%s979 + $0xc9] sm:$0xff] %vm480, %v909
      %998 = vst.msk [vmem:[%s979 + $0xd9] sm:$0xff] %vm480, %v910
      %999 = vst.msk [vmem:[%s979 + $0xe1] sm:$0xff] %vm480, %v911
      %1000 = vst.msk [vmem:[%s979 + $0xf1] sm:$0xff] %vm480, %v912
      %1001 = vst.msk [vmem:[%s979 + $0xf9] sm:$0xff] %vm480, %v913
      %1002 = vst.msk [vmem:[%s979 + $0x109] sm:$0xff] %vm480, %v914
      %1003 = vst.msk [vmem:[%s979 + $0x111] sm:$0xff] %vm480, %v915
      %1004 = vst.msk [vmem:[%s979 + $0x121] sm:$0xff] %vm480, %v916
      %1005 = vst.msk [vmem:[%s979 + $0x129] sm:$0xff] %vm480, %v917
      %1006 = vst.msk [vmem:[%s979 + $0x139] sm:$0xff] %vm480, %v918
      %1007 = vst.msk [vmem:[%s979 + $0x141] sm:$0xff] %vm480, %v919
      %1008 = vst.msk [vmem:[%s979 + $0x151] sm:$0xff] %vm480, %v920
      %1009 = vst.msk [vmem:[%s979 + $0x159] sm:$0xff] %vm480, %v921
      %1010 = vst.msk [vmem:[%s979 + $0x169] sm:$0xff] %vm480, %v922
      %1011 = vst.msk [vmem:[%s979 + $0x171] sm:$0xff] %vm480, %v923
      %v1012 = vld [vmem:[#allocation2] sm:$0xff]
      %v1013 = vld [vmem:[#allocation2 + $0x8] sm:$0xff]
      %v1014 = vld [vmem:[#allocation2 + $0x18] sm:$0xff]
      %v1015 = vld [vmem:[#allocation2 + $0x20] sm:$0xff]
      %v1016 = vld [vmem:[#allocation2 + $0x30] sm:$0xff]
      %v1017 = vld [vmem:[#allocation2 + $0x38] sm:$0xff]
      %v1018 = vld [vmem:[#allocation2 + $0x48] sm:$0xff]
      %v1019 = vld [vmem:[#allocation2 + $0x50] sm:$0xff]
      %v1020 = vld [vmem:[#allocation2 + $0x60] sm:$0xff]
      %v1021 = vld [vmem:[#allocation2 + $0x68] sm:$0xff]
      %v1022 = vld [vmem:[#allocation2 + $0x78] sm:$0xff]
      %v1023 = vld [vmem:[#allocation2 + $0x80] sm:$0xff]
      %v1024 = vld [vmem:[#allocation2 + $0x90] sm:$0xff]
      %v1025 = vld [vmem:[#allocation2 + $0x98] sm:$0xff]
      %v1026 = vld [vmem:[#allocation2 + $0xa8] sm:$0xff]
      %v1027 = vld [vmem:[#allocation2 + $0xb0] sm:$0xff]
      %v1028 = vld [vmem:[#allocation2 + $0xc0] sm:$0xff]
      %v1029 = vld [vmem:[#allocation2 + $0xc8] sm:$0xff]
      %v1030 = vld [vmem:[#allocation2 + $0xd8] sm:$0xff]
      %v1031 = vld [vmem:[#allocation2 + $0xe0] sm:$0xff]
      %v1032 = vld [vmem:[#allocation2 + $0xf0] sm:$0xff]
      %v1033 = vld [vmem:[#allocation2 + $0xf8] sm:$0xff]
      %v1034 = vld [vmem:[#allocation2 + $0x108] sm:$0xff]
      %v1035 = vld [vmem:[#allocation2 + $0x110] sm:$0xff]
      %v1036 = vld [vmem:[#allocation2 + $0x120] sm:$0xff]
      %v1037 = vld [vmem:[#allocation2 + $0x128] sm:$0xff]
      %v1038 = vld [vmem:[#allocation2 + $0x138] sm:$0xff]
      %v1039 = vld [vmem:[#allocation2 + $0x140] sm:$0xff]
      %v1040 = vld [vmem:[#allocation2 + $0x150] sm:$0xff]
      %v1041 = vld [vmem:[#allocation2 + $0x158] sm:$0xff]
      %v1042 = vld [vmem:[#allocation2 + $0x168] sm:$0xff]
      %v1043 = vld [vmem:[#allocation2 + $0x170] sm:$0xff]
      %1044 = vst.msk [vmem:[#allocation5] sm:$0xff] %vm480, %v1012
      %1045 = vst.msk [vmem:[#allocation5 + $0x8] sm:$0xff] %vm480, %v1013
      %1046 = vst.msk [vmem:[#allocation5 + $0x10] sm:$0xff] %vm480, %v1014
      %1047 = vst.msk [vmem:[#allocation5 + $0x18] sm:$0xff] %vm480, %v1015
      %1048 = vst.msk [vmem:[#allocation5 + $0x20] sm:$0xff] %vm480, %v1016
      %1049 = vst.msk [vmem:[#allocation5 + $0x28] sm:$0xff] %vm480, %v1017
      %1050 = vst.msk [vmem:[#allocation5 + $0x30] sm:$0xff] %vm480, %v1018
      %1051 = vst.msk [vmem:[#allocation5 + $0x38] sm:$0xff] %vm480, %v1019
      %1052 = vst.msk [vmem:[#allocation5 + $0x40] sm:$0xff] %vm480, %v1020
      %1053 = vst.msk [vmem:[#allocation5 + $0x48] sm:$0xff] %vm480, %v1021
      %1054 = vst.msk [vmem:[#allocation5 + $0x50] sm:$0xff] %vm480, %v1022
      %1055 = vst.msk [vmem:[#allocation5 + $0x58] sm:$0xff] %vm480, %v1023
      %1056 = vst.msk [vmem:[#allocation5 + $0x60] sm:$0xff] %vm480, %v1024
      %1057 = vst.msk [vmem:[#allocation5 + $0x68] sm:$0xff] %vm480, %v1025
      %1058 = vst.msk [vmem:[#allocation5 + $0x70] sm:$0xff] %vm480, %v1026
      %1059 = vst.msk [vmem:[#allocation5 + $0x78] sm:$0xff] %vm480, %v1027
      %1060 = vst.msk [vmem:[#allocation5 + $0x80] sm:$0xff] %vm480, %v1028
      %1061 = vst.msk [vmem:[#allocation5 + $0x88] sm:$0xff] %vm480, %v1029
      %1062 = vst.msk [vmem:[#allocation5 + $0x90] sm:$0xff] %vm480, %v1030
      %1063 = vst.msk [vmem:[#allocation5 + $0x98] sm:$0xff] %vm480, %v1031
      %1064 = vst.msk [vmem:[#allocation5 + $0xa0] sm:$0xff] %vm480, %v1032
      %1065 = vst.msk [vmem:[#allocation5 + $0xa8] sm:$0xff] %vm480, %v1033
      %1066 = vst.msk [vmem:[#allocation5 + $0xb0] sm:$0xff] %vm480, %v1034
      %1067 = vst.msk [vmem:[#allocation5 + $0xb8] sm:$0xff] %vm480, %v1035
      %1068 = vst.msk [vmem:[#allocation5 + $0xc0] sm:$0xff] %vm480, %v1036
      %1069 = vst.msk [vmem:[#allocation5 + $0xc8] sm:$0xff] %vm480, %v1037
      %1070 = vst.msk [vmem:[#allocation5 + $0xd0] sm:$0xff] %vm480, %v1038
      %1071 = vst.msk [vmem:[#allocation5 + $0xd8] sm:$0xff] %vm480, %v1039
      %1072 = vst.msk [vmem:[#allocation5 + $0xe0] sm:$0xff] %vm480, %v1040
      %1073 = vst.msk [vmem:[#allocation5 + $0xe8] sm:$0xff] %vm480, %v1041
      %1074 = vst.msk [vmem:[#allocation5 + $0xf0] sm:$0xff] %vm480, %v1042
      %1075 = vst.msk [vmem:[#allocation5 + $0xf8] sm:$0xff] %vm480, %v1043
      %v1076 = vld [vmem:[#allocation2 + $0x1] sm:$0xff]
      %v1077 = vld [vmem:[#allocation2 + $0x9] sm:$0xff]
      %v1078 = vld [vmem:[#allocation2 + $0x19] sm:$0xff]
      %v1079 = vld [vmem:[#allocation2 + $0x21] sm:$0xff]
      %v1080 = vld [vmem:[#allocation2 + $0x31] sm:$0xff]
      %v1081 = vld [vmem:[#allocation2 + $0x39] sm:$0xff]
      %v1082 = vld [vmem:[#allocation2 + $0x49] sm:$0xff]
      %v1083 = vld [vmem:[#allocation2 + $0x51] sm:$0xff]
      %v1084 = vld [vmem:[#allocation2 + $0x61] sm:$0xff]
      %v1085 = vld [vmem:[#allocation2 + $0x69] sm:$0xff]
      %v1086 = vld [vmem:[#allocation2 + $0x79] sm:$0xff]
      %v1087 = vld [vmem:[#allocation2 + $0x81] sm:$0xff]
      %v1088 = vld [vmem:[#allocation2 + $0x91] sm:$0xff]
      %v1089 = vld [vmem:[#allocation2 + $0x99] sm:$0xff]
      %v1090 = vld [vmem:[#allocation2 + $0xa9] sm:$0xff]
      %v1091 = vld [vmem:[#allocation2 + $0xb1] sm:$0xff]
      %v1092 = vld [vmem:[#allocation2 + $0xc1] sm:$0xff]
      %v1093 = vld [vmem:[#allocation2 + $0xc9] sm:$0xff]
      %v1094 = vld [vmem:[#allocation2 + $0xd9] sm:$0xff]
      %v1095 = vld [vmem:[#allocation2 + $0xe1] sm:$0xff]
      %v1096 = vld [vmem:[#allocation2 + $0xf1] sm:$0xff]
      %v1097 = vld [vmem:[#allocation2 + $0xf9] sm:$0xff]
      %v1098 = vld [vmem:[#allocation2 + $0x109] sm:$0xff]
      %v1099 = vld [vmem:[#allocation2 + $0x111] sm:$0xff]
      %v1100 = vld [vmem:[#allocation2 + $0x121] sm:$0xff]
      %v1101 = vld [vmem:[#allocation2 + $0x129] sm:$0xff]
      %v1102 = vld [vmem:[#allocation2 + $0x139] sm:$0xff]
      %v1103 = vld [vmem:[#allocation2 + $0x141] sm:$0xff]
      %v1104 = vld [vmem:[#allocation2 + $0x151] sm:$0xff]
      %v1105 = vld [vmem:[#allocation2 + $0x159] sm:$0xff]
      %v1106 = vld [vmem:[#allocation2 + $0x169] sm:$0xff]
      %v1107 = vld [vmem:[#allocation2 + $0x171] sm:$0xff]
      %1140 = vrot.lane.b32.xlu0 %v1076, 4
      %v1141 = vpop.permute.xlu0 %1140
      %1142 = vrot.lane.b32.xlu0 %v1077, 4
      %v1143 = vpop.permute.xlu0 %1142
      %1144 = vrot.lane.b32.xlu0 %v1078, 4
      %v1145 = vpop.permute.xlu0 %1144
      %1146 = vrot.lane.b32.xlu0 %v1079, 4
      %v1147 = vpop.permute.xlu0 %1146
      %1148 = vrot.lane.b32.xlu0 %v1080, 4
      %v1149 = vpop.permute.xlu0 %1148
      %1150 = vrot.lane.b32.xlu0 %v1081, 4
      %v1151 = vpop.permute.xlu0 %1150
      %1152 = vrot.lane.b32.xlu0 %v1082, 4
      %v1153 = vpop.permute.xlu0 %1152
      %1154 = vrot.lane.b32.xlu0 %v1083, 4
      %v1155 = vpop.permute.xlu0 %1154
      %1156 = vrot.lane.b32.xlu0 %v1084, 4
      %v1157 = vpop.permute.xlu0 %1156
      %1158 = vrot.lane.b32.xlu0 %v1085, 4
      %v1159 = vpop.permute.xlu0 %1158
      %1160 = vrot.lane.b32.xlu0 %v1086, 4
      %v1161 = vpop.permute.xlu0 %1160
      %1162 = vrot.lane.b32.xlu0 %v1087, 4
      %v1163 = vpop.permute.xlu0 %1162
      %1164 = vrot.lane.b32.xlu0 %v1088, 4
      %v1165 = vpop.permute.xlu0 %1164
      %1166 = vrot.lane.b32.xlu0 %v1089, 4
      %v1167 = vpop.permute.xlu0 %1166
      %1168 = vrot.lane.b32.xlu0 %v1090, 4
      %v1169 = vpop.permute.xlu0 %1168
      %1170 = vrot.lane.b32.xlu0 %v1091, 4
      %v1171 = vpop.permute.xlu0 %1170
      %1172 = vrot.lane.b32.xlu0 %v1092, 4
      %v1173 = vpop.permute.xlu0 %1172
      %1174 = vrot.lane.b32.xlu0 %v1093, 4
      %v1175 = vpop.permute.xlu0 %1174
      %1176 = vrot.lane.b32.xlu0 %v1094, 4
      %v1177 = vpop.permute.xlu0 %1176
      %1178 = vrot.lane.b32.xlu0 %v1095, 4
      %v1179 = vpop.permute.xlu0 %1178
      %1180 = vrot.lane.b32.xlu0 %v1096, 4
      %v1181 = vpop.permute.xlu0 %1180
      %1182 = vrot.lane.b32.xlu0 %v1097, 4
      %v1183 = vpop.permute.xlu0 %1182
      %1184 = vrot.lane.b32.xlu0 %v1098, 4
      %v1185 = vpop.permute.xlu0 %1184
      %1186 = vrot.lane.b32.xlu0 %v1099, 4
      %v1187 = vpop.permute.xlu0 %1186
      %1188 = vrot.lane.b32.xlu0 %v1100, 4
      %v1189 = vpop.permute.xlu0 %1188
      %1190 = vrot.lane.b32.xlu0 %v1101, 4
      %v1191 = vpop.permute.xlu0 %1190
      %1192 = vrot.lane.b32.xlu0 %v1102, 4
      %v1193 = vpop.permute.xlu0 %1192
      %1194 = vrot.lane.b32.xlu0 %v1103, 4
      %v1195 = vpop.permute.xlu0 %1194
      %1196 = vrot.lane.b32.xlu0 %v1104, 4
      %v1197 = vpop.permute.xlu0 %1196
      %1198 = vrot.lane.b32.xlu0 %v1105, 4
      %v1199 = vpop.permute.xlu0 %1198
      %1200 = vrot.lane.b32.xlu0 %v1106, 4
      %v1201 = vpop.permute.xlu0 %1200
      %1202 = vrot.lane.b32.xlu0 %v1107, 4
      %v1203 = vpop.permute.xlu0 %1202
      %vm1236 = vcmask 64544
      %1237 = vst.msk [vmem:[#allocation5] sm:$0xff] %vm1236, %v1141
      %1238 = vst.msk [vmem:[#allocation5 + $0x8] sm:$0xff] %vm1236, %v1143
      %1239 = vst.msk [vmem:[#allocation5 + $0x10] sm:$0xff] %vm1236, %v1145
      %1240 = vst.msk [vmem:[#allocation5 + $0x18] sm:$0xff] %vm1236, %v1147
      %1241 = vst.msk [vmem:[#allocation5 + $0x20] sm:$0xff] %vm1236, %v1149
      %1242 = vst.msk [vmem:[#allocation5 + $0x28] sm:$0xff] %vm1236, %v1151
      %1243 = vst.msk [vmem:[#allocation5 + $0x30] sm:$0xff] %vm1236, %v1153
      %1244 = vst.msk [vmem:[#allocation5 + $0x38] sm:$0xff] %vm1236, %v1155
      %1245 = vst.msk [vmem:[#allocation5 + $0x40] sm:$0xff] %vm1236, %v1157
      %1246 = vst.msk [vmem:[#allocation5 + $0x48] sm:$0xff] %vm1236, %v1159
      %1247 = vst.msk [vmem:[#allocation5 + $0x50] sm:$0xff] %vm1236, %v1161
      %1248 = vst.msk [vmem:[#allocation5 + $0x58] sm:$0xff] %vm1236, %v1163
      %1249 = vst.msk [vmem:[#allocation5 + $0x60] sm:$0xff] %vm1236, %v1165
      %1250 = vst.msk [vmem:[#allocation5 + $0x68] sm:$0xff] %vm1236, %v1167
      %1251 = vst.msk [vmem:[#allocation5 + $0x70] sm:$0xff] %vm1236, %v1169
      %1252 = vst.msk [vmem:[#allocation5 + $0x78] sm:$0xff] %vm1236, %v1171
      %1253 = vst.msk [vmem:[#allocation5 + $0x80] sm:$0xff] %vm1236, %v1173
      %1254 = vst.msk [vmem:[#allocation5 + $0x88] sm:$0xff] %vm1236, %v1175
      %1255 = vst.msk [vmem:[#allocation5 + $0x90] sm:$0xff] %vm1236, %v1177
      %1256 = vst.msk [vmem:[#allocation5 + $0x98] sm:$0xff] %vm1236, %v1179
      %1257 = vst.msk [vmem:[#allocation5 + $0xa0] sm:$0xff] %vm1236, %v1181
      %1258 = vst.msk [vmem:[#allocation5 + $0xa8] sm:$0xff] %vm1236, %v1183
      %1259 = vst.msk [vmem:[#allocation5 + $0xb0] sm:$0xff] %vm1236, %v1185
      %1260 = vst.msk [vmem:[#allocation5 + $0xb8] sm:$0xff] %vm1236, %v1187
      %1261 = vst.msk [vmem:[#allocation5 + $0xc0] sm:$0xff] %vm1236, %v1189
      %1262 = vst.msk [vmem:[#allocation5 + $0xc8] sm:$0xff] %vm1236, %v1191
      %1263 = vst.msk [vmem:[#allocation5 + $0xd0] sm:$0xff] %vm1236, %v1193
      %1264 = vst.msk [vmem:[#allocation5 + $0xd8] sm:$0xff] %vm1236, %v1195
      %1265 = vst.msk [vmem:[#allocation5 + $0xe0] sm:$0xff] %vm1236, %v1197
      %1266 = vst.msk [vmem:[#allocation5 + $0xe8] sm:$0xff] %vm1236, %v1199
      %1267 = vst.msk [vmem:[#allocation5 + $0xf0] sm:$0xff] %vm1236, %v1201
      %1268 = vst.msk [vmem:[#allocation5 + $0xf8] sm:$0xff] %vm1236, %v1203
      %v1269 = vld [vmem:[#allocation2 + $0x2] sm:$0xff]
      %v1270 = vld [vmem:[#allocation2 + $0xa] sm:$0xff]
      %v1271 = vld [vmem:[#allocation2 + $0x1a] sm:$0xff]
      %v1272 = vld [vmem:[#allocation2 + $0x22] sm:$0xff]
      %v1273 = vld [vmem:[#allocation2 + $0x32] sm:$0xff]
      %v1274 = vld [vmem:[#allocation2 + $0x3a] sm:$0xff]
      %v1275 = vld [vmem:[#allocation2 + $0x4a] sm:$0xff]
      %v1276 = vld [vmem:[#allocation2 + $0x52] sm:$0xff]
      %v1277 = vld [vmem:[#allocation2 + $0x62] sm:$0xff]
      %v1278 = vld [vmem:[#allocation2 + $0x6a] sm:$0xff]
      %v1279 = vld [vmem:[#allocation2 + $0x7a] sm:$0xff]
      %v1280 = vld [vmem:[#allocation2 + $0x82] sm:$0xff]
      %v1281 = vld [vmem:[#allocation2 + $0x92] sm:$0xff]
      %v1282 = vld [vmem:[#allocation2 + $0x9a] sm:$0xff]
      %v1283 = vld [vmem:[#allocation2 + $0xaa] sm:$0xff]
      %v1284 = vld [vmem:[#allocation2 + $0xb2] sm:$0xff]
      %v1285 = vld [vmem:[#allocation2 + $0xc2] sm:$0xff]
      %v1286 = vld [vmem:[#allocation2 + $0xca] sm:$0xff]
      %v1287 = vld [vmem:[#allocation2 + $0xda] sm:$0xff]
      %v1288 = vld [vmem:[#allocation2 + $0xe2] sm:$0xff]
      %v1289 = vld [vmem:[#allocation2 + $0xf2] sm:$0xff]
      %v1290 = vld [vmem:[#allocation2 + $0xfa] sm:$0xff]
      %v1291 = vld [vmem:[#allocation2 + $0x10a] sm:$0xff]
      %v1292 = vld [vmem:[#allocation2 + $0x112] sm:$0xff]
      %v1293 = vld [vmem:[#allocation2 + $0x122] sm:$0xff]
      %v1294 = vld [vmem:[#allocation2 + $0x12a] sm:$0xff]
      %v1295 = vld [vmem:[#allocation2 + $0x13a] sm:$0xff]
      %v1296 = vld [vmem:[#allocation2 + $0x142] sm:$0xff]
      %v1297 = vld [vmem:[#allocation2 + $0x152] sm:$0xff]
      %v1298 = vld [vmem:[#allocation2 + $0x15a] sm:$0xff]
      %v1299 = vld [vmem:[#allocation2 + $0x16a] sm:$0xff]
      %v1300 = vld [vmem:[#allocation2 + $0x172] sm:$0xff]
      %1333 = vrot.lane.b32.xlu0 %v1269, 8
      %v1334 = vpop.permute.xlu0 %1333
      %1335 = vrot.lane.b32.xlu0 %v1270, 8
      %v1336 = vpop.permute.xlu0 %1335
      %1337 = vrot.lane.b32.xlu0 %v1271, 8
      %v1338 = vpop.permute.xlu0 %1337
      %1339 = vrot.lane.b32.xlu0 %v1272, 8
      %v1340 = vpop.permute.xlu0 %1339
      %1341 = vrot.lane.b32.xlu0 %v1273, 8
      %v1342 = vpop.permute.xlu0 %1341
      %1343 = vrot.lane.b32.xlu0 %v1274, 8
      %v1344 = vpop.permute.xlu0 %1343
      %1345 = vrot.lane.b32.xlu0 %v1275, 8
      %v1346 = vpop.permute.xlu0 %1345
      %1347 = vrot.lane.b32.xlu0 %v1276, 8
      %v1348 = vpop.permute.xlu0 %1347
      %1349 = vrot.lane.b32.xlu0 %v1277, 8
      %v1350 = vpop.permute.xlu0 %1349
      %1351 = vrot.lane.b32.xlu0 %v1278, 8
      %v1352 = vpop.permute.xlu0 %1351
      %1353 = vrot.lane.b32.xlu0 %v1279, 8
      %v1354 = vpop.permute.xlu0 %1353
      %1355 = vrot.lane.b32.xlu0 %v1280, 8
      %v1356 = vpop.permute.xlu0 %1355
      %1357 = vrot.lane.b32.xlu0 %v1281, 8
      %v1358 = vpop.permute.xlu0 %1357
      %1359 = vrot.lane.b32.xlu0 %v1282, 8
      %v1360 = vpop.permute.xlu0 %1359
      %1361 = vrot.lane.b32.xlu0 %v1283, 8
      %v1362 = vpop.permute.xlu0 %1361
      %1363 = vrot.lane.b32.xlu0 %v1284, 8
      %v1364 = vpop.permute.xlu0 %1363
      %1365 = vrot.lane.b32.xlu0 %v1285, 8
      %v1366 = vpop.permute.xlu0 %1365
      %1367 = vrot.lane.b32.xlu0 %v1286, 8
      %v1368 = vpop.permute.xlu0 %1367
      %1369 = vrot.lane.b32.xlu0 %v1287, 8
      %v1370 = vpop.permute.xlu0 %1369
      %1371 = vrot.lane.b32.xlu0 %v1288, 8
      %v1372 = vpop.permute.xlu0 %1371
      %1373 = vrot.lane.b32.xlu0 %v1289, 8
      %v1374 = vpop.permute.xlu0 %1373
      %1375 = vrot.lane.b32.xlu0 %v1290, 8
      %v1376 = vpop.permute.xlu0 %1375
      %1377 = vrot.lane.b32.xlu0 %v1291, 8
      %v1378 = vpop.permute.xlu0 %1377
      %1379 = vrot.lane.b32.xlu0 %v1292, 8
      %v1380 = vpop.permute.xlu0 %1379
      %1381 = vrot.lane.b32.xlu0 %v1293, 8
      %v1382 = vpop.permute.xlu0 %1381
      %1383 = vrot.lane.b32.xlu0 %v1294, 8
      %v1384 = vpop.permute.xlu0 %1383
      %1385 = vrot.lane.b32.xlu0 %v1295, 8
      %v1386 = vpop.permute.xlu0 %1385
      %1387 = vrot.lane.b32.xlu0 %v1296, 8
      %v1388 = vpop.permute.xlu0 %1387
      %1389 = vrot.lane.b32.xlu0 %v1297, 8
      %v1390 = vpop.permute.xlu0 %1389
      %1391 = vrot.lane.b32.xlu0 %v1298, 8
      %v1392 = vpop.permute.xlu0 %1391
      %1393 = vrot.lane.b32.xlu0 %v1299, 8
      %v1394 = vpop.permute.xlu0 %1393
      %1395 = vrot.lane.b32.xlu0 %v1300, 8
      %v1396 = vpop.permute.xlu0 %1395
      %vm1429 = vcmask 97344
      %1430 = vst.msk [vmem:[#allocation5] sm:$0xff] %vm1429, %v1334
      %1431 = vst.msk [vmem:[#allocation5 + $0x8] sm:$0xff] %vm1429, %v1336
      %1432 = vst.msk [vmem:[#allocation5 + $0x10] sm:$0xff] %vm1429, %v1338
      %1433 = vst.msk [vmem:[#allocation5 + $0x18] sm:$0xff] %vm1429, %v1340
      %1434 = vst.msk [vmem:[#allocation5 + $0x20] sm:$0xff] %vm1429, %v1342
      %1435 = vst.msk [vmem:[#allocation5 + $0x28] sm:$0xff] %vm1429, %v1344
      %1436 = vst.msk [vmem:[#allocation5 + $0x30] sm:$0xff] %vm1429, %v1346
      %1437 = vst.msk [vmem:[#allocation5 + $0x38] sm:$0xff] %vm1429, %v1348
      %1438 = vst.msk [vmem:[#allocation5 + $0x40] sm:$0xff] %vm1429, %v1350
      %1439 = vst.msk [vmem:[#allocation5 + $0x48] sm:$0xff] %vm1429, %v1352
      %1440 = vst.msk [vmem:[#allocation5 + $0x50] sm:$0xff] %vm1429, %v1354
      %1441 = vst.msk [vmem:[#allocation5 + $0x58] sm:$0xff] %vm1429, %v1356
      %1442 = vst.msk [vmem:[#allocation5 + $0x60] sm:$0xff] %vm1429, %v1358
      %1443 = vst.msk [vmem:[#allocation5 + $0x68] sm:$0xff] %vm1429, %v1360
      %1444 = vst.msk [vmem:[#allocation5 + $0x70] sm:$0xff] %vm1429, %v1362
      %1445 = vst.msk [vmem:[#allocation5 + $0x78] sm:$0xff] %vm1429, %v1364
      %1446 = vst.msk [vmem:[#allocation5 + $0x80] sm:$0xff] %vm1429, %v1366
      %1447 = vst.msk [vmem:[#allocation5 + $0x88] sm:$0xff] %vm1429, %v1368
      %1448 = vst.msk [vmem:[#allocation5 + $0x90] sm:$0xff] %vm1429, %v1370
      %1449 = vst.msk [vmem:[#allocation5 + $0x98] sm:$0xff] %vm1429, %v1372
      %1450 = vst.msk [vmem:[#allocation5 + $0xa0] sm:$0xff] %vm1429, %v1374
      %1451 = vst.msk [vmem:[#allocation5 + $0xa8] sm:$0xff] %vm1429, %v1376
      %1452 = vst.msk [vmem:[#allocation5 + $0xb0] sm:$0xff] %vm1429, %v1378
      %1453 = vst.msk [vmem:[#allocation5 + $0xb8] sm:$0xff] %vm1429, %v1380
      %1454 = vst.msk [vmem:[#allocation5 + $0xc0] sm:$0xff] %vm1429, %v1382
      %1455 = vst.msk [vmem:[#allocation5 + $0xc8] sm:$0xff] %vm1429, %v1384
      %1456 = vst.msk [vmem:[#allocation5 + $0xd0] sm:$0xff] %vm1429, %v1386
      %1457 = vst.msk [vmem:[#allocation5 + $0xd8] sm:$0xff] %vm1429, %v1388
      %1458 = vst.msk [vmem:[#allocation5 + $0xe0] sm:$0xff] %vm1429, %v1390
      %1459 = vst.msk [vmem:[#allocation5 + $0xe8] sm:$0xff] %vm1429, %v1392
      %1460 = vst.msk [vmem:[#allocation5 + $0xf0] sm:$0xff] %vm1429, %v1394
      %1461 = vst.msk [vmem:[#allocation5 + $0xf8] sm:$0xff] %vm1429, %v1396
      %v1462 = vld [vmem:[%s979] sm:$0xff]
      %v1463 = vld [vmem:[%s979 + $0x8] sm:$0xff]
      %v1464 = vld [vmem:[%s979 + $0x18] sm:$0xff]
      %v1465 = vld [vmem:[%s979 + $0x20] sm:$0xff]
      %v1466 = vld [vmem:[%s979 + $0x30] sm:$0xff]
      %v1467 = vld [vmem:[%s979 + $0x38] sm:$0xff]
      %v1468 = vld [vmem:[%s979 + $0x48] sm:$0xff]
      %v1469 = vld [vmem:[%s979 + $0x50] sm:$0xff]
      %v1470 = vld [vmem:[%s979 + $0x60] sm:$0xff]
      %v1471 = vld [vmem:[%s979 + $0x68] sm:$0xff]
      %v1472 = vld [vmem:[%s979 + $0x78] sm:$0xff]
      %v1473 = vld [vmem:[%s979 + $0x80] sm:$0xff]
      %v1474 = vld [vmem:[%s979 + $0x90] sm:$0xff]
      %v1475 = vld [vmem:[%s979 + $0x98] sm:$0xff]
      %v1476 = vld [vmem:[%s979 + $0xa8] sm:$0xff]
      %v1477 = vld [vmem:[%s979 + $0xb0] sm:$0xff]
      %v1478 = vld [vmem:[%s979 + $0xc0] sm:$0xff]
      %v1479 = vld [vmem:[%s979 + $0xc8] sm:$0xff]
      %v1480 = vld [vmem:[%s979 + $0xd8] sm:$0xff]
      %v1481 = vld [vmem:[%s979 + $0xe0] sm:$0xff]
      %v1482 = vld [vmem:[%s979 + $0xf0] sm:$0xff]
      %v1483 = vld [vmem:[%s979 + $0xf8] sm:$0xff]
      %v1484 = vld [vmem:[%s979 + $0x108] sm:$0xff]
      %v1485 = vld [vmem:[%s979 + $0x110] sm:$0xff]
      %v1486 = vld [vmem:[%s979 + $0x120] sm:$0xff]
      %v1487 = vld [vmem:[%s979 + $0x128] sm:$0xff]
      %v1488 = vld [vmem:[%s979 + $0x138] sm:$0xff]
      %v1489 = vld [vmem:[%s979 + $0x140] sm:$0xff]
      %v1490 = vld [vmem:[%s979 + $0x150] sm:$0xff]
      %v1491 = vld [vmem:[%s979 + $0x158] sm:$0xff]
      %v1492 = vld [vmem:[%s979 + $0x168] sm:$0xff]
      %v1493 = vld [vmem:[%s979 + $0x170] sm:$0xff]
      %1526 = vrot.lane.b32.xlu0 %v1462, 12
      %v1527 = vpop.permute.xlu0 %1526
      %1528 = vrot.lane.b32.xlu0 %v1463, 12
      %v1529 = vpop.permute.xlu0 %1528
      %1530 = vrot.lane.b32.xlu0 %v1464, 12
      %v1531 = vpop.permute.xlu0 %1530
      %1532 = vrot.lane.b32.xlu0 %v1465, 12
      %v1533 = vpop.permute.xlu0 %1532
      %1534 = vrot.lane.b32.xlu0 %v1466, 12
      %v1535 = vpop.permute.xlu0 %1534
      %1536 = vrot.lane.b32.xlu0 %v1467, 12
      %v1537 = vpop.permute.xlu0 %1536
      %1538 = vrot.lane.b32.xlu0 %v1468, 12
      %v1539 = vpop.permute.xlu0 %1538
      %1540 = vrot.lane.b32.xlu0 %v1469, 12
      %v1541 = vpop.permute.xlu0 %1540
      %1542 = vrot.lane.b32.xlu0 %v1470, 12
      %v1543 = vpop.permute.xlu0 %1542
      %1544 = vrot.lane.b32.xlu0 %v1471, 12
      %v1545 = vpop.permute.xlu0 %1544
      %1546 = vrot.lane.b32.xlu0 %v1472, 12
      %v1547 = vpop.permute.xlu0 %1546
      %1548 = vrot.lane.b32.xlu0 %v1473, 12
      %v1549 = vpop.permute.xlu0 %1548
      %1550 = vrot.lane.b32.xlu0 %v1474, 12
      %v1551 = vpop.permute.xlu0 %1550
      %1552 = vrot.lane.b32.xlu0 %v1475, 12
      %v1553 = vpop.permute.xlu0 %1552
      %1554 = vrot.lane.b32.xlu0 %v1476, 12
      %v1555 = vpop.permute.xlu0 %1554
      %1556 = vrot.lane.b32.xlu0 %v1477, 12
      %v1557 = vpop.permute.xlu0 %1556
      %1558 = vrot.lane.b32.xlu0 %v1478, 12
      %v1559 = vpop.permute.xlu0 %1558
      %1560 = vrot.lane.b32.xlu0 %v1479, 12
      %v1561 = vpop.permute.xlu0 %1560
      %1562 = vrot.lane.b32.xlu0 %v1480, 12
      %v1563 = vpop.permute.xlu0 %1562
      %1564 = vrot.lane.b32.xlu0 %v1481, 12
      %v1565 = vpop.permute.xlu0 %1564
      %1566 = vrot.lane.b32.xlu0 %v1482, 12
      %v1567 = vpop.permute.xlu0 %1566
      %1568 = vrot.lane.b32.xlu0 %v1483, 12
      %v1569 = vpop.permute.xlu0 %1568
      %1570 = vrot.lane.b32.xlu0 %v1484, 12
      %v1571 = vpop.permute.xlu0 %1570
      %1572 = vrot.lane.b32.xlu0 %v1485, 12
      %v1573 = vpop.permute.xlu0 %1572
      %1574 = vrot.lane.b32.xlu0 %v1486, 12
      %v1575 = vpop.permute.xlu0 %1574
      %1576 = vrot.lane.b32.xlu0 %v1487, 12
      %v1577 = vpop.permute.xlu0 %1576
      %1578 = vrot.lane.b32.xlu0 %v1488, 12
      %v1579 = vpop.permute.xlu0 %1578
      %1580 = vrot.lane.b32.xlu0 %v1489, 12
      %v1581 = vpop.permute.xlu0 %1580
      %1582 = vrot.lane.b32.xlu0 %v1490, 12
      %v1583 = vpop.permute.xlu0 %1582
      %1584 = vrot.lane.b32.xlu0 %v1491, 12
      %v1585 = vpop.permute.xlu0 %1584
      %1586 = vrot.lane.b32.xlu0 %v1492, 12
      %v1587 = vpop.permute.xlu0 %1586
      %1588 = vrot.lane.b32.xlu0 %v1493, 12
      %v1589 = vpop.permute.xlu0 %1588
      %vm1622 = vcmask 130144
      %1623 = vst.msk [vmem:[#allocation5] sm:$0xff] %vm1622, %v1527
      %1624 = vst.msk [vmem:[#allocation5 + $0x8] sm:$0xff] %vm1622, %v1529
      %1625 = vst.msk [vmem:[#allocation5 + $0x10] sm:$0xff] %vm1622, %v1531
      %1626 = vst.msk [vmem:[#allocation5 + $0x18] sm:$0xff] %vm1622, %v1533
      %1627 = vst.msk [vmem:[#allocation5 + $0x20] sm:$0xff] %vm1622, %v1535
      %1628 = vst.msk [vmem:[#allocation5 + $0x28] sm:$0xff] %vm1622, %v1537
      %1629 = vst.msk [vmem:[#allocation5 + $0x30] sm:$0xff] %vm1622, %v1539
      %1630 = vst.msk [vmem:[#allocation5 + $0x38] sm:$0xff] %vm1622, %v1541
      %1631 = vst.msk [vmem:[#allocation5 + $0x40] sm:$0xff] %vm1622, %v1543
      %1632 = vst.msk [vmem:[#allocation5 + $0x48] sm:$0xff] %vm1622, %v1545
      %1633 = vst.msk [vmem:[#allocation5 + $0x50] sm:$0xff] %vm1622, %v1547
      %1634 = vst.msk [vmem:[#allocation5 + $0x58] sm:$0xff] %vm1622, %v1549
      %1635 = vst.msk [vmem:[#allocation5 + $0x60] sm:$0xff] %vm1622, %v1551
      %1636 = vst.msk [vmem:[#allocation5 + $0x68] sm:$0xff] %vm1622, %v1553
      %1637 = vst.msk [vmem:[#allocation5 + $0x70] sm:$0xff] %vm1622, %v1555
      %1638 = vst.msk [vmem:[#allocation5 + $0x78] sm:$0xff] %vm1622, %v1557
      %1639 = vst.msk [vmem:[#allocation5 + $0x80] sm:$0xff] %vm1622, %v1559
      %1640 = vst.msk [vmem:[#allocation5 + $0x88] sm:$0xff] %vm1622, %v1561
      %1641 = vst.msk [vmem:[#allocation5 + $0x90] sm:$0xff] %vm1622, %v1563
      %1642 = vst.msk [vmem:[#allocation5 + $0x98] sm:$0xff] %vm1622, %v1565
      %1643 = vst.msk [vmem:[#allocation5 + $0xa0] sm:$0xff] %vm1622, %v1567
      %1644 = vst.msk [vmem:[#allocation5 + $0xa8] sm:$0xff] %vm1622, %v1569
      %1645 = vst.msk [vmem:[#allocation5 + $0xb0] sm:$0xff] %vm1622, %v1571
      %1646 = vst.msk [vmem:[#allocation5 + $0xb8] sm:$0xff] %vm1622, %v1573
      %1647 = vst.msk [vmem:[#allocation5 + $0xc0] sm:$0xff] %vm1622, %v1575
      %1648 = vst.msk [vmem:[#allocation5 + $0xc8] sm:$0xff] %vm1622, %v1577
      %1649 = vst.msk [vmem:[#allocation5 + $0xd0] sm:$0xff] %vm1622, %v1579
      %1650 = vst.msk [vmem:[#allocation5 + $0xd8] sm:$0xff] %vm1622, %v1581
      %1651 = vst.msk [vmem:[#allocation5 + $0xe0] sm:$0xff] %vm1622, %v1583
      %1652 = vst.msk [vmem:[#allocation5 + $0xe8] sm:$0xff] %vm1622, %v1585
      %1653 = vst.msk [vmem:[#allocation5 + $0xf0] sm:$0xff] %vm1622, %v1587
      %1654 = vst.msk [vmem:[#allocation5 + $0xf8] sm:$0xff] %vm1622, %v1589
      %v1655 = vld [vmem:[%s979 + $0x1] sm:$0xff]
      %v1656 = vld [vmem:[%s979 + $0x9] sm:$0xff]
      %v1657 = vld [vmem:[%s979 + $0x19] sm:$0xff]
      %v1658 = vld [vmem:[%s979 + $0x21] sm:$0xff]
      %v1659 = vld [vmem:[%s979 + $0x31] sm:$0xff]
      %v1660 = vld [vmem:[%s979 + $0x39] sm:$0xff]
      %v1661 = vld [vmem:[%s979 + $0x49] sm:$0xff]
      %v1662 = vld [vmem:[%s979 + $0x51] sm:$0xff]
      %v1663 = vld [vmem:[%s979 + $0x61] sm:$0xff]
      %v1664 = vld [vmem:[%s979 + $0x69] sm:$0xff]
      %v1665 = vld [vmem:[%s979 + $0x79] sm:$0xff]
      %v1666 = vld [vmem:[%s979 + $0x81] sm:$0xff]
      %v1667 = vld [vmem:[%s979 + $0x91] sm:$0xff]
      %v1668 = vld [vmem:[%s979 + $0x99] sm:$0xff]
      %v1669 = vld [vmem:[%s979 + $0xa9] sm:$0xff]
      %v1670 = vld [vmem:[%s979 + $0xb1] sm:$0xff]
      %v1671 = vld [vmem:[%s979 + $0xc1] sm:$0xff]
      %v1672 = vld [vmem:[%s979 + $0xc9] sm:$0xff]
      %v1673 = vld [vmem:[%s979 + $0xd9] sm:$0xff]
      %v1674 = vld [vmem:[%s979 + $0xe1] sm:$0xff]
      %v1675 = vld [vmem:[%s979 + $0xf1] sm:$0xff]
      %v1676 = vld [vmem:[%s979 + $0xf9] sm:$0xff]
      %v1677 = vld [vmem:[%s979 + $0x109] sm:$0xff]
      %v1678 = vld [vmem:[%s979 + $0x111] sm:$0xff]
      %v1679 = vld [vmem:[%s979 + $0x121] sm:$0xff]
      %v1680 = vld [vmem:[%s979 + $0x129] sm:$0xff]
      %v1681 = vld [vmem:[%s979 + $0x139] sm:$0xff]
      %v1682 = vld [vmem:[%s979 + $0x141] sm:$0xff]
      %v1683 = vld [vmem:[%s979 + $0x151] sm:$0xff]
      %v1684 = vld [vmem:[%s979 + $0x159] sm:$0xff]
      %v1685 = vld [vmem:[%s979 + $0x169] sm:$0xff]
      %v1686 = vld [vmem:[%s979 + $0x171] sm:$0xff]
      %1719 = vrot.lane.b32.xlu0 %v1655, 16
      %v1720 = vpop.permute.xlu0 %1719
      %1721 = vrot.lane.b32.xlu0 %v1656, 16
      %v1722 = vpop.permute.xlu0 %1721
      %1723 = vrot.lane.b32.xlu0 %v1657, 16
      %v1724 = vpop.permute.xlu0 %1723
      %1725 = vrot.lane.b32.xlu0 %v1658, 16
      %v1726 = vpop.permute.xlu0 %1725
      %1727 = vrot.lane.b32.xlu0 %v1659, 16
      %v1728 = vpop.permute.xlu0 %1727
      %1729 = vrot.lane.b32.xlu0 %v1660, 16
      %v1730 = vpop.permute.xlu0 %1729
      %1731 = vrot.lane.b32.xlu0 %v1661, 16
      %v1732 = vpop.permute.xlu0 %1731
      %1733 = vrot.lane.b32.xlu0 %v1662, 16
      %v1734 = vpop.permute.xlu0 %1733
      %1735 = vrot.lane.b32.xlu0 %v1663, 16
      %v1736 = vpop.permute.xlu0 %1735
      %1737 = vrot.lane.b32.xlu0 %v1664, 16
      %v1738 = vpop.permute.xlu0 %1737
      %1739 = vrot.lane.b32.xlu0 %v1665, 16
      %v1740 = vpop.permute.xlu0 %1739
      %1741 = vrot.lane.b32.xlu0 %v1666, 16
      %v1742 = vpop.permute.xlu0 %1741
      %1743 = vrot.lane.b32.xlu0 %v1667, 16
      %v1744 = vpop.permute.xlu0 %1743
      %1745 = vrot.lane.b32.xlu0 %v1668, 16
      %v1746 = vpop.permute.xlu0 %1745
      %1747 = vrot.lane.b32.xlu0 %v1669, 16
      %v1748 = vpop.permute.xlu0 %1747
      %1749 = vrot.lane.b32.xlu0 %v1670, 16
      %v1750 = vpop.permute.xlu0 %1749
      %1751 = vrot.lane.b32.xlu0 %v1671, 16
      %v1752 = vpop.permute.xlu0 %1751
      %1753 = vrot.lane.b32.xlu0 %v1672, 16
      %v1754 = vpop.permute.xlu0 %1753
      %1755 = vrot.lane.b32.xlu0 %v1673, 16
      %v1756 = vpop.permute.xlu0 %1755
      %1757 = vrot.lane.b32.xlu0 %v1674, 16
      %v1758 = vpop.permute.xlu0 %1757
      %1759 = vrot.lane.b32.xlu0 %v1675, 16
      %v1760 = vpop.permute.xlu0 %1759
      %1761 = vrot.lane.b32.xlu0 %v1676, 16
      %v1762 = vpop.permute.xlu0 %1761
      %1763 = vrot.lane.b32.xlu0 %v1677, 16
      %v1764 = vpop.permute.xlu0 %1763
      %1765 = vrot.lane.b32.xlu0 %v1678, 16
      %v1766 = vpop.permute.xlu0 %1765
      %1767 = vrot.lane.b32.xlu0 %v1679, 16
      %v1768 = vpop.permute.xlu0 %1767
      %1769 = vrot.lane.b32.xlu0 %v1680, 16
      %v1770 = vpop.permute.xlu0 %1769
      %1771 = vrot.lane.b32.xlu0 %v1681, 16
      %v1772 = vpop.permute.xlu0 %1771
      %1773 = vrot.lane.b32.xlu0 %v1682, 16
      %v1774 = vpop.permute.xlu0 %1773
      %1775 = vrot.lane.b32.xlu0 %v1683, 16
      %v1776 = vpop.permute.xlu0 %1775
      %1777 = vrot.lane.b32.xlu0 %v1684, 16
      %v1778 = vpop.permute.xlu0 %1777
      %1779 = vrot.lane.b32.xlu0 %v1685, 16
      %v1780 = vpop.permute.xlu0 %1779
      %1781 = vrot.lane.b32.xlu0 %v1686, 16
      %v1782 = vpop.permute.xlu0 %1781
      %vm1815 = vcmask 162944
      %1816 = vst.msk [vmem:[#allocation5] sm:$0xff] %vm1815, %v1720
      %1817 = vst.msk [vmem:[#allocation5 + $0x8] sm:$0xff] %vm1815, %v1722
      %1818 = vst.msk [vmem:[#allocation5 + $0x10] sm:$0xff] %vm1815, %v1724
      %1819 = vst.msk [vmem:[#allocation5 + $0x18] sm:$0xff] %vm1815, %v1726
      %1820 = vst.msk [vmem:[#allocation5 + $0x20] sm:$0xff] %vm1815, %v1728
      %1821 = vst.msk [vmem:[#allocation5 + $0x28] sm:$0xff] %vm1815, %v1730
      %1822 = vst.msk [vmem:[#allocation5 + $0x30] sm:$0xff] %vm1815, %v1732
      %1823 = vst.msk [vmem:[#allocation5 + $0x38] sm:$0xff] %vm1815, %v1734
      %1824 = vst.msk [vmem:[#allocation5 + $0x40] sm:$0xff] %vm1815, %v1736
      %1825 = vst.msk [vmem:[#allocation5 + $0x48] sm:$0xff] %vm1815, %v1738
      %1826 = vst.msk [vmem:[#allocation5 + $0x50] sm:$0xff] %vm1815, %v1740
      %1827 = vst.msk [vmem:[#allocation5 + $0x58] sm:$0xff] %vm1815, %v1742
      %1828 = vst.msk [vmem:[#allocation5 + $0x60] sm:$0xff] %vm1815, %v1744
      %1829 = vst.msk [vmem:[#allocation5 + $0x68] sm:$0xff] %vm1815, %v1746
      %1830 = vst.msk [vmem:[#allocation5 + $0x70] sm:$0xff] %vm1815, %v1748
      %1831 = vst.msk [vmem:[#allocation5 + $0x78] sm:$0xff] %vm1815, %v1750
      %1832 = vst.msk [vmem:[#allocation5 + $0x80] sm:$0xff] %vm1815, %v1752
      %1833 = vst.msk [vmem:[#allocation5 + $0x88] sm:$0xff] %vm1815, %v1754
      %1834 = vst.msk [vmem:[#allocation5 + $0x90] sm:$0xff] %vm1815, %v1756
      %1835 = vst.msk [vmem:[#allocation5 + $0x98] sm:$0xff] %vm1815, %v1758
      %1836 = vst.msk [vmem:[#allocation5 + $0xa0] sm:$0xff] %vm1815, %v1760
      %1837 = vst.msk [vmem:[#allocation5 + $0xa8] sm:$0xff] %vm1815, %v1762
      %1838 = vst.msk [vmem:[#allocation5 + $0xb0] sm:$0xff] %vm1815, %v1764
      %1839 = vst.msk [vmem:[#allocation5 + $0xb8] sm:$0xff] %vm1815, %v1766
      %1840 = vst.msk [vmem:[#allocation5 + $0xc0] sm:$0xff] %vm1815, %v1768
      %1841 = vst.msk [vmem:[#allocation5 + $0xc8] sm:$0xff] %vm1815, %v1770
      %1842 = vst.msk [vmem:[#allocation5 + $0xd0] sm:$0xff] %vm1815, %v1772
      %1843 = vst.msk [vmem:[#allocation5 + $0xd8] sm:$0xff] %vm1815, %v1774
      %1844 = vst.msk [vmem:[#allocation5 + $0xe0] sm:$0xff] %vm1815, %v1776
      %1845 = vst.msk [vmem:[#allocation5 + $0xe8] sm:$0xff] %vm1815, %v1778
      %1846 = vst.msk [vmem:[#allocation5 + $0xf0] sm:$0xff] %vm1815, %v1780
      %1847 = vst.msk [vmem:[#allocation5 + $0xf8] sm:$0xff] %vm1815, %v1782
      %v1848 = vld [vmem:[%s979 + $0x2] sm:$0xff]
      %v1849 = vld [vmem:[%s979 + $0xa] sm:$0xff]
      %v1850 = vld [vmem:[%s979 + $0x1a] sm:$0xff]
      %v1851 = vld [vmem:[%s979 + $0x22] sm:$0xff]
      %v1852 = vld [vmem:[%s979 + $0x32] sm:$0xff]
      %v1853 = vld [vmem:[%s979 + $0x3a] sm:$0xff]
      %v1854 = vld [vmem:[%s979 + $0x4a] sm:$0xff]
      %v1855 = vld [vmem:[%s979 + $0x52] sm:$0xff]
      %v1856 = vld [vmem:[%s979 + $0x62] sm:$0xff]
      %v1857 = vld [vmem:[%s979 + $0x6a] sm:$0xff]
      %v1858 = vld [vmem:[%s979 + $0x7a] sm:$0xff]
      %v1859 = vld [vmem:[%s979 + $0x82] sm:$0xff]
      %v1860 = vld [vmem:[%s979 + $0x92] sm:$0xff]
      %v1861 = vld [vmem:[%s979 + $0x9a] sm:$0xff]
      %v1862 = vld [vmem:[%s979 + $0xaa] sm:$0xff]
      %v1863 = vld [vmem:[%s979 + $0xb2] sm:$0xff]
      %v1864 = vld [vmem:[%s979 + $0xc2] sm:$0xff]
      %v1865 = vld [vmem:[%s979 + $0xca] sm:$0xff]
      %v1866 = vld [vmem:[%s979 + $0xda] sm:$0xff]
      %v1867 = vld [vmem:[%s979 + $0xe2] sm:$0xff]
      %v1868 = vld [vmem:[%s979 + $0xf2] sm:$0xff]
      %v1869 = vld [vmem:[%s979 + $0xfa] sm:$0xff]
      %v1870 = vld [vmem:[%s979 + $0x10a] sm:$0xff]
      %v1871 = vld [vmem:[%s979 + $0x112] sm:$0xff]
      %v1872 = vld [vmem:[%s979 + $0x122] sm:$0xff]
      %v1873 = vld [vmem:[%s979 + $0x12a] sm:$0xff]
      %v1874 = vld [vmem:[%s979 + $0x13a] sm:$0xff]
      %v1875 = vld [vmem:[%s979 + $0x142] sm:$0xff]
      %v1876 = vld [vmem:[%s979 + $0x152] sm:$0xff]
      %v1877 = vld [vmem:[%s979 + $0x15a] sm:$0xff]
      %v1878 = vld [vmem:[%s979 + $0x16a] sm:$0xff]
      %v1879 = vld [vmem:[%s979 + $0x172] sm:$0xff]
      %1912 = vrot.lane.b32.xlu0 %v1848, 20
      %v1913 = vpop.permute.xlu0 %1912
      %1914 = vrot.lane.b32.xlu0 %v1849, 20
      %v1915 = vpop.permute.xlu0 %1914
      %1916 = vrot.lane.b32.xlu0 %v1850, 20
      %v1917 = vpop.permute.xlu0 %1916
      %1918 = vrot.lane.b32.xlu0 %v1851, 20
      %v1919 = vpop.permute.xlu0 %1918
      %1920 = vrot.lane.b32.xlu0 %v1852, 20
      %v1921 = vpop.permute.xlu0 %1920
      %1922 = vrot.lane.b32.xlu0 %v1853, 20
      %v1923 = vpop.permute.xlu0 %1922
      %1924 = vrot.lane.b32.xlu0 %v1854, 20
      %v1925 = vpop.permute.xlu0 %1924
      %1926 = vrot.lane.b32.xlu0 %v1855, 20
      %v1927 = vpop.permute.xlu0 %1926
      %1928 = vrot.lane.b32.xlu0 %v1856, 20
      %v1929 = vpop.permute.xlu0 %1928
      %1930 = vrot.lane.b32.xlu0 %v1857, 20
      %v1931 = vpop.permute.xlu0 %1930
      %1932 = vrot.lane.b32.xlu0 %v1858, 20
      %v1933 = vpop.permute.xlu0 %1932
      %1934 = vrot.lane.b32.xlu0 %v1859, 20
      %v1935 = vpop.permute.xlu0 %1934
      %1936 = vrot.lane.b32.xlu0 %v1860, 20
      %v1937 = vpop.permute.xlu0 %1936
      %1938 = vrot.lane.b32.xlu0 %v1861, 20
      %v1939 = vpop.permute.xlu0 %1938
      %1940 = vrot.lane.b32.xlu0 %v1862, 20
      %v1941 = vpop.permute.xlu0 %1940
      %1942 = vrot.lane.b32.xlu0 %v1863, 20
      %v1943 = vpop.permute.xlu0 %1942
      %1944 = vrot.lane.b32.xlu0 %v1864, 20
      %v1945 = vpop.permute.xlu0 %1944
      %1946 = vrot.lane.b32.xlu0 %v1865, 20
      %v1947 = vpop.permute.xlu0 %1946
      %1948 = vrot.lane.b32.xlu0 %v1866, 20
      %v1949 = vpop.permute.xlu0 %1948
      %1950 = vrot.lane.b32.xlu0 %v1867, 20
      %v1951 = vpop.permute.xlu0 %1950
      %1952 = vrot.lane.b32.xlu0 %v1868, 20
      %v1953 = vpop.permute.xlu0 %1952
      %1954 = vrot.lane.b32.xlu0 %v1869, 20
      %v1955 = vpop.permute.xlu0 %1954
      %1956 = vrot.lane.b32.xlu0 %v1870, 20
      %v1957 = vpop.permute.xlu0 %1956
      %1958 = vrot.lane.b32.xlu0 %v1871, 20
      %v1959 = vpop.permute.xlu0 %1958
      %1960 = vrot.lane.b32.xlu0 %v1872, 20
      %v1961 = vpop.permute.xlu0 %1960
      %1962 = vrot.lane.b32.xlu0 %v1873, 20
      %v1963 = vpop.permute.xlu0 %1962
      %1964 = vrot.lane.b32.xlu0 %v1874, 20
      %v1965 = vpop.permute.xlu0 %1964
      %1966 = vrot.lane.b32.xlu0 %v1875, 20
      %v1967 = vpop.permute.xlu0 %1966
      %1968 = vrot.lane.b32.xlu0 %v1876, 20
      %v1969 = vpop.permute.xlu0 %1968
      %1970 = vrot.lane.b32.xlu0 %v1877, 20
      %v1971 = vpop.permute.xlu0 %1970
      %1972 = vrot.lane.b32.xlu0 %v1878, 20
      %v1973 = vpop.permute.xlu0 %1972
      %1974 = vrot.lane.b32.xlu0 %v1879, 20
      %v1975 = vpop.permute.xlu0 %1974
      %vm2008 = vcmask 195744
      %2009 = vst.msk [vmem:[#allocation5] sm:$0xff] %vm2008, %v1913
      %2010 = vst.msk [vmem:[#allocation5 + $0x8] sm:$0xff] %vm2008, %v1915
      %2011 = vst.msk [vmem:[#allocation5 + $0x10] sm:$0xff] %vm2008, %v1917
      %2012 = vst.msk [vmem:[#allocation5 + $0x18] sm:$0xff] %vm2008, %v1919
      %2013 = vst.msk [vmem:[#allocation5 + $0x20] sm:$0xff] %vm2008, %v1921
      %2014 = vst.msk [vmem:[#allocation5 + $0x28] sm:$0xff] %vm2008, %v1923
      %2015 = vst.msk [vmem:[#allocation5 + $0x30] sm:$0xff] %vm2008, %v1925
      %2016 = vst.msk [vmem:[#allocation5 + $0x38] sm:$0xff] %vm2008, %v1927
      %2017 = vst.msk [vmem:[#allocation5 + $0x40] sm:$0xff] %vm2008, %v1929
      %2018 = vst.msk [vmem:[#allocation5 + $0x48] sm:$0xff] %vm2008, %v1931
      %2019 = vst.msk [vmem:[#allocation5 + $0x50] sm:$0xff] %vm2008, %v1933
      %2020 = vst.msk [vmem:[#allocation5 + $0x58] sm:$0xff] %vm2008, %v1935
      %2021 = vst.msk [vmem:[#allocation5 + $0x60] sm:$0xff] %vm2008, %v1937
      %2022 = vst.msk [vmem:[#allocation5 + $0x68] sm:$0xff] %vm2008, %v1939
      %2023 = vst.msk [vmem:[#allocation5 + $0x70] sm:$0xff] %vm2008, %v1941
      %2024 = vst.msk [vmem:[#allocation5 + $0x78] sm:$0xff] %vm2008, %v1943
      %2025 = vst.msk [vmem:[#allocation5 + $0x80] sm:$0xff] %vm2008, %v1945
      %2026 = vst.msk [vmem:[#allocation5 + $0x88] sm:$0xff] %vm2008, %v1947
      %2027 = vst.msk [vmem:[#allocation5 + $0x90] sm:$0xff] %vm2008, %v1949
      %2028 = vst.msk [vmem:[#allocation5 + $0x98] sm:$0xff] %vm2008, %v1951
      %2029 = vst.msk [vmem:[#allocation5 + $0xa0] sm:$0xff] %vm2008, %v1953
      %2030 = vst.msk [vmem:[#allocation5 + $0xa8] sm:$0xff] %vm2008, %v1955
      %2031 = vst.msk [vmem:[#allocation5 + $0xb0] sm:$0xff] %vm2008, %v1957
      %2032 = vst.msk [vmem:[#allocation5 + $0xb8] sm:$0xff] %vm2008, %v1959
      %2033 = vst.msk [vmem:[#allocation5 + $0xc0] sm:$0xff] %vm2008, %v1961
      %2034 = vst.msk [vmem:[#allocation5 + $0xc8] sm:$0xff] %vm2008, %v1963
      %2035 = vst.msk [vmem:[#allocation5 + $0xd0] sm:$0xff] %vm2008, %v1965
      %2036 = vst.msk [vmem:[#allocation5 + $0xd8] sm:$0xff] %vm2008, %v1967
      %2037 = vst.msk [vmem:[#allocation5 + $0xe0] sm:$0xff] %vm2008, %v1969
      %2038 = vst.msk [vmem:[#allocation5 + $0xe8] sm:$0xff] %vm2008, %v1971
      %2039 = vst.msk [vmem:[#allocation5 + $0xf0] sm:$0xff] %vm2008, %v1973
      %2040 = vst.msk [vmem:[#allocation5 + $0xf8] sm:$0xff] %vm2008, %v1975
      %s2041 = scalar_lea.vmem [#allocation2], 48
      %v2042 = vld [vmem:[%s2041] sm:$0xff]
      %v2043 = vld [vmem:[%s2041 + $0x8] sm:$0xff]
      %v2044 = vld [vmem:[%s2041 + $0x18] sm:$0xff]
      %v2045 = vld [vmem:[%s2041 + $0x20] sm:$0xff]
      %v2046 = vld [vmem:[%s2041 + $0x30] sm:$0xff]
      %v2047 = vld [vmem:[%s2041 + $0x38] sm:$0xff]
      %v2048 = vld [vmem:[%s2041 + $0x48] sm:$0xff]
      %v2049 = vld [vmem:[%s2041 + $0x50] sm:$0xff]
      %v2050 = vld [vmem:[%s2041 + $0x60] sm:$0xff]
      %v2051 = vld [vmem:[%s2041 + $0x68] sm:$0xff]
      %v2052 = vld [vmem:[%s2041 + $0x78] sm:$0xff]
      %v2053 = vld [vmem:[%s2041 + $0x80] sm:$0xff]
      %v2054 = vld [vmem:[%s2041 + $0x90] sm:$0xff]
      %v2055 = vld [vmem:[%s2041 + $0x98] sm:$0xff]
      %v2056 = vld [vmem:[%s2041 + $0xa8] sm:$0xff]
      %v2057 = vld [vmem:[%s2041 + $0xb0] sm:$0xff]
      %v2058 = vld [vmem:[%s2041 + $0xc0] sm:$0xff]
      %v2059 = vld [vmem:[%s2041 + $0xc8] sm:$0xff]
      %v2060 = vld [vmem:[%s2041 + $0xd8] sm:$0xff]
      %v2061 = vld [vmem:[%s2041 + $0xe0] sm:$0xff]
      %v2062 = vld [vmem:[%s2041 + $0xf0] sm:$0xff]
      %v2063 = vld [vmem:[%s2041 + $0xf8] sm:$0xff]
      %v2064 = vld [vmem:[%s2041 + $0x108] sm:$0xff]
      %v2065 = vld [vmem:[%s2041 + $0x110] sm:$0xff]
      %v2066 = vld [vmem:[%s2041 + $0x120] sm:$0xff]
      %v2067 = vld [vmem:[%s2041 + $0x128] sm:$0xff]
      %v2068 = vld [vmem:[%s2041 + $0x138] sm:$0xff]
      %v2069 = vld [vmem:[%s2041 + $0x140] sm:$0xff]
      %v2070 = vld [vmem:[%s2041 + $0x150] sm:$0xff]
      %v2071 = vld [vmem:[%s2041 + $0x158] sm:$0xff]
      %v2072 = vld [vmem:[%s2041 + $0x168] sm:$0xff]
      %v2073 = vld [vmem:[%s2041 + $0x170] sm:$0xff]
      %2106 = vrot.lane.b32.xlu0 %v2042, 24
      %v2107 = vpop.permute.xlu0 %2106
      %2108 = vrot.lane.b32.xlu0 %v2043, 24
      %v2109 = vpop.permute.xlu0 %2108
      %2110 = vrot.lane.b32.xlu0 %v2044, 24
      %v2111 = vpop.permute.xlu0 %2110
      %2112 = vrot.lane.b32.xlu0 %v2045, 24
      %v2113 = vpop.permute.xlu0 %2112
      %2114 = vrot.lane.b32.xlu0 %v2046, 24
      %v2115 = vpop.permute.xlu0 %2114
      %2116 = vrot.lane.b32.xlu0 %v2047, 24
      %v2117 = vpop.permute.xlu0 %2116
      %2118 = vrot.lane.b32.xlu0 %v2048, 24
      %v2119 = vpop.permute.xlu0 %2118
      %2120 = vrot.lane.b32.xlu0 %v2049, 24
      %v2121 = vpop.permute.xlu0 %2120
      %2122 = vrot.lane.b32.xlu0 %v2050, 24
      %v2123 = vpop.permute.xlu0 %2122
      %2124 = vrot.lane.b32.xlu0 %v2051, 24
      %v2125 = vpop.permute.xlu0 %2124
      %2126 = vrot.lane.b32.xlu0 %v2052, 24
      %v2127 = vpop.permute.xlu0 %2126
      %2128 = vrot.lane.b32.xlu0 %v2053, 24
      %v2129 = vpop.permute.xlu0 %2128
      %2130 = vrot.lane.b32.xlu0 %v2054, 24
      %v2131 = vpop.permute.xlu0 %2130
      %2132 = vrot.lane.b32.xlu0 %v2055, 24
      %v2133 = vpop.permute.xlu0 %2132
      %2134 = vrot.lane.b32.xlu0 %v2056, 24
      %v2135 = vpop.permute.xlu0 %2134
      %2136 = vrot.lane.b32.xlu0 %v2057, 24
      %v2137 = vpop.permute.xlu0 %2136
      %2138 = vrot.lane.b32.xlu0 %v2058, 24
      %v2139 = vpop.permute.xlu0 %2138
      %2140 = vrot.lane.b32.xlu0 %v2059, 24
      %v2141 = vpop.permute.xlu0 %2140
      %2142 = vrot.lane.b32.xlu0 %v2060, 24
      %v2143 = vpop.permute.xlu0 %2142
      %2144 = vrot.lane.b32.xlu0 %v2061, 24
      %v2145 = vpop.permute.xlu0 %2144
      %2146 = vrot.lane.b32.xlu0 %v2062, 24
      %v2147 = vpop.permute.xlu0 %2146
      %2148 = vrot.lane.b32.xlu0 %v2063, 24
      %v2149 = vpop.permute.xlu0 %2148
      %2150 = vrot.lane.b32.xlu0 %v2064, 24
      %v2151 = vpop.permute.xlu0 %2150
      %2152 = vrot.lane.b32.xlu0 %v2065, 24
      %v2153 = vpop.permute.xlu0 %2152
      %2154 = vrot.lane.b32.xlu0 %v2066, 24
      %v2155 = vpop.permute.xlu0 %2154
      %2156 = vrot.lane.b32.xlu0 %v2067, 24
      %v2157 = vpop.permute.xlu0 %2156
      %2158 = vrot.lane.b32.xlu0 %v2068, 24
      %v2159 = vpop.permute.xlu0 %2158
      %2160 = vrot.lane.b32.xlu0 %v2069, 24
      %v2161 = vpop.permute.xlu0 %2160
      %2162 = vrot.lane.b32.xlu0 %v2070, 24
      %v2163 = vpop.permute.xlu0 %2162
      %2164 = vrot.lane.b32.xlu0 %v2071, 24
      %v2165 = vpop.permute.xlu0 %2164
      %2166 = vrot.lane.b32.xlu0 %v2072, 24
      %v2167 = vpop.permute.xlu0 %2166
      %2168 = vrot.lane.b32.xlu0 %v2073, 24
      %v2169 = vpop.permute.xlu0 %2168
      %vm2202 = vcmask 228544
      %2203 = vst.msk [vmem:[#allocation5] sm:$0xff] %vm2202, %v2107
      %2204 = vst.msk [vmem:[#allocation5 + $0x8] sm:$0xff] %vm2202, %v2109
      %2205 = vst.msk [vmem:[#allocation5 + $0x10] sm:$0xff] %vm2202, %v2111
      %2206 = vst.msk [vmem:[#allocation5 + $0x18] sm:$0xff] %vm2202, %v2113
      %2207 = vst.msk [vmem:[#allocation5 + $0x20] sm:$0xff] %vm2202, %v2115
      %2208 = vst.msk [vmem:[#allocation5 + $0x28] sm:$0xff] %vm2202, %v2117
      %2209 = vst.msk [vmem:[#allocation5 + $0x30] sm:$0xff] %vm2202, %v2119
      %2210 = vst.msk [vmem:[#allocation5 + $0x38] sm:$0xff] %vm2202, %v2121
      %2211 = vst.msk [vmem:[#allocation5 + $0x40] sm:$0xff] %vm2202, %v2123
      %2212 = vst.msk [vmem:[#allocation5 + $0x48] sm:$0xff] %vm2202, %v2125
      %2213 = vst.msk [vmem:[#allocation5 + $0x50] sm:$0xff] %vm2202, %v2127
      %2214 = vst.msk [vmem:[#allocation5 + $0x58] sm:$0xff] %vm2202, %v2129
      %2215 = vst.msk [vmem:[#allocation5 + $0x60] sm:$0xff] %vm2202, %v2131
      %2216 = vst.msk [vmem:[#allocation5 + $0x68] sm:$0xff] %vm2202, %v2133
      %2217 = vst.msk [vmem:[#allocation5 + $0x70] sm:$0xff] %vm2202, %v2135
      %2218 = vst.msk [vmem:[#allocation5 + $0x78] sm:$0xff] %vm2202, %v2137
      %2219 = vst.msk [vmem:[#allocation5 + $0x80] sm:$0xff] %vm2202, %v2139
      %2220 = vst.msk [vmem:[#allocation5 + $0x88] sm:$0xff] %vm2202, %v2141
      %2221 = vst.msk [vmem:[#allocation5 + $0x90] sm:$0xff] %vm2202, %v2143
      %2222 = vst.msk [vmem:[#allocation5 + $0x98] sm:$0xff] %vm2202, %v2145
      %2223 = vst.msk [vmem:[#allocation5 + $0xa0] sm:$0xff] %vm2202, %v2147
      %2224 = vst.msk [vmem:[#allocation5 + $0xa8] sm:$0xff] %vm2202, %v2149
      %2225 = vst.msk [vmem:[#allocation5 + $0xb0] sm:$0xff] %vm2202, %v2151
      %2226 = vst.msk [vmem:[#allocation5 + $0xb8] sm:$0xff] %vm2202, %v2153
      %2227 = vst.msk [vmem:[#allocation5 + $0xc0] sm:$0xff] %vm2202, %v2155
      %2228 = vst.msk [vmem:[#allocation5 + $0xc8] sm:$0xff] %vm2202, %v2157
      %2229 = vst.msk [vmem:[#allocation5 + $0xd0] sm:$0xff] %vm2202, %v2159
      %2230 = vst.msk [vmem:[#allocation5 + $0xd8] sm:$0xff] %vm2202, %v2161
      %2231 = vst.msk [vmem:[#allocation5 + $0xe0] sm:$0xff] %vm2202, %v2163
      %2232 = vst.msk [vmem:[#allocation5 + $0xe8] sm:$0xff] %vm2202, %v2165
      %2233 = vst.msk [vmem:[#allocation5 + $0xf0] sm:$0xff] %vm2202, %v2167
      %2234 = vst.msk [vmem:[#allocation5 + $0xf8] sm:$0xff] %vm2202, %v2169
      %v2235 = vld [vmem:[%s2041 + $0x1] sm:$0xff]
      %v2236 = vld [vmem:[%s2041 + $0x9] sm:$0xff]
      %v2237 = vld [vmem:[%s2041 + $0x19] sm:$0xff]
      %v2238 = vld [vmem:[%s2041 + $0x21] sm:$0xff]
      %v2239 = vld [vmem:[%s2041 + $0x31] sm:$0xff]
      %v2240 = vld [vmem:[%s2041 + $0x39] sm:$0xff]
      %v2241 = vld [vmem:[%s2041 + $0x49] sm:$0xff]
      %v2242 = vld [vmem:[%s2041 + $0x51] sm:$0xff]
      %v2243 = vld [vmem:[%s2041 + $0x61] sm:$0xff]
      %v2244 = vld [vmem:[%s2041 + $0x69] sm:$0xff]
      %v2245 = vld [vmem:[%s2041 + $0x79] sm:$0xff]
      %v2246 = vld [vmem:[%s2041 + $0x81] sm:$0xff]
      %v2247 = vld [vmem:[%s2041 + $0x91] sm:$0xff]
      %v2248 = vld [vmem:[%s2041 + $0x99] sm:$0xff]
      %v2249 = vld [vmem:[%s2041 + $0xa9] sm:$0xff]
      %v2250 = vld [vmem:[%s2041 + $0xb1] sm:$0xff]
      %v2251 = vld [vmem:[%s2041 + $0xc1] sm:$0xff]
      %v2252 = vld [vmem:[%s2041 + $0xc9] sm:$0xff]
      %v2253 = vld [vmem:[%s2041 + $0xd9] sm:$0xff]
      %v2254 = vld [vmem:[%s2041 + $0xe1] sm:$0xff]
      %v2255 = vld [vmem:[%s2041 + $0xf1] sm:$0xff]
      %v2256 = vld [vmem:[%s2041 + $0xf9] sm:$0xff]
      %v2257 = vld [vmem:[%s2041 + $0x109] sm:$0xff]
      %v2258 = vld [vmem:[%s2041 + $0x111] sm:$0xff]
      %v2259 = vld [vmem:[%s2041 + $0x121] sm:$0xff]
      %v2260 = vld [vmem:[%s2041 + $0x129] sm:$0xff]
      %v2261 = vld [vmem:[%s2041 + $0x139] sm:$0xff]
      %v2262 = vld [vmem:[%s2041 + $0x141] sm:$0xff]
      %v2263 = vld [vmem:[%s2041 + $0x151] sm:$0xff]
      %v2264 = vld [vmem:[%s2041 + $0x159] sm:$0xff]
      %v2265 = vld [vmem:[%s2041 + $0x169] sm:$0xff]
      %v2266 = vld [vmem:[%s2041 + $0x171] sm:$0xff]
      %2299 = vrot.lane.b32.xlu0 %v2235, 28
      %v2300 = vpop.permute.xlu0 %2299
      %2301 = vrot.lane.b32.xlu0 %v2236, 28
      %v2302 = vpop.permute.xlu0 %2301
      %2303 = vrot.lane.b32.xlu0 %v2237, 28
      %v2304 = vpop.permute.xlu0 %2303
      %2305 = vrot.lane.b32.xlu0 %v2238, 28
      %v2306 = vpop.permute.xlu0 %2305
      %2307 = vrot.lane.b32.xlu0 %v2239, 28
      %v2308 = vpop.permute.xlu0 %2307
      %2309 = vrot.lane.b32.xlu0 %v2240, 28
      %v2310 = vpop.permute.xlu0 %2309
      %2311 = vrot.lane.b32.xlu0 %v2241, 28
      %v2312 = vpop.permute.xlu0 %2311
      %2313 = vrot.lane.b32.xlu0 %v2242, 28
      %v2314 = vpop.permute.xlu0 %2313
      %2315 = vrot.lane.b32.xlu0 %v2243, 28
      %v2316 = vpop.permute.xlu0 %2315
      %2317 = vrot.lane.b32.xlu0 %v2244, 28
      %v2318 = vpop.permute.xlu0 %2317
      %2319 = vrot.lane.b32.xlu0 %v2245, 28
      %v2320 = vpop.permute.xlu0 %2319
      %2321 = vrot.lane.b32.xlu0 %v2246, 28
      %v2322 = vpop.permute.xlu0 %2321
      %2323 = vrot.lane.b32.xlu0 %v2247, 28
      %v2324 = vpop.permute.xlu0 %2323
      %2325 = vrot.lane.b32.xlu0 %v2248, 28
      %v2326 = vpop.permute.xlu0 %2325
      %2327 = vrot.lane.b32.xlu0 %v2249, 28
      %v2328 = vpop.permute.xlu0 %2327
      %2329 = vrot.lane.b32.xlu0 %v2250, 28
      %v2330 = vpop.permute.xlu0 %2329
      %2331 = vrot.lane.b32.xlu0 %v2251, 28
      %v2332 = vpop.permute.xlu0 %2331
      %2333 = vrot.lane.b32.xlu0 %v2252, 28
      %v2334 = vpop.permute.xlu0 %2333
      %2335 = vrot.lane.b32.xlu0 %v2253, 28
      %v2336 = vpop.permute.xlu0 %2335
      %2337 = vrot.lane.b32.xlu0 %v2254, 28
      %v2338 = vpop.permute.xlu0 %2337
      %2339 = vrot.lane.b32.xlu0 %v2255, 28
      %v2340 = vpop.permute.xlu0 %2339
      %2341 = vrot.lane.b32.xlu0 %v2256, 28
      %v2342 = vpop.permute.xlu0 %2341
      %2343 = vrot.lane.b32.xlu0 %v2257, 28
      %v2344 = vpop.permute.xlu0 %2343
      %2345 = vrot.lane.b32.xlu0 %v2258, 28
      %v2346 = vpop.permute.xlu0 %2345
      %2347 = vrot.lane.b32.xlu0 %v2259, 28
      %v2348 = vpop.permute.xlu0 %2347
      %2349 = vrot.lane.b32.xlu0 %v2260, 28
      %v2350 = vpop.permute.xlu0 %2349
      %2351 = vrot.lane.b32.xlu0 %v2261, 28
      %v2352 = vpop.permute.xlu0 %2351
      %2353 = vrot.lane.b32.xlu0 %v2262, 28
      %v2354 = vpop.permute.xlu0 %2353
      %2355 = vrot.lane.b32.xlu0 %v2263, 28
      %v2356 = vpop.permute.xlu0 %2355
      %2357 = vrot.lane.b32.xlu0 %v2264, 28
      %v2358 = vpop.permute.xlu0 %2357
      %2359 = vrot.lane.b32.xlu0 %v2265, 28
      %v2360 = vpop.permute.xlu0 %2359
      %2361 = vrot.lane.b32.xlu0 %v2266, 28
      %v2362 = vpop.permute.xlu0 %2361
      %vm2395 = vcmask 261344
      %2396 = vst.msk [vmem:[#allocation5] sm:$0xff] %vm2395, %v2300
      %2397 = vst.msk [vmem:[#allocation5 + $0x8] sm:$0xff] %vm2395, %v2302
      %2398 = vst.msk [vmem:[#allocation5 + $0x10] sm:$0xff] %vm2395, %v2304
      %2399 = vst.msk [vmem:[#allocation5 + $0x18] sm:$0xff] %vm2395, %v2306
      %2400 = vst.msk [vmem:[#allocation5 + $0x20] sm:$0xff] %vm2395, %v2308
      %2401 = vst.msk [vmem:[#allocation5 + $0x28] sm:$0xff] %vm2395, %v2310
      %2402 = vst.msk [vmem:[#allocation5 + $0x30] sm:$0xff] %vm2395, %v2312
      %2403 = vst.msk [vmem:[#allocation5 + $0x38] sm:$0xff] %vm2395, %v2314
      %2404 = vst.msk [vmem:[#allocation5 + $0x40] sm:$0xff] %vm2395, %v2316
      %2405 = vst.msk [vmem:[#allocation5 + $0x48] sm:$0xff] %vm2395, %v2318
      %2406 = vst.msk [vmem:[#allocation5 + $0x50] sm:$0xff] %vm2395, %v2320
      %2407 = vst.msk [vmem:[#allocation5 + $0x58] sm:$0xff] %vm2395, %v2322
      %2408 = vst.msk [vmem:[#allocation5 + $0x60] sm:$0xff] %vm2395, %v2324
      %2409 = vst.msk [vmem:[#allocation5 + $0x68] sm:$0xff] %vm2395, %v2326
      %2410 = vst.msk [vmem:[#allocation5 + $0x70] sm:$0xff] %vm2395, %v2328
      %2411 = vst.msk [vmem:[#allocation5 + $0x78] sm:$0xff] %vm2395, %v2330
      %2412 = vst.msk [vmem:[#allocation5 + $0x80] sm:$0xff] %vm2395, %v2332
      %2413 = vst.msk [vmem:[#allocation5 + $0x88] sm:$0xff] %vm2395, %v2334
      %2414 = vst.msk [vmem:[#allocation5 + $0x90] sm:$0xff] %vm2395, %v2336
      %2415 = vst.msk [vmem:[#allocation5 + $0x98] sm:$0xff] %vm2395, %v2338
      %2416 = vst.msk [vmem:[#allocation5 + $0xa0] sm:$0xff] %vm2395, %v2340
      %2417 = vst.msk [vmem:[#allocation5 + $0xa8] sm:$0xff] %vm2395, %v2342
      %2418 = vst.msk [vmem:[#allocation5 + $0xb0] sm:$0xff] %vm2395, %v2344
      %2419 = vst.msk [vmem:[#allocation5 + $0xb8] sm:$0xff] %vm2395, %v2346
      %2420 = vst.msk [vmem:[#allocation5 + $0xc0] sm:$0xff] %vm2395, %v2348
      %2421 = vst.msk [vmem:[#allocation5 + $0xc8] sm:$0xff] %vm2395, %v2350
      %2422 = vst.msk [vmem:[#allocation5 + $0xd0] sm:$0xff] %vm2395, %v2352
      %2423 = vst.msk [vmem:[#allocation5 + $0xd8] sm:$0xff] %vm2395, %v2354
      %2424 = vst.msk [vmem:[#allocation5 + $0xe0] sm:$0xff] %vm2395, %v2356
      %2425 = vst.msk [vmem:[#allocation5 + $0xe8] sm:$0xff] %vm2395, %v2358
      %2426 = vst.msk [vmem:[#allocation5 + $0xf0] sm:$0xff] %vm2395, %v2360
      %2427 = vst.msk [vmem:[#allocation5 + $0xf8] sm:$0xff] %vm2395, %v2362
      %v2428 = vld [vmem:[%s2041 + $0x2] sm:$0xff]
      %v2429 = vld [vmem:[%s2041 + $0xa] sm:$0xff]
      %v2430 = vld [vmem:[%s2041 + $0x1a] sm:$0xff]
      %v2431 = vld [vmem:[%s2041 + $0x22] sm:$0xff]
      %v2432 = vld [vmem:[%s2041 + $0x32] sm:$0xff]
      %v2433 = vld [vmem:[%s2041 + $0x3a] sm:$0xff]
      %v2434 = vld [vmem:[%s2041 + $0x4a] sm:$0xff]
      %v2435 = vld [vmem:[%s2041 + $0x52] sm:$0xff]
      %v2436 = vld [vmem:[%s2041 + $0x62] sm:$0xff]
      %v2437 = vld [vmem:[%s2041 + $0x6a] sm:$0xff]
      %v2438 = vld [vmem:[%s2041 + $0x7a] sm:$0xff]
      %v2439 = vld [vmem:[%s2041 + $0x82] sm:$0xff]
      %v2440 = vld [vmem:[%s2041 + $0x92] sm:$0xff]
      %v2441 = vld [vmem:[%s2041 + $0x9a] sm:$0xff]
      %v2442 = vld [vmem:[%s2041 + $0xaa] sm:$0xff]
      %v2443 = vld [vmem:[%s2041 + $0xb2] sm:$0xff]
      %v2444 = vld [vmem:[%s2041 + $0xc2] sm:$0xff]
      %v2445 = vld [vmem:[%s2041 + $0xca] sm:$0xff]
      %v2446 = vld [vmem:[%s2041 + $0xda] sm:$0xff]
      %v2447 = vld [vmem:[%s2041 + $0xe2] sm:$0xff]
      %v2448 = vld [vmem:[%s2041 + $0xf2] sm:$0xff]
      %v2449 = vld [vmem:[%s2041 + $0xfa] sm:$0xff]
      %v2450 = vld [vmem:[%s2041 + $0x10a] sm:$0xff]
      %v2451 = vld [vmem:[%s2041 + $0x112] sm:$0xff]
      %v2452 = vld [vmem:[%s2041 + $0x122] sm:$0xff]
      %v2453 = vld [vmem:[%s2041 + $0x12a] sm:$0xff]
      %v2454 = vld [vmem:[%s2041 + $0x13a] sm:$0xff]
      %v2455 = vld [vmem:[%s2041 + $0x142] sm:$0xff]
      %v2456 = vld [vmem:[%s2041 + $0x152] sm:$0xff]
      %v2457 = vld [vmem:[%s2041 + $0x15a] sm:$0xff]
      %v2458 = vld [vmem:[%s2041 + $0x16a] sm:$0xff]
      %v2459 = vld [vmem:[%s2041 + $0x172] sm:$0xff]
      %2492 = vrot.lane.b32.xlu0 %v2428, 32
      %v2493 = vpop.permute.xlu0 %2492
      %2494 = vrot.lane.b32.xlu0 %v2429, 32
      %v2495 = vpop.permute.xlu0 %2494
      %2496 = vrot.lane.b32.xlu0 %v2430, 32
      %v2497 = vpop.permute.xlu0 %2496
      %2498 = vrot.lane.b32.xlu0 %v2431, 32
      %v2499 = vpop.permute.xlu0 %2498
      %2500 = vrot.lane.b32.xlu0 %v2432, 32
      %v2501 = vpop.permute.xlu0 %2500
      %2502 = vrot.lane.b32.xlu0 %v2433, 32
      %v2503 = vpop.permute.xlu0 %2502
      %2504 = vrot.lane.b32.xlu0 %v2434, 32
      %v2505 = vpop.permute.xlu0 %2504
      %2506 = vrot.lane.b32.xlu0 %v2435, 32
      %v2507 = vpop.permute.xlu0 %2506
      %2508 = vrot.lane.b32.xlu0 %v2436, 32
      %v2509 = vpop.permute.xlu0 %2508
      %2510 = vrot.lane.b32.xlu0 %v2437, 32
      %v2511 = vpop.permute.xlu0 %2510
      %2512 = vrot.lane.b32.xlu0 %v2438, 32
      %v2513 = vpop.permute.xlu0 %2512
      %2514 = vrot.lane.b32.xlu0 %v2439, 32
      %v2515 = vpop.permute.xlu0 %2514
      %2516 = vrot.lane.b32.xlu0 %v2440, 32
      %v2517 = vpop.permute.xlu0 %2516
      %2518 = vrot.lane.b32.xlu0 %v2441, 32
      %v2519 = vpop.permute.xlu0 %2518
      %2520 = vrot.lane.b32.xlu0 %v2442, 32
      %v2521 = vpop.permute.xlu0 %2520
      %2522 = vrot.lane.b32.xlu0 %v2443, 32
      %v2523 = vpop.permute.xlu0 %2522
      %2524 = vrot.lane.b32.xlu0 %v2444, 32
      %v2525 = vpop.permute.xlu0 %2524
      %2526 = vrot.lane.b32.xlu0 %v2445, 32
      %v2527 = vpop.permute.xlu0 %2526
      %2528 = vrot.lane.b32.xlu0 %v2446, 32
      %v2529 = vpop.permute.xlu0 %2528
      %2530 = vrot.lane.b32.xlu0 %v2447, 32
      %v2531 = vpop.permute.xlu0 %2530
      %2532 = vrot.lane.b32.xlu0 %v2448, 32
      %v2533 = vpop.permute.xlu0 %2532
      %2534 = vrot.lane.b32.xlu0 %v2449, 32
      %v2535 = vpop.permute.xlu0 %2534
      %2536 = vrot.lane.b32.xlu0 %v2450, 32
      %v2537 = vpop.permute.xlu0 %2536
      %2538 = vrot.lane.b32.xlu0 %v2451, 32
      %v2539 = vpop.permute.xlu0 %2538
      %2540 = vrot.lane.b32.xlu0 %v2452, 32
      %v2541 = vpop.permute.xlu0 %2540
      %2542 = vrot.lane.b32.xlu0 %v2453, 32
      %v2543 = vpop.permute.xlu0 %2542
      %2544 = vrot.lane.b32.xlu0 %v2454, 32
      %v2545 = vpop.permute.xlu0 %2544
      %2546 = vrot.lane.b32.xlu0 %v2455, 32
      %v2547 = vpop.permute.xlu0 %2546
      %2548 = vrot.lane.b32.xlu0 %v2456, 32
      %v2549 = vpop.permute.xlu0 %2548
      %2550 = vrot.lane.b32.xlu0 %v2457, 32
      %v2551 = vpop.permute.xlu0 %2550
      %2552 = vrot.lane.b32.xlu0 %v2458, 32
      %v2553 = vpop.permute.xlu0 %2552
      %2554 = vrot.lane.b32.xlu0 %v2459, 32
      %v2555 = vpop.permute.xlu0 %2554
      %vm2588 = vcmask 294144
      %2589 = vst.msk [vmem:[#allocation5] sm:$0xff] %vm2588, %v2493
      %2590 = vst.msk [vmem:[#allocation5 + $0x8] sm:$0xff] %vm2588, %v2495
      %2591 = vst.msk [vmem:[#allocation5 + $0x10] sm:$0xff] %vm2588, %v2497
      %2592 = vst.msk [vmem:[#allocation5 + $0x18] sm:$0xff] %vm2588, %v2499
      %2593 = vst.msk [vmem:[#allocation5 + $0x20] sm:$0xff] %vm2588, %v2501
      %2594 = vst.msk [vmem:[#allocation5 + $0x28] sm:$0xff] %vm2588, %v2503
      %2595 = vst.msk [vmem:[#allocation5 + $0x30] sm:$0xff] %vm2588, %v2505
      %2596 = vst.msk [vmem:[#allocation5 + $0x38] sm:$0xff] %vm2588, %v2507
      %2597 = vst.msk [vmem:[#allocation5 + $0x40] sm:$0xff] %vm2588, %v2509
      %2598 = vst.msk [vmem:[#allocation5 + $0x48] sm:$0xff] %vm2588, %v2511
      %2599 = vst.msk [vmem:[#allocation5 + $0x50] sm:$0xff] %vm2588, %v2513
      %2600 = vst.msk [vmem:[#allocation5 + $0x58] sm:$0xff] %vm2588, %v2515
      %2601 = vst.msk [vmem:[#allocation5 + $0x60] sm:$0xff] %vm2588, %v2517
      %2602 = vst.msk [vmem:[#allocation5 + $0x68] sm:$0xff] %vm2588, %v2519
      %2603 = vst.msk [vmem:[#allocation5 + $0x70] sm:$0xff] %vm2588, %v2521
      %2604 = vst.msk [vmem:[#allocation5 + $0x78] sm:$0xff] %vm2588, %v2523
      %2605 = vst.msk [vmem:[#allocation5 + $0x80] sm:$0xff] %vm2588, %v2525
      %2606 = vst.msk [vmem:[#allocation5 + $0x88] sm:$0xff] %vm2588, %v2527
      %2607 = vst.msk [vmem:[#allocation5 + $0x90] sm:$0xff] %vm2588, %v2529
      %2608 = vst.msk [vmem:[#allocation5 + $0x98] sm:$0xff] %vm2588, %v2531
      %2609 = vst.msk [vmem:[#allocation5 + $0xa0] sm:$0xff] %vm2588, %v2533
      %2610 = vst.msk [vmem:[#allocation5 + $0xa8] sm:$0xff] %vm2588, %v2535
      %2611 = vst.msk [vmem:[#allocation5 + $0xb0] sm:$0xff] %vm2588, %v2537
      %2612 = vst.msk [vmem:[#allocation5 + $0xb8] sm:$0xff] %vm2588, %v2539
      %2613 = vst.msk [vmem:[#allocation5 + $0xc0] sm:$0xff] %vm2588, %v2541
      %2614 = vst.msk [vmem:[#allocation5 + $0xc8] sm:$0xff] %vm2588, %v2543
      %2615 = vst.msk [vmem:[#allocation5 + $0xd0] sm:$0xff] %vm2588, %v2545
      %2616 = vst.msk [vmem:[#allocation5 + $0xd8] sm:$0xff] %vm2588, %v2547
      %2617 = vst.msk [vmem:[#allocation5 + $0xe0] sm:$0xff] %vm2588, %v2549
      %2618 = vst.msk [vmem:[#allocation5 + $0xe8] sm:$0xff] %vm2588, %v2551
      %2619 = vst.msk [vmem:[#allocation5 + $0xf0] sm:$0xff] %vm2588, %v2553
      %2620 = vst.msk [vmem:[#allocation5 + $0xf8] sm:$0xff] %vm2588, %v2555
      %v2621 = vld [vmem:[%s5] sm:$0xff]
      %v2622 = vld [vmem:[#allocation5] sm:$0xff]
      %v2623 = vld [vmem:[#allocation5 + $0x8] sm:$0xff]
      %v2624 = vld [vmem:[#allocation5 + $0x10] sm:$0xff]
      %v2625 = vld [vmem:[#allocation5 + $0x18] sm:$0xff]
      %v2626 = vld [vmem:[#allocation5 + $0x20] sm:$0xff]
      %v2627 = vld [vmem:[#allocation5 + $0x28] sm:$0xff]
      %v2628 = vld [vmem:[#allocation5 + $0x30] sm:$0xff]
      %v2629 = vld [vmem:[#allocation5 + $0x38] sm:$0xff]
      %v2630 = vld [vmem:[#allocation5 + $0x40] sm:$0xff]
      %v2631 = vld [vmem:[#allocation5 + $0x48] sm:$0xff]
      %v2632 = vld [vmem:[#allocation5 + $0x50] sm:$0xff]
      %v2633 = vld [vmem:[#allocation5 + $0x58] sm:$0xff]
      %v2634 = vld [vmem:[#allocation5 + $0x60] sm:$0xff]
      %v2635 = vld [vmem:[#allocation5 + $0x68] sm:$0xff]
      %v2636 = vld [vmem:[#allocation5 + $0x70] sm:$0xff]
      %v2637 = vld [vmem:[#allocation5 + $0x78] sm:$0xff]
      %v2638 = vld [vmem:[#allocation5 + $0x80] sm:$0xff]
      %v2639 = vld [vmem:[#allocation5 + $0x88] sm:$0xff]
      %v2640 = vld [vmem:[#allocation5 + $0x90] sm:$0xff]
      %v2641 = vld [vmem:[#allocation5 + $0x98] sm:$0xff]
      %v2642 = vld [vmem:[#allocation5 + $0xa0] sm:$0xff]
      %v2643 = vld [vmem:[#allocation5 + $0xa8] sm:$0xff]
      %v2644 = vld [vmem:[#allocation5 + $0xb0] sm:$0xff]
      %v2645 = vld [vmem:[#allocation5 + $0xb8] sm:$0xff]
      %v2646 = vld [vmem:[#allocation5 + $0xc0] sm:$0xff]
      %v2647 = vld [vmem:[#allocation5 + $0xc8] sm:$0xff]
      %v2648 = vld [vmem:[#allocation5 + $0xd0] sm:$0xff]
      %v2649 = vld [vmem:[#allocation5 + $0xd8] sm:$0xff]
      %v2650 = vld [vmem:[#allocation5 + $0xe0] sm:$0xff]
      %v2651 = vld [vmem:[#allocation5 + $0xe8] sm:$0xff]
      %v2652 = vld [vmem:[#allocation5 + $0xf0] sm:$0xff]
      %v2653 = vld [vmem:[#allocation5 + $0xf8] sm:$0xff]
      %v2654 = vld [vmem:[%s6] sm:$0xff]
      %2656 = vset.pattern.permute.xlu0 0
      %2657 = vperm.xlu0 %2656, %v2654
      %v2658 = vpop.permute.xlu0 %2657
      %vm2660 = vcmask 293888
      %v2662 = vsel %vm2660, %v2621, 0
      %v2665 = vsel %vm2660, %v2622, 0
      %v2668 = vsel %vm2660, %v2623, 0
      %v2671 = vsel %vm2660, %v2624, 0
      %v2674 = vsel %vm2660, %v2625, 0
      %v2677 = vsel %vm2660, %v2626, 0
      %v2680 = vsel %vm2660, %v2627, 0
      %v2683 = vsel %vm2660, %v2628, 0
      %v2686 = vsel %vm2660, %v2629, 0
      %v2689 = vsel %vm2660, %v2630, 0
      %v2692 = vsel %vm2660, %v2631, 0
      %v2695 = vsel %vm2660, %v2632, 0
      %v2698 = vsel %vm2660, %v2633, 0
      %v2701 = vsel %vm2660, %v2634, 0
      %v2704 = vsel %vm2660, %v2635, 0
      %v2707 = vsel %vm2660, %v2636, 0
      %v2710 = vsel %vm2660, %v2637, 0
      %v2713 = vsel %vm2660, %v2638, 0
      %v2716 = vsel %vm2660, %v2639, 0
      %v2719 = vsel %vm2660, %v2640, 0
      %v2722 = vsel %vm2660, %v2641, 0
      %v2725 = vsel %vm2660, %v2642, 0
      %v2728 = vsel %vm2660, %v2643, 0
      %v2731 = vsel %vm2660, %v2644, 0
      %v2734 = vsel %vm2660, %v2645, 0
      %v2737 = vsel %vm2660, %v2646, 0
      %v2740 = vsel %vm2660, %v2647, 0
      %v2743 = vsel %vm2660, %v2648, 0
      %v2746 = vsel %vm2660, %v2649, 0
      %v2749 = vsel %vm2660, %v2650, 0
      %v2752 = vsel %vm2660, %v2651, 0
      %v2755 = vsel %vm2660, %v2652, 0
      %v2758 = vsel %vm2660, %v2653, 0
      %2760 = vmatprep.subr.mxu0 0.0
      %2761 = vmatpush1.xpose.msra.mxu0 %v2665
      %2762 = vmatprep.subr.mxu0 0.0
      %2763 = vmatpush1.xpose.msra.mxu0 %v2668
      %2764 = vmatprep.subr.mxu0 0.0
      %2765 = vmatpush1.xpose.msra.mxu0 %v2671
      %2766 = vmatprep.subr.mxu0 0.0
      %2767 = vmatpush1.xpose.msra.mxu0 %v2674
      %2768 = vmatprep.subr.mxu0 0.0
      %2769 = vmatpush1.xpose.msra.mxu0 %v2677
      %2770 = vmatprep.subr.mxu0 0.0
      %2771 = vmatpush1.xpose.msra.mxu0 %v2680
      %2772 = vmatprep.subr.mxu0 0.0
      %2773 = vmatpush1.xpose.msra.mxu0 %v2683
      %2774 = vmatprep.subr.mxu0 0.0
      %2775 = vmatpush1.xpose.msra.mxu0 %v2686
      %2776 = vmatprep.subr.mxu0 0.0
      %2777 = vmatpush1.xpose.msra.mxu0 %v2689
      %2778 = vmatprep.subr.mxu0 0.0
      %2779 = vmatpush1.xpose.msra.mxu0 %v2692
      %2780 = vmatprep.subr.mxu0 0.0
      %2781 = vmatpush1.xpose.msra.mxu0 %v2695
      %2782 = vmatprep.subr.mxu0 0.0
      %2783 = vmatpush1.xpose.msra.mxu0 %v2698
      %2784 = vmatprep.subr.mxu0 0.0
      %2785 = vmatpush1.xpose.msra.mxu0 %v2701
      %2786 = vmatprep.subr.mxu0 0.0
      %2787 = vmatpush1.xpose.msra.mxu0 %v2704
      %2788 = vmatprep.subr.mxu0 0.0
      %2789 = vmatpush1.xpose.msra.mxu0 %v2707
      %2790 = vmatprep.subr.mxu0 0.0
      %2791 = vmatpush1.xpose.msra.mxu0 %v2710
      %2792 = vmatprep.subr.mxu0 0.0
      %2793 = vmatpush1.xpose.msra.mxu0 %v2713
      %2794 = vmatprep.subr.mxu0 0.0
      %2795 = vmatpush1.xpose.msra.mxu0 %v2716
      %2796 = vmatprep.subr.mxu0 0.0
      %2797 = vmatpush1.xpose.msra.mxu0 %v2719
      %2798 = vmatprep.subr.mxu0 0.0
      %2799 = vmatpush1.xpose.msra.mxu0 %v2722
      %2800 = vmatprep.subr.mxu0 0.0
      %2801 = vmatpush1.xpose.msra.mxu0 %v2725
      %2802 = vmatprep.subr.mxu0 0.0
      %2803 = vmatpush1.xpose.msra.mxu0 %v2728
      %2804 = vmatprep.subr.mxu0 0.0
      %2805 = vmatpush1.xpose.msra.mxu0 %v2731
      %2806 = vmatprep.subr.mxu0 0.0
      %2807 = vmatpush1.xpose.msra.mxu0 %v2734
      %2808 = vmatprep.subr.mxu0 0.0
      %2809 = vmatpush1.xpose.msra.mxu0 %v2737
      %2810 = vmatprep.subr.mxu0 0.0
      %2811 = vmatpush1.xpose.msra.mxu0 %v2740
      %2812 = vmatprep.subr.mxu0 0.0
      %2813 = vmatpush1.xpose.msra.mxu0 %v2743
      %2814 = vmatprep.subr.mxu0 0.0
      %2815 = vmatpush1.xpose.msra.mxu0 %v2746
      %2816 = vmatprep.subr.mxu0 0.0
      %2817 = vmatpush1.xpose.msra.mxu0 %v2749
      %2818 = vmatprep.subr.mxu0 0.0
      %2819 = vmatpush1.xpose.msra.mxu0 %v2752
      %2820 = vmatprep.subr.mxu0 0.0
      %2821 = vmatpush1.xpose.msra.mxu0 %v2755
      %2822 = vmatprep.subr.mxu0 0.0
      %2823 = vmatpush1.xpose.msra.mxu0 %v2758
      %2824 = vmatprep.mubr.f32.mxu0 0.0
      %2825 = vmatmul.mubr.f32.gmra.mrb[0].mxu0 %v2662
      %v2826 = vpop.f32.mrb[0].mxu0
      %v2827 = vadd.f32 %v2658, %v2826
      %v2828 = vpop.f32.mrb[0].mxu0
      %v2829 = vadd.f32 %v2658, %v2828
      %2830 = vdwg.mxu0
      %v2831 = vmax.f32 %v2827, 0.0
      %v2832 = vmax.f32 %v2829, 0.0
      %2833 = vst [vmem:[%s440 + $0x10] sm:$0xff] %v2831
      %2834 = vst [vmem:[%s440 + $0x18] sm:$0xff] %v2832
      %v2835 = vld [vmem:[%s7] sm:$0xf]
      %v2836 = vld [vmem:[%s8] sm:$0x1]
      %v2838 = vlaneseq
      %v2839 = vshrl.u32 %v2838, 7
      %v2840 = vsub.s32 0, %v2839
      %v2841 = vrot.slane %v2836, %v2840
      %v2844 = vsel %vm663, %v2835, 0
      %2846 = vmatprep.subr.mxu0 0.0
      %2847 = vmatpush1.msra.mxu0 %v2844
      %2848 = vmatprep.subr.mxu0 0.0
      %2849 = vmatpush1.msra.mxu0 0.0
      %2850 = vmatprep.subr.mxu0 0.0
      %2851 = vmatpush1.msra.mxu0 0.0
      %2852 = vmatprep.subr.mxu0 0.0
      %2853 = vmatpush1.msra.mxu0 0.0
      %2854 = vmatprep.subr.mxu0 0.0
      %2855 = vmatpush1.msra.mxu0 0.0
      %2856 = vmatprep.subr.mxu0 0.0
      %2857 = vmatpush1.msra.mxu0 0.0
      %2858 = vmatprep.subr.mxu0 0.0
      %2859 = vmatpush1.msra.mxu0 0.0
      %2860 = vmatprep.subr.mxu0 0.0
      %2861 = vmatpush1.msra.mxu0 0.0
      %2862 = vmatprep.subr.mxu0 0.0
      %2863 = vmatpush1.msra.mxu0 0.0
      %2864 = vmatprep.subr.mxu0 0.0
      %2865 = vmatpush1.msra.mxu0 0.0
      %2866 = vmatprep.subr.mxu0 0.0
      %2867 = vmatpush1.msra.mxu0 0.0
      %2868 = vmatprep.subr.mxu0 0.0
      %2869 = vmatpush1.msra.mxu0 0.0
      %2870 = vmatprep.subr.mxu0 0.0
      %2871 = vmatpush1.msra.mxu0 0.0
      %2872 = vmatprep.subr.mxu0 0.0
      %2873 = vmatpush1.msra.mxu0 0.0
      %2874 = vmatprep.subr.mxu0 0.0
      %2875 = vmatpush1.msra.mxu0 0.0
      %2876 = vmatprep.subr.mxu0 0.0
      %2877 = vmatpush1.msra.mxu0 0.0
      %2878 = vmatprep.subr.mxu0 0.0
      %2879 = vmatpush1.msra.mxu0 0.0
      %2880 = vmatprep.subr.mxu0 0.0
      %2881 = vmatpush1.msra.mxu0 0.0
      %2882 = vmatprep.subr.mxu0 0.0
      %2883 = vmatpush1.msra.mxu0 0.0
      %2884 = vmatprep.subr.mxu0 0.0
      %2885 = vmatpush1.msra.mxu0 0.0
      %2886 = vmatprep.subr.mxu0 0.0
      %2887 = vmatpush1.msra.mxu0 0.0
      %2888 = vmatprep.subr.mxu0 0.0
      %2889 = vmatpush1.msra.mxu0 0.0
      %2890 = vmatprep.subr.mxu0 0.0
      %2891 = vmatpush1.msra.mxu0 0.0
      %2892 = vmatprep.subr.mxu0 0.0
      %2893 = vmatpush1.msra.mxu0 0.0
      %2894 = vmatprep.subr.mxu0 0.0
      %2895 = vmatpush1.msra.mxu0 0.0
      %2896 = vmatprep.subr.mxu0 0.0
      %2897 = vmatpush1.msra.mxu0 0.0
      %2898 = vmatprep.subr.mxu0 0.0
      %2899 = vmatpush1.msra.mxu0 0.0
      %2900 = vmatprep.subr.mxu0 0.0
      %2901 = vmatpush1.msra.mxu0 0.0
      %2902 = vmatprep.subr.mxu0 0.0
      %2903 = vmatpush1.msra.mxu0 0.0
      %2904 = vmatprep.subr.mxu0 0.0
      %2905 = vmatpush1.msra.mxu0 0.0
      %2906 = vmatprep.subr.mxu0 0.0
      %2907 = vmatpush1.msra.mxu0 0.0
      %2908 = vmatprep.subr.mxu0 0.0
      %2909 = vmatpush1.msra.mxu0 0.0
      %2910 = vmatprep.mubr.f32.mxu0 0.0
      %2911 = vmatmul.mubr.f32.gmra.mrb[0].mxu0 %v485
      %v2912 = vpop.f32.mrb[0].mxu0
      %v2913 = vadd.f32 %v2841, %v2912
      %v2914 = vpop.f32.mrb[0].mxu0
      %2915 = vmatprep.mubr.f32.mxu0 0.0
      %2916 = vmatmul.mubr.f32.gmra.mrb[0].mxu0 %v488
      %v2917 = vpop.f32.mrb[0].mxu0
      %v2918 = vadd.f32 %v2841, %v2917
      %v2919 = vpop.f32.mrb[0].mxu0
      %2920 = vmatprep.mubr.f32.mxu0 0.0
      %2921 = vmatmul.mubr.f32.gmra.mrb[0].mxu0 %v491
      %v2922 = vpop.f32.mrb[0].mxu0
      %v2923 = vadd.f32 %v2841, %v2922
      %v2924 = vpop.f32.mrb[0].mxu0
      %2925 = vmatprep.mubr.f32.mxu0 0.0
      %2926 = vmatmul.mubr.f32.gmra.mrb[0].mxu0 %v494
      %v2927 = vpop.f32.mrb[0].mxu0
      %v2928 = vadd.f32 %v2841, %v2927
      %v2929 = vpop.f32.mrb[0].mxu0
      %2930 = vmatprep.mubr.f32.mxu0 0.0
      %2931 = vmatmul.mubr.f32.gmra.mrb[0].mxu0 %v497
      %v2932 = vpop.f32.mrb[0].mxu0
      %v2933 = vadd.f32 %v2841, %v2932
      %v2934 = vpop.f32.mrb[0].mxu0
      %2935 = vmatprep.mubr.f32.mxu0 0.0
      %2936 = vmatmul.mubr.f32.gmra.mrb[0].mxu0 %v500
      %v2937 = vpop.f32.mrb[0].mxu0
      %v2938 = vadd.f32 %v2841, %v2937
      %v2939 = vpop.f32.mrb[0].mxu0
      %2940 = vmatprep.mubr.f32.mxu0 0.0
      %2941 = vmatmul.mubr.f32.gmra.mrb[0].mxu0 %v503
      %v2942 = vpop.f32.mrb[0].mxu0
      %v2943 = vadd.f32 %v2841, %v2942
      %v2944 = vpop.f32.mrb[0].mxu0
      %2945 = vmatprep.mubr.f32.mxu0 0.0
      %2946 = vmatmul.mubr.f32.gmra.mrb[0].mxu0 %v506
      %v2947 = vpop.f32.mrb[0].mxu0
      %v2948 = vadd.f32 %v2841, %v2947
      %v2949 = vpop.f32.mrb[0].mxu0
      %2950 = vmatprep.mubr.f32.mxu0 0.0
      %2951 = vmatmul.mubr.f32.gmra.mrb[0].mxu0 %v509
      %v2952 = vpop.f32.mrb[0].mxu0
      %v2953 = vadd.f32 %v2841, %v2952
      %v2954 = vpop.f32.mrb[0].mxu0
      %2955 = vmatprep.mubr.f32.mxu0 0.0
      %2956 = vmatmul.mubr.f32.gmra.mrb[0].mxu0 %v512
      %v2957 = vpop.f32.mrb[0].mxu0
      %v2958 = vadd.f32 %v2841, %v2957
      %v2959 = vpop.f32.mrb[0].mxu0
      %2960 = vmatprep.mubr.f32.mxu0 0.0
      %2961 = vmatmul.mubr.f32.gmra.mrb[0].mxu0 %v515
      %v2962 = vpop.f32.mrb[0].mxu0
      %v2963 = vadd.f32 %v2841, %v2962
      %v2964 = vpop.f32.mrb[0].mxu0
      %2965 = vmatprep.mubr.f32.mxu0 0.0
      %2966 = vmatmul.mubr.f32.gmra.mrb[0].mxu0 %v518
      %v2967 = vpop.f32.mrb[0].mxu0
      %v2968 = vadd.f32 %v2841, %v2967
      %v2969 = vpop.f32.mrb[0].mxu0
      %2970 = vmatprep.mubr.f32.mxu0 0.0
      %2971 = vmatmul.mubr.f32.gmra.mrb[0].mxu0 %v521
      %v2972 = vpop.f32.mrb[0].mxu0
      %v2973 = vadd.f32 %v2841, %v2972
      %v2974 = vpop.f32.mrb[0].mxu0
      %2975 = vmatprep.mubr.f32.mxu0 0.0
      %2976 = vmatmul.mubr.f32.gmra.mrb[0].mxu0 %v524
      %v2977 = vpop.f32.mrb[0].mxu0
      %v2978 = vadd.f32 %v2841, %v2977
      %v2979 = vpop.f32.mrb[0].mxu0
      %2980 = vmatprep.mubr.f32.mxu0 0.0
      %2981 = vmatmul.mubr.f32.gmra.mrb[0].mxu0 %v527
      %v2982 = vpop.f32.mrb[0].mxu0
      %v2983 = vadd.f32 %v2841, %v2982
      %v2984 = vpop.f32.mrb[0].mxu0
      %2985 = vmatprep.mubr.f32.mxu0 0.0
      %2986 = vmatmul.mubr.f32.gmra.mrb[0].mxu0 %v530
      %v2987 = vpop.f32.mrb[0].mxu0
      %v2988 = vadd.f32 %v2841, %v2987
      %v2989 = vpop.f32.mrb[0].mxu0
      %2990 = vmatprep.mubr.f32.mxu0 0.0
      %2991 = vmatmul.mubr.f32.gmra.mrb[0].mxu0 %v533
      %v2992 = vpop.f32.mrb[0].mxu0
      %v2993 = vadd.f32 %v2841, %v2992
      %v2994 = vpop.f32.mrb[0].mxu0
      %2995 = vmatprep.mubr.f32.mxu0 0.0
      %2996 = vmatmul.mubr.f32.gmra.mrb[0].mxu0 %v536
      %v2997 = vpop.f32.mrb[0].mxu0
      %v2998 = vadd.f32 %v2841, %v2997
      %v2999 = vpop.f32.mrb[0].mxu0
      %3000 = vmatprep.mubr.f32.mxu0 0.0
      %3001 = vmatmul.mubr.f32.gmra.mrb[0].mxu0 %v539
      %v3002 = vpop.f32.mrb[0].mxu0
      %v3003 = vadd.f32 %v2841, %v3002
      %v3004 = vpop.f32.mrb[0].mxu0
      %3005 = vmatprep.mubr.f32.mxu0 0.0
      %3006 = vmatmul.mubr.f32.gmra.mrb[0].mxu0 %v542
      %v3007 = vpop.f32.mrb[0].mxu0
      %v3008 = vadd.f32 %v2841, %v3007
      %v3009 = vpop.f32.mrb[0].mxu0
      %3010 = vmatprep.mubr.f32.mxu0 0.0
      %3011 = vmatmul.mubr.f32.gmra.mrb[0].mxu0 %v545
      %v3012 = vpop.f32.mrb[0].mxu0
      %v3013 = vadd.f32 %v2841, %v3012
      %v3014 = vpop.f32.mrb[0].mxu0
      %3015 = vmatprep.mubr.f32.mxu0 0.0
      %3016 = vmatmul.mubr.f32.gmra.mrb[0].mxu0 %v548
      %v3017 = vpop.f32.mrb[0].mxu0
      %v3018 = vadd.f32 %v2841, %v3017
      %v3019 = vpop.f32.mrb[0].mxu0
      %3020 = vmatprep.mubr.f32.mxu0 0.0
      %3021 = vmatmul.mubr.f32.gmra.mrb[0].mxu0 %v551
      %v3022 = vpop.f32.mrb[0].mxu0
      %v3023 = vadd.f32 %v2841, %v3022
      %v3024 = vpop.f32.mrb[0].mxu0
      %3025 = vmatprep.mubr.f32.mxu0 0.0
      %3026 = vmatmul.mubr.f32.gmra.mrb[0].mxu0 %v554
      %v3027 = vpop.f32.mrb[0].mxu0
      %v3028 = vadd.f32 %v2841, %v3027
      %v3029 = vpop.f32.mrb[0].mxu0
      %3030 = vmatprep.mubr.f32.mxu0 0.0
      %3031 = vmatmul.mubr.f32.gmra.mrb[0].mxu0 %v557
      %v3032 = vpop.f32.mrb[0].mxu0
      %v3033 = vadd.f32 %v2841, %v3032
      %v3034 = vpop.f32.mrb[0].mxu0
      %3035 = vmatprep.mubr.f32.mxu0 0.0
      %3036 = vmatmul.mubr.f32.gmra.mrb[0].mxu0 %v560
      %v3037 = vpop.f32.mrb[0].mxu0
      %v3038 = vadd.f32 %v2841, %v3037
      %v3039 = vpop.f32.mrb[0].mxu0
      %3040 = vmatprep.mubr.f32.mxu0 0.0
      %3041 = vmatmul.mubr.f32.gmra.mrb[0].mxu0 %v563
      %v3042 = vpop.f32.mrb[0].mxu0
      %v3043 = vadd.f32 %v2841, %v3042
      %v3044 = vpop.f32.mrb[0].mxu0
      %3045 = vmatprep.mubr.f32.mxu0 0.0
      %3046 = vmatmul.mubr.f32.gmra.mrb[0].mxu0 %v566
      %v3047 = vpop.f32.mrb[0].mxu0
      %v3048 = vadd.f32 %v2841, %v3047
      %v3049 = vpop.f32.mrb[0].mxu0
      %3050 = vmatprep.mubr.f32.mxu0 0.0
      %3051 = vmatmul.mubr.f32.gmra.mrb[0].mxu0 %v569
      %v3052 = vpop.f32.mrb[0].mxu0
      %v3053 = vadd.f32 %v2841, %v3052
      %v3054 = vpop.f32.mrb[0].mxu0
      %3055 = vmatprep.mubr.f32.mxu0 0.0
      %3056 = vmatmul.mubr.f32.gmra.mrb[0].mxu0 %v572
      %v3057 = vpop.f32.mrb[0].mxu0
      %v3058 = vadd.f32 %v2841, %v3057
      %v3059 = vpop.f32.mrb[0].mxu0
      %3060 = vmatprep.mubr.f32.mxu0 0.0
      %3061 = vmatmul.mubr.f32.gmra.mrb[0].mxu0 %v575
      %v3062 = vpop.f32.mrb[0].mxu0
      %v3063 = vadd.f32 %v2841, %v3062
      %v3064 = vpop.f32.mrb[0].mxu0
      %3065 = vmatprep.mubr.f32.mxu0 0.0
      %3066 = vmatmul.mubr.f32.gmra.mrb[0].mxu0 %v578
      %v3067 = vpop.f32.mrb[0].mxu0
      %v3068 = vadd.f32 %v2841, %v3067
      %v3069 = vpop.f32.mrb[0].mxu0
      %3070 = vdwg.mxu0
      %v3071 = vmax.f32 %v2913, 0.0
      %v3072 = vmax.f32 %v2918, 0.0
      %v3073 = vmax.f32 %v2923, 0.0
      %v3074 = vmax.f32 %v2928, 0.0
      %v3075 = vmax.f32 %v2933, 0.0
      %v3076 = vmax.f32 %v2938, 0.0
      %v3077 = vmax.f32 %v2943, 0.0
      %v3078 = vmax.f32 %v2948, 0.0
      %v3079 = vmax.f32 %v2953, 0.0
      %v3080 = vmax.f32 %v2958, 0.0
      %v3081 = vmax.f32 %v2963, 0.0
      %v3082 = vmax.f32 %v2968, 0.0
      %v3083 = vmax.f32 %v2973, 0.0
      %v3084 = vmax.f32 %v2978, 0.0
      %v3085 = vmax.f32 %v2983, 0.0
      %v3086 = vmax.f32 %v2988, 0.0
      %v3087 = vmax.f32 %v2993, 0.0
      %v3088 = vmax.f32 %v2998, 0.0
      %v3089 = vmax.f32 %v3003, 0.0
      %v3090 = vmax.f32 %v3008, 0.0
      %v3091 = vmax.f32 %v3013, 0.0
      %v3092 = vmax.f32 %v3018, 0.0
      %v3093 = vmax.f32 %v3023, 0.0
      %v3094 = vmax.f32 %v3028, 0.0
      %v3095 = vmax.f32 %v3033, 0.0
      %v3096 = vmax.f32 %v3038, 0.0
      %v3097 = vmax.f32 %v3043, 0.0
      %v3098 = vmax.f32 %v3048, 0.0
      %v3099 = vmax.f32 %v3053, 0.0
      %v3100 = vmax.f32 %v3058, 0.0
      %v3101 = vmax.f32 %v3063, 0.0
      %v3102 = vmax.f32 %v3068, 0.0
      %3103 = vst.msk [vmem:[#allocation3] sm:$0xff] %vm480, 0.0
      %3104 = vst.msk [vmem:[#allocation3 + $0x8] sm:$0xff] %vm480, 0.0
      %vm3105 = vcmask 27648
      %3106 = vst.msk [vmem:[#allocation3 + $0x10] sm:$0xf] %vm3105, 0.0
      %3107 = vst.msk [vmem:[#allocation3 + $0x18] sm:$0xff] %vm480, 0.0
      %3108 = vst.msk [vmem:[#allocation3 + $0x20] sm:$0xff] %vm480, 0.0
      %3109 = vst.msk [vmem:[#allocation3 + $0x28] sm:$0xf] %vm3105, 0.0
      %3110 = vst.msk [vmem:[#allocation3 + $0x30] sm:$0xff] %vm480, 0.0
      %3111 = vst.msk [vmem:[#allocation3 + $0x38] sm:$0xff] %vm480, 0.0
      %3112 = vst.msk [vmem:[#allocation3 + $0x40] sm:$0xf] %vm3105, 0.0
      %3113 = vst.msk [vmem:[#allocation3 + $0x48] sm:$0xff] %vm480, 0.0
      %3114 = vst.msk [vmem:[#allocation3 + $0x50] sm:$0xff] %vm480, 0.0
      %3115 = vst.msk [vmem:[#allocation3 + $0x58] sm:$0xf] %vm3105, 0.0
      %3116 = vst.msk [vmem:[#allocation3 + $0x60] sm:$0xff] %vm480, 0.0
      %3117 = vst.msk [vmem:[#allocation3 + $0x68] sm:$0xff] %vm480, 0.0
      %3118 = vst.msk [vmem:[#allocation3 + $0x70] sm:$0xf] %vm3105, 0.0
      %3119 = vst.msk [vmem:[#allocation3 + $0x78] sm:$0xff] %vm480, 0.0
      %3120 = vst.msk [vmem:[#allocation3 + $0x80] sm:$0xff] %vm480, 0.0
      %3121 = vst.msk [vmem:[#allocation3 + $0x88] sm:$0xf] %vm3105, 0.0
      %3122 = vst.msk [vmem:[#allocation3 + $0x90] sm:$0xff] %vm480, 0.0
      %3123 = vst.msk [vmem:[#allocation3 + $0x98] sm:$0xff] %vm480, 0.0
      %3124 = vst.msk [vmem:[#allocation3 + $0xa0] sm:$0xf] %vm3105, 0.0
      %3125 = vst.msk [vmem:[#allocation3 + $0xa8] sm:$0xff] %vm480, 0.0
      %3126 = vst.msk [vmem:[#allocation3 + $0xb0] sm:$0xff] %vm480, 0.0
      %3127 = vst.msk [vmem:[#allocation3 + $0xb8] sm:$0xf] %vm3105, 0.0
      %3128 = vst.msk [vmem:[#allocation3 + $0xc0] sm:$0xff] %vm480, 0.0
      %3129 = vst.msk [vmem:[#allocation3 + $0xc8] sm:$0xff] %vm480, 0.0
      %3130 = vst.msk [vmem:[#allocation3 + $0xd0] sm:$0xf] %vm3105, 0.0
      %3131 = vst.msk [vmem:[#allocation3 + $0xd8] sm:$0xff] %vm480, 0.0
      %3132 = vst.msk [vmem:[#allocation3 + $0xe0] sm:$0xff] %vm480, 0.0
      %3133 = vst.msk [vmem:[#allocation3 + $0xe8] sm:$0xf] %vm3105, 0.0
      %3134 = vst.msk [vmem:[#allocation3 + $0xf0] sm:$0xff] %vm480, 0.0
      %3135 = vst.msk [vmem:[#allocation3 + $0xf8] sm:$0xff] %vm480, 0.0
      %3136 = vst.msk [vmem:[#allocation3 + $0x100] sm:$0xf] %vm3105, 0.0
      %3137 = vst.msk [vmem:[#allocation3 + $0x108] sm:$0xff] %vm480, 0.0
      %3138 = vst.msk [vmem:[#allocation3 + $0x110] sm:$0xff] %vm480, 0.0
      %3139 = vst.msk [vmem:[#allocation3 + $0x118] sm:$0xf] %vm3105, 0.0
      %3140 = vst.msk [vmem:[#allocation3 + $0x120] sm:$0xff] %vm480, 0.0
      %3141 = vst.msk [vmem:[#allocation3 + $0x128] sm:$0xff] %vm480, 0.0
      %3142 = vst.msk [vmem:[#allocation3 + $0x130] sm:$0xf] %vm3105, 0.0
      %3143 = vst.msk [vmem:[#allocation3 + $0x138] sm:$0xff] %vm480, 0.0
      %3144 = vst.msk [vmem:[#allocation3 + $0x140] sm:$0xff] %vm480, 0.0
      %3145 = vst.msk [vmem:[#allocation3 + $0x148] sm:$0xf] %vm3105, 0.0
      %3146 = vst.msk [vmem:[#allocation3 + $0x150] sm:$0xff] %vm480, 0.0
      %3147 = vst.msk [vmem:[#allocation3 + $0x158] sm:$0xff] %vm480, 0.0
      %3148 = vst.msk [vmem:[#allocation3 + $0x160] sm:$0xf] %vm3105, 0.0
      %3149 = vst.msk [vmem:[#allocation3 + $0x168] sm:$0xff] %vm480, 0.0
      %3150 = vst.msk [vmem:[#allocation3 + $0x170] sm:$0xff] %vm480, 0.0
      %3151 = vst.msk [vmem:[#allocation3 + $0x178] sm:$0xf] %vm3105, 0.0
      %3152 = vst.msk [vmem:[#allocation3 + $0x180] sm:$0xff] %vm480, 0.0
      %3153 = vst.msk [vmem:[#allocation3 + $0x188] sm:$0xff] %vm480, 0.0
      %3154 = vst.msk [vmem:[#allocation3 + $0x190] sm:$0xf] %vm3105, 0.0
      %3155 = vst.msk [vmem:[#allocation3 + $0x198] sm:$0xff] %vm480, 0.0
      %3156 = vst.msk [vmem:[#allocation3 + $0x1a0] sm:$0xff] %vm480, 0.0
      %3157 = vst.msk [vmem:[#allocation3 + $0x1a8] sm:$0xf] %vm3105, 0.0
      %3158 = vst.msk [vmem:[#allocation3 + $0x1b0] sm:$0xff] %vm480, 0.0
      %3159 = vst.msk [vmem:[#allocation3 + $0x1b8] sm:$0xff] %vm480, 0.0
      %3160 = vst.msk [vmem:[#allocation3 + $0x1c0] sm:$0xf] %vm3105, 0.0
      %3161 = vst.msk [vmem:[#allocation3 + $0x1c8] sm:$0xff] %vm480, 0.0
      %3162 = vst.msk [vmem:[#allocation3 + $0x1d0] sm:$0xff] %vm480, 0.0
      %3163 = vst.msk [vmem:[#allocation3 + $0x1d8] sm:$0xf] %vm3105, 0.0
      %s3164 = scalar_lea.vmem [#allocation3], 48
      %3165 = vst.msk [vmem:[%s3164 + $0x2] sm:$0xff] %vm480, %v3071
      %3166 = vst.msk [vmem:[%s3164 + $0xa] sm:$0xff] %vm480, %v3072
      %3167 = vst.msk [vmem:[%s3164 + $0x1a] sm:$0xff] %vm480, %v3073
      %3168 = vst.msk [vmem:[%s3164 + $0x22] sm:$0xff] %vm480, %v3074
      %3169 = vst.msk [vmem:[%s3164 + $0x32] sm:$0xff] %vm480, %v3075
      %3170 = vst.msk [vmem:[%s3164 + $0x3a] sm:$0xff] %vm480, %v3076
      %3171 = vst.msk [vmem:[%s3164 + $0x4a] sm:$0xff] %vm480, %v3077
      %3172 = vst.msk [vmem:[%s3164 + $0x52] sm:$0xff] %vm480, %v3078
      %3173 = vst.msk [vmem:[%s3164 + $0x62] sm:$0xff] %vm480, %v3079
      %3174 = vst.msk [vmem:[%s3164 + $0x6a] sm:$0xff] %vm480, %v3080
      %3175 = vst.msk [vmem:[%s3164 + $0x7a] sm:$0xff] %vm480, %v3081
      %3176 = vst.msk [vmem:[%s3164 + $0x82] sm:$0xff] %vm480, %v3082
      %3177 = vst.msk [vmem:[%s3164 + $0x92] sm:$0xff] %vm480, %v3083
      %3178 = vst.msk [vmem:[%s3164 + $0x9a] sm:$0xff] %vm480, %v3084
      %3179 = vst.msk [vmem:[%s3164 + $0xaa] sm:$0xff] %vm480, %v3085
      %3180 = vst.msk [vmem:[%s3164 + $0xb2] sm:$0xff] %vm480, %v3086
      %3181 = vst.msk [vmem:[%s3164 + $0xc2] sm:$0xff] %vm480, %v3087
      %3182 = vst.msk [vmem:[%s3164 + $0xca] sm:$0xff] %vm480, %v3088
      %3183 = vst.msk [vmem:[%s3164 + $0xda] sm:$0xff] %vm480, %v3089
      %3184 = vst.msk [vmem:[%s3164 + $0xe2] sm:$0xff] %vm480, %v3090
      %3185 = vst.msk [vmem:[%s3164 + $0xf2] sm:$0xff] %vm480, %v3091
      %3186 = vst.msk [vmem:[%s3164 + $0xfa] sm:$0xff] %vm480, %v3092
      %3187 = vst.msk [vmem:[%s3164 + $0x10a] sm:$0xff] %vm480, %v3093
      %3188 = vst.msk [vmem:[%s3164 + $0x112] sm:$0xff] %vm480, %v3094
      %3189 = vst.msk [vmem:[%s3164 + $0x122] sm:$0xff] %vm480, %v3095
      %3190 = vst.msk [vmem:[%s3164 + $0x12a] sm:$0xff] %vm480, %v3096
      %3191 = vst.msk [vmem:[%s3164 + $0x13a] sm:$0xff] %vm480, %v3097
      %3192 = vst.msk [vmem:[%s3164 + $0x142] sm:$0xff] %vm480, %v3098
      %3193 = vst.msk [vmem:[%s3164 + $0x152] sm:$0xff] %vm480, %v3099
      %3194 = vst.msk [vmem:[%s3164 + $0x15a] sm:$0xff] %vm480, %v3100
      %3195 = vst.msk [vmem:[%s3164 + $0x16a] sm:$0xff] %vm480, %v3101
      %3196 = vst.msk [vmem:[%s3164 + $0x172] sm:$0xff] %vm480, %v3102
      %v3197 = vld [vmem:[#allocation3] sm:$0xff]
      %v3198 = vld [vmem:[#allocation3 + $0x8] sm:$0xff]
      %v3199 = vld [vmem:[#allocation3 + $0x18] sm:$0xff]
      %v3200 = vld [vmem:[#allocation3 + $0x20] sm:$0xff]
      %v3201 = vld [vmem:[#allocation3 + $0x30] sm:$0xff]
      %v3202 = vld [vmem:[#allocation3 + $0x38] sm:$0xff]
      %v3203 = vld [vmem:[#allocation3 + $0x48] sm:$0xff]
      %v3204 = vld [vmem:[#allocation3 + $0x50] sm:$0xff]
      %v3205 = vld [vmem:[#allocation3 + $0x60] sm:$0xff]
      %v3206 = vld [vmem:[#allocation3 + $0x68] sm:$0xff]
      %v3207 = vld [vmem:[#allocation3 + $0x78] sm:$0xff]
      %v3208 = vld [vmem:[#allocation3 + $0x80] sm:$0xff]
      %v3209 = vld [vmem:[#allocation3 + $0x90] sm:$0xff]
      %v3210 = vld [vmem:[#allocation3 + $0x98] sm:$0xff]
      %v3211 = vld [vmem:[#allocation3 + $0xa8] sm:$0xff]
      %v3212 = vld [vmem:[#allocation3 + $0xb0] sm:$0xff]
      %v3213 = vld [vmem:[#allocation3 + $0xc0] sm:$0xff]
      %v3214 = vld [vmem:[#allocation3 + $0xc8] sm:$0xff]
      %v3215 = vld [vmem:[#allocation3 + $0xd8] sm:$0xff]
      %v3216 = vld [vmem:[#allocation3 + $0xe0] sm:$0xff]
      %v3217 = vld [vmem:[#allocation3 + $0xf0] sm:$0xff]
      %v3218 = vld [vmem:[#allocation3 + $0xf8] sm:$0xff]
      %v3219 = vld [vmem:[#allocation3 + $0x108] sm:$0xff]
      %v3220 = vld [vmem:[#allocation3 + $0x110] sm:$0xff]
      %v3221 = vld [vmem:[#allocation3 + $0x120] sm:$0xff]
      %v3222 = vld [vmem:[#allocation3 + $0x128] sm:$0xff]
      %v3223 = vld [vmem:[#allocation3 + $0x138] sm:$0xff]
      %v3224 = vld [vmem:[#allocation3 + $0x140] sm:$0xff]
      %v3225 = vld [vmem:[#allocation3 + $0x150] sm:$0xff]
      %v3226 = vld [vmem:[#allocation3 + $0x158] sm:$0xff]
      %v3227 = vld [vmem:[#allocation3 + $0x168] sm:$0xff]
      %v3228 = vld [vmem:[#allocation3 + $0x170] sm:$0xff]
      %3229 = vst.msk [vmem:[#allocation6] sm:$0xff] %vm480, %v3197
      %3230 = vst.msk [vmem:[#allocation6 + $0x8] sm:$0xff] %vm480, %v3198
      %3231 = vst.msk [vmem:[#allocation6 + $0x10] sm:$0xff] %vm480, %v3199
      %3232 = vst.msk [vmem:[#allocation6 + $0x18] sm:$0xff] %vm480, %v3200
      %3233 = vst.msk [vmem:[#allocation6 + $0x20] sm:$0xff] %vm480, %v3201
      %3234 = vst.msk [vmem:[#allocation6 + $0x28] sm:$0xff] %vm480, %v3202
      %3235 = vst.msk [vmem:[#allocation6 + $0x30] sm:$0xff] %vm480, %v3203
      %3236 = vst.msk [vmem:[#allocation6 + $0x38] sm:$0xff] %vm480, %v3204
      %3237 = vst.msk [vmem:[#allocation6 + $0x40] sm:$0xff] %vm480, %v3205
      %3238 = vst.msk [vmem:[#allocation6 + $0x48] sm:$0xff] %vm480, %v3206
      %3239 = vst.msk [vmem:[#allocation6 + $0x50] sm:$0xff] %vm480, %v3207
      %3240 = vst.msk [vmem:[#allocation6 + $0x58] sm:$0xff] %vm480, %v3208
      %3241 = vst.msk [vmem:[#allocation6 + $0x60] sm:$0xff] %vm480, %v3209
      %3242 = vst.msk [vmem:[#allocation6 + $0x68] sm:$0xff] %vm480, %v3210
      %3243 = vst.msk [vmem:[#allocation6 + $0x70] sm:$0xff] %vm480, %v3211
      %3244 = vst.msk [vmem:[#allocation6 + $0x78] sm:$0xff] %vm480, %v3212
      %3245 = vst.msk [vmem:[#allocation6 + $0x80] sm:$0xff] %vm480, %v3213
      %3246 = vst.msk [vmem:[#allocation6 + $0x88] sm:$0xff] %vm480, %v3214
      %3247 = vst.msk [vmem:[#allocation6 + $0x90] sm:$0xff] %vm480, %v3215
      %3248 = vst.msk [vmem:[#allocation6 + $0x98] sm:$0xff] %vm480, %v3216
      %3249 = vst.msk [vmem:[#allocation6 + $0xa0] sm:$0xff] %vm480, %v3217
      %3250 = vst.msk [vmem:[#allocation6 + $0xa8] sm:$0xff] %vm480, %v3218
      %3251 = vst.msk [vmem:[#allocation6 + $0xb0] sm:$0xff] %vm480, %v3219
      %3252 = vst.msk [vmem:[#allocation6 + $0xb8] sm:$0xff] %vm480, %v3220
      %3253 = vst.msk [vmem:[#allocation6 + $0xc0] sm:$0xff] %vm480, %v3221
      %3254 = vst.msk [vmem:[#allocation6 + $0xc8] sm:$0xff] %vm480, %v3222
      %3255 = vst.msk [vmem:[#allocation6 + $0xd0] sm:$0xff] %vm480, %v3223
      %3256 = vst.msk [vmem:[#allocation6 + $0xd8] sm:$0xff] %vm480, %v3224
      %3257 = vst.msk [vmem:[#allocation6 + $0xe0] sm:$0xff] %vm480, %v3225
      %3258 = vst.msk [vmem:[#allocation6 + $0xe8] sm:$0xff] %vm480, %v3226
      %3259 = vst.msk [vmem:[#allocation6 + $0xf0] sm:$0xff] %vm480, %v3227
      %3260 = vst.msk [vmem:[#allocation6 + $0xf8] sm:$0xff] %vm480, %v3228
      %v3261 = vld [vmem:[#allocation3 + $0x1] sm:$0xff]
      %v3262 = vld [vmem:[#allocation3 + $0x9] sm:$0xff]
      %v3263 = vld [vmem:[#allocation3 + $0x19] sm:$0xff]
      %v3264 = vld [vmem:[#allocation3 + $0x21] sm:$0xff]
      %v3265 = vld [vmem:[#allocation3 + $0x31] sm:$0xff]
      %v3266 = vld [vmem:[#allocation3 + $0x39] sm:$0xff]
      %v3267 = vld [vmem:[#allocation3 + $0x49] sm:$0xff]
      %v3268 = vld [vmem:[#allocation3 + $0x51] sm:$0xff]
      %v3269 = vld [vmem:[#allocation3 + $0x61] sm:$0xff]
      %v3270 = vld [vmem:[#allocation3 + $0x69] sm:$0xff]
      %v3271 = vld [vmem:[#allocation3 + $0x79] sm:$0xff]
      %v3272 = vld [vmem:[#allocation3 + $0x81] sm:$0xff]
      %v3273 = vld [vmem:[#allocation3 + $0x91] sm:$0xff]
      %v3274 = vld [vmem:[#allocation3 + $0x99] sm:$0xff]
      %v3275 = vld [vmem:[#allocation3 + $0xa9] sm:$0xff]
      %v3276 = vld [vmem:[#allocation3 + $0xb1] sm:$0xff]
      %v3277 = vld [vmem:[#allocation3 + $0xc1] sm:$0xff]
      %v3278 = vld [vmem:[#allocation3 + $0xc9] sm:$0xff]
      %v3279 = vld [vmem:[#allocation3 + $0xd9] sm:$0xff]
      %v3280 = vld [vmem:[#allocation3 + $0xe1] sm:$0xff]
      %v3281 = vld [vmem:[#allocation3 + $0xf1] sm:$0xff]
      %v3282 = vld [vmem:[#allocation3 + $0xf9] sm:$0xff]
      %v3283 = vld [vmem:[#allocation3 + $0x109] sm:$0xff]
      %v3284 = vld [vmem:[#allocation3 + $0x111] sm:$0xff]
      %v3285 = vld [vmem:[#allocation3 + $0x121] sm:$0xff]
      %v3286 = vld [vmem:[#allocation3 + $0x129] sm:$0xff]
      %v3287 = vld [vmem:[#allocation3 + $0x139] sm:$0xff]
      %v3288 = vld [vmem:[#allocation3 + $0x141] sm:$0xff]
      %v3289 = vld [vmem:[#allocation3 + $0x151] sm:$0xff]
      %v3290 = vld [vmem:[#allocation3 + $0x159] sm:$0xff]
      %v3291 = vld [vmem:[#allocation3 + $0x169] sm:$0xff]
      %v3292 = vld [vmem:[#allocation3 + $0x171] sm:$0xff]
      %3325 = vrot.lane.b32.xlu0 %v3261, 4
      %v3326 = vpop.permute.xlu0 %3325
      %3327 = vrot.lane.b32.xlu0 %v3262, 4
      %v3328 = vpop.permute.xlu0 %3327
      %3329 = vrot.lane.b32.xlu0 %v3263, 4
      %v3330 = vpop.permute.xlu0 %3329
      %3331 = vrot.lane.b32.xlu0 %v3264, 4
      %v3332 = vpop.permute.xlu0 %3331
      %3333 = vrot.lane.b32.xlu0 %v3265, 4
      %v3334 = vpop.permute.xlu0 %3333
      %3335 = vrot.lane.b32.xlu0 %v3266, 4
      %v3336 = vpop.permute.xlu0 %3335
      %3337 = vrot.lane.b32.xlu0 %v3267, 4
      %v3338 = vpop.permute.xlu0 %3337
      %3339 = vrot.lane.b32.xlu0 %v3268, 4
      %v3340 = vpop.permute.xlu0 %3339
      %3341 = vrot.lane.b32.xlu0 %v3269, 4
      %v3342 = vpop.permute.xlu0 %3341
      %3343 = vrot.lane.b32.xlu0 %v3270, 4
      %v3344 = vpop.permute.xlu0 %3343
      %3345 = vrot.lane.b32.xlu0 %v3271, 4
      %v3346 = vpop.permute.xlu0 %3345
      %3347 = vrot.lane.b32.xlu0 %v3272, 4
      %v3348 = vpop.permute.xlu0 %3347
      %3349 = vrot.lane.b32.xlu0 %v3273, 4
      %v3350 = vpop.permute.xlu0 %3349
      %3351 = vrot.lane.b32.xlu0 %v3274, 4
      %v3352 = vpop.permute.xlu0 %3351
      %3353 = vrot.lane.b32.xlu0 %v3275, 4
      %v3354 = vpop.permute.xlu0 %3353
      %3355 = vrot.lane.b32.xlu0 %v3276, 4
      %v3356 = vpop.permute.xlu0 %3355
      %3357 = vrot.lane.b32.xlu0 %v3277, 4
      %v3358 = vpop.permute.xlu0 %3357
      %3359 = vrot.lane.b32.xlu0 %v3278, 4
      %v3360 = vpop.permute.xlu0 %3359
      %3361 = vrot.lane.b32.xlu0 %v3279, 4
      %v3362 = vpop.permute.xlu0 %3361
      %3363 = vrot.lane.b32.xlu0 %v3280, 4
      %v3364 = vpop.permute.xlu0 %3363
      %3365 = vrot.lane.b32.xlu0 %v3281, 4
      %v3366 = vpop.permute.xlu0 %3365
      %3367 = vrot.lane.b32.xlu0 %v3282, 4
      %v3368 = vpop.permute.xlu0 %3367
      %3369 = vrot.lane.b32.xlu0 %v3283, 4
      %v3370 = vpop.permute.xlu0 %3369
      %3371 = vrot.lane.b32.xlu0 %v3284, 4
      %v3372 = vpop.permute.xlu0 %3371
      %3373 = vrot.lane.b32.xlu0 %v3285, 4
      %v3374 = vpop.permute.xlu0 %3373
      %3375 = vrot.lane.b32.xlu0 %v3286, 4
      %v3376 = vpop.permute.xlu0 %3375
      %3377 = vrot.lane.b32.xlu0 %v3287, 4
      %v3378 = vpop.permute.xlu0 %3377
      %3379 = vrot.lane.b32.xlu0 %v3288, 4
      %v3380 = vpop.permute.xlu0 %3379
      %3381 = vrot.lane.b32.xlu0 %v3289, 4
      %v3382 = vpop.permute.xlu0 %3381
      %3383 = vrot.lane.b32.xlu0 %v3290, 4
      %v3384 = vpop.permute.xlu0 %3383
      %3385 = vrot.lane.b32.xlu0 %v3291, 4
      %v3386 = vpop.permute.xlu0 %3385
      %3387 = vrot.lane.b32.xlu0 %v3292, 4
      %v3388 = vpop.permute.xlu0 %3387
      %3421 = vst.msk [vmem:[#allocation6] sm:$0xff] %vm1236, %v3326
      %3422 = vst.msk [vmem:[#allocation6 + $0x8] sm:$0xff] %vm1236, %v3328
      %3423 = vst.msk [vmem:[#allocation6 + $0x10] sm:$0xff] %vm1236, %v3330
      %3424 = vst.msk [vmem:[#allocation6 + $0x18] sm:$0xff] %vm1236, %v3332
      %3425 = vst.msk [vmem:[#allocation6 + $0x20] sm:$0xff] %vm1236, %v3334
      %3426 = vst.msk [vmem:[#allocation6 + $0x28] sm:$0xff] %vm1236, %v3336
      %3427 = vst.msk [vmem:[#allocation6 + $0x30] sm:$0xff] %vm1236, %v3338
      %3428 = vst.msk [vmem:[#allocation6 + $0x38] sm:$0xff] %vm1236, %v3340
      %3429 = vst.msk [vmem:[#allocation6 + $0x40] sm:$0xff] %vm1236, %v3342
      %3430 = vst.msk [vmem:[#allocation6 + $0x48] sm:$0xff] %vm1236, %v3344
      %3431 = vst.msk [vmem:[#allocation6 + $0x50] sm:$0xff] %vm1236, %v3346
      %3432 = vst.msk [vmem:[#allocation6 + $0x58] sm:$0xff] %vm1236, %v3348
      %3433 = vst.msk [vmem:[#allocation6 + $0x60] sm:$0xff] %vm1236, %v3350
      %3434 = vst.msk [vmem:[#allocation6 + $0x68] sm:$0xff] %vm1236, %v3352
      %3435 = vst.msk [vmem:[#allocation6 + $0x70] sm:$0xff] %vm1236, %v3354
      %3436 = vst.msk [vmem:[#allocation6 + $0x78] sm:$0xff] %vm1236, %v3356
      %3437 = vst.msk [vmem:[#allocation6 + $0x80] sm:$0xff] %vm1236, %v3358
      %3438 = vst.msk [vmem:[#allocation6 + $0x88] sm:$0xff] %vm1236, %v3360
      %3439 = vst.msk [vmem:[#allocation6 + $0x90] sm:$0xff] %vm1236, %v3362
      %3440 = vst.msk [vmem:[#allocation6 + $0x98] sm:$0xff] %vm1236, %v3364
      %3441 = vst.msk [vmem:[#allocation6 + $0xa0] sm:$0xff] %vm1236, %v3366
      %3442 = vst.msk [vmem:[#allocation6 + $0xa8] sm:$0xff] %vm1236, %v3368
      %3443 = vst.msk [vmem:[#allocation6 + $0xb0] sm:$0xff] %vm1236, %v3370
      %3444 = vst.msk [vmem:[#allocation6 + $0xb8] sm:$0xff] %vm1236, %v3372
      %3445 = vst.msk [vmem:[#allocation6 + $0xc0] sm:$0xff] %vm1236, %v3374
      %3446 = vst.msk [vmem:[#allocation6 + $0xc8] sm:$0xff] %vm1236, %v3376
      %3447 = vst.msk [vmem:[#allocation6 + $0xd0] sm:$0xff] %vm1236, %v3378
      %3448 = vst.msk [vmem:[#allocation6 + $0xd8] sm:$0xff] %vm1236, %v3380
      %3449 = vst.msk [vmem:[#allocation6 + $0xe0] sm:$0xff] %vm1236, %v3382
      %3450 = vst.msk [vmem:[#allocation6 + $0xe8] sm:$0xff] %vm1236, %v3384
      %3451 = vst.msk [vmem:[#allocation6 + $0xf0] sm:$0xff] %vm1236, %v3386
      %3452 = vst.msk [vmem:[#allocation6 + $0xf8] sm:$0xff] %vm1236, %v3388
      %v3453 = vld [vmem:[#allocation3 + $0x2] sm:$0xff]
      %v3454 = vld [vmem:[#allocation3 + $0xa] sm:$0xff]
      %v3455 = vld [vmem:[#allocation3 + $0x1a] sm:$0xff]
      %v3456 = vld [vmem:[#allocation3 + $0x22] sm:$0xff]
      %v3457 = vld [vmem:[#allocation3 + $0x32] sm:$0xff]
      %v3458 = vld [vmem:[#allocation3 + $0x3a] sm:$0xff]
      %v3459 = vld [vmem:[#allocation3 + $0x4a] sm:$0xff]
      %v3460 = vld [vmem:[#allocation3 + $0x52] sm:$0xff]
      %v3461 = vld [vmem:[#allocation3 + $0x62] sm:$0xff]
      %v3462 = vld [vmem:[#allocation3 + $0x6a] sm:$0xff]
      %v3463 = vld [vmem:[#allocation3 + $0x7a] sm:$0xff]
      %v3464 = vld [vmem:[#allocation3 + $0x82] sm:$0xff]
      %v3465 = vld [vmem:[#allocation3 + $0x92] sm:$0xff]
      %v3466 = vld [vmem:[#allocation3 + $0x9a] sm:$0xff]
      %v3467 = vld [vmem:[#allocation3 + $0xaa] sm:$0xff]
      %v3468 = vld [vmem:[#allocation3 + $0xb2] sm:$0xff]
      %v3469 = vld [vmem:[#allocation3 + $0xc2] sm:$0xff]
      %v3470 = vld [vmem:[#allocation3 + $0xca] sm:$0xff]
      %v3471 = vld [vmem:[#allocation3 + $0xda] sm:$0xff]
      %v3472 = vld [vmem:[#allocation3 + $0xe2] sm:$0xff]
      %v3473 = vld [vmem:[#allocation3 + $0xf2] sm:$0xff]
      %v3474 = vld [vmem:[#allocation3 + $0xfa] sm:$0xff]
      %v3475 = vld [vmem:[#allocation3 + $0x10a] sm:$0xff]
      %v3476 = vld [vmem:[#allocation3 + $0x112] sm:$0xff]
      %v3477 = vld [vmem:[#allocation3 + $0x122] sm:$0xff]
      %v3478 = vld [vmem:[#allocation3 + $0x12a] sm:$0xff]
      %v3479 = vld [vmem:[#allocation3 + $0x13a] sm:$0xff]
      %v3480 = vld [vmem:[#allocation3 + $0x142] sm:$0xff]
      %v3481 = vld [vmem:[#allocation3 + $0x152] sm:$0xff]
      %v3482 = vld [vmem:[#allocation3 + $0x15a] sm:$0xff]
      %v3483 = vld [vmem:[#allocation3 + $0x16a] sm:$0xff]
      %v3484 = vld [vmem:[#allocation3 + $0x172] sm:$0xff]
      %3517 = vrot.lane.b32.xlu0 %v3453, 8
      %v3518 = vpop.permute.xlu0 %3517
      %3519 = vrot.lane.b32.xlu0 %v3454, 8
      %v3520 = vpop.permute.xlu0 %3519
      %3521 = vrot.lane.b32.xlu0 %v3455, 8
      %v3522 = vpop.permute.xlu0 %3521
      %3523 = vrot.lane.b32.xlu0 %v3456, 8
      %v3524 = vpop.permute.xlu0 %3523
      %3525 = vrot.lane.b32.xlu0 %v3457, 8
      %v3526 = vpop.permute.xlu0 %3525
      %3527 = vrot.lane.b32.xlu0 %v3458, 8
      %v3528 = vpop.permute.xlu0 %3527
      %3529 = vrot.lane.b32.xlu0 %v3459, 8
      %v3530 = vpop.permute.xlu0 %3529
      %3531 = vrot.lane.b32.xlu0 %v3460, 8
      %v3532 = vpop.permute.xlu0 %3531
      %3533 = vrot.lane.b32.xlu0 %v3461, 8
      %v3534 = vpop.permute.xlu0 %3533
      %3535 = vrot.lane.b32.xlu0 %v3462, 8
      %v3536 = vpop.permute.xlu0 %3535
      %3537 = vrot.lane.b32.xlu0 %v3463, 8
      %v3538 = vpop.permute.xlu0 %3537
      %3539 = vrot.lane.b32.xlu0 %v3464, 8
      %v3540 = vpop.permute.xlu0 %3539
      %3541 = vrot.lane.b32.xlu0 %v3465, 8
      %v3542 = vpop.permute.xlu0 %3541
      %3543 = vrot.lane.b32.xlu0 %v3466, 8
      %v3544 = vpop.permute.xlu0 %3543
      %3545 = vrot.lane.b32.xlu0 %v3467, 8
      %v3546 = vpop.permute.xlu0 %3545
      %3547 = vrot.lane.b32.xlu0 %v3468, 8
      %v3548 = vpop.permute.xlu0 %3547
      %3549 = vrot.lane.b32.xlu0 %v3469, 8
      %v3550 = vpop.permute.xlu0 %3549
      %3551 = vrot.lane.b32.xlu0 %v3470, 8
      %v3552 = vpop.permute.xlu0 %3551
      %3553 = vrot.lane.b32.xlu0 %v3471, 8
      %v3554 = vpop.permute.xlu0 %3553
      %3555 = vrot.lane.b32.xlu0 %v3472, 8
      %v3556 = vpop.permute.xlu0 %3555
      %3557 = vrot.lane.b32.xlu0 %v3473, 8
      %v3558 = vpop.permute.xlu0 %3557
      %3559 = vrot.lane.b32.xlu0 %v3474, 8
      %v3560 = vpop.permute.xlu0 %3559
      %3561 = vrot.lane.b32.xlu0 %v3475, 8
      %v3562 = vpop.permute.xlu0 %3561
      %3563 = vrot.lane.b32.xlu0 %v3476, 8
      %v3564 = vpop.permute.xlu0 %3563
      %3565 = vrot.lane.b32.xlu0 %v3477, 8
      %v3566 = vpop.permute.xlu0 %3565
      %3567 = vrot.lane.b32.xlu0 %v3478, 8
      %v3568 = vpop.permute.xlu0 %3567
      %3569 = vrot.lane.b32.xlu0 %v3479, 8
      %v3570 = vpop.permute.xlu0 %3569
      %3571 = vrot.lane.b32.xlu0 %v3480, 8
      %v3572 = vpop.permute.xlu0 %3571
      %3573 = vrot.lane.b32.xlu0 %v3481, 8
      %v3574 = vpop.permute.xlu0 %3573
      %3575 = vrot.lane.b32.xlu0 %v3482, 8
      %v3576 = vpop.permute.xlu0 %3575
      %3577 = vrot.lane.b32.xlu0 %v3483, 8
      %v3578 = vpop.permute.xlu0 %3577
      %3579 = vrot.lane.b32.xlu0 %v3484, 8
      %v3580 = vpop.permute.xlu0 %3579
      %3613 = vst.msk [vmem:[#allocation6] sm:$0xff] %vm1429, %v3518
      %3614 = vst.msk [vmem:[#allocation6 + $0x8] sm:$0xff] %vm1429, %v3520
      %3615 = vst.msk [vmem:[#allocation6 + $0x10] sm:$0xff] %vm1429, %v3522
      %3616 = vst.msk [vmem:[#allocation6 + $0x18] sm:$0xff] %vm1429, %v3524
      %3617 = vst.msk [vmem:[#allocation6 + $0x20] sm:$0xff] %vm1429, %v3526
      %3618 = vst.msk [vmem:[#allocation6 + $0x28] sm:$0xff] %vm1429, %v3528
      %3619 = vst.msk [vmem:[#allocation6 + $0x30] sm:$0xff] %vm1429, %v3530
      %3620 = vst.msk [vmem:[#allocation6 + $0x38] sm:$0xff] %vm1429, %v3532
      %3621 = vst.msk [vmem:[#allocation6 + $0x40] sm:$0xff] %vm1429, %v3534
      %3622 = vst.msk [vmem:[#allocation6 + $0x48] sm:$0xff] %vm1429, %v3536
      %3623 = vst.msk [vmem:[#allocation6 + $0x50] sm:$0xff] %vm1429, %v3538
      %3624 = vst.msk [vmem:[#allocation6 + $0x58] sm:$0xff] %vm1429, %v3540
      %3625 = vst.msk [vmem:[#allocation6 + $0x60] sm:$0xff] %vm1429, %v3542
      %3626 = vst.msk [vmem:[#allocation6 + $0x68] sm:$0xff] %vm1429, %v3544
      %3627 = vst.msk [vmem:[#allocation6 + $0x70] sm:$0xff] %vm1429, %v3546
      %3628 = vst.msk [vmem:[#allocation6 + $0x78] sm:$0xff] %vm1429, %v3548
      %3629 = vst.msk [vmem:[#allocation6 + $0x80] sm:$0xff] %vm1429, %v3550
      %3630 = vst.msk [vmem:[#allocation6 + $0x88] sm:$0xff] %vm1429, %v3552
      %3631 = vst.msk [vmem:[#allocation6 + $0x90] sm:$0xff] %vm1429, %v3554
      %3632 = vst.msk [vmem:[#allocation6 + $0x98] sm:$0xff] %vm1429, %v3556
      %3633 = vst.msk [vmem:[#allocation6 + $0xa0] sm:$0xff] %vm1429, %v3558
      %3634 = vst.msk [vmem:[#allocation6 + $0xa8] sm:$0xff] %vm1429, %v3560
      %3635 = vst.msk [vmem:[#allocation6 + $0xb0] sm:$0xff] %vm1429, %v3562
      %3636 = vst.msk [vmem:[#allocation6 + $0xb8] sm:$0xff] %vm1429, %v3564
      %3637 = vst.msk [vmem:[#allocation6 + $0xc0] sm:$0xff] %vm1429, %v3566
      %3638 = vst.msk [vmem:[#allocation6 + $0xc8] sm:$0xff] %vm1429, %v3568
      %3639 = vst.msk [vmem:[#allocation6 + $0xd0] sm:$0xff] %vm1429, %v3570
      %3640 = vst.msk [vmem:[#allocation6 + $0xd8] sm:$0xff] %vm1429, %v3572
      %3641 = vst.msk [vmem:[#allocation6 + $0xe0] sm:$0xff] %vm1429, %v3574
      %3642 = vst.msk [vmem:[#allocation6 + $0xe8] sm:$0xff] %vm1429, %v3576
      %3643 = vst.msk [vmem:[#allocation6 + $0xf0] sm:$0xff] %vm1429, %v3578
      %3644 = vst.msk [vmem:[#allocation6 + $0xf8] sm:$0xff] %vm1429, %v3580
      %v3645 = vld [vmem:[#allocation3 + $0x3] sm:$0xff]
      %v3646 = vld [vmem:[#allocation3 + $0xb] sm:$0xff]
      %v3647 = vld [vmem:[#allocation3 + $0x1b] sm:$0xff]
      %v3648 = vld [vmem:[#allocation3 + $0x23] sm:$0xff]
      %v3649 = vld [vmem:[#allocation3 + $0x33] sm:$0xff]
      %v3650 = vld [vmem:[#allocation3 + $0x3b] sm:$0xff]
      %v3651 = vld [vmem:[#allocation3 + $0x4b] sm:$0xff]
      %v3652 = vld [vmem:[#allocation3 + $0x53] sm:$0xff]
      %v3653 = vld [vmem:[#allocation3 + $0x63] sm:$0xff]
      %v3654 = vld [vmem:[#allocation3 + $0x6b] sm:$0xff]
      %v3655 = vld [vmem:[#allocation3 + $0x7b] sm:$0xff]
      %v3656 = vld [vmem:[#allocation3 + $0x83] sm:$0xff]
      %v3657 = vld [vmem:[#allocation3 + $0x93] sm:$0xff]
      %v3658 = vld [vmem:[#allocation3 + $0x9b] sm:$0xff]
      %v3659 = vld [vmem:[#allocation3 + $0xab] sm:$0xff]
      %v3660 = vld [vmem:[#allocation3 + $0xb3] sm:$0xff]
      %v3661 = vld [vmem:[#allocation3 + $0xc3] sm:$0xff]
      %v3662 = vld [vmem:[#allocation3 + $0xcb] sm:$0xff]
      %v3663 = vld [vmem:[#allocation3 + $0xdb] sm:$0xff]
      %v3664 = vld [vmem:[#allocation3 + $0xe3] sm:$0xff]
      %v3665 = vld [vmem:[#allocation3 + $0xf3] sm:$0xff]
      %v3666 = vld [vmem:[#allocation3 + $0xfb] sm:$0xff]
      %v3667 = vld [vmem:[#allocation3 + $0x10b] sm:$0xff]
      %v3668 = vld [vmem:[#allocation3 + $0x113] sm:$0xff]
      %v3669 = vld [vmem:[#allocation3 + $0x123] sm:$0xff]
      %v3670 = vld [vmem:[#allocation3 + $0x12b] sm:$0xff]
      %v3671 = vld [vmem:[#allocation3 + $0x13b] sm:$0xff]
      %v3672 = vld [vmem:[#allocation3 + $0x143] sm:$0xff]
      %v3673 = vld [vmem:[#allocation3 + $0x153] sm:$0xff]
      %v3674 = vld [vmem:[#allocation3 + $0x15b] sm:$0xff]
      %v3675 = vld [vmem:[#allocation3 + $0x16b] sm:$0xff]
      %v3676 = vld [vmem:[#allocation3 + $0x173] sm:$0xff]
      %3709 = vrot.lane.b32.xlu0 %v3645, 12
      %v3710 = vpop.permute.xlu0 %3709
      %3711 = vrot.lane.b32.xlu0 %v3646, 12
      %v3712 = vpop.permute.xlu0 %3711
      %3713 = vrot.lane.b32.xlu0 %v3647, 12
      %v3714 = vpop.permute.xlu0 %3713
      %3715 = vrot.lane.b32.xlu0 %v3648, 12
      %v3716 = vpop.permute.xlu0 %3715
      %3717 = vrot.lane.b32.xlu0 %v3649, 12
      %v3718 = vpop.permute.xlu0 %3717
      %3719 = vrot.lane.b32.xlu0 %v3650, 12
      %v3720 = vpop.permute.xlu0 %3719
      %3721 = vrot.lane.b32.xlu0 %v3651, 12
      %v3722 = vpop.permute.xlu0 %3721
      %3723 = vrot.lane.b32.xlu0 %v3652, 12
      %v3724 = vpop.permute.xlu0 %3723
      %3725 = vrot.lane.b32.xlu0 %v3653, 12
      %v3726 = vpop.permute.xlu0 %3725
      %3727 = vrot.lane.b32.xlu0 %v3654, 12
      %v3728 = vpop.permute.xlu0 %3727
      %3729 = vrot.lane.b32.xlu0 %v3655, 12
      %v3730 = vpop.permute.xlu0 %3729
      %3731 = vrot.lane.b32.xlu0 %v3656, 12
      %v3732 = vpop.permute.xlu0 %3731
      %3733 = vrot.lane.b32.xlu0 %v3657, 12
      %v3734 = vpop.permute.xlu0 %3733
      %3735 = vrot.lane.b32.xlu0 %v3658, 12
      %v3736 = vpop.permute.xlu0 %3735
      %3737 = vrot.lane.b32.xlu0 %v3659, 12
      %v3738 = vpop.permute.xlu0 %3737
      %3739 = vrot.lane.b32.xlu0 %v3660, 12
      %v3740 = vpop.permute.xlu0 %3739
      %3741 = vrot.lane.b32.xlu0 %v3661, 12
      %v3742 = vpop.permute.xlu0 %3741
      %3743 = vrot.lane.b32.xlu0 %v3662, 12
      %v3744 = vpop.permute.xlu0 %3743
      %3745 = vrot.lane.b32.xlu0 %v3663, 12
      %v3746 = vpop.permute.xlu0 %3745
      %3747 = vrot.lane.b32.xlu0 %v3664, 12
      %v3748 = vpop.permute.xlu0 %3747
      %3749 = vrot.lane.b32.xlu0 %v3665, 12
      %v3750 = vpop.permute.xlu0 %3749
      %3751 = vrot.lane.b32.xlu0 %v3666, 12
      %v3752 = vpop.permute.xlu0 %3751
      %3753 = vrot.lane.b32.xlu0 %v3667, 12
      %v3754 = vpop.permute.xlu0 %3753
      %3755 = vrot.lane.b32.xlu0 %v3668, 12
      %v3756 = vpop.permute.xlu0 %3755
      %3757 = vrot.lane.b32.xlu0 %v3669, 12
      %v3758 = vpop.permute.xlu0 %3757
      %3759 = vrot.lane.b32.xlu0 %v3670, 12
      %v3760 = vpop.permute.xlu0 %3759
      %3761 = vrot.lane.b32.xlu0 %v3671, 12
      %v3762 = vpop.permute.xlu0 %3761
      %3763 = vrot.lane.b32.xlu0 %v3672, 12
      %v3764 = vpop.permute.xlu0 %3763
      %3765 = vrot.lane.b32.xlu0 %v3673, 12
      %v3766 = vpop.permute.xlu0 %3765
      %3767 = vrot.lane.b32.xlu0 %v3674, 12
      %v3768 = vpop.permute.xlu0 %3767
      %3769 = vrot.lane.b32.xlu0 %v3675, 12
      %v3770 = vpop.permute.xlu0 %3769
      %3771 = vrot.lane.b32.xlu0 %v3676, 12
      %v3772 = vpop.permute.xlu0 %3771
      %3805 = vst.msk [vmem:[#allocation6] sm:$0xff] %vm1622, %v3710
      %3806 = vst.msk [vmem:[#allocation6 + $0x8] sm:$0xff] %vm1622, %v3712
      %3807 = vst.msk [vmem:[#allocation6 + $0x10] sm:$0xff] %vm1622, %v3714
      %3808 = vst.msk [vmem:[#allocation6 + $0x18] sm:$0xff] %vm1622, %v3716
      %3809 = vst.msk [vmem:[#allocation6 + $0x20] sm:$0xff] %vm1622, %v3718
      %3810 = vst.msk [vmem:[#allocation6 + $0x28] sm:$0xff] %vm1622, %v3720
      %3811 = vst.msk [vmem:[#allocation6 + $0x30] sm:$0xff] %vm1622, %v3722
      %3812 = vst.msk [vmem:[#allocation6 + $0x38] sm:$0xff] %vm1622, %v3724
      %3813 = vst.msk [vmem:[#allocation6 + $0x40] sm:$0xff] %vm1622, %v3726
      %3814 = vst.msk [vmem:[#allocation6 + $0x48] sm:$0xff] %vm1622, %v3728
      %3815 = vst.msk [vmem:[#allocation6 + $0x50] sm:$0xff] %vm1622, %v3730
      %3816 = vst.msk [vmem:[#allocation6 + $0x58] sm:$0xff] %vm1622, %v3732
      %3817 = vst.msk [vmem:[#allocation6 + $0x60] sm:$0xff] %vm1622, %v3734
      %3818 = vst.msk [vmem:[#allocation6 + $0x68] sm:$0xff] %vm1622, %v3736
      %3819 = vst.msk [vmem:[#allocation6 + $0x70] sm:$0xff] %vm1622, %v3738
      %3820 = vst.msk [vmem:[#allocation6 + $0x78] sm:$0xff] %vm1622, %v3740
      %3821 = vst.msk [vmem:[#allocation6 + $0x80] sm:$0xff] %vm1622, %v3742
      %3822 = vst.msk [vmem:[#allocation6 + $0x88] sm:$0xff] %vm1622, %v3744
      %3823 = vst.msk [vmem:[#allocation6 + $0x90] sm:$0xff] %vm1622, %v3746
      %3824 = vst.msk [vmem:[#allocation6 + $0x98] sm:$0xff] %vm1622, %v3748
      %3825 = vst.msk [vmem:[#allocation6 + $0xa0] sm:$0xff] %vm1622, %v3750
      %3826 = vst.msk [vmem:[#allocation6 + $0xa8] sm:$0xff] %vm1622, %v3752
      %3827 = vst.msk [vmem:[#allocation6 + $0xb0] sm:$0xff] %vm1622, %v3754
      %3828 = vst.msk [vmem:[#allocation6 + $0xb8] sm:$0xff] %vm1622, %v3756
      %3829 = vst.msk [vmem:[#allocation6 + $0xc0] sm:$0xff] %vm1622, %v3758
      %3830 = vst.msk [vmem:[#allocation6 + $0xc8] sm:$0xff] %vm1622, %v3760
      %3831 = vst.msk [vmem:[#allocation6 + $0xd0] sm:$0xff] %vm1622, %v3762
      %3832 = vst.msk [vmem:[#allocation6 + $0xd8] sm:$0xff] %vm1622, %v3764
      %3833 = vst.msk [vmem:[#allocation6 + $0xe0] sm:$0xff] %vm1622, %v3766
      %3834 = vst.msk [vmem:[#allocation6 + $0xe8] sm:$0xff] %vm1622, %v3768
      %3835 = vst.msk [vmem:[#allocation6 + $0xf0] sm:$0xff] %vm1622, %v3770
      %3836 = vst.msk [vmem:[#allocation6 + $0xf8] sm:$0xff] %vm1622, %v3772
      %v3837 = vld [vmem:[#allocation3 + $0x4] sm:$0xff]
      %v3838 = vld [vmem:[#allocation3 + $0xc] sm:$0xff]
      %v3839 = vld [vmem:[#allocation3 + $0x1c] sm:$0xff]
      %v3840 = vld [vmem:[#allocation3 + $0x24] sm:$0xff]
      %v3841 = vld [vmem:[#allocation3 + $0x34] sm:$0xff]
      %v3842 = vld [vmem:[#allocation3 + $0x3c] sm:$0xff]
      %v3843 = vld [vmem:[#allocation3 + $0x4c] sm:$0xff]
      %v3844 = vld [vmem:[#allocation3 + $0x54] sm:$0xff]
      %v3845 = vld [vmem:[#allocation3 + $0x64] sm:$0xff]
      %v3846 = vld [vmem:[#allocation3 + $0x6c] sm:$0xff]
      %v3847 = vld [vmem:[#allocation3 + $0x7c] sm:$0xff]
      %v3848 = vld [vmem:[#allocation3 + $0x84] sm:$0xff]
      %v3849 = vld [vmem:[#allocation3 + $0x94] sm:$0xff]
      %v3850 = vld [vmem:[#allocation3 + $0x9c] sm:$0xff]
      %v3851 = vld [vmem:[#allocation3 + $0xac] sm:$0xff]
      %v3852 = vld [vmem:[#allocation3 + $0xb4] sm:$0xff]
      %v3853 = vld [vmem:[#allocation3 + $0xc4] sm:$0xff]
      %v3854 = vld [vmem:[#allocation3 + $0xcc] sm:$0xff]
      %v3855 = vld [vmem:[#allocation3 + $0xdc] sm:$0xff]
      %v3856 = vld [vmem:[#allocation3 + $0xe4] sm:$0xff]
      %v3857 = vld [vmem:[#allocation3 + $0xf4] sm:$0xff]
      %v3858 = vld [vmem:[#allocation3 + $0xfc] sm:$0xff]
      %v3859 = vld [vmem:[#allocation3 + $0x10c] sm:$0xff]
      %v3860 = vld [vmem:[#allocation3 + $0x114] sm:$0xff]
      %v3861 = vld [vmem:[#allocation3 + $0x124] sm:$0xff]
      %v3862 = vld [vmem:[#allocation3 + $0x12c] sm:$0xff]
      %v3863 = vld [vmem:[#allocation3 + $0x13c] sm:$0xff]
      %v3864 = vld [vmem:[#allocation3 + $0x144] sm:$0xff]
      %v3865 = vld [vmem:[#allocation3 + $0x154] sm:$0xff]
      %v3866 = vld [vmem:[#allocation3 + $0x15c] sm:$0xff]
      %v3867 = vld [vmem:[#allocation3 + $0x16c] sm:$0xff]
      %v3868 = vld [vmem:[#allocation3 + $0x174] sm:$0xff]
      %3901 = vrot.lane.b32.xlu0 %v3837, 16
      %v3902 = vpop.permute.xlu0 %3901
      %3903 = vrot.lane.b32.xlu0 %v3838, 16
      %v3904 = vpop.permute.xlu0 %3903
      %3905 = vrot.lane.b32.xlu0 %v3839, 16
      %v3906 = vpop.permute.xlu0 %3905
      %3907 = vrot.lane.b32.xlu0 %v3840, 16
      %v3908 = vpop.permute.xlu0 %3907
      %3909 = vrot.lane.b32.xlu0 %v3841, 16
      %v3910 = vpop.permute.xlu0 %3909
      %3911 = vrot.lane.b32.xlu0 %v3842, 16
      %v3912 = vpop.permute.xlu0 %3911
      %3913 = vrot.lane.b32.xlu0 %v3843, 16
      %v3914 = vpop.permute.xlu0 %3913
      %3915 = vrot.lane.b32.xlu0 %v3844, 16
      %v3916 = vpop.permute.xlu0 %3915
      %3917 = vrot.lane.b32.xlu0 %v3845, 16
      %v3918 = vpop.permute.xlu0 %3917
      %3919 = vrot.lane.b32.xlu0 %v3846, 16
      %v3920 = vpop.permute.xlu0 %3919
      %3921 = vrot.lane.b32.xlu0 %v3847, 16
      %v3922 = vpop.permute.xlu0 %3921
      %3923 = vrot.lane.b32.xlu0 %v3848, 16
      %v3924 = vpop.permute.xlu0 %3923
      %3925 = vrot.lane.b32.xlu0 %v3849, 16
      %v3926 = vpop.permute.xlu0 %3925
      %3927 = vrot.lane.b32.xlu0 %v3850, 16
      %v3928 = vpop.permute.xlu0 %3927
      %3929 = vrot.lane.b32.xlu0 %v3851, 16
      %v3930 = vpop.permute.xlu0 %3929
      %3931 = vrot.lane.b32.xlu0 %v3852, 16
      %v3932 = vpop.permute.xlu0 %3931
      %3933 = vrot.lane.b32.xlu0 %v3853, 16
      %v3934 = vpop.permute.xlu0 %3933
      %3935 = vrot.lane.b32.xlu0 %v3854, 16
      %v3936 = vpop.permute.xlu0 %3935
      %3937 = vrot.lane.b32.xlu0 %v3855, 16
      %v3938 = vpop.permute.xlu0 %3937
      %3939 = vrot.lane.b32.xlu0 %v3856, 16
      %v3940 = vpop.permute.xlu0 %3939
      %3941 = vrot.lane.b32.xlu0 %v3857, 16
      %v3942 = vpop.permute.xlu0 %3941
      %3943 = vrot.lane.b32.xlu0 %v3858, 16
      %v3944 = vpop.permute.xlu0 %3943
      %3945 = vrot.lane.b32.xlu0 %v3859, 16
      %v3946 = vpop.permute.xlu0 %3945
      %3947 = vrot.lane.b32.xlu0 %v3860, 16
      %v3948 = vpop.permute.xlu0 %3947
      %3949 = vrot.lane.b32.xlu0 %v3861, 16
      %v3950 = vpop.permute.xlu0 %3949
      %3951 = vrot.lane.b32.xlu0 %v3862, 16
      %v3952 = vpop.permute.xlu0 %3951
      %3953 = vrot.lane.b32.xlu0 %v3863, 16
      %v3954 = vpop.permute.xlu0 %3953
      %3955 = vrot.lane.b32.xlu0 %v3864, 16
      %v3956 = vpop.permute.xlu0 %3955
      %3957 = vrot.lane.b32.xlu0 %v3865, 16
      %v3958 = vpop.permute.xlu0 %3957
      %3959 = vrot.lane.b32.xlu0 %v3866, 16
      %v3960 = vpop.permute.xlu0 %3959
      %3961 = vrot.lane.b32.xlu0 %v3867, 16
      %v3962 = vpop.permute.xlu0 %3961
      %3963 = vrot.lane.b32.xlu0 %v3868, 16
      %v3964 = vpop.permute.xlu0 %3963
      %3997 = vst.msk [vmem:[#allocation6] sm:$0xff] %vm1815, %v3902
      %3998 = vst.msk [vmem:[#allocation6 + $0x8] sm:$0xff] %vm1815, %v3904
      %3999 = vst.msk [vmem:[#allocation6 + $0x10] sm:$0xff] %vm1815, %v3906
      %4000 = vst.msk [vmem:[#allocation6 + $0x18] sm:$0xff] %vm1815, %v3908
      %4001 = vst.msk [vmem:[#allocation6 + $0x20] sm:$0xff] %vm1815, %v3910
      %4002 = vst.msk [vmem:[#allocation6 + $0x28] sm:$0xff] %vm1815, %v3912
      %4003 = vst.msk [vmem:[#allocation6 + $0x30] sm:$0xff] %vm1815, %v3914
      %4004 = vst.msk [vmem:[#allocation6 + $0x38] sm:$0xff] %vm1815, %v3916
      %4005 = vst.msk [vmem:[#allocation6 + $0x40] sm:$0xff] %vm1815, %v3918
      %4006 = vst.msk [vmem:[#allocation6 + $0x48] sm:$0xff] %vm1815, %v3920
      %4007 = vst.msk [vmem:[#allocation6 + $0x50] sm:$0xff] %vm1815, %v3922
      %4008 = vst.msk [vmem:[#allocation6 + $0x58] sm:$0xff] %vm1815, %v3924
      %4009 = vst.msk [vmem:[#allocation6 + $0x60] sm:$0xff] %vm1815, %v3926
      %4010 = vst.msk [vmem:[#allocation6 + $0x68] sm:$0xff] %vm1815, %v3928
      %4011 = vst.msk [vmem:[#allocation6 + $0x70] sm:$0xff] %vm1815, %v3930
      %4012 = vst.msk [vmem:[#allocation6 + $0x78] sm:$0xff] %vm1815, %v3932
      %4013 = vst.msk [vmem:[#allocation6 + $0x80] sm:$0xff] %vm1815, %v3934
      %4014 = vst.msk [vmem:[#allocation6 + $0x88] sm:$0xff] %vm1815, %v3936
      %4015 = vst.msk [vmem:[#allocation6 + $0x90] sm:$0xff] %vm1815, %v3938
      %4016 = vst.msk [vmem:[#allocation6 + $0x98] sm:$0xff] %vm1815, %v3940
      %4017 = vst.msk [vmem:[#allocation6 + $0xa0] sm:$0xff] %vm1815, %v3942
      %4018 = vst.msk [vmem:[#allocation6 + $0xa8] sm:$0xff] %vm1815, %v3944
      %4019 = vst.msk [vmem:[#allocation6 + $0xb0] sm:$0xff] %vm1815, %v3946
      %4020 = vst.msk [vmem:[#allocation6 + $0xb8] sm:$0xff] %vm1815, %v3948
      %4021 = vst.msk [vmem:[#allocation6 + $0xc0] sm:$0xff] %vm1815, %v3950
      %4022 = vst.msk [vmem:[#allocation6 + $0xc8] sm:$0xff] %vm1815, %v3952
      %4023 = vst.msk [vmem:[#allocation6 + $0xd0] sm:$0xff] %vm1815, %v3954
      %4024 = vst.msk [vmem:[#allocation6 + $0xd8] sm:$0xff] %vm1815, %v3956
      %4025 = vst.msk [vmem:[#allocation6 + $0xe0] sm:$0xff] %vm1815, %v3958
      %4026 = vst.msk [vmem:[#allocation6 + $0xe8] sm:$0xff] %vm1815, %v3960
      %4027 = vst.msk [vmem:[#allocation6 + $0xf0] sm:$0xff] %vm1815, %v3962
      %4028 = vst.msk [vmem:[#allocation6 + $0xf8] sm:$0xff] %vm1815, %v3964
      %s4029 = scalar_lea.vmem [#allocation3], 24
      %v4030 = vld [vmem:[%s4029] sm:$0xff]
      %v4031 = vld [vmem:[%s4029 + $0x8] sm:$0xff]
      %v4032 = vld [vmem:[%s4029 + $0x18] sm:$0xff]
      %v4033 = vld [vmem:[%s4029 + $0x20] sm:$0xff]
      %v4034 = vld [vmem:[%s4029 + $0x30] sm:$0xff]
      %v4035 = vld [vmem:[%s4029 + $0x38] sm:$0xff]
      %v4036 = vld [vmem:[%s4029 + $0x48] sm:$0xff]
      %v4037 = vld [vmem:[%s4029 + $0x50] sm:$0xff]
      %v4038 = vld [vmem:[%s4029 + $0x60] sm:$0xff]
      %v4039 = vld [vmem:[%s4029 + $0x68] sm:$0xff]
      %v4040 = vld [vmem:[%s4029 + $0x78] sm:$0xff]
      %v4041 = vld [vmem:[%s4029 + $0x80] sm:$0xff]
      %v4042 = vld [vmem:[%s4029 + $0x90] sm:$0xff]
      %v4043 = vld [vmem:[%s4029 + $0x98] sm:$0xff]
      %v4044 = vld [vmem:[%s4029 + $0xa8] sm:$0xff]
      %v4045 = vld [vmem:[%s4029 + $0xb0] sm:$0xff]
      %v4046 = vld [vmem:[%s4029 + $0xc0] sm:$0xff]
      %v4047 = vld [vmem:[%s4029 + $0xc8] sm:$0xff]
      %v4048 = vld [vmem:[%s4029 + $0xd8] sm:$0xff]
      %v4049 = vld [vmem:[%s4029 + $0xe0] sm:$0xff]
      %v4050 = vld [vmem:[%s4029 + $0xf0] sm:$0xff]
      %v4051 = vld [vmem:[%s4029 + $0xf8] sm:$0xff]
      %v4052 = vld [vmem:[%s4029 + $0x108] sm:$0xff]
      %v4053 = vld [vmem:[%s4029 + $0x110] sm:$0xff]
      %v4054 = vld [vmem:[%s4029 + $0x120] sm:$0xff]
      %v4055 = vld [vmem:[%s4029 + $0x128] sm:$0xff]
      %v4056 = vld [vmem:[%s4029 + $0x138] sm:$0xff]
      %v4057 = vld [vmem:[%s4029 + $0x140] sm:$0xff]
      %v4058 = vld [vmem:[%s4029 + $0x150] sm:$0xff]
      %v4059 = vld [vmem:[%s4029 + $0x158] sm:$0xff]
      %v4060 = vld [vmem:[%s4029 + $0x168] sm:$0xff]
      %v4061 = vld [vmem:[%s4029 + $0x170] sm:$0xff]
      %4094 = vrot.lane.b32.xlu0 %v4030, 20
      %v4095 = vpop.permute.xlu0 %4094
      %4096 = vrot.lane.b32.xlu0 %v4031, 20
      %v4097 = vpop.permute.xlu0 %4096
      %4098 = vrot.lane.b32.xlu0 %v4032, 20
      %v4099 = vpop.permute.xlu0 %4098
      %4100 = vrot.lane.b32.xlu0 %v4033, 20
      %v4101 = vpop.permute.xlu0 %4100
      %4102 = vrot.lane.b32.xlu0 %v4034, 20
      %v4103 = vpop.permute.xlu0 %4102
      %4104 = vrot.lane.b32.xlu0 %v4035, 20
      %v4105 = vpop.permute.xlu0 %4104
      %4106 = vrot.lane.b32.xlu0 %v4036, 20
      %v4107 = vpop.permute.xlu0 %4106
      %4108 = vrot.lane.b32.xlu0 %v4037, 20
      %v4109 = vpop.permute.xlu0 %4108
      %4110 = vrot.lane.b32.xlu0 %v4038, 20
      %v4111 = vpop.permute.xlu0 %4110
      %4112 = vrot.lane.b32.xlu0 %v4039, 20
      %v4113 = vpop.permute.xlu0 %4112
      %4114 = vrot.lane.b32.xlu0 %v4040, 20
      %v4115 = vpop.permute.xlu0 %4114
      %4116 = vrot.lane.b32.xlu0 %v4041, 20
      %v4117 = vpop.permute.xlu0 %4116
      %4118 = vrot.lane.b32.xlu0 %v4042, 20
      %v4119 = vpop.permute.xlu0 %4118
      %4120 = vrot.lane.b32.xlu0 %v4043, 20
      %v4121 = vpop.permute.xlu0 %4120
      %4122 = vrot.lane.b32.xlu0 %v4044, 20
      %v4123 = vpop.permute.xlu0 %4122
      %4124 = vrot.lane.b32.xlu0 %v4045, 20
      %v4125 = vpop.permute.xlu0 %4124
      %4126 = vrot.lane.b32.xlu0 %v4046, 20
      %v4127 = vpop.permute.xlu0 %4126
      %4128 = vrot.lane.b32.xlu0 %v4047, 20
      %v4129 = vpop.permute.xlu0 %4128
      %4130 = vrot.lane.b32.xlu0 %v4048, 20
      %v4131 = vpop.permute.xlu0 %4130
      %4132 = vrot.lane.b32.xlu0 %v4049, 20
      %v4133 = vpop.permute.xlu0 %4132
      %4134 = vrot.lane.b32.xlu0 %v4050, 20
      %v4135 = vpop.permute.xlu0 %4134
      %4136 = vrot.lane.b32.xlu0 %v4051, 20
      %v4137 = vpop.permute.xlu0 %4136
      %4138 = vrot.lane.b32.xlu0 %v4052, 20
      %v4139 = vpop.permute.xlu0 %4138
      %4140 = vrot.lane.b32.xlu0 %v4053, 20
      %v4141 = vpop.permute.xlu0 %4140
      %4142 = vrot.lane.b32.xlu0 %v4054, 20
      %v4143 = vpop.permute.xlu0 %4142
      %4144 = vrot.lane.b32.xlu0 %v4055, 20
      %v4145 = vpop.permute.xlu0 %4144
      %4146 = vrot.lane.b32.xlu0 %v4056, 20
      %v4147 = vpop.permute.xlu0 %4146
      %4148 = vrot.lane.b32.xlu0 %v4057, 20
      %v4149 = vpop.permute.xlu0 %4148
      %4150 = vrot.lane.b32.xlu0 %v4058, 20
      %v4151 = vpop.permute.xlu0 %4150
      %4152 = vrot.lane.b32.xlu0 %v4059, 20
      %v4153 = vpop.permute.xlu0 %4152
      %4154 = vrot.lane.b32.xlu0 %v4060, 20
      %v4155 = vpop.permute.xlu0 %4154
      %4156 = vrot.lane.b32.xlu0 %v4061, 20
      %v4157 = vpop.permute.xlu0 %4156
      %4190 = vst.msk [vmem:[#allocation6] sm:$0xff] %vm2008, %v4095
      %4191 = vst.msk [vmem:[#allocation6 + $0x8] sm:$0xff] %vm2008, %v4097
      %4192 = vst.msk [vmem:[#allocation6 + $0x10] sm:$0xff] %vm2008, %v4099
      %4193 = vst.msk [vmem:[#allocation6 + $0x18] sm:$0xff] %vm2008, %v4101
      %4194 = vst.msk [vmem:[#allocation6 + $0x20] sm:$0xff] %vm2008, %v4103
      %4195 = vst.msk [vmem:[#allocation6 + $0x28] sm:$0xff] %vm2008, %v4105
      %4196 = vst.msk [vmem:[#allocation6 + $0x30] sm:$0xff] %vm2008, %v4107
      %4197 = vst.msk [vmem:[#allocation6 + $0x38] sm:$0xff] %vm2008, %v4109
      %4198 = vst.msk [vmem:[#allocation6 + $0x40] sm:$0xff] %vm2008, %v4111
      %4199 = vst.msk [vmem:[#allocation6 + $0x48] sm:$0xff] %vm2008, %v4113
      %4200 = vst.msk [vmem:[#allocation6 + $0x50] sm:$0xff] %vm2008, %v4115
      %4201 = vst.msk [vmem:[#allocation6 + $0x58] sm:$0xff] %vm2008, %v4117
      %4202 = vst.msk [vmem:[#allocation6 + $0x60] sm:$0xff] %vm2008, %v4119
      %4203 = vst.msk [vmem:[#allocation6 + $0x68] sm:$0xff] %vm2008, %v4121
      %4204 = vst.msk [vmem:[#allocation6 + $0x70] sm:$0xff] %vm2008, %v4123
      %4205 = vst.msk [vmem:[#allocation6 + $0x78] sm:$0xff] %vm2008, %v4125
      %4206 = vst.msk [vmem:[#allocation6 + $0x80] sm:$0xff] %vm2008, %v4127
      %4207 = vst.msk [vmem:[#allocation6 + $0x88] sm:$0xff] %vm2008, %v4129
      %4208 = vst.msk [vmem:[#allocation6 + $0x90] sm:$0xff] %vm2008, %v4131
      %4209 = vst.msk [vmem:[#allocation6 + $0x98] sm:$0xff] %vm2008, %v4133
      %4210 = vst.msk [vmem:[#allocation6 + $0xa0] sm:$0xff] %vm2008, %v4135
      %4211 = vst.msk [vmem:[#allocation6 + $0xa8] sm:$0xff] %vm2008, %v4137
      %4212 = vst.msk [vmem:[#allocation6 + $0xb0] sm:$0xff] %vm2008, %v4139
      %4213 = vst.msk [vmem:[#allocation6 + $0xb8] sm:$0xff] %vm2008, %v4141
      %4214 = vst.msk [vmem:[#allocation6 + $0xc0] sm:$0xff] %vm2008, %v4143
      %4215 = vst.msk [vmem:[#allocation6 + $0xc8] sm:$0xff] %vm2008, %v4145
      %4216 = vst.msk [vmem:[#allocation6 + $0xd0] sm:$0xff] %vm2008, %v4147
      %4217 = vst.msk [vmem:[#allocation6 + $0xd8] sm:$0xff] %vm2008, %v4149
      %4218 = vst.msk [vmem:[#allocation6 + $0xe0] sm:$0xff] %vm2008, %v4151
      %4219 = vst.msk [vmem:[#allocation6 + $0xe8] sm:$0xff] %vm2008, %v4153
      %4220 = vst.msk [vmem:[#allocation6 + $0xf0] sm:$0xff] %vm2008, %v4155
      %4221 = vst.msk [vmem:[#allocation6 + $0xf8] sm:$0xff] %vm2008, %v4157
      %v4222 = vld [vmem:[%s4029 + $0x1] sm:$0xff]
      %v4223 = vld [vmem:[%s4029 + $0x9] sm:$0xff]
      %v4224 = vld [vmem:[%s4029 + $0x19] sm:$0xff]
      %v4225 = vld [vmem:[%s4029 + $0x21] sm:$0xff]
      %v4226 = vld [vmem:[%s4029 + $0x31] sm:$0xff]
      %v4227 = vld [vmem:[%s4029 + $0x39] sm:$0xff]
      %v4228 = vld [vmem:[%s4029 + $0x49] sm:$0xff]
      %v4229 = vld [vmem:[%s4029 + $0x51] sm:$0xff]
      %v4230 = vld [vmem:[%s4029 + $0x61] sm:$0xff]
      %v4231 = vld [vmem:[%s4029 + $0x69] sm:$0xff]
      %v4232 = vld [vmem:[%s4029 + $0x79] sm:$0xff]
      %v4233 = vld [vmem:[%s4029 + $0x81] sm:$0xff]
      %v4234 = vld [vmem:[%s4029 + $0x91] sm:$0xff]
      %v4235 = vld [vmem:[%s4029 + $0x99] sm:$0xff]
      %v4236 = vld [vmem:[%s4029 + $0xa9] sm:$0xff]
      %v4237 = vld [vmem:[%s4029 + $0xb1] sm:$0xff]
      %v4238 = vld [vmem:[%s4029 + $0xc1] sm:$0xff]
      %v4239 = vld [vmem:[%s4029 + $0xc9] sm:$0xff]
      %v4240 = vld [vmem:[%s4029 + $0xd9] sm:$0xff]
      %v4241 = vld [vmem:[%s4029 + $0xe1] sm:$0xff]
      %v4242 = vld [vmem:[%s4029 + $0xf1] sm:$0xff]
      %v4243 = vld [vmem:[%s4029 + $0xf9] sm:$0xff]
      %v4244 = vld [vmem:[%s4029 + $0x109] sm:$0xff]
      %v4245 = vld [vmem:[%s4029 + $0x111] sm:$0xff]
      %v4246 = vld [vmem:[%s4029 + $0x121] sm:$0xff]
      %v4247 = vld [vmem:[%s4029 + $0x129] sm:$0xff]
      %v4248 = vld [vmem:[%s4029 + $0x139] sm:$0xff]
      %v4249 = vld [vmem:[%s4029 + $0x141] sm:$0xff]
      %v4250 = vld [vmem:[%s4029 + $0x151] sm:$0xff]
      %v4251 = vld [vmem:[%s4029 + $0x159] sm:$0xff]
      %v4252 = vld [vmem:[%s4029 + $0x169] sm:$0xff]
      %v4253 = vld [vmem:[%s4029 + $0x171] sm:$0xff]
      %4286 = vrot.lane.b32.xlu0 %v4222, 24
      %v4287 = vpop.permute.xlu0 %4286
      %4288 = vrot.lane.b32.xlu0 %v4223, 24
      %v4289 = vpop.permute.xlu0 %4288
      %4290 = vrot.lane.b32.xlu0 %v4224, 24
      %v4291 = vpop.permute.xlu0 %4290
      %4292 = vrot.lane.b32.xlu0 %v4225, 24
      %v4293 = vpop.permute.xlu0 %4292
      %4294 = vrot.lane.b32.xlu0 %v4226, 24
      %v4295 = vpop.permute.xlu0 %4294
      %4296 = vrot.lane.b32.xlu0 %v4227, 24
      %v4297 = vpop.permute.xlu0 %4296
      %4298 = vrot.lane.b32.xlu0 %v4228, 24
      %v4299 = vpop.permute.xlu0 %4298
      %4300 = vrot.lane.b32.xlu0 %v4229, 24
      %v4301 = vpop.permute.xlu0 %4300
      %4302 = vrot.lane.b32.xlu0 %v4230, 24
      %v4303 = vpop.permute.xlu0 %4302
      %4304 = vrot.lane.b32.xlu0 %v4231, 24
      %v4305 = vpop.permute.xlu0 %4304
      %4306 = vrot.lane.b32.xlu0 %v4232, 24
      %v4307 = vpop.permute.xlu0 %4306
      %4308 = vrot.lane.b32.xlu0 %v4233, 24
      %v4309 = vpop.permute.xlu0 %4308
      %4310 = vrot.lane.b32.xlu0 %v4234, 24
      %v4311 = vpop.permute.xlu0 %4310
      %4312 = vrot.lane.b32.xlu0 %v4235, 24
      %v4313 = vpop.permute.xlu0 %4312
      %4314 = vrot.lane.b32.xlu0 %v4236, 24
      %v4315 = vpop.permute.xlu0 %4314
      %4316 = vrot.lane.b32.xlu0 %v4237, 24
      %v4317 = vpop.permute.xlu0 %4316
      %4318 = vrot.lane.b32.xlu0 %v4238, 24
      %v4319 = vpop.permute.xlu0 %4318
      %4320 = vrot.lane.b32.xlu0 %v4239, 24
      %v4321 = vpop.permute.xlu0 %4320
      %4322 = vrot.lane.b32.xlu0 %v4240, 24
      %v4323 = vpop.permute.xlu0 %4322
      %4324 = vrot.lane.b32.xlu0 %v4241, 24
      %v4325 = vpop.permute.xlu0 %4324
      %4326 = vrot.lane.b32.xlu0 %v4242, 24
      %v4327 = vpop.permute.xlu0 %4326
      %4328 = vrot.lane.b32.xlu0 %v4243, 24
      %v4329 = vpop.permute.xlu0 %4328
      %4330 = vrot.lane.b32.xlu0 %v4244, 24
      %v4331 = vpop.permute.xlu0 %4330
      %4332 = vrot.lane.b32.xlu0 %v4245, 24
      %v4333 = vpop.permute.xlu0 %4332
      %4334 = vrot.lane.b32.xlu0 %v4246, 24
      %v4335 = vpop.permute.xlu0 %4334
      %4336 = vrot.lane.b32.xlu0 %v4247, 24
      %v4337 = vpop.permute.xlu0 %4336
      %4338 = vrot.lane.b32.xlu0 %v4248, 24
      %v4339 = vpop.permute.xlu0 %4338
      %4340 = vrot.lane.b32.xlu0 %v4249, 24
      %v4341 = vpop.permute.xlu0 %4340
      %4342 = vrot.lane.b32.xlu0 %v4250, 24
      %v4343 = vpop.permute.xlu0 %4342
      %4344 = vrot.lane.b32.xlu0 %v4251, 24
      %v4345 = vpop.permute.xlu0 %4344
      %4346 = vrot.lane.b32.xlu0 %v4252, 24
      %v4347 = vpop.permute.xlu0 %4346
      %4348 = vrot.lane.b32.xlu0 %v4253, 24
      %v4349 = vpop.permute.xlu0 %4348
      %4382 = vst.msk [vmem:[#allocation6] sm:$0xff] %vm2202, %v4287
      %4383 = vst.msk [vmem:[#allocation6 + $0x8] sm:$0xff] %vm2202, %v4289
      %4384 = vst.msk [vmem:[#allocation6 + $0x10] sm:$0xff] %vm2202, %v4291
      %4385 = vst.msk [vmem:[#allocation6 + $0x18] sm:$0xff] %vm2202, %v4293
      %4386 = vst.msk [vmem:[#allocation6 + $0x20] sm:$0xff] %vm2202, %v4295
      %4387 = vst.msk [vmem:[#allocation6 + $0x28] sm:$0xff] %vm2202, %v4297
      %4388 = vst.msk [vmem:[#allocation6 + $0x30] sm:$0xff] %vm2202, %v4299
      %4389 = vst.msk [vmem:[#allocation6 + $0x38] sm:$0xff] %vm2202, %v4301
      %4390 = vst.msk [vmem:[#allocation6 + $0x40] sm:$0xff] %vm2202, %v4303
      %4391 = vst.msk [vmem:[#allocation6 + $0x48] sm:$0xff] %vm2202, %v4305
      %4392 = vst.msk [vmem:[#allocation6 + $0x50] sm:$0xff] %vm2202, %v4307
      %4393 = vst.msk [vmem:[#allocation6 + $0x58] sm:$0xff] %vm2202, %v4309
      %4394 = vst.msk [vmem:[#allocation6 + $0x60] sm:$0xff] %vm2202, %v4311
      %4395 = vst.msk [vmem:[#allocation6 + $0x68] sm:$0xff] %vm2202, %v4313
      %4396 = vst.msk [vmem:[#allocation6 + $0x70] sm:$0xff] %vm2202, %v4315
      %4397 = vst.msk [vmem:[#allocation6 + $0x78] sm:$0xff] %vm2202, %v4317
      %4398 = vst.msk [vmem:[#allocation6 + $0x80] sm:$0xff] %vm2202, %v4319
      %4399 = vst.msk [vmem:[#allocation6 + $0x88] sm:$0xff] %vm2202, %v4321
      %4400 = vst.msk [vmem:[#allocation6 + $0x90] sm:$0xff] %vm2202, %v4323
      %4401 = vst.msk [vmem:[#allocation6 + $0x98] sm:$0xff] %vm2202, %v4325
      %4402 = vst.msk [vmem:[#allocation6 + $0xa0] sm:$0xff] %vm2202, %v4327
      %4403 = vst.msk [vmem:[#allocation6 + $0xa8] sm:$0xff] %vm2202, %v4329
      %4404 = vst.msk [vmem:[#allocation6 + $0xb0] sm:$0xff] %vm2202, %v4331
      %4405 = vst.msk [vmem:[#allocation6 + $0xb8] sm:$0xff] %vm2202, %v4333
      %4406 = vst.msk [vmem:[#allocation6 + $0xc0] sm:$0xff] %vm2202, %v4335
      %4407 = vst.msk [vmem:[#allocation6 + $0xc8] sm:$0xff] %vm2202, %v4337
      %4408 = vst.msk [vmem:[#allocation6 + $0xd0] sm:$0xff] %vm2202, %v4339
      %4409 = vst.msk [vmem:[#allocation6 + $0xd8] sm:$0xff] %vm2202, %v4341
      %4410 = vst.msk [vmem:[#allocation6 + $0xe0] sm:$0xff] %vm2202, %v4343
      %4411 = vst.msk [vmem:[#allocation6 + $0xe8] sm:$0xff] %vm2202, %v4345
      %4412 = vst.msk [vmem:[#allocation6 + $0xf0] sm:$0xff] %vm2202, %v4347
      %4413 = vst.msk [vmem:[#allocation6 + $0xf8] sm:$0xff] %vm2202, %v4349
      %v4414 = vld [vmem:[%s4029 + $0x2] sm:$0xff]
      %v4415 = vld [vmem:[%s4029 + $0xa] sm:$0xff]
      %v4416 = vld [vmem:[%s4029 + $0x1a] sm:$0xff]
      %v4417 = vld [vmem:[%s4029 + $0x22] sm:$0xff]
      %v4418 = vld [vmem:[%s4029 + $0x32] sm:$0xff]
      %v4419 = vld [vmem:[%s4029 + $0x3a] sm:$0xff]
      %v4420 = vld [vmem:[%s4029 + $0x4a] sm:$0xff]
      %v4421 = vld [vmem:[%s4029 + $0x52] sm:$0xff]
      %v4422 = vld [vmem:[%s4029 + $0x62] sm:$0xff]
      %v4423 = vld [vmem:[%s4029 + $0x6a] sm:$0xff]
      %v4424 = vld [vmem:[%s4029 + $0x7a] sm:$0xff]
      %v4425 = vld [vmem:[%s4029 + $0x82] sm:$0xff]
      %v4426 = vld [vmem:[%s4029 + $0x92] sm:$0xff]
      %v4427 = vld [vmem:[%s4029 + $0x9a] sm:$0xff]
      %v4428 = vld [vmem:[%s4029 + $0xaa] sm:$0xff]
      %v4429 = vld [vmem:[%s4029 + $0xb2] sm:$0xff]
      %v4430 = vld [vmem:[%s4029 + $0xc2] sm:$0xff]
      %v4431 = vld [vmem:[%s4029 + $0xca] sm:$0xff]
      %v4432 = vld [vmem:[%s4029 + $0xda] sm:$0xff]
      %v4433 = vld [vmem:[%s4029 + $0xe2] sm:$0xff]
      %v4434 = vld [vmem:[%s4029 + $0xf2] sm:$0xff]
      %v4435 = vld [vmem:[%s4029 + $0xfa] sm:$0xff]
      %v4436 = vld [vmem:[%s4029 + $0x10a] sm:$0xff]
      %v4437 = vld [vmem:[%s4029 + $0x112] sm:$0xff]
      %v4438 = vld [vmem:[%s4029 + $0x122] sm:$0xff]
      %v4439 = vld [vmem:[%s4029 + $0x12a] sm:$0xff]
      %v4440 = vld [vmem:[%s4029 + $0x13a] sm:$0xff]
      %v4441 = vld [vmem:[%s4029 + $0x142] sm:$0xff]
      %v4442 = vld [vmem:[%s4029 + $0x152] sm:$0xff]
      %v4443 = vld [vmem:[%s4029 + $0x15a] sm:$0xff]
      %v4444 = vld [vmem:[%s4029 + $0x16a] sm:$0xff]
      %v4445 = vld [vmem:[%s4029 + $0x172] sm:$0xff]
      %4478 = vrot.lane.b32.xlu0 %v4414, 28
      %v4479 = vpop.permute.xlu0 %4478
      %4480 = vrot.lane.b32.xlu0 %v4415, 28
      %v4481 = vpop.permute.xlu0 %4480
      %4482 = vrot.lane.b32.xlu0 %v4416, 28
      %v4483 = vpop.permute.xlu0 %4482
      %4484 = vrot.lane.b32.xlu0 %v4417, 28
      %v4485 = vpop.permute.xlu0 %4484
      %4486 = vrot.lane.b32.xlu0 %v4418, 28
      %v4487 = vpop.permute.xlu0 %4486
      %4488 = vrot.lane.b32.xlu0 %v4419, 28
      %v4489 = vpop.permute.xlu0 %4488
      %4490 = vrot.lane.b32.xlu0 %v4420, 28
      %v4491 = vpop.permute.xlu0 %4490
      %4492 = vrot.lane.b32.xlu0 %v4421, 28
      %v4493 = vpop.permute.xlu0 %4492
      %4494 = vrot.lane.b32.xlu0 %v4422, 28
      %v4495 = vpop.permute.xlu0 %4494
      %4496 = vrot.lane.b32.xlu0 %v4423, 28
      %v4497 = vpop.permute.xlu0 %4496
      %4498 = vrot.lane.b32.xlu0 %v4424, 28
      %v4499 = vpop.permute.xlu0 %4498
      %4500 = vrot.lane.b32.xlu0 %v4425, 28
      %v4501 = vpop.permute.xlu0 %4500
      %4502 = vrot.lane.b32.xlu0 %v4426, 28
      %v4503 = vpop.permute.xlu0 %4502
      %4504 = vrot.lane.b32.xlu0 %v4427, 28
      %v4505 = vpop.permute.xlu0 %4504
      %4506 = vrot.lane.b32.xlu0 %v4428, 28
      %v4507 = vpop.permute.xlu0 %4506
      %4508 = vrot.lane.b32.xlu0 %v4429, 28
      %v4509 = vpop.permute.xlu0 %4508
      %4510 = vrot.lane.b32.xlu0 %v4430, 28
      %v4511 = vpop.permute.xlu0 %4510
      %4512 = vrot.lane.b32.xlu0 %v4431, 28
      %v4513 = vpop.permute.xlu0 %4512
      %4514 = vrot.lane.b32.xlu0 %v4432, 28
      %v4515 = vpop.permute.xlu0 %4514
      %4516 = vrot.lane.b32.xlu0 %v4433, 28
      %v4517 = vpop.permute.xlu0 %4516
      %4518 = vrot.lane.b32.xlu0 %v4434, 28
      %v4519 = vpop.permute.xlu0 %4518
      %4520 = vrot.lane.b32.xlu0 %v4435, 28
      %v4521 = vpop.permute.xlu0 %4520
      %4522 = vrot.lane.b32.xlu0 %v4436, 28
      %v4523 = vpop.permute.xlu0 %4522
      %4524 = vrot.lane.b32.xlu0 %v4437, 28
      %v4525 = vpop.permute.xlu0 %4524
      %4526 = vrot.lane.b32.xlu0 %v4438, 28
      %v4527 = vpop.permute.xlu0 %4526
      %4528 = vrot.lane.b32.xlu0 %v4439, 28
      %v4529 = vpop.permute.xlu0 %4528
      %4530 = vrot.lane.b32.xlu0 %v4440, 28
      %v4531 = vpop.permute.xlu0 %4530
      %4532 = vrot.lane.b32.xlu0 %v4441, 28
      %v4533 = vpop.permute.xlu0 %4532
      %4534 = vrot.lane.b32.xlu0 %v4442, 28
      %v4535 = vpop.permute.xlu0 %4534
      %4536 = vrot.lane.b32.xlu0 %v4443, 28
      %v4537 = vpop.permute.xlu0 %4536
      %4538 = vrot.lane.b32.xlu0 %v4444, 28
      %v4539 = vpop.permute.xlu0 %4538
      %4540 = vrot.lane.b32.xlu0 %v4445, 28
      %v4541 = vpop.permute.xlu0 %4540
      %4574 = vst.msk [vmem:[#allocation6] sm:$0xff] %vm2395, %v4479
      %4575 = vst.msk [vmem:[#allocation6 + $0x8] sm:$0xff] %vm2395, %v4481
      %4576 = vst.msk [vmem:[#allocation6 + $0x10] sm:$0xff] %vm2395, %v4483
      %4577 = vst.msk [vmem:[#allocation6 + $0x18] sm:$0xff] %vm2395, %v4485
      %4578 = vst.msk [vmem:[#allocation6 + $0x20] sm:$0xff] %vm2395, %v4487
      %4579 = vst.msk [vmem:[#allocation6 + $0x28] sm:$0xff] %vm2395, %v4489
      %4580 = vst.msk [vmem:[#allocation6 + $0x30] sm:$0xff] %vm2395, %v4491
      %4581 = vst.msk [vmem:[#allocation6 + $0x38] sm:$0xff] %vm2395, %v4493
      %4582 = vst.msk [vmem:[#allocation6 + $0x40] sm:$0xff] %vm2395, %v4495
      %4583 = vst.msk [vmem:[#allocation6 + $0x48] sm:$0xff] %vm2395, %v4497
      %4584 = vst.msk [vmem:[#allocation6 + $0x50] sm:$0xff] %vm2395, %v4499
      %4585 = vst.msk [vmem:[#allocation6 + $0x58] sm:$0xff] %vm2395, %v4501
      %4586 = vst.msk [vmem:[#allocation6 + $0x60] sm:$0xff] %vm2395, %v4503
      %4587 = vst.msk [vmem:[#allocation6 + $0x68] sm:$0xff] %vm2395, %v4505
      %4588 = vst.msk [vmem:[#allocation6 + $0x70] sm:$0xff] %vm2395, %v4507
      %4589 = vst.msk [vmem:[#allocation6 + $0x78] sm:$0xff] %vm2395, %v4509
      %4590 = vst.msk [vmem:[#allocation6 + $0x80] sm:$0xff] %vm2395, %v4511
      %4591 = vst.msk [vmem:[#allocation6 + $0x88] sm:$0xff] %vm2395, %v4513
      %4592 = vst.msk [vmem:[#allocation6 + $0x90] sm:$0xff] %vm2395, %v4515
      %4593 = vst.msk [vmem:[#allocation6 + $0x98] sm:$0xff] %vm2395, %v4517
      %4594 = vst.msk [vmem:[#allocation6 + $0xa0] sm:$0xff] %vm2395, %v4519
      %4595 = vst.msk [vmem:[#allocation6 + $0xa8] sm:$0xff] %vm2395, %v4521
      %4596 = vst.msk [vmem:[#allocation6 + $0xb0] sm:$0xff] %vm2395, %v4523
      %4597 = vst.msk [vmem:[#allocation6 + $0xb8] sm:$0xff] %vm2395, %v4525
      %4598 = vst.msk [vmem:[#allocation6 + $0xc0] sm:$0xff] %vm2395, %v4527
      %4599 = vst.msk [vmem:[#allocation6 + $0xc8] sm:$0xff] %vm2395, %v4529
      %4600 = vst.msk [vmem:[#allocation6 + $0xd0] sm:$0xff] %vm2395, %v4531
      %4601 = vst.msk [vmem:[#allocation6 + $0xd8] sm:$0xff] %vm2395, %v4533
      %4602 = vst.msk [vmem:[#allocation6 + $0xe0] sm:$0xff] %vm2395, %v4535
      %4603 = vst.msk [vmem:[#allocation6 + $0xe8] sm:$0xff] %vm2395, %v4537
      %4604 = vst.msk [vmem:[#allocation6 + $0xf0] sm:$0xff] %vm2395, %v4539
      %4605 = vst.msk [vmem:[#allocation6 + $0xf8] sm:$0xff] %vm2395, %v4541
      %v4606 = vld [vmem:[%s4029 + $0x3] sm:$0xff]
      %v4607 = vld [vmem:[%s4029 + $0xb] sm:$0xff]
      %v4608 = vld [vmem:[%s4029 + $0x1b] sm:$0xff]
      %v4609 = vld [vmem:[%s4029 + $0x23] sm:$0xff]
      %v4610 = vld [vmem:[%s4029 + $0x33] sm:$0xff]
      %v4611 = vld [vmem:[%s4029 + $0x3b] sm:$0xff]
      %v4612 = vld [vmem:[%s4029 + $0x4b] sm:$0xff]
      %v4613 = vld [vmem:[%s4029 + $0x53] sm:$0xff]
      %v4614 = vld [vmem:[%s4029 + $0x63] sm:$0xff]
      %v4615 = vld [vmem:[%s4029 + $0x6b] sm:$0xff]
      %v4616 = vld [vmem:[%s4029 + $0x7b] sm:$0xff]
      %v4617 = vld [vmem:[%s4029 + $0x83] sm:$0xff]
      %v4618 = vld [vmem:[%s4029 + $0x93] sm:$0xff]
      %v4619 = vld [vmem:[%s4029 + $0x9b] sm:$0xff]
      %v4620 = vld [vmem:[%s4029 + $0xab] sm:$0xff]
      %v4621 = vld [vmem:[%s4029 + $0xb3] sm:$0xff]
      %v4622 = vld [vmem:[%s4029 + $0xc3] sm:$0xff]
      %v4623 = vld [vmem:[%s4029 + $0xcb] sm:$0xff]
      %v4624 = vld [vmem:[%s4029 + $0xdb] sm:$0xff]
      %v4625 = vld [vmem:[%s4029 + $0xe3] sm:$0xff]
      %v4626 = vld [vmem:[%s4029 + $0xf3] sm:$0xff]
      %v4627 = vld [vmem:[%s4029 + $0xfb] sm:$0xff]
      %v4628 = vld [vmem:[%s4029 + $0x10b] sm:$0xff]
      %v4629 = vld [vmem:[%s4029 + $0x113] sm:$0xff]
      %v4630 = vld [vmem:[%s4029 + $0x123] sm:$0xff]
      %v4631 = vld [vmem:[%s4029 + $0x12b] sm:$0xff]
      %v4632 = vld [vmem:[%s4029 + $0x13b] sm:$0xff]
      %v4633 = vld [vmem:[%s4029 + $0x143] sm:$0xff]
      %v4634 = vld [vmem:[%s4029 + $0x153] sm:$0xff]
      %v4635 = vld [vmem:[%s4029 + $0x15b] sm:$0xff]
      %v4636 = vld [vmem:[%s4029 + $0x16b] sm:$0xff]
      %v4637 = vld [vmem:[%s4029 + $0x173] sm:$0xff]
      %4670 = vrot.lane.b32.xlu0 %v4606, 32
      %v4671 = vpop.permute.xlu0 %4670
      %4672 = vrot.lane.b32.xlu0 %v4607, 32
      %v4673 = vpop.permute.xlu0 %4672
      %4674 = vrot.lane.b32.xlu0 %v4608, 32
      %v4675 = vpop.permute.xlu0 %4674
      %4676 = vrot.lane.b32.xlu0 %v4609, 32
      %v4677 = vpop.permute.xlu0 %4676
      %4678 = vrot.lane.b32.xlu0 %v4610, 32
      %v4679 = vpop.permute.xlu0 %4678
      %4680 = vrot.lane.b32.xlu0 %v4611, 32
      %v4681 = vpop.permute.xlu0 %4680
      %4682 = vrot.lane.b32.xlu0 %v4612, 32
      %v4683 = vpop.permute.xlu0 %4682
      %4684 = vrot.lane.b32.xlu0 %v4613, 32
      %v4685 = vpop.permute.xlu0 %4684
      %4686 = vrot.lane.b32.xlu0 %v4614, 32
      %v4687 = vpop.permute.xlu0 %4686
      %4688 = vrot.lane.b32.xlu0 %v4615, 32
      %v4689 = vpop.permute.xlu0 %4688
      %4690 = vrot.lane.b32.xlu0 %v4616, 32
      %v4691 = vpop.permute.xlu0 %4690
      %4692 = vrot.lane.b32.xlu0 %v4617, 32
      %v4693 = vpop.permute.xlu0 %4692
      %4694 = vrot.lane.b32.xlu0 %v4618, 32
      %v4695 = vpop.permute.xlu0 %4694
      %4696 = vrot.lane.b32.xlu0 %v4619, 32
      %v4697 = vpop.permute.xlu0 %4696
      %4698 = vrot.lane.b32.xlu0 %v4620, 32
      %v4699 = vpop.permute.xlu0 %4698
      %4700 = vrot.lane.b32.xlu0 %v4621, 32
      %v4701 = vpop.permute.xlu0 %4700
      %4702 = vrot.lane.b32.xlu0 %v4622, 32
      %v4703 = vpop.permute.xlu0 %4702
      %4704 = vrot.lane.b32.xlu0 %v4623, 32
      %v4705 = vpop.permute.xlu0 %4704
      %4706 = vrot.lane.b32.xlu0 %v4624, 32
      %v4707 = vpop.permute.xlu0 %4706
      %4708 = vrot.lane.b32.xlu0 %v4625, 32
      %v4709 = vpop.permute.xlu0 %4708
      %4710 = vrot.lane.b32.xlu0 %v4626, 32
      %v4711 = vpop.permute.xlu0 %4710
      %4712 = vrot.lane.b32.xlu0 %v4627, 32
      %v4713 = vpop.permute.xlu0 %4712
      %4714 = vrot.lane.b32.xlu0 %v4628, 32
      %v4715 = vpop.permute.xlu0 %4714
      %4716 = vrot.lane.b32.xlu0 %v4629, 32
      %v4717 = vpop.permute.xlu0 %4716
      %4718 = vrot.lane.b32.xlu0 %v4630, 32
      %v4719 = vpop.permute.xlu0 %4718
      %4720 = vrot.lane.b32.xlu0 %v4631, 32
      %v4721 = vpop.permute.xlu0 %4720
      %4722 = vrot.lane.b32.xlu0 %v4632, 32
      %v4723 = vpop.permute.xlu0 %4722
      %4724 = vrot.lane.b32.xlu0 %v4633, 32
      %v4725 = vpop.permute.xlu0 %4724
      %4726 = vrot.lane.b32.xlu0 %v4634, 32
      %v4727 = vpop.permute.xlu0 %4726
      %4728 = vrot.lane.b32.xlu0 %v4635, 32
      %v4729 = vpop.permute.xlu0 %4728
      %4730 = vrot.lane.b32.xlu0 %v4636, 32
      %v4731 = vpop.permute.xlu0 %4730
      %4732 = vrot.lane.b32.xlu0 %v4637, 32
      %v4733 = vpop.permute.xlu0 %4732
      %4766 = vst.msk [vmem:[#allocation6] sm:$0xff] %vm2588, %v4671
      %4767 = vst.msk [vmem:[#allocation6 + $0x8] sm:$0xff] %vm2588, %v4673
      %4768 = vst.msk [vmem:[#allocation6 + $0x10] sm:$0xff] %vm2588, %v4675
      %4769 = vst.msk [vmem:[#allocation6 + $0x18] sm:$0xff] %vm2588, %v4677
      %4770 = vst.msk [vmem:[#allocation6 + $0x20] sm:$0xff] %vm2588, %v4679
      %4771 = vst.msk [vmem:[#allocation6 + $0x28] sm:$0xff] %vm2588, %v4681
      %4772 = vst.msk [vmem:[#allocation6 + $0x30] sm:$0xff] %vm2588, %v4683
      %4773 = vst.msk [vmem:[#allocation6 + $0x38] sm:$0xff] %vm2588, %v4685
      %4774 = vst.msk [vmem:[#allocation6 + $0x40] sm:$0xff] %vm2588, %v4687
      %4775 = vst.msk [vmem:[#allocation6 + $0x48] sm:$0xff] %vm2588, %v4689
      %4776 = vst.msk [vmem:[#allocation6 + $0x50] sm:$0xff] %vm2588, %v4691
      %4777 = vst.msk [vmem:[#allocation6 + $0x58] sm:$0xff] %vm2588, %v4693
      %4778 = vst.msk [vmem:[#allocation6 + $0x60] sm:$0xff] %vm2588, %v4695
      %4779 = vst.msk [vmem:[#allocation6 + $0x68] sm:$0xff] %vm2588, %v4697
      %4780 = vst.msk [vmem:[#allocation6 + $0x70] sm:$0xff] %vm2588, %v4699
      %4781 = vst.msk [vmem:[#allocation6 + $0x78] sm:$0xff] %vm2588, %v4701
      %4782 = vst.msk [vmem:[#allocation6 + $0x80] sm:$0xff] %vm2588, %v4703
      %4783 = vst.msk [vmem:[#allocation6 + $0x88] sm:$0xff] %vm2588, %v4705
      %4784 = vst.msk [vmem:[#allocation6 + $0x90] sm:$0xff] %vm2588, %v4707
      %4785 = vst.msk [vmem:[#allocation6 + $0x98] sm:$0xff] %vm2588, %v4709
      %4786 = vst.msk [vmem:[#allocation6 + $0xa0] sm:$0xff] %vm2588, %v4711
      %4787 = vst.msk [vmem:[#allocation6 + $0xa8] sm:$0xff] %vm2588, %v4713
      %4788 = vst.msk [vmem:[#allocation6 + $0xb0] sm:$0xff] %vm2588, %v4715
      %4789 = vst.msk [vmem:[#allocation6 + $0xb8] sm:$0xff] %vm2588, %v4717
      %4790 = vst.msk [vmem:[#allocation6 + $0xc0] sm:$0xff] %vm2588, %v4719
      %4791 = vst.msk [vmem:[#allocation6 + $0xc8] sm:$0xff] %vm2588, %v4721
      %4792 = vst.msk [vmem:[#allocation6 + $0xd0] sm:$0xff] %vm2588, %v4723
      %4793 = vst.msk [vmem:[#allocation6 + $0xd8] sm:$0xff] %vm2588, %v4725
      %4794 = vst.msk [vmem:[#allocation6 + $0xe0] sm:$0xff] %vm2588, %v4727
      %4795 = vst.msk [vmem:[#allocation6 + $0xe8] sm:$0xff] %vm2588, %v4729
      %4796 = vst.msk [vmem:[#allocation6 + $0xf0] sm:$0xff] %vm2588, %v4731
      %4797 = vst.msk [vmem:[#allocation6 + $0xf8] sm:$0xff] %vm2588, %v4733
      %v4798 = vld [vmem:[%s4029 + $0x4] sm:$0xff]
      %v4799 = vld [vmem:[%s4029 + $0xc] sm:$0xff]
      %v4800 = vld [vmem:[%s4029 + $0x1c] sm:$0xff]
      %v4801 = vld [vmem:[%s4029 + $0x24] sm:$0xff]
      %v4802 = vld [vmem:[%s4029 + $0x34] sm:$0xff]
      %v4803 = vld [vmem:[%s4029 + $0x3c] sm:$0xff]
      %v4804 = vld [vmem:[%s4029 + $0x4c] sm:$0xff]
      %v4805 = vld [vmem:[%s4029 + $0x54] sm:$0xff]
      %v4806 = vld [vmem:[%s4029 + $0x64] sm:$0xff]
      %v4807 = vld [vmem:[%s4029 + $0x6c] sm:$0xff]
      %v4808 = vld [vmem:[%s4029 + $0x7c] sm:$0xff]
      %v4809 = vld [vmem:[%s4029 + $0x84] sm:$0xff]
      %v4810 = vld [vmem:[%s4029 + $0x94] sm:$0xff]
      %v4811 = vld [vmem:[%s4029 + $0x9c] sm:$0xff]
      %v4812 = vld [vmem:[%s4029 + $0xac] sm:$0xff]
      %v4813 = vld [vmem:[%s4029 + $0xb4] sm:$0xff]
      %v4814 = vld [vmem:[%s4029 + $0xc4] sm:$0xff]
      %v4815 = vld [vmem:[%s4029 + $0xcc] sm:$0xff]
      %v4816 = vld [vmem:[%s4029 + $0xdc] sm:$0xff]
      %v4817 = vld [vmem:[%s4029 + $0xe4] sm:$0xff]
      %v4818 = vld [vmem:[%s4029 + $0xf4] sm:$0xff]
      %v4819 = vld [vmem:[%s4029 + $0xfc] sm:$0xff]
      %v4820 = vld [vmem:[%s4029 + $0x10c] sm:$0xff]
      %v4821 = vld [vmem:[%s4029 + $0x114] sm:$0xff]
      %v4822 = vld [vmem:[%s4029 + $0x124] sm:$0xff]
      %v4823 = vld [vmem:[%s4029 + $0x12c] sm:$0xff]
      %v4824 = vld [vmem:[%s4029 + $0x13c] sm:$0xff]
      %v4825 = vld [vmem:[%s4029 + $0x144] sm:$0xff]
      %v4826 = vld [vmem:[%s4029 + $0x154] sm:$0xff]
      %v4827 = vld [vmem:[%s4029 + $0x15c] sm:$0xff]
      %v4828 = vld [vmem:[%s4029 + $0x16c] sm:$0xff]
      %v4829 = vld [vmem:[%s4029 + $0x174] sm:$0xff]
      %4862 = vrot.lane.b32.xlu0 %v4798, 36
      %v4863 = vpop.permute.xlu0 %4862
      %4864 = vrot.lane.b32.xlu0 %v4799, 36
      %v4865 = vpop.permute.xlu0 %4864
      %4866 = vrot.lane.b32.xlu0 %v4800, 36
      %v4867 = vpop.permute.xlu0 %4866
      %4868 = vrot.lane.b32.xlu0 %v4801, 36
      %v4869 = vpop.permute.xlu0 %4868
      %4870 = vrot.lane.b32.xlu0 %v4802, 36
      %v4871 = vpop.permute.xlu0 %4870
      %4872 = vrot.lane.b32.xlu0 %v4803, 36
      %v4873 = vpop.permute.xlu0 %4872
      %4874 = vrot.lane.b32.xlu0 %v4804, 36
      %v4875 = vpop.permute.xlu0 %4874
      %4876 = vrot.lane.b32.xlu0 %v4805, 36
      %v4877 = vpop.permute.xlu0 %4876
      %4878 = vrot.lane.b32.xlu0 %v4806, 36
      %v4879 = vpop.permute.xlu0 %4878
      %4880 = vrot.lane.b32.xlu0 %v4807, 36
      %v4881 = vpop.permute.xlu0 %4880
      %4882 = vrot.lane.b32.xlu0 %v4808, 36
      %v4883 = vpop.permute.xlu0 %4882
      %4884 = vrot.lane.b32.xlu0 %v4809, 36
      %v4885 = vpop.permute.xlu0 %4884
      %4886 = vrot.lane.b32.xlu0 %v4810, 36
      %v4887 = vpop.permute.xlu0 %4886
      %4888 = vrot.lane.b32.xlu0 %v4811, 36
      %v4889 = vpop.permute.xlu0 %4888
      %4890 = vrot.lane.b32.xlu0 %v4812, 36
      %v4891 = vpop.permute.xlu0 %4890
      %4892 = vrot.lane.b32.xlu0 %v4813, 36
      %v4893 = vpop.permute.xlu0 %4892
      %4894 = vrot.lane.b32.xlu0 %v4814, 36
      %v4895 = vpop.permute.xlu0 %4894
      %4896 = vrot.lane.b32.xlu0 %v4815, 36
      %v4897 = vpop.permute.xlu0 %4896
      %4898 = vrot.lane.b32.xlu0 %v4816, 36
      %v4899 = vpop.permute.xlu0 %4898
      %4900 = vrot.lane.b32.xlu0 %v4817, 36
      %v4901 = vpop.permute.xlu0 %4900
      %4902 = vrot.lane.b32.xlu0 %v4818, 36
      %v4903 = vpop.permute.xlu0 %4902
      %4904 = vrot.lane.b32.xlu0 %v4819, 36
      %v4905 = vpop.permute.xlu0 %4904
      %4906 = vrot.lane.b32.xlu0 %v4820, 36
      %v4907 = vpop.permute.xlu0 %4906
      %4908 = vrot.lane.b32.xlu0 %v4821, 36
      %v4909 = vpop.permute.xlu0 %4908
      %4910 = vrot.lane.b32.xlu0 %v4822, 36
      %v4911 = vpop.permute.xlu0 %4910
      %4912 = vrot.lane.b32.xlu0 %v4823, 36
      %v4913 = vpop.permute.xlu0 %4912
      %4914 = vrot.lane.b32.xlu0 %v4824, 36
      %v4915 = vpop.permute.xlu0 %4914
      %4916 = vrot.lane.b32.xlu0 %v4825, 36
      %v4917 = vpop.permute.xlu0 %4916
      %4918 = vrot.lane.b32.xlu0 %v4826, 36
      %v4919 = vpop.permute.xlu0 %4918
      %4920 = vrot.lane.b32.xlu0 %v4827, 36
      %v4921 = vpop.permute.xlu0 %4920
      %4922 = vrot.lane.b32.xlu0 %v4828, 36
      %v4923 = vpop.permute.xlu0 %4922
      %4924 = vrot.lane.b32.xlu0 %v4829, 36
      %v4925 = vpop.permute.xlu0 %4924
      %vm4958 = vcmask 326944
      %4959 = vst.msk [vmem:[#allocation6] sm:$0xff] %vm4958, %v4863
      %4960 = vst.msk [vmem:[#allocation6 + $0x8] sm:$0xff] %vm4958, %v4865
      %4961 = vst.msk [vmem:[#allocation6 + $0x10] sm:$0xff] %vm4958, %v4867
      %4962 = vst.msk [vmem:[#allocation6 + $0x18] sm:$0xff] %vm4958, %v4869
      %4963 = vst.msk [vmem:[#allocation6 + $0x20] sm:$0xff] %vm4958, %v4871
      %4964 = vst.msk [vmem:[#allocation6 + $0x28] sm:$0xff] %vm4958, %v4873
      %4965 = vst.msk [vmem:[#allocation6 + $0x30] sm:$0xff] %vm4958, %v4875
      %4966 = vst.msk [vmem:[#allocation6 + $0x38] sm:$0xff] %vm4958, %v4877
      %4967 = vst.msk [vmem:[#allocation6 + $0x40] sm:$0xff] %vm4958, %v4879
      %4968 = vst.msk [vmem:[#allocation6 + $0x48] sm:$0xff] %vm4958, %v4881
      %4969 = vst.msk [vmem:[#allocation6 + $0x50] sm:$0xff] %vm4958, %v4883
      %4970 = vst.msk [vmem:[#allocation6 + $0x58] sm:$0xff] %vm4958, %v4885
      %4971 = vst.msk [vmem:[#allocation6 + $0x60] sm:$0xff] %vm4958, %v4887
      %4972 = vst.msk [vmem:[#allocation6 + $0x68] sm:$0xff] %vm4958, %v4889
      %4973 = vst.msk [vmem:[#allocation6 + $0x70] sm:$0xff] %vm4958, %v4891
      %4974 = vst.msk [vmem:[#allocation6 + $0x78] sm:$0xff] %vm4958, %v4893
      %4975 = vst.msk [vmem:[#allocation6 + $0x80] sm:$0xff] %vm4958, %v4895
      %4976 = vst.msk [vmem:[#allocation6 + $0x88] sm:$0xff] %vm4958, %v4897
      %4977 = vst.msk [vmem:[#allocation6 + $0x90] sm:$0xff] %vm4958, %v4899
      %4978 = vst.msk [vmem:[#allocation6 + $0x98] sm:$0xff] %vm4958, %v4901
      %4979 = vst.msk [vmem:[#allocation6 + $0xa0] sm:$0xff] %vm4958, %v4903
      %4980 = vst.msk [vmem:[#allocation6 + $0xa8] sm:$0xff] %vm4958, %v4905
      %4981 = vst.msk [vmem:[#allocation6 + $0xb0] sm:$0xff] %vm4958, %v4907
      %4982 = vst.msk [vmem:[#allocation6 + $0xb8] sm:$0xff] %vm4958, %v4909
      %4983 = vst.msk [vmem:[#allocation6 + $0xc0] sm:$0xff] %vm4958, %v4911
      %4984 = vst.msk [vmem:[#allocation6 + $0xc8] sm:$0xff] %vm4958, %v4913
      %4985 = vst.msk [vmem:[#allocation6 + $0xd0] sm:$0xff] %vm4958, %v4915
      %4986 = vst.msk [vmem:[#allocation6 + $0xd8] sm:$0xff] %vm4958, %v4917
      %4987 = vst.msk [vmem:[#allocation6 + $0xe0] sm:$0xff] %vm4958, %v4919
      %4988 = vst.msk [vmem:[#allocation6 + $0xe8] sm:$0xff] %vm4958, %v4921
      %4989 = vst.msk [vmem:[#allocation6 + $0xf0] sm:$0xff] %vm4958, %v4923
      %4990 = vst.msk [vmem:[#allocation6 + $0xf8] sm:$0xff] %vm4958, %v4925
      %v4991 = vld [vmem:[%s3164] sm:$0xff]
      %v4992 = vld [vmem:[%s3164 + $0x8] sm:$0xff]
      %v4993 = vld [vmem:[%s3164 + $0x18] sm:$0xff]
      %v4994 = vld [vmem:[%s3164 + $0x20] sm:$0xff]
      %v4995 = vld [vmem:[%s3164 + $0x30] sm:$0xff]
      %v4996 = vld [vmem:[%s3164 + $0x38] sm:$0xff]
      %v4997 = vld [vmem:[%s3164 + $0x48] sm:$0xff]
      %v4998 = vld [vmem:[%s3164 + $0x50] sm:$0xff]
      %v4999 = vld [vmem:[%s3164 + $0x60] sm:$0xff]
      %v5000 = vld [vmem:[%s3164 + $0x68] sm:$0xff]
      %v5001 = vld [vmem:[%s3164 + $0x78] sm:$0xff]
      %v5002 = vld [vmem:[%s3164 + $0x80] sm:$0xff]
      %v5003 = vld [vmem:[%s3164 + $0x90] sm:$0xff]
      %v5004 = vld [vmem:[%s3164 + $0x98] sm:$0xff]
      %v5005 = vld [vmem:[%s3164 + $0xa8] sm:$0xff]
      %v5006 = vld [vmem:[%s3164 + $0xb0] sm:$0xff]
      %v5007 = vld [vmem:[%s3164 + $0xc0] sm:$0xff]
      %v5008 = vld [vmem:[%s3164 + $0xc8] sm:$0xff]
      %v5009 = vld [vmem:[%s3164 + $0xd8] sm:$0xff]
      %v5010 = vld [vmem:[%s3164 + $0xe0] sm:$0xff]
      %v5011 = vld [vmem:[%s3164 + $0xf0] sm:$0xff]
      %v5012 = vld [vmem:[%s3164 + $0xf8] sm:$0xff]
      %v5013 = vld [vmem:[%s3164 + $0x108] sm:$0xff]
      %v5014 = vld [vmem:[%s3164 + $0x110] sm:$0xff]
      %v5015 = vld [vmem:[%s3164 + $0x120] sm:$0xff]
      %v5016 = vld [vmem:[%s3164 + $0x128] sm:$0xff]
      %v5017 = vld [vmem:[%s3164 + $0x138] sm:$0xff]
      %v5018 = vld [vmem:[%s3164 + $0x140] sm:$0xff]
      %v5019 = vld [vmem:[%s3164 + $0x150] sm:$0xff]
      %v5020 = vld [vmem:[%s3164 + $0x158] sm:$0xff]
      %v5021 = vld [vmem:[%s3164 + $0x168] sm:$0xff]
      %v5022 = vld [vmem:[%s3164 + $0x170] sm:$0xff]
      %5055 = vrot.lane.b32.xlu0 %v4991, 40
      %v5056 = vpop.permute.xlu0 %5055
      %5057 = vrot.lane.b32.xlu0 %v4992, 40
      %v5058 = vpop.permute.xlu0 %5057
      %5059 = vrot.lane.b32.xlu0 %v4993, 40
      %v5060 = vpop.permute.xlu0 %5059
      %5061 = vrot.lane.b32.xlu0 %v4994, 40
      %v5062 = vpop.permute.xlu0 %5061
      %5063 = vrot.lane.b32.xlu0 %v4995, 40
      %v5064 = vpop.permute.xlu0 %5063
      %5065 = vrot.lane.b32.xlu0 %v4996, 40
      %v5066 = vpop.permute.xlu0 %5065
      %5067 = vrot.lane.b32.xlu0 %v4997, 40
      %v5068 = vpop.permute.xlu0 %5067
      %5069 = vrot.lane.b32.xlu0 %v4998, 40
      %v5070 = vpop.permute.xlu0 %5069
      %5071 = vrot.lane.b32.xlu0 %v4999, 40
      %v5072 = vpop.permute.xlu0 %5071
      %5073 = vrot.lane.b32.xlu0 %v5000, 40
      %v5074 = vpop.permute.xlu0 %5073
      %5075 = vrot.lane.b32.xlu0 %v5001, 40
      %v5076 = vpop.permute.xlu0 %5075
      %5077 = vrot.lane.b32.xlu0 %v5002, 40
      %v5078 = vpop.permute.xlu0 %5077
      %5079 = vrot.lane.b32.xlu0 %v5003, 40
      %v5080 = vpop.permute.xlu0 %5079
      %5081 = vrot.lane.b32.xlu0 %v5004, 40
      %v5082 = vpop.permute.xlu0 %5081
      %5083 = vrot.lane.b32.xlu0 %v5005, 40
      %v5084 = vpop.permute.xlu0 %5083
      %5085 = vrot.lane.b32.xlu0 %v5006, 40
      %v5086 = vpop.permute.xlu0 %5085
      %5087 = vrot.lane.b32.xlu0 %v5007, 40
      %v5088 = vpop.permute.xlu0 %5087
      %5089 = vrot.lane.b32.xlu0 %v5008, 40
      %v5090 = vpop.permute.xlu0 %5089
      %5091 = vrot.lane.b32.xlu0 %v5009, 40
      %v5092 = vpop.permute.xlu0 %5091
      %5093 = vrot.lane.b32.xlu0 %v5010, 40
      %v5094 = vpop.permute.xlu0 %5093
      %5095 = vrot.lane.b32.xlu0 %v5011, 40
      %v5096 = vpop.permute.xlu0 %5095
      %5097 = vrot.lane.b32.xlu0 %v5012, 40
      %v5098 = vpop.permute.xlu0 %5097
      %5099 = vrot.lane.b32.xlu0 %v5013, 40
      %v5100 = vpop.permute.xlu0 %5099
      %5101 = vrot.lane.b32.xlu0 %v5014, 40
      %v5102 = vpop.permute.xlu0 %5101
      %5103 = vrot.lane.b32.xlu0 %v5015, 40
      %v5104 = vpop.permute.xlu0 %5103
      %5105 = vrot.lane.b32.xlu0 %v5016, 40
      %v5106 = vpop.permute.xlu0 %5105
      %5107 = vrot.lane.b32.xlu0 %v5017, 40
      %v5108 = vpop.permute.xlu0 %5107
      %5109 = vrot.lane.b32.xlu0 %v5018, 40
      %v5110 = vpop.permute.xlu0 %5109
      %5111 = vrot.lane.b32.xlu0 %v5019, 40
      %v5112 = vpop.permute.xlu0 %5111
      %5113 = vrot.lane.b32.xlu0 %v5020, 40
      %v5114 = vpop.permute.xlu0 %5113
      %5115 = vrot.lane.b32.xlu0 %v5021, 40
      %v5116 = vpop.permute.xlu0 %5115
      %5117 = vrot.lane.b32.xlu0 %v5022, 40
      %v5118 = vpop.permute.xlu0 %5117
      %vm5151 = vcmask 359744
      %5152 = vst.msk [vmem:[#allocation6] sm:$0xff] %vm5151, %v5056
      %5153 = vst.msk [vmem:[#allocation6 + $0x8] sm:$0xff] %vm5151, %v5058
      %5154 = vst.msk [vmem:[#allocation6 + $0x10] sm:$0xff] %vm5151, %v5060
      %5155 = vst.msk [vmem:[#allocation6 + $0x18] sm:$0xff] %vm5151, %v5062
      %5156 = vst.msk [vmem:[#allocation6 + $0x20] sm:$0xff] %vm5151, %v5064
      %5157 = vst.msk [vmem:[#allocation6 + $0x28] sm:$0xff] %vm5151, %v5066
      %5158 = vst.msk [vmem:[#allocation6 + $0x30] sm:$0xff] %vm5151, %v5068
      %5159 = vst.msk [vmem:[#allocation6 + $0x38] sm:$0xff] %vm5151, %v5070
      %5160 = vst.msk [vmem:[#allocation6 + $0x40] sm:$0xff] %vm5151, %v5072
      %5161 = vst.msk [vmem:[#allocation6 + $0x48] sm:$0xff] %vm5151, %v5074
      %5162 = vst.msk [vmem:[#allocation6 + $0x50] sm:$0xff] %vm5151, %v5076
      %5163 = vst.msk [vmem:[#allocation6 + $0x58] sm:$0xff] %vm5151, %v5078
      %5164 = vst.msk [vmem:[#allocation6 + $0x60] sm:$0xff] %vm5151, %v5080
      %5165 = vst.msk [vmem:[#allocation6 + $0x68] sm:$0xff] %vm5151, %v5082
      %5166 = vst.msk [vmem:[#allocation6 + $0x70] sm:$0xff] %vm5151, %v5084
      %5167 = vst.msk [vmem:[#allocation6 + $0x78] sm:$0xff] %vm5151, %v5086
      %5168 = vst.msk [vmem:[#allocation6 + $0x80] sm:$0xff] %vm5151, %v5088
      %5169 = vst.msk [vmem:[#allocation6 + $0x88] sm:$0xff] %vm5151, %v5090
      %5170 = vst.msk [vmem:[#allocation6 + $0x90] sm:$0xff] %vm5151, %v5092
      %5171 = vst.msk [vmem:[#allocation6 + $0x98] sm:$0xff] %vm5151, %v5094
      %5172 = vst.msk [vmem:[#allocation6 + $0xa0] sm:$0xff] %vm5151, %v5096
      %5173 = vst.msk [vmem:[#allocation6 + $0xa8] sm:$0xff] %vm5151, %v5098
      %5174 = vst.msk [vmem:[#allocation6 + $0xb0] sm:$0xff] %vm5151, %v5100
      %5175 = vst.msk [vmem:[#allocation6 + $0xb8] sm:$0xff] %vm5151, %v5102
      %5176 = vst.msk [vmem:[#allocation6 + $0xc0] sm:$0xff] %vm5151, %v5104
      %5177 = vst.msk [vmem:[#allocation6 + $0xc8] sm:$0xff] %vm5151, %v5106
      %5178 = vst.msk [vmem:[#allocation6 + $0xd0] sm:$0xff] %vm5151, %v5108
      %5179 = vst.msk [vmem:[#allocation6 + $0xd8] sm:$0xff] %vm5151, %v5110
      %5180 = vst.msk [vmem:[#allocation6 + $0xe0] sm:$0xff] %vm5151, %v5112
      %5181 = vst.msk [vmem:[#allocation6 + $0xe8] sm:$0xff] %vm5151, %v5114
      %5182 = vst.msk [vmem:[#allocation6 + $0xf0] sm:$0xff] %vm5151, %v5116
      %5183 = vst.msk [vmem:[#allocation6 + $0xf8] sm:$0xff] %vm5151, %v5118
      %v5184 = vld [vmem:[%s3164 + $0x1] sm:$0xff]
      %v5185 = vld [vmem:[%s3164 + $0x9] sm:$0xff]
      %v5186 = vld [vmem:[%s3164 + $0x19] sm:$0xff]
      %v5187 = vld [vmem:[%s3164 + $0x21] sm:$0xff]
      %v5188 = vld [vmem:[%s3164 + $0x31] sm:$0xff]
      %v5189 = vld [vmem:[%s3164 + $0x39] sm:$0xff]
      %v5190 = vld [vmem:[%s3164 + $0x49] sm:$0xff]
      %v5191 = vld [vmem:[%s3164 + $0x51] sm:$0xff]
      %v5192 = vld [vmem:[%s3164 + $0x61] sm:$0xff]
      %v5193 = vld [vmem:[%s3164 + $0x69] sm:$0xff]
      %v5194 = vld [vmem:[%s3164 + $0x79] sm:$0xff]
      %v5195 = vld [vmem:[%s3164 + $0x81] sm:$0xff]
      %v5196 = vld [vmem:[%s3164 + $0x91] sm:$0xff]
      %v5197 = vld [vmem:[%s3164 + $0x99] sm:$0xff]
      %v5198 = vld [vmem:[%s3164 + $0xa9] sm:$0xff]
      %v5199 = vld [vmem:[%s3164 + $0xb1] sm:$0xff]
      %v5200 = vld [vmem:[%s3164 + $0xc1] sm:$0xff]
      %v5201 = vld [vmem:[%s3164 + $0xc9] sm:$0xff]
      %v5202 = vld [vmem:[%s3164 + $0xd9] sm:$0xff]
      %v5203 = vld [vmem:[%s3164 + $0xe1] sm:$0xff]
      %v5204 = vld [vmem:[%s3164 + $0xf1] sm:$0xff]
      %v5205 = vld [vmem:[%s3164 + $0xf9] sm:$0xff]
      %v5206 = vld [vmem:[%s3164 + $0x109] sm:$0xff]
      %v5207 = vld [vmem:[%s3164 + $0x111] sm:$0xff]
      %v5208 = vld [vmem:[%s3164 + $0x121] sm:$0xff]
      %v5209 = vld [vmem:[%s3164 + $0x129] sm:$0xff]
      %v5210 = vld [vmem:[%s3164 + $0x139] sm:$0xff]
      %v5211 = vld [vmem:[%s3164 + $0x141] sm:$0xff]
      %v5212 = vld [vmem:[%s3164 + $0x151] sm:$0xff]
      %v5213 = vld [vmem:[%s3164 + $0x159] sm:$0xff]
      %v5214 = vld [vmem:[%s3164 + $0x169] sm:$0xff]
      %v5215 = vld [vmem:[%s3164 + $0x171] sm:$0xff]
      %5248 = vrot.lane.b32.xlu0 %v5184, 44
      %v5249 = vpop.permute.xlu0 %5248
      %5250 = vrot.lane.b32.xlu0 %v5185, 44
      %v5251 = vpop.permute.xlu0 %5250
      %5252 = vrot.lane.b32.xlu0 %v5186, 44
      %v5253 = vpop.permute.xlu0 %5252
      %5254 = vrot.lane.b32.xlu0 %v5187, 44
      %v5255 = vpop.permute.xlu0 %5254
      %5256 = vrot.lane.b32.xlu0 %v5188, 44
      %v5257 = vpop.permute.xlu0 %5256
      %5258 = vrot.lane.b32.xlu0 %v5189, 44
      %v5259 = vpop.permute.xlu0 %5258
      %5260 = vrot.lane.b32.xlu0 %v5190, 44
      %v5261 = vpop.permute.xlu0 %5260
      %5262 = vrot.lane.b32.xlu0 %v5191, 44
      %v5263 = vpop.permute.xlu0 %5262
      %5264 = vrot.lane.b32.xlu0 %v5192, 44
      %v5265 = vpop.permute.xlu0 %5264
      %5266 = vrot.lane.b32.xlu0 %v5193, 44
      %v5267 = vpop.permute.xlu0 %5266
      %5268 = vrot.lane.b32.xlu0 %v5194, 44
      %v5269 = vpop.permute.xlu0 %5268
      %5270 = vrot.lane.b32.xlu0 %v5195, 44
      %v5271 = vpop.permute.xlu0 %5270
      %5272 = vrot.lane.b32.xlu0 %v5196, 44
      %v5273 = vpop.permute.xlu0 %5272
      %5274 = vrot.lane.b32.xlu0 %v5197, 44
      %v5275 = vpop.permute.xlu0 %5274
      %5276 = vrot.lane.b32.xlu0 %v5198, 44
      %v5277 = vpop.permute.xlu0 %5276
      %5278 = vrot.lane.b32.xlu0 %v5199, 44
      %v5279 = vpop.permute.xlu0 %5278
      %5280 = vrot.lane.b32.xlu0 %v5200, 44
      %v5281 = vpop.permute.xlu0 %5280
      %5282 = vrot.lane.b32.xlu0 %v5201, 44
      %v5283 = vpop.permute.xlu0 %5282
      %5284 = vrot.lane.b32.xlu0 %v5202, 44
      %v5285 = vpop.permute.xlu0 %5284
      %5286 = vrot.lane.b32.xlu0 %v5203, 44
      %v5287 = vpop.permute.xlu0 %5286
      %5288 = vrot.lane.b32.xlu0 %v5204, 44
      %v5289 = vpop.permute.xlu0 %5288
      %5290 = vrot.lane.b32.xlu0 %v5205, 44
      %v5291 = vpop.permute.xlu0 %5290
      %5292 = vrot.lane.b32.xlu0 %v5206, 44
      %v5293 = vpop.permute.xlu0 %5292
      %5294 = vrot.lane.b32.xlu0 %v5207, 44
      %v5295 = vpop.permute.xlu0 %5294
      %5296 = vrot.lane.b32.xlu0 %v5208, 44
      %v5297 = vpop.permute.xlu0 %5296
      %5298 = vrot.lane.b32.xlu0 %v5209, 44
      %v5299 = vpop.permute.xlu0 %5298
      %5300 = vrot.lane.b32.xlu0 %v5210, 44
      %v5301 = vpop.permute.xlu0 %5300
      %5302 = vrot.lane.b32.xlu0 %v5211, 44
      %v5303 = vpop.permute.xlu0 %5302
      %5304 = vrot.lane.b32.xlu0 %v5212, 44
      %v5305 = vpop.permute.xlu0 %5304
      %5306 = vrot.lane.b32.xlu0 %v5213, 44
      %v5307 = vpop.permute.xlu0 %5306
      %5308 = vrot.lane.b32.xlu0 %v5214, 44
      %v5309 = vpop.permute.xlu0 %5308
      %5310 = vrot.lane.b32.xlu0 %v5215, 44
      %v5311 = vpop.permute.xlu0 %5310
      %vm5344 = vcmask 392544
      %5345 = vst.msk [vmem:[#allocation6] sm:$0xff] %vm5344, %v5249
      %5346 = vst.msk [vmem:[#allocation6 + $0x8] sm:$0xff] %vm5344, %v5251
      %5347 = vst.msk [vmem:[#allocation6 + $0x10] sm:$0xff] %vm5344, %v5253
      %5348 = vst.msk [vmem:[#allocation6 + $0x18] sm:$0xff] %vm5344, %v5255
      %5349 = vst.msk [vmem:[#allocation6 + $0x20] sm:$0xff] %vm5344, %v5257
      %5350 = vst.msk [vmem:[#allocation6 + $0x28] sm:$0xff] %vm5344, %v5259
      %5351 = vst.msk [vmem:[#allocation6 + $0x30] sm:$0xff] %vm5344, %v5261
      %5352 = vst.msk [vmem:[#allocation6 + $0x38] sm:$0xff] %vm5344, %v5263
      %5353 = vst.msk [vmem:[#allocation6 + $0x40] sm:$0xff] %vm5344, %v5265
      %5354 = vst.msk [vmem:[#allocation6 + $0x48] sm:$0xff] %vm5344, %v5267
      %5355 = vst.msk [vmem:[#allocation6 + $0x50] sm:$0xff] %vm5344, %v5269
      %5356 = vst.msk [vmem:[#allocation6 + $0x58] sm:$0xff] %vm5344, %v5271
      %5357 = vst.msk [vmem:[#allocation6 + $0x60] sm:$0xff] %vm5344, %v5273
      %5358 = vst.msk [vmem:[#allocation6 + $0x68] sm:$0xff] %vm5344, %v5275
      %5359 = vst.msk [vmem:[#allocation6 + $0x70] sm:$0xff] %vm5344, %v5277
      %5360 = vst.msk [vmem:[#allocation6 + $0x78] sm:$0xff] %vm5344, %v5279
      %5361 = vst.msk [vmem:[#allocation6 + $0x80] sm:$0xff] %vm5344, %v5281
      %5362 = vst.msk [vmem:[#allocation6 + $0x88] sm:$0xff] %vm5344, %v5283
      %5363 = vst.msk [vmem:[#allocation6 + $0x90] sm:$0xff] %vm5344, %v5285
      %5364 = vst.msk [vmem:[#allocation6 + $0x98] sm:$0xff] %vm5344, %v5287
      %5365 = vst.msk [vmem:[#allocation6 + $0xa0] sm:$0xff] %vm5344, %v5289
      %5366 = vst.msk [vmem:[#allocation6 + $0xa8] sm:$0xff] %vm5344, %v5291
      %5367 = vst.msk [vmem:[#allocation6 + $0xb0] sm:$0xff] %vm5344, %v5293
      %5368 = vst.msk [vmem:[#allocation6 + $0xb8] sm:$0xff] %vm5344, %v5295
      %5369 = vst.msk [vmem:[#allocation6 + $0xc0] sm:$0xff] %vm5344, %v5297
      %5370 = vst.msk [vmem:[#allocation6 + $0xc8] sm:$0xff] %vm5344, %v5299
      %5371 = vst.msk [vmem:[#allocation6 + $0xd0] sm:$0xff] %vm5344, %v5301
      %5372 = vst.msk [vmem:[#allocation6 + $0xd8] sm:$0xff] %vm5344, %v5303
      %5373 = vst.msk [vmem:[#allocation6 + $0xe0] sm:$0xff] %vm5344, %v5305
      %5374 = vst.msk [vmem:[#allocation6 + $0xe8] sm:$0xff] %vm5344, %v5307
      %5375 = vst.msk [vmem:[#allocation6 + $0xf0] sm:$0xff] %vm5344, %v5309
      %5376 = vst.msk [vmem:[#allocation6 + $0xf8] sm:$0xff] %vm5344, %v5311
      %v5377 = vld [vmem:[%s3164 + $0x2] sm:$0xff]
      %v5378 = vld [vmem:[%s3164 + $0xa] sm:$0xff]
      %v5379 = vld [vmem:[%s3164 + $0x1a] sm:$0xff]
      %v5380 = vld [vmem:[%s3164 + $0x22] sm:$0xff]
      %v5381 = vld [vmem:[%s3164 + $0x32] sm:$0xff]
      %v5382 = vld [vmem:[%s3164 + $0x3a] sm:$0xff]
      %v5383 = vld [vmem:[%s3164 + $0x4a] sm:$0xff]
      %v5384 = vld [vmem:[%s3164 + $0x52] sm:$0xff]
      %v5385 = vld [vmem:[%s3164 + $0x62] sm:$0xff]
      %v5386 = vld [vmem:[%s3164 + $0x6a] sm:$0xff]
      %v5387 = vld [vmem:[%s3164 + $0x7a] sm:$0xff]
      %v5388 = vld [vmem:[%s3164 + $0x82] sm:$0xff]
      %v5389 = vld [vmem:[%s3164 + $0x92] sm:$0xff]
      %v5390 = vld [vmem:[%s3164 + $0x9a] sm:$0xff]
      %v5391 = vld [vmem:[%s3164 + $0xaa] sm:$0xff]
      %v5392 = vld [vmem:[%s3164 + $0xb2] sm:$0xff]
      %v5393 = vld [vmem:[%s3164 + $0xc2] sm:$0xff]
      %v5394 = vld [vmem:[%s3164 + $0xca] sm:$0xff]
      %v5395 = vld [vmem:[%s3164 + $0xda] sm:$0xff]
      %v5396 = vld [vmem:[%s3164 + $0xe2] sm:$0xff]
      %v5397 = vld [vmem:[%s3164 + $0xf2] sm:$0xff]
      %v5398 = vld [vmem:[%s3164 + $0xfa] sm:$0xff]
      %v5399 = vld [vmem:[%s3164 + $0x10a] sm:$0xff]
      %v5400 = vld [vmem:[%s3164 + $0x112] sm:$0xff]
      %v5401 = vld [vmem:[%s3164 + $0x122] sm:$0xff]
      %v5402 = vld [vmem:[%s3164 + $0x12a] sm:$0xff]
      %v5403 = vld [vmem:[%s3164 + $0x13a] sm:$0xff]
      %v5404 = vld [vmem:[%s3164 + $0x142] sm:$0xff]
      %v5405 = vld [vmem:[%s3164 + $0x152] sm:$0xff]
      %v5406 = vld [vmem:[%s3164 + $0x15a] sm:$0xff]
      %v5407 = vld [vmem:[%s3164 + $0x16a] sm:$0xff]
      %v5408 = vld [vmem:[%s3164 + $0x172] sm:$0xff]
      %5441 = vrot.lane.b32.xlu0 %v5377, 48
      %v5442 = vpop.permute.xlu0 %5441
      %5443 = vrot.lane.b32.xlu0 %v5378, 48
      %v5444 = vpop.permute.xlu0 %5443
      %5445 = vrot.lane.b32.xlu0 %v5379, 48
      %v5446 = vpop.permute.xlu0 %5445
      %5447 = vrot.lane.b32.xlu0 %v5380, 48
      %v5448 = vpop.permute.xlu0 %5447
      %5449 = vrot.lane.b32.xlu0 %v5381, 48
      %v5450 = vpop.permute.xlu0 %5449
      %5451 = vrot.lane.b32.xlu0 %v5382, 48
      %v5452 = vpop.permute.xlu0 %5451
      %5453 = vrot.lane.b32.xlu0 %v5383, 48
      %v5454 = vpop.permute.xlu0 %5453
      %5455 = vrot.lane.b32.xlu0 %v5384, 48
      %v5456 = vpop.permute.xlu0 %5455
      %5457 = vrot.lane.b32.xlu0 %v5385, 48
      %v5458 = vpop.permute.xlu0 %5457
      %5459 = vrot.lane.b32.xlu0 %v5386, 48
      %v5460 = vpop.permute.xlu0 %5459
      %5461 = vrot.lane.b32.xlu0 %v5387, 48
      %v5462 = vpop.permute.xlu0 %5461
      %5463 = vrot.lane.b32.xlu0 %v5388, 48
      %v5464 = vpop.permute.xlu0 %5463
      %5465 = vrot.lane.b32.xlu0 %v5389, 48
      %v5466 = vpop.permute.xlu0 %5465
      %5467 = vrot.lane.b32.xlu0 %v5390, 48
      %v5468 = vpop.permute.xlu0 %5467
      %5469 = vrot.lane.b32.xlu0 %v5391, 48
      %v5470 = vpop.permute.xlu0 %5469
      %5471 = vrot.lane.b32.xlu0 %v5392, 48
      %v5472 = vpop.permute.xlu0 %5471
      %5473 = vrot.lane.b32.xlu0 %v5393, 48
      %v5474 = vpop.permute.xlu0 %5473
      %5475 = vrot.lane.b32.xlu0 %v5394, 48
      %v5476 = vpop.permute.xlu0 %5475
      %5477 = vrot.lane.b32.xlu0 %v5395, 48
      %v5478 = vpop.permute.xlu0 %5477
      %5479 = vrot.lane.b32.xlu0 %v5396, 48
      %v5480 = vpop.permute.xlu0 %5479
      %5481 = vrot.lane.b32.xlu0 %v5397, 48
      %v5482 = vpop.permute.xlu0 %5481
      %5483 = vrot.lane.b32.xlu0 %v5398, 48
      %v5484 = vpop.permute.xlu0 %5483
      %5485 = vrot.lane.b32.xlu0 %v5399, 48
      %v5486 = vpop.permute.xlu0 %5485
      %5487 = vrot.lane.b32.xlu0 %v5400, 48
      %v5488 = vpop.permute.xlu0 %5487
      %5489 = vrot.lane.b32.xlu0 %v5401, 48
      %v5490 = vpop.permute.xlu0 %5489
      %5491 = vrot.lane.b32.xlu0 %v5402, 48
      %v5492 = vpop.permute.xlu0 %5491
      %5493 = vrot.lane.b32.xlu0 %v5403, 48
      %v5494 = vpop.permute.xlu0 %5493
      %5495 = vrot.lane.b32.xlu0 %v5404, 48
      %v5496 = vpop.permute.xlu0 %5495
      %5497 = vrot.lane.b32.xlu0 %v5405, 48
      %v5498 = vpop.permute.xlu0 %5497
      %5499 = vrot.lane.b32.xlu0 %v5406, 48
      %v5500 = vpop.permute.xlu0 %5499
      %5501 = vrot.lane.b32.xlu0 %v5407, 48
      %v5502 = vpop.permute.xlu0 %5501
      %5503 = vrot.lane.b32.xlu0 %v5408, 48
      %v5504 = vpop.permute.xlu0 %5503
      %vm5537 = vcmask 425344
      %5538 = vst.msk [vmem:[#allocation6] sm:$0xff] %vm5537, %v5442
      %5539 = vst.msk [vmem:[#allocation6 + $0x8] sm:$0xff] %vm5537, %v5444
      %5540 = vst.msk [vmem:[#allocation6 + $0x10] sm:$0xff] %vm5537, %v5446
      %5541 = vst.msk [vmem:[#allocation6 + $0x18] sm:$0xff] %vm5537, %v5448
      %5542 = vst.msk [vmem:[#allocation6 + $0x20] sm:$0xff] %vm5537, %v5450
      %5543 = vst.msk [vmem:[#allocation6 + $0x28] sm:$0xff] %vm5537, %v5452
      %5544 = vst.msk [vmem:[#allocation6 + $0x30] sm:$0xff] %vm5537, %v5454
      %5545 = vst.msk [vmem:[#allocation6 + $0x38] sm:$0xff] %vm5537, %v5456
      %5546 = vst.msk [vmem:[#allocation6 + $0x40] sm:$0xff] %vm5537, %v5458
      %5547 = vst.msk [vmem:[#allocation6 + $0x48] sm:$0xff] %vm5537, %v5460
      %5548 = vst.msk [vmem:[#allocation6 + $0x50] sm:$0xff] %vm5537, %v5462
      %5549 = vst.msk [vmem:[#allocation6 + $0x58] sm:$0xff] %vm5537, %v5464
      %5550 = vst.msk [vmem:[#allocation6 + $0x60] sm:$0xff] %vm5537, %v5466
      %5551 = vst.msk [vmem:[#allocation6 + $0x68] sm:$0xff] %vm5537, %v5468
      %5552 = vst.msk [vmem:[#allocation6 + $0x70] sm:$0xff] %vm5537, %v5470
      %5553 = vst.msk [vmem:[#allocation6 + $0x78] sm:$0xff] %vm5537, %v5472
      %5554 = vst.msk [vmem:[#allocation6 + $0x80] sm:$0xff] %vm5537, %v5474
      %5555 = vst.msk [vmem:[#allocation6 + $0x88] sm:$0xff] %vm5537, %v5476
      %5556 = vst.msk [vmem:[#allocation6 + $0x90] sm:$0xff] %vm5537, %v5478
      %5557 = vst.msk [vmem:[#allocation6 + $0x98] sm:$0xff] %vm5537, %v5480
      %5558 = vst.msk [vmem:[#allocation6 + $0xa0] sm:$0xff] %vm5537, %v5482
      %5559 = vst.msk [vmem:[#allocation6 + $0xa8] sm:$0xff] %vm5537, %v5484
      %5560 = vst.msk [vmem:[#allocation6 + $0xb0] sm:$0xff] %vm5537, %v5486
      %5561 = vst.msk [vmem:[#allocation6 + $0xb8] sm:$0xff] %vm5537, %v5488
      %5562 = vst.msk [vmem:[#allocation6 + $0xc0] sm:$0xff] %vm5537, %v5490
      %5563 = vst.msk [vmem:[#allocation6 + $0xc8] sm:$0xff] %vm5537, %v5492
      %5564 = vst.msk [vmem:[#allocation6 + $0xd0] sm:$0xff] %vm5537, %v5494
      %5565 = vst.msk [vmem:[#allocation6 + $0xd8] sm:$0xff] %vm5537, %v5496
      %5566 = vst.msk [vmem:[#allocation6 + $0xe0] sm:$0xff] %vm5537, %v5498
      %5567 = vst.msk [vmem:[#allocation6 + $0xe8] sm:$0xff] %vm5537, %v5500
      %5568 = vst.msk [vmem:[#allocation6 + $0xf0] sm:$0xff] %vm5537, %v5502
      %5569 = vst.msk [vmem:[#allocation6 + $0xf8] sm:$0xff] %vm5537, %v5504
      %v5570 = vld [vmem:[%s3164 + $0x3] sm:$0xff]
      %v5571 = vld [vmem:[%s3164 + $0xb] sm:$0xff]
      %v5572 = vld [vmem:[%s3164 + $0x1b] sm:$0xff]
      %v5573 = vld [vmem:[%s3164 + $0x23] sm:$0xff]
      %v5574 = vld [vmem:[%s3164 + $0x33] sm:$0xff]
      %v5575 = vld [vmem:[%s3164 + $0x3b] sm:$0xff]
      %v5576 = vld [vmem:[%s3164 + $0x4b] sm:$0xff]
      %v5577 = vld [vmem:[%s3164 + $0x53] sm:$0xff]
      %v5578 = vld [vmem:[%s3164 + $0x63] sm:$0xff]
      %v5579 = vld [vmem:[%s3164 + $0x6b] sm:$0xff]
      %v5580 = vld [vmem:[%s3164 + $0x7b] sm:$0xff]
      %v5581 = vld [vmem:[%s3164 + $0x83] sm:$0xff]
      %v5582 = vld [vmem:[%s3164 + $0x93] sm:$0xff]
      %v5583 = vld [vmem:[%s3164 + $0x9b] sm:$0xff]
      %v5584 = vld [vmem:[%s3164 + $0xab] sm:$0xff]
      %v5585 = vld [vmem:[%s3164 + $0xb3] sm:$0xff]
      %v5586 = vld [vmem:[%s3164 + $0xc3] sm:$0xff]
      %v5587 = vld [vmem:[%s3164 + $0xcb] sm:$0xff]
      %v5588 = vld [vmem:[%s3164 + $0xdb] sm:$0xff]
      %v5589 = vld [vmem:[%s3164 + $0xe3] sm:$0xff]
      %v5590 = vld [vmem:[%s3164 + $0xf3] sm:$0xff]
      %v5591 = vld [vmem:[%s3164 + $0xfb] sm:$0xff]
      %v5592 = vld [vmem:[%s3164 + $0x10b] sm:$0xff]
      %v5593 = vld [vmem:[%s3164 + $0x113] sm:$0xff]
      %v5594 = vld [vmem:[%s3164 + $0x123] sm:$0xff]
      %v5595 = vld [vmem:[%s3164 + $0x12b] sm:$0xff]
      %v5596 = vld [vmem:[%s3164 + $0x13b] sm:$0xff]
      %v5597 = vld [vmem:[%s3164 + $0x143] sm:$0xff]
      %v5598 = vld [vmem:[%s3164 + $0x153] sm:$0xff]
      %v5599 = vld [vmem:[%s3164 + $0x15b] sm:$0xff]
      %v5600 = vld [vmem:[%s3164 + $0x16b] sm:$0xff]
      %v5601 = vld [vmem:[%s3164 + $0x173] sm:$0xff]
      %5634 = vrot.lane.b32.xlu0 %v5570, 52
      %v5635 = vpop.permute.xlu0 %5634
      %5636 = vrot.lane.b32.xlu0 %v5571, 52
      %v5637 = vpop.permute.xlu0 %5636
      %5638 = vrot.lane.b32.xlu0 %v5572, 52
      %v5639 = vpop.permute.xlu0 %5638
      %5640 = vrot.lane.b32.xlu0 %v5573, 52
      %v5641 = vpop.permute.xlu0 %5640
      %5642 = vrot.lane.b32.xlu0 %v5574, 52
      %v5643 = vpop.permute.xlu0 %5642
      %5644 = vrot.lane.b32.xlu0 %v5575, 52
      %v5645 = vpop.permute.xlu0 %5644
      %5646 = vrot.lane.b32.xlu0 %v5576, 52
      %v5647 = vpop.permute.xlu0 %5646
      %5648 = vrot.lane.b32.xlu0 %v5577, 52
      %v5649 = vpop.permute.xlu0 %5648
      %5650 = vrot.lane.b32.xlu0 %v5578, 52
      %v5651 = vpop.permute.xlu0 %5650
      %5652 = vrot.lane.b32.xlu0 %v5579, 52
      %v5653 = vpop.permute.xlu0 %5652
      %5654 = vrot.lane.b32.xlu0 %v5580, 52
      %v5655 = vpop.permute.xlu0 %5654
      %5656 = vrot.lane.b32.xlu0 %v5581, 52
      %v5657 = vpop.permute.xlu0 %5656
      %5658 = vrot.lane.b32.xlu0 %v5582, 52
      %v5659 = vpop.permute.xlu0 %5658
      %5660 = vrot.lane.b32.xlu0 %v5583, 52
      %v5661 = vpop.permute.xlu0 %5660
      %5662 = vrot.lane.b32.xlu0 %v5584, 52
      %v5663 = vpop.permute.xlu0 %5662
      %5664 = vrot.lane.b32.xlu0 %v5585, 52
      %v5665 = vpop.permute.xlu0 %5664
      %5666 = vrot.lane.b32.xlu0 %v5586, 52
      %v5667 = vpop.permute.xlu0 %5666
      %5668 = vrot.lane.b32.xlu0 %v5587, 52
      %v5669 = vpop.permute.xlu0 %5668
      %5670 = vrot.lane.b32.xlu0 %v5588, 52
      %v5671 = vpop.permute.xlu0 %5670
      %5672 = vrot.lane.b32.xlu0 %v5589, 52
      %v5673 = vpop.permute.xlu0 %5672
      %5674 = vrot.lane.b32.xlu0 %v5590, 52
      %v5675 = vpop.permute.xlu0 %5674
      %5676 = vrot.lane.b32.xlu0 %v5591, 52
      %v5677 = vpop.permute.xlu0 %5676
      %5678 = vrot.lane.b32.xlu0 %v5592, 52
      %v5679 = vpop.permute.xlu0 %5678
      %5680 = vrot.lane.b32.xlu0 %v5593, 52
      %v5681 = vpop.permute.xlu0 %5680
      %5682 = vrot.lane.b32.xlu0 %v5594, 52
      %v5683 = vpop.permute.xlu0 %5682
      %5684 = vrot.lane.b32.xlu0 %v5595, 52
      %v5685 = vpop.permute.xlu0 %5684
      %5686 = vrot.lane.b32.xlu0 %v5596, 52
      %v5687 = vpop.permute.xlu0 %5686
      %5688 = vrot.lane.b32.xlu0 %v5597, 52
      %v5689 = vpop.permute.xlu0 %5688
      %5690 = vrot.lane.b32.xlu0 %v5598, 52
      %v5691 = vpop.permute.xlu0 %5690
      %5692 = vrot.lane.b32.xlu0 %v5599, 52
      %v5693 = vpop.permute.xlu0 %5692
      %5694 = vrot.lane.b32.xlu0 %v5600, 52
      %v5695 = vpop.permute.xlu0 %5694
      %5696 = vrot.lane.b32.xlu0 %v5601, 52
      %v5697 = vpop.permute.xlu0 %5696
      %vm5730 = vcmask 458144
      %5731 = vst.msk [vmem:[#allocation6] sm:$0xff] %vm5730, %v5635
      %5732 = vst.msk [vmem:[#allocation6 + $0x8] sm:$0xff] %vm5730, %v5637
      %5733 = vst.msk [vmem:[#allocation6 + $0x10] sm:$0xff] %vm5730, %v5639
      %5734 = vst.msk [vmem:[#allocation6 + $0x18] sm:$0xff] %vm5730, %v5641
      %5735 = vst.msk [vmem:[#allocation6 + $0x20] sm:$0xff] %vm5730, %v5643
      %5736 = vst.msk [vmem:[#allocation6 + $0x28] sm:$0xff] %vm5730, %v5645
      %5737 = vst.msk [vmem:[#allocation6 + $0x30] sm:$0xff] %vm5730, %v5647
      %5738 = vst.msk [vmem:[#allocation6 + $0x38] sm:$0xff] %vm5730, %v5649
      %5739 = vst.msk [vmem:[#allocation6 + $0x40] sm:$0xff] %vm5730, %v5651
      %5740 = vst.msk [vmem:[#allocation6 + $0x48] sm:$0xff] %vm5730, %v5653
      %5741 = vst.msk [vmem:[#allocation6 + $0x50] sm:$0xff] %vm5730, %v5655
      %5742 = vst.msk [vmem:[#allocation6 + $0x58] sm:$0xff] %vm5730, %v5657
      %5743 = vst.msk [vmem:[#allocation6 + $0x60] sm:$0xff] %vm5730, %v5659
      %5744 = vst.msk [vmem:[#allocation6 + $0x68] sm:$0xff] %vm5730, %v5661
      %5745 = vst.msk [vmem:[#allocation6 + $0x70] sm:$0xff] %vm5730, %v5663
      %5746 = vst.msk [vmem:[#allocation6 + $0x78] sm:$0xff] %vm5730, %v5665
      %5747 = vst.msk [vmem:[#allocation6 + $0x80] sm:$0xff] %vm5730, %v5667
      %5748 = vst.msk [vmem:[#allocation6 + $0x88] sm:$0xff] %vm5730, %v5669
      %5749 = vst.msk [vmem:[#allocation6 + $0x90] sm:$0xff] %vm5730, %v5671
      %5750 = vst.msk [vmem:[#allocation6 + $0x98] sm:$0xff] %vm5730, %v5673
      %5751 = vst.msk [vmem:[#allocation6 + $0xa0] sm:$0xff] %vm5730, %v5675
      %5752 = vst.msk [vmem:[#allocation6 + $0xa8] sm:$0xff] %vm5730, %v5677
      %5753 = vst.msk [vmem:[#allocation6 + $0xb0] sm:$0xff] %vm5730, %v5679
      %5754 = vst.msk [vmem:[#allocation6 + $0xb8] sm:$0xff] %vm5730, %v5681
      %5755 = vst.msk [vmem:[#allocation6 + $0xc0] sm:$0xff] %vm5730, %v5683
      %5756 = vst.msk [vmem:[#allocation6 + $0xc8] sm:$0xff] %vm5730, %v5685
      %5757 = vst.msk [vmem:[#allocation6 + $0xd0] sm:$0xff] %vm5730, %v5687
      %5758 = vst.msk [vmem:[#allocation6 + $0xd8] sm:$0xff] %vm5730, %v5689
      %5759 = vst.msk [vmem:[#allocation6 + $0xe0] sm:$0xff] %vm5730, %v5691
      %5760 = vst.msk [vmem:[#allocation6 + $0xe8] sm:$0xff] %vm5730, %v5693
      %5761 = vst.msk [vmem:[#allocation6 + $0xf0] sm:$0xff] %vm5730, %v5695
      %5762 = vst.msk [vmem:[#allocation6 + $0xf8] sm:$0xff] %vm5730, %v5697
      %v5763 = vld [vmem:[%s3164 + $0x4] sm:$0xff]
      %v5764 = vld [vmem:[%s3164 + $0xc] sm:$0xff]
      %v5765 = vld [vmem:[%s3164 + $0x1c] sm:$0xff]
      %v5766 = vld [vmem:[%s3164 + $0x24] sm:$0xff]
      %v5767 = vld [vmem:[%s3164 + $0x34] sm:$0xff]
      %v5768 = vld [vmem:[%s3164 + $0x3c] sm:$0xff]
      %v5769 = vld [vmem:[%s3164 + $0x4c] sm:$0xff]
      %v5770 = vld [vmem:[%s3164 + $0x54] sm:$0xff]
      %v5771 = vld [vmem:[%s3164 + $0x64] sm:$0xff]
      %v5772 = vld [vmem:[%s3164 + $0x6c] sm:$0xff]
      %v5773 = vld [vmem:[%s3164 + $0x7c] sm:$0xff]
      %v5774 = vld [vmem:[%s3164 + $0x84] sm:$0xff]
      %v5775 = vld [vmem:[%s3164 + $0x94] sm:$0xff]
      %v5776 = vld [vmem:[%s3164 + $0x9c] sm:$0xff]
      %v5777 = vld [vmem:[%s3164 + $0xac] sm:$0xff]
      %v5778 = vld [vmem:[%s3164 + $0xb4] sm:$0xff]
      %v5779 = vld [vmem:[%s3164 + $0xc4] sm:$0xff]
      %v5780 = vld [vmem:[%s3164 + $0xcc] sm:$0xff]
      %v5781 = vld [vmem:[%s3164 + $0xdc] sm:$0xff]
      %v5782 = vld [vmem:[%s3164 + $0xe4] sm:$0xff]
      %v5783 = vld [vmem:[%s3164 + $0xf4] sm:$0xff]
      %v5784 = vld [vmem:[%s3164 + $0xfc] sm:$0xff]
      %v5785 = vld [vmem:[%s3164 + $0x10c] sm:$0xff]
      %v5786 = vld [vmem:[%s3164 + $0x114] sm:$0xff]
      %v5787 = vld [vmem:[%s3164 + $0x124] sm:$0xff]
      %v5788 = vld [vmem:[%s3164 + $0x12c] sm:$0xff]
      %v5789 = vld [vmem:[%s3164 + $0x13c] sm:$0xff]
      %v5790 = vld [vmem:[%s3164 + $0x144] sm:$0xff]
      %v5791 = vld [vmem:[%s3164 + $0x154] sm:$0xff]
      %v5792 = vld [vmem:[%s3164 + $0x15c] sm:$0xff]
      %v5793 = vld [vmem:[%s3164 + $0x16c] sm:$0xff]
      %v5794 = vld [vmem:[%s3164 + $0x174] sm:$0xff]
      %5827 = vrot.lane.b32.xlu0 %v5763, 56
      %v5828 = vpop.permute.xlu0 %5827
      %5829 = vrot.lane.b32.xlu0 %v5764, 56
      %v5830 = vpop.permute.xlu0 %5829
      %5831 = vrot.lane.b32.xlu0 %v5765, 56
      %v5832 = vpop.permute.xlu0 %5831
      %5833 = vrot.lane.b32.xlu0 %v5766, 56
      %v5834 = vpop.permute.xlu0 %5833
      %5835 = vrot.lane.b32.xlu0 %v5767, 56
      %v5836 = vpop.permute.xlu0 %5835
      %5837 = vrot.lane.b32.xlu0 %v5768, 56
      %v5838 = vpop.permute.xlu0 %5837
      %5839 = vrot.lane.b32.xlu0 %v5769, 56
      %v5840 = vpop.permute.xlu0 %5839
      %5841 = vrot.lane.b32.xlu0 %v5770, 56
      %v5842 = vpop.permute.xlu0 %5841
      %5843 = vrot.lane.b32.xlu0 %v5771, 56
      %v5844 = vpop.permute.xlu0 %5843
      %5845 = vrot.lane.b32.xlu0 %v5772, 56
      %v5846 = vpop.permute.xlu0 %5845
      %5847 = vrot.lane.b32.xlu0 %v5773, 56
      %v5848 = vpop.permute.xlu0 %5847
      %5849 = vrot.lane.b32.xlu0 %v5774, 56
      %v5850 = vpop.permute.xlu0 %5849
      %5851 = vrot.lane.b32.xlu0 %v5775, 56
      %v5852 = vpop.permute.xlu0 %5851
      %5853 = vrot.lane.b32.xlu0 %v5776, 56
      %v5854 = vpop.permute.xlu0 %5853
      %5855 = vrot.lane.b32.xlu0 %v5777, 56
      %v5856 = vpop.permute.xlu0 %5855
      %5857 = vrot.lane.b32.xlu0 %v5778, 56
      %v5858 = vpop.permute.xlu0 %5857
      %5859 = vrot.lane.b32.xlu0 %v5779, 56
      %v5860 = vpop.permute.xlu0 %5859
      %5861 = vrot.lane.b32.xlu0 %v5780, 56
      %v5862 = vpop.permute.xlu0 %5861
      %5863 = vrot.lane.b32.xlu0 %v5781, 56
      %v5864 = vpop.permute.xlu0 %5863
      %5865 = vrot.lane.b32.xlu0 %v5782, 56
      %v5866 = vpop.permute.xlu0 %5865
      %5867 = vrot.lane.b32.xlu0 %v5783, 56
      %v5868 = vpop.permute.xlu0 %5867
      %5869 = vrot.lane.b32.xlu0 %v5784, 56
      %v5870 = vpop.permute.xlu0 %5869
      %5871 = vrot.lane.b32.xlu0 %v5785, 56
      %v5872 = vpop.permute.xlu0 %5871
      %5873 = vrot.lane.b32.xlu0 %v5786, 56
      %v5874 = vpop.permute.xlu0 %5873
      %5875 = vrot.lane.b32.xlu0 %v5787, 56
      %v5876 = vpop.permute.xlu0 %5875
      %5877 = vrot.lane.b32.xlu0 %v5788, 56
      %v5878 = vpop.permute.xlu0 %5877
      %5879 = vrot.lane.b32.xlu0 %v5789, 56
      %v5880 = vpop.permute.xlu0 %5879
      %5881 = vrot.lane.b32.xlu0 %v5790, 56
      %v5882 = vpop.permute.xlu0 %5881
      %5883 = vrot.lane.b32.xlu0 %v5791, 56
      %v5884 = vpop.permute.xlu0 %5883
      %5885 = vrot.lane.b32.xlu0 %v5792, 56
      %v5886 = vpop.permute.xlu0 %5885
      %5887 = vrot.lane.b32.xlu0 %v5793, 56
      %v5888 = vpop.permute.xlu0 %5887
      %5889 = vrot.lane.b32.xlu0 %v5794, 56
      %v5890 = vpop.permute.xlu0 %5889
      %vm5923 = vcmask 490944
      %5924 = vst.msk [vmem:[#allocation6] sm:$0xff] %vm5923, %v5828
      %5925 = vst.msk [vmem:[#allocation6 + $0x8] sm:$0xff] %vm5923, %v5830
      %5926 = vst.msk [vmem:[#allocation6 + $0x10] sm:$0xff] %vm5923, %v5832
      %5927 = vst.msk [vmem:[#allocation6 + $0x18] sm:$0xff] %vm5923, %v5834
      %5928 = vst.msk [vmem:[#allocation6 + $0x20] sm:$0xff] %vm5923, %v5836
      %5929 = vst.msk [vmem:[#allocation6 + $0x28] sm:$0xff] %vm5923, %v5838
      %5930 = vst.msk [vmem:[#allocation6 + $0x30] sm:$0xff] %vm5923, %v5840
      %5931 = vst.msk [vmem:[#allocation6 + $0x38] sm:$0xff] %vm5923, %v5842
      %5932 = vst.msk [vmem:[#allocation6 + $0x40] sm:$0xff] %vm5923, %v5844
      %5933 = vst.msk [vmem:[#allocation6 + $0x48] sm:$0xff] %vm5923, %v5846
      %5934 = vst.msk [vmem:[#allocation6 + $0x50] sm:$0xff] %vm5923, %v5848
      %5935 = vst.msk [vmem:[#allocation6 + $0x58] sm:$0xff] %vm5923, %v5850
      %5936 = vst.msk [vmem:[#allocation6 + $0x60] sm:$0xff] %vm5923, %v5852
      %5937 = vst.msk [vmem:[#allocation6 + $0x68] sm:$0xff] %vm5923, %v5854
      %5938 = vst.msk [vmem:[#allocation6 + $0x70] sm:$0xff] %vm5923, %v5856
      %5939 = vst.msk [vmem:[#allocation6 + $0x78] sm:$0xff] %vm5923, %v5858
      %5940 = vst.msk [vmem:[#allocation6 + $0x80] sm:$0xff] %vm5923, %v5860
      %5941 = vst.msk [vmem:[#allocation6 + $0x88] sm:$0xff] %vm5923, %v5862
      %5942 = vst.msk [vmem:[#allocation6 + $0x90] sm:$0xff] %vm5923, %v5864
      %5943 = vst.msk [vmem:[#allocation6 + $0x98] sm:$0xff] %vm5923, %v5866
      %5944 = vst.msk [vmem:[#allocation6 + $0xa0] sm:$0xff] %vm5923, %v5868
      %5945 = vst.msk [vmem:[#allocation6 + $0xa8] sm:$0xff] %vm5923, %v5870
      %5946 = vst.msk [vmem:[#allocation6 + $0xb0] sm:$0xff] %vm5923, %v5872
      %5947 = vst.msk [vmem:[#allocation6 + $0xb8] sm:$0xff] %vm5923, %v5874
      %5948 = vst.msk [vmem:[#allocation6 + $0xc0] sm:$0xff] %vm5923, %v5876
      %5949 = vst.msk [vmem:[#allocation6 + $0xc8] sm:$0xff] %vm5923, %v5878
      %5950 = vst.msk [vmem:[#allocation6 + $0xd0] sm:$0xff] %vm5923, %v5880
      %5951 = vst.msk [vmem:[#allocation6 + $0xd8] sm:$0xff] %vm5923, %v5882
      %5952 = vst.msk [vmem:[#allocation6 + $0xe0] sm:$0xff] %vm5923, %v5884
      %5953 = vst.msk [vmem:[#allocation6 + $0xe8] sm:$0xff] %vm5923, %v5886
      %5954 = vst.msk [vmem:[#allocation6 + $0xf0] sm:$0xff] %vm5923, %v5888
      %5955 = vst.msk [vmem:[#allocation6 + $0xf8] sm:$0xff] %vm5923, %v5890
      %s5956 = scalar_lea.vmem [#allocation3], 72
      %v5957 = vld [vmem:[%s5956] sm:$0xff]
      %v5958 = vld [vmem:[%s5956 + $0x8] sm:$0xff]
      %v5959 = vld [vmem:[%s5956 + $0x18] sm:$0xff]
      %v5960 = vld [vmem:[%s5956 + $0x20] sm:$0xff]
      %v5961 = vld [vmem:[%s5956 + $0x30] sm:$0xff]
      %v5962 = vld [vmem:[%s5956 + $0x38] sm:$0xff]
      %v5963 = vld [vmem:[%s5956 + $0x48] sm:$0xff]
      %v5964 = vld [vmem:[%s5956 + $0x50] sm:$0xff]
      %v5965 = vld [vmem:[%s5956 + $0x60] sm:$0xff]
      %v5966 = vld [vmem:[%s5956 + $0x68] sm:$0xff]
      %v5967 = vld [vmem:[%s5956 + $0x78] sm:$0xff]
      %v5968 = vld [vmem:[%s5956 + $0x80] sm:$0xff]
      %v5969 = vld [vmem:[%s5956 + $0x90] sm:$0xff]
      %v5970 = vld [vmem:[%s5956 + $0x98] sm:$0xff]
      %v5971 = vld [vmem:[%s5956 + $0xa8] sm:$0xff]
      %v5972 = vld [vmem:[%s5956 + $0xb0] sm:$0xff]
      %v5973 = vld [vmem:[%s5956 + $0xc0] sm:$0xff]
      %v5974 = vld [vmem:[%s5956 + $0xc8] sm:$0xff]
      %v5975 = vld [vmem:[%s5956 + $0xd8] sm:$0xff]
      %v5976 = vld [vmem:[%s5956 + $0xe0] sm:$0xff]
      %v5977 = vld [vmem:[%s5956 + $0xf0] sm:$0xff]
      %v5978 = vld [vmem:[%s5956 + $0xf8] sm:$0xff]
      %v5979 = vld [vmem:[%s5956 + $0x108] sm:$0xff]
      %v5980 = vld [vmem:[%s5956 + $0x110] sm:$0xff]
      %v5981 = vld [vmem:[%s5956 + $0x120] sm:$0xff]
      %v5982 = vld [vmem:[%s5956 + $0x128] sm:$0xff]
      %v5983 = vld [vmem:[%s5956 + $0x138] sm:$0xff]
      %v5984 = vld [vmem:[%s5956 + $0x140] sm:$0xff]
      %v5985 = vld [vmem:[%s5956 + $0x150] sm:$0xff]
      %v5986 = vld [vmem:[%s5956 + $0x158] sm:$0xff]
      %v5987 = vld [vmem:[%s5956 + $0x168] sm:$0xff]
      %v5988 = vld [vmem:[%s5956 + $0x170] sm:$0xff]
      %6021 = vrot.lane.b32.xlu0 %v5957, 60
      %v6022 = vpop.permute.xlu0 %6021
      %6023 = vrot.lane.b32.xlu0 %v5958, 60
      %v6024 = vpop.permute.xlu0 %6023
      %6025 = vrot.lane.b32.xlu0 %v5959, 60
      %v6026 = vpop.permute.xlu0 %6025
      %6027 = vrot.lane.b32.xlu0 %v5960, 60
      %v6028 = vpop.permute.xlu0 %6027
      %6029 = vrot.lane.b32.xlu0 %v5961, 60
      %v6030 = vpop.permute.xlu0 %6029
      %6031 = vrot.lane.b32.xlu0 %v5962, 60
      %v6032 = vpop.permute.xlu0 %6031
      %6033 = vrot.lane.b32.xlu0 %v5963, 60
      %v6034 = vpop.permute.xlu0 %6033
      %6035 = vrot.lane.b32.xlu0 %v5964, 60
      %v6036 = vpop.permute.xlu0 %6035
      %6037 = vrot.lane.b32.xlu0 %v5965, 60
      %v6038 = vpop.permute.xlu0 %6037
      %6039 = vrot.lane.b32.xlu0 %v5966, 60
      %v6040 = vpop.permute.xlu0 %6039
      %6041 = vrot.lane.b32.xlu0 %v5967, 60
      %v6042 = vpop.permute.xlu0 %6041
      %6043 = vrot.lane.b32.xlu0 %v5968, 60
      %v6044 = vpop.permute.xlu0 %6043
      %6045 = vrot.lane.b32.xlu0 %v5969, 60
      %v6046 = vpop.permute.xlu0 %6045
      %6047 = vrot.lane.b32.xlu0 %v5970, 60
      %v6048 = vpop.permute.xlu0 %6047
      %6049 = vrot.lane.b32.xlu0 %v5971, 60
      %v6050 = vpop.permute.xlu0 %6049
      %6051 = vrot.lane.b32.xlu0 %v5972, 60
      %v6052 = vpop.permute.xlu0 %6051
      %6053 = vrot.lane.b32.xlu0 %v5973, 60
      %v6054 = vpop.permute.xlu0 %6053
      %6055 = vrot.lane.b32.xlu0 %v5974, 60
      %v6056 = vpop.permute.xlu0 %6055
      %6057 = vrot.lane.b32.xlu0 %v5975, 60
      %v6058 = vpop.permute.xlu0 %6057
      %6059 = vrot.lane.b32.xlu0 %v5976, 60
      %v6060 = vpop.permute.xlu0 %6059
      %6061 = vrot.lane.b32.xlu0 %v5977, 60
      %v6062 = vpop.permute.xlu0 %6061
      %6063 = vrot.lane.b32.xlu0 %v5978, 60
      %v6064 = vpop.permute.xlu0 %6063
      %6065 = vrot.lane.b32.xlu0 %v5979, 60
      %v6066 = vpop.permute.xlu0 %6065
      %6067 = vrot.lane.b32.xlu0 %v5980, 60
      %v6068 = vpop.permute.xlu0 %6067
      %6069 = vrot.lane.b32.xlu0 %v5981, 60
      %v6070 = vpop.permute.xlu0 %6069
      %6071 = vrot.lane.b32.xlu0 %v5982, 60
      %v6072 = vpop.permute.xlu0 %6071
      %6073 = vrot.lane.b32.xlu0 %v5983, 60
      %v6074 = vpop.permute.xlu0 %6073
      %6075 = vrot.lane.b32.xlu0 %v5984, 60
      %v6076 = vpop.permute.xlu0 %6075
      %6077 = vrot.lane.b32.xlu0 %v5985, 60
      %v6078 = vpop.permute.xlu0 %6077
      %6079 = vrot.lane.b32.xlu0 %v5986, 60
      %v6080 = vpop.permute.xlu0 %6079
      %6081 = vrot.lane.b32.xlu0 %v5987, 60
      %v6082 = vpop.permute.xlu0 %6081
      %6083 = vrot.lane.b32.xlu0 %v5988, 60
      %v6084 = vpop.permute.xlu0 %6083
      %vm6117 = vcmask 523744
      %6118 = vst.msk [vmem:[#allocation6] sm:$0xff] %vm6117, %v6022
      %6119 = vst.msk [vmem:[#allocation6 + $0x8] sm:$0xff] %vm6117, %v6024
      %6120 = vst.msk [vmem:[#allocation6 + $0x10] sm:$0xff] %vm6117, %v6026
      %6121 = vst.msk [vmem:[#allocation6 + $0x18] sm:$0xff] %vm6117, %v6028
      %6122 = vst.msk [vmem:[#allocation6 + $0x20] sm:$0xff] %vm6117, %v6030
      %6123 = vst.msk [vmem:[#allocation6 + $0x28] sm:$0xff] %vm6117, %v6032
      %6124 = vst.msk [vmem:[#allocation6 + $0x30] sm:$0xff] %vm6117, %v6034
      %6125 = vst.msk [vmem:[#allocation6 + $0x38] sm:$0xff] %vm6117, %v6036
      %6126 = vst.msk [vmem:[#allocation6 + $0x40] sm:$0xff] %vm6117, %v6038
      %6127 = vst.msk [vmem:[#allocation6 + $0x48] sm:$0xff] %vm6117, %v6040
      %6128 = vst.msk [vmem:[#allocation6 + $0x50] sm:$0xff] %vm6117, %v6042
      %6129 = vst.msk [vmem:[#allocation6 + $0x58] sm:$0xff] %vm6117, %v6044
      %6130 = vst.msk [vmem:[#allocation6 + $0x60] sm:$0xff] %vm6117, %v6046
      %6131 = vst.msk [vmem:[#allocation6 + $0x68] sm:$0xff] %vm6117, %v6048
      %6132 = vst.msk [vmem:[#allocation6 + $0x70] sm:$0xff] %vm6117, %v6050
      %6133 = vst.msk [vmem:[#allocation6 + $0x78] sm:$0xff] %vm6117, %v6052
      %6134 = vst.msk [vmem:[#allocation6 + $0x80] sm:$0xff] %vm6117, %v6054
      %6135 = vst.msk [vmem:[#allocation6 + $0x88] sm:$0xff] %vm6117, %v6056
      %6136 = vst.msk [vmem:[#allocation6 + $0x90] sm:$0xff] %vm6117, %v6058
      %6137 = vst.msk [vmem:[#allocation6 + $0x98] sm:$0xff] %vm6117, %v6060
      %6138 = vst.msk [vmem:[#allocation6 + $0xa0] sm:$0xff] %vm6117, %v6062
      %6139 = vst.msk [vmem:[#allocation6 + $0xa8] sm:$0xff] %vm6117, %v6064
      %6140 = vst.msk [vmem:[#allocation6 + $0xb0] sm:$0xff] %vm6117, %v6066
      %6141 = vst.msk [vmem:[#allocation6 + $0xb8] sm:$0xff] %vm6117, %v6068
      %6142 = vst.msk [vmem:[#allocation6 + $0xc0] sm:$0xff] %vm6117, %v6070
      %6143 = vst.msk [vmem:[#allocation6 + $0xc8] sm:$0xff] %vm6117, %v6072
      %6144 = vst.msk [vmem:[#allocation6 + $0xd0] sm:$0xff] %vm6117, %v6074
      %6145 = vst.msk [vmem:[#allocation6 + $0xd8] sm:$0xff] %vm6117, %v6076
      %6146 = vst.msk [vmem:[#allocation6 + $0xe0] sm:$0xff] %vm6117, %v6078
      %6147 = vst.msk [vmem:[#allocation6 + $0xe8] sm:$0xff] %vm6117, %v6080
      %6148 = vst.msk [vmem:[#allocation6 + $0xf0] sm:$0xff] %vm6117, %v6082
      %6149 = vst.msk [vmem:[#allocation6 + $0xf8] sm:$0xff] %vm6117, %v6084
      %v6150 = vld [vmem:[%s5956 + $0x1] sm:$0xff]
      %v6151 = vld [vmem:[%s5956 + $0x9] sm:$0xff]
      %v6152 = vld [vmem:[%s5956 + $0x19] sm:$0xff]
      %v6153 = vld [vmem:[%s5956 + $0x21] sm:$0xff]
      %v6154 = vld [vmem:[%s5956 + $0x31] sm:$0xff]
      %v6155 = vld [vmem:[%s5956 + $0x39] sm:$0xff]
      %v6156 = vld [vmem:[%s5956 + $0x49] sm:$0xff]
      %v6157 = vld [vmem:[%s5956 + $0x51] sm:$0xff]
      %v6158 = vld [vmem:[%s5956 + $0x61] sm:$0xff]
      %v6159 = vld [vmem:[%s5956 + $0x69] sm:$0xff]
      %v6160 = vld [vmem:[%s5956 + $0x79] sm:$0xff]
      %v6161 = vld [vmem:[%s5956 + $0x81] sm:$0xff]
      %v6162 = vld [vmem:[%s5956 + $0x91] sm:$0xff]
      %v6163 = vld [vmem:[%s5956 + $0x99] sm:$0xff]
      %v6164 = vld [vmem:[%s5956 + $0xa9] sm:$0xff]
      %v6165 = vld [vmem:[%s5956 + $0xb1] sm:$0xff]
      %v6166 = vld [vmem:[%s5956 + $0xc1] sm:$0xff]
      %v6167 = vld [vmem:[%s5956 + $0xc9] sm:$0xff]
      %v6168 = vld [vmem:[%s5956 + $0xd9] sm:$0xff]
      %v6169 = vld [vmem:[%s5956 + $0xe1] sm:$0xff]
      %v6170 = vld [vmem:[%s5956 + $0xf1] sm:$0xff]
      %v6171 = vld [vmem:[%s5956 + $0xf9] sm:$0xff]
      %v6172 = vld [vmem:[%s5956 + $0x109] sm:$0xff]
      %v6173 = vld [vmem:[%s5956 + $0x111] sm:$0xff]
      %v6174 = vld [vmem:[%s5956 + $0x121] sm:$0xff]
      %v6175 = vld [vmem:[%s5956 + $0x129] sm:$0xff]
      %v6176 = vld [vmem:[%s5956 + $0x139] sm:$0xff]
      %v6177 = vld [vmem:[%s5956 + $0x141] sm:$0xff]
      %v6178 = vld [vmem:[%s5956 + $0x151] sm:$0xff]
      %v6179 = vld [vmem:[%s5956 + $0x159] sm:$0xff]
      %v6180 = vld [vmem:[%s5956 + $0x169] sm:$0xff]
      %v6181 = vld [vmem:[%s5956 + $0x171] sm:$0xff]
      %6214 = vrot.lane.b32.xlu0 %v6150, 64
      %v6215 = vpop.permute.xlu0 %6214
      %6216 = vrot.lane.b32.xlu0 %v6151, 64
      %v6217 = vpop.permute.xlu0 %6216
      %6218 = vrot.lane.b32.xlu0 %v6152, 64
      %v6219 = vpop.permute.xlu0 %6218
      %6220 = vrot.lane.b32.xlu0 %v6153, 64
      %v6221 = vpop.permute.xlu0 %6220
      %6222 = vrot.lane.b32.xlu0 %v6154, 64
      %v6223 = vpop.permute.xlu0 %6222
      %6224 = vrot.lane.b32.xlu0 %v6155, 64
      %v6225 = vpop.permute.xlu0 %6224
      %6226 = vrot.lane.b32.xlu0 %v6156, 64
      %v6227 = vpop.permute.xlu0 %6226
      %6228 = vrot.lane.b32.xlu0 %v6157, 64
      %v6229 = vpop.permute.xlu0 %6228
      %6230 = vrot.lane.b32.xlu0 %v6158, 64
      %v6231 = vpop.permute.xlu0 %6230
      %6232 = vrot.lane.b32.xlu0 %v6159, 64
      %v6233 = vpop.permute.xlu0 %6232
      %6234 = vrot.lane.b32.xlu0 %v6160, 64
      %v6235 = vpop.permute.xlu0 %6234
      %6236 = vrot.lane.b32.xlu0 %v6161, 64
      %v6237 = vpop.permute.xlu0 %6236
      %6238 = vrot.lane.b32.xlu0 %v6162, 64
      %v6239 = vpop.permute.xlu0 %6238
      %6240 = vrot.lane.b32.xlu0 %v6163, 64
      %v6241 = vpop.permute.xlu0 %6240
      %6242 = vrot.lane.b32.xlu0 %v6164, 64
      %v6243 = vpop.permute.xlu0 %6242
      %6244 = vrot.lane.b32.xlu0 %v6165, 64
      %v6245 = vpop.permute.xlu0 %6244
      %6246 = vrot.lane.b32.xlu0 %v6166, 64
      %v6247 = vpop.permute.xlu0 %6246
      %6248 = vrot.lane.b32.xlu0 %v6167, 64
      %v6249 = vpop.permute.xlu0 %6248
      %6250 = vrot.lane.b32.xlu0 %v6168, 64
      %v6251 = vpop.permute.xlu0 %6250
      %6252 = vrot.lane.b32.xlu0 %v6169, 64
      %v6253 = vpop.permute.xlu0 %6252
      %6254 = vrot.lane.b32.xlu0 %v6170, 64
      %v6255 = vpop.permute.xlu0 %6254
      %6256 = vrot.lane.b32.xlu0 %v6171, 64
      %v6257 = vpop.permute.xlu0 %6256
      %6258 = vrot.lane.b32.xlu0 %v6172, 64
      %v6259 = vpop.permute.xlu0 %6258
      %6260 = vrot.lane.b32.xlu0 %v6173, 64
      %v6261 = vpop.permute.xlu0 %6260
      %6262 = vrot.lane.b32.xlu0 %v6174, 64
      %v6263 = vpop.permute.xlu0 %6262
      %6264 = vrot.lane.b32.xlu0 %v6175, 64
      %v6265 = vpop.permute.xlu0 %6264
      %6266 = vrot.lane.b32.xlu0 %v6176, 64
      %v6267 = vpop.permute.xlu0 %6266
      %6268 = vrot.lane.b32.xlu0 %v6177, 64
      %v6269 = vpop.permute.xlu0 %6268
      %6270 = vrot.lane.b32.xlu0 %v6178, 64
      %v6271 = vpop.permute.xlu0 %6270
      %6272 = vrot.lane.b32.xlu0 %v6179, 64
      %v6273 = vpop.permute.xlu0 %6272
      %6274 = vrot.lane.b32.xlu0 %v6180, 64
      %v6275 = vpop.permute.xlu0 %6274
      %6276 = vrot.lane.b32.xlu0 %v6181, 64
      %v6277 = vpop.permute.xlu0 %6276
      %vm6310 = vcmask 556544
      %6311 = vst.msk [vmem:[#allocation6] sm:$0xff] %vm6310, %v6215
      %6312 = vst.msk [vmem:[#allocation6 + $0x8] sm:$0xff] %vm6310, %v6217
      %6313 = vst.msk [vmem:[#allocation6 + $0x10] sm:$0xff] %vm6310, %v6219
      %6314 = vst.msk [vmem:[#allocation6 + $0x18] sm:$0xff] %vm6310, %v6221
      %6315 = vst.msk [vmem:[#allocation6 + $0x20] sm:$0xff] %vm6310, %v6223
      %6316 = vst.msk [vmem:[#allocation6 + $0x28] sm:$0xff] %vm6310, %v6225
      %6317 = vst.msk [vmem:[#allocation6 + $0x30] sm:$0xff] %vm6310, %v6227
      %6318 = vst.msk [vmem:[#allocation6 + $0x38] sm:$0xff] %vm6310, %v6229
      %6319 = vst.msk [vmem:[#allocation6 + $0x40] sm:$0xff] %vm6310, %v6231
      %6320 = vst.msk [vmem:[#allocation6 + $0x48] sm:$0xff] %vm6310, %v6233
      %6321 = vst.msk [vmem:[#allocation6 + $0x50] sm:$0xff] %vm6310, %v6235
      %6322 = vst.msk [vmem:[#allocation6 + $0x58] sm:$0xff] %vm6310, %v6237
      %6323 = vst.msk [vmem:[#allocation6 + $0x60] sm:$0xff] %vm6310, %v6239
      %6324 = vst.msk [vmem:[#allocation6 + $0x68] sm:$0xff] %vm6310, %v6241
      %6325 = vst.msk [vmem:[#allocation6 + $0x70] sm:$0xff] %vm6310, %v6243
      %6326 = vst.msk [vmem:[#allocation6 + $0x78] sm:$0xff] %vm6310, %v6245
      %6327 = vst.msk [vmem:[#allocation6 + $0x80] sm:$0xff] %vm6310, %v6247
      %6328 = vst.msk [vmem:[#allocation6 + $0x88] sm:$0xff] %vm6310, %v6249
      %6329 = vst.msk [vmem:[#allocation6 + $0x90] sm:$0xff] %vm6310, %v6251
      %6330 = vst.msk [vmem:[#allocation6 + $0x98] sm:$0xff] %vm6310, %v6253
      %6331 = vst.msk [vmem:[#allocation6 + $0xa0] sm:$0xff] %vm6310, %v6255
      %6332 = vst.msk [vmem:[#allocation6 + $0xa8] sm:$0xff] %vm6310, %v6257
      %6333 = vst.msk [vmem:[#allocation6 + $0xb0] sm:$0xff] %vm6310, %v6259
      %6334 = vst.msk [vmem:[#allocation6 + $0xb8] sm:$0xff] %vm6310, %v6261
      %6335 = vst.msk [vmem:[#allocation6 + $0xc0] sm:$0xff] %vm6310, %v6263
      %6336 = vst.msk [vmem:[#allocation6 + $0xc8] sm:$0xff] %vm6310, %v6265
      %6337 = vst.msk [vmem:[#allocation6 + $0xd0] sm:$0xff] %vm6310, %v6267
      %6338 = vst.msk [vmem:[#allocation6 + $0xd8] sm:$0xff] %vm6310, %v6269
      %6339 = vst.msk [vmem:[#allocation6 + $0xe0] sm:$0xff] %vm6310, %v6271
      %6340 = vst.msk [vmem:[#allocation6 + $0xe8] sm:$0xff] %vm6310, %v6273
      %6341 = vst.msk [vmem:[#allocation6 + $0xf0] sm:$0xff] %vm6310, %v6275
      %6342 = vst.msk [vmem:[#allocation6 + $0xf8] sm:$0xff] %vm6310, %v6277
      %v6343 = vld [vmem:[%s5956 + $0x2] sm:$0xff]
      %v6344 = vld [vmem:[%s5956 + $0xa] sm:$0xff]
      %v6345 = vld [vmem:[%s5956 + $0x1a] sm:$0xff]
      %v6346 = vld [vmem:[%s5956 + $0x22] sm:$0xff]
      %v6347 = vld [vmem:[%s5956 + $0x32] sm:$0xff]
      %v6348 = vld [vmem:[%s5956 + $0x3a] sm:$0xff]
      %v6349 = vld [vmem:[%s5956 + $0x4a] sm:$0xff]
      %v6350 = vld [vmem:[%s5956 + $0x52] sm:$0xff]
      %v6351 = vld [vmem:[%s5956 + $0x62] sm:$0xff]
      %v6352 = vld [vmem:[%s5956 + $0x6a] sm:$0xff]
      %v6353 = vld [vmem:[%s5956 + $0x7a] sm:$0xff]
      %v6354 = vld [vmem:[%s5956 + $0x82] sm:$0xff]
      %v6355 = vld [vmem:[%s5956 + $0x92] sm:$0xff]
      %v6356 = vld [vmem:[%s5956 + $0x9a] sm:$0xff]
      %v6357 = vld [vmem:[%s5956 + $0xaa] sm:$0xff]
      %v6358 = vld [vmem:[%s5956 + $0xb2] sm:$0xff]
      %v6359 = vld [vmem:[%s5956 + $0xc2] sm:$0xff]
      %v6360 = vld [vmem:[%s5956 + $0xca] sm:$0xff]
      %v6361 = vld [vmem:[%s5956 + $0xda] sm:$0xff]
      %v6362 = vld [vmem:[%s5956 + $0xe2] sm:$0xff]
      %v6363 = vld [vmem:[%s5956 + $0xf2] sm:$0xff]
      %v6364 = vld [vmem:[%s5956 + $0xfa] sm:$0xff]
      %v6365 = vld [vmem:[%s5956 + $0x10a] sm:$0xff]
      %v6366 = vld [vmem:[%s5956 + $0x112] sm:$0xff]
      %v6367 = vld [vmem:[%s5956 + $0x122] sm:$0xff]
      %v6368 = vld [vmem:[%s5956 + $0x12a] sm:$0xff]
      %v6369 = vld [vmem:[%s5956 + $0x13a] sm:$0xff]
      %v6370 = vld [vmem:[%s5956 + $0x142] sm:$0xff]
      %v6371 = vld [vmem:[%s5956 + $0x152] sm:$0xff]
      %v6372 = vld [vmem:[%s5956 + $0x15a] sm:$0xff]
      %v6373 = vld [vmem:[%s5956 + $0x16a] sm:$0xff]
      %v6374 = vld [vmem:[%s5956 + $0x172] sm:$0xff]
      %6407 = vrot.lane.b32.xlu0 %v6343, 68
      %v6408 = vpop.permute.xlu0 %6407
      %6409 = vrot.lane.b32.xlu0 %v6344, 68
      %v6410 = vpop.permute.xlu0 %6409
      %6411 = vrot.lane.b32.xlu0 %v6345, 68
      %v6412 = vpop.permute.xlu0 %6411
      %6413 = vrot.lane.b32.xlu0 %v6346, 68
      %v6414 = vpop.permute.xlu0 %6413
      %6415 = vrot.lane.b32.xlu0 %v6347, 68
      %v6416 = vpop.permute.xlu0 %6415
      %6417 = vrot.lane.b32.xlu0 %v6348, 68
      %v6418 = vpop.permute.xlu0 %6417
      %6419 = vrot.lane.b32.xlu0 %v6349, 68
      %v6420 = vpop.permute.xlu0 %6419
      %6421 = vrot.lane.b32.xlu0 %v6350, 68
      %v6422 = vpop.permute.xlu0 %6421
      %6423 = vrot.lane.b32.xlu0 %v6351, 68
      %v6424 = vpop.permute.xlu0 %6423
      %6425 = vrot.lane.b32.xlu0 %v6352, 68
      %v6426 = vpop.permute.xlu0 %6425
      %6427 = vrot.lane.b32.xlu0 %v6353, 68
      %v6428 = vpop.permute.xlu0 %6427
      %6429 = vrot.lane.b32.xlu0 %v6354, 68
      %v6430 = vpop.permute.xlu0 %6429
      %6431 = vrot.lane.b32.xlu0 %v6355, 68
      %v6432 = vpop.permute.xlu0 %6431
      %6433 = vrot.lane.b32.xlu0 %v6356, 68
      %v6434 = vpop.permute.xlu0 %6433
      %6435 = vrot.lane.b32.xlu0 %v6357, 68
      %v6436 = vpop.permute.xlu0 %6435
      %6437 = vrot.lane.b32.xlu0 %v6358, 68
      %v6438 = vpop.permute.xlu0 %6437
      %6439 = vrot.lane.b32.xlu0 %v6359, 68
      %v6440 = vpop.permute.xlu0 %6439
      %6441 = vrot.lane.b32.xlu0 %v6360, 68
      %v6442 = vpop.permute.xlu0 %6441
      %6443 = vrot.lane.b32.xlu0 %v6361, 68
      %v6444 = vpop.permute.xlu0 %6443
      %6445 = vrot.lane.b32.xlu0 %v6362, 68
      %v6446 = vpop.permute.xlu0 %6445
      %6447 = vrot.lane.b32.xlu0 %v6363, 68
      %v6448 = vpop.permute.xlu0 %6447
      %6449 = vrot.lane.b32.xlu0 %v6364, 68
      %v6450 = vpop.permute.xlu0 %6449
      %6451 = vrot.lane.b32.xlu0 %v6365, 68
      %v6452 = vpop.permute.xlu0 %6451
      %6453 = vrot.lane.b32.xlu0 %v6366, 68
      %v6454 = vpop.permute.xlu0 %6453
      %6455 = vrot.lane.b32.xlu0 %v6367, 68
      %v6456 = vpop.permute.xlu0 %6455
      %6457 = vrot.lane.b32.xlu0 %v6368, 68
      %v6458 = vpop.permute.xlu0 %6457
      %6459 = vrot.lane.b32.xlu0 %v6369, 68
      %v6460 = vpop.permute.xlu0 %6459
      %6461 = vrot.lane.b32.xlu0 %v6370, 68
      %v6462 = vpop.permute.xlu0 %6461
      %6463 = vrot.lane.b32.xlu0 %v6371, 68
      %v6464 = vpop.permute.xlu0 %6463
      %6465 = vrot.lane.b32.xlu0 %v6372, 68
      %v6466 = vpop.permute.xlu0 %6465
      %6467 = vrot.lane.b32.xlu0 %v6373, 68
      %v6468 = vpop.permute.xlu0 %6467
      %6469 = vrot.lane.b32.xlu0 %v6374, 68
      %v6470 = vpop.permute.xlu0 %6469
      %vm6503 = vcmask 589344
      %6504 = vst.msk [vmem:[#allocation6] sm:$0xff] %vm6503, %v6408
      %6505 = vst.msk [vmem:[#allocation6 + $0x8] sm:$0xff] %vm6503, %v6410
      %6506 = vst.msk [vmem:[#allocation6 + $0x10] sm:$0xff] %vm6503, %v6412
      %6507 = vst.msk [vmem:[#allocation6 + $0x18] sm:$0xff] %vm6503, %v6414
      %6508 = vst.msk [vmem:[#allocation6 + $0x20] sm:$0xff] %vm6503, %v6416
      %6509 = vst.msk [vmem:[#allocation6 + $0x28] sm:$0xff] %vm6503, %v6418
      %6510 = vst.msk [vmem:[#allocation6 + $0x30] sm:$0xff] %vm6503, %v6420
      %6511 = vst.msk [vmem:[#allocation6 + $0x38] sm:$0xff] %vm6503, %v6422
      %6512 = vst.msk [vmem:[#allocation6 + $0x40] sm:$0xff] %vm6503, %v6424
      %6513 = vst.msk [vmem:[#allocation6 + $0x48] sm:$0xff] %vm6503, %v6426
      %6514 = vst.msk [vmem:[#allocation6 + $0x50] sm:$0xff] %vm6503, %v6428
      %6515 = vst.msk [vmem:[#allocation6 + $0x58] sm:$0xff] %vm6503, %v6430
      %6516 = vst.msk [vmem:[#allocation6 + $0x60] sm:$0xff] %vm6503, %v6432
      %6517 = vst.msk [vmem:[#allocation6 + $0x68] sm:$0xff] %vm6503, %v6434
      %6518 = vst.msk [vmem:[#allocation6 + $0x70] sm:$0xff] %vm6503, %v6436
      %6519 = vst.msk [vmem:[#allocation6 + $0x78] sm:$0xff] %vm6503, %v6438
      %6520 = vst.msk [vmem:[#allocation6 + $0x80] sm:$0xff] %vm6503, %v6440
      %6521 = vst.msk [vmem:[#allocation6 + $0x88] sm:$0xff] %vm6503, %v6442
      %6522 = vst.msk [vmem:[#allocation6 + $0x90] sm:$0xff] %vm6503, %v6444
      %6523 = vst.msk [vmem:[#allocation6 + $0x98] sm:$0xff] %vm6503, %v6446
      %6524 = vst.msk [vmem:[#allocation6 + $0xa0] sm:$0xff] %vm6503, %v6448
      %6525 = vst.msk [vmem:[#allocation6 + $0xa8] sm:$0xff] %vm6503, %v6450
      %6526 = vst.msk [vmem:[#allocation6 + $0xb0] sm:$0xff] %vm6503, %v6452
      %6527 = vst.msk [vmem:[#allocation6 + $0xb8] sm:$0xff] %vm6503, %v6454
      %6528 = vst.msk [vmem:[#allocation6 + $0xc0] sm:$0xff] %vm6503, %v6456
      %6529 = vst.msk [vmem:[#allocation6 + $0xc8] sm:$0xff] %vm6503, %v6458
      %6530 = vst.msk [vmem:[#allocation6 + $0xd0] sm:$0xff] %vm6503, %v6460
      %6531 = vst.msk [vmem:[#allocation6 + $0xd8] sm:$0xff] %vm6503, %v6462
      %6532 = vst.msk [vmem:[#allocation6 + $0xe0] sm:$0xff] %vm6503, %v6464
      %6533 = vst.msk [vmem:[#allocation6 + $0xe8] sm:$0xff] %vm6503, %v6466
      %6534 = vst.msk [vmem:[#allocation6 + $0xf0] sm:$0xff] %vm6503, %v6468
      %6535 = vst.msk [vmem:[#allocation6 + $0xf8] sm:$0xff] %vm6503, %v6470
      %v6536 = vld [vmem:[%s5956 + $0x3] sm:$0xff]
      %v6537 = vld [vmem:[%s5956 + $0xb] sm:$0xff]
      %v6538 = vld [vmem:[%s5956 + $0x1b] sm:$0xff]
      %v6539 = vld [vmem:[%s5956 + $0x23] sm:$0xff]
      %v6540 = vld [vmem:[%s5956 + $0x33] sm:$0xff]
      %v6541 = vld [vmem:[%s5956 + $0x3b] sm:$0xff]
      %v6542 = vld [vmem:[%s5956 + $0x4b] sm:$0xff]
      %v6543 = vld [vmem:[%s5956 + $0x53] sm:$0xff]
      %v6544 = vld [vmem:[%s5956 + $0x63] sm:$0xff]
      %v6545 = vld [vmem:[%s5956 + $0x6b] sm:$0xff]
      %v6546 = vld [vmem:[%s5956 + $0x7b] sm:$0xff]
      %v6547 = vld [vmem:[%s5956 + $0x83] sm:$0xff]
      %v6548 = vld [vmem:[%s5956 + $0x93] sm:$0xff]
      %v6549 = vld [vmem:[%s5956 + $0x9b] sm:$0xff]
      %v6550 = vld [vmem:[%s5956 + $0xab] sm:$0xff]
      %v6551 = vld [vmem:[%s5956 + $0xb3] sm:$0xff]
      %v6552 = vld [vmem:[%s5956 + $0xc3] sm:$0xff]
      %v6553 = vld [vmem:[%s5956 + $0xcb] sm:$0xff]
      %v6554 = vld [vmem:[%s5956 + $0xdb] sm:$0xff]
      %v6555 = vld [vmem:[%s5956 + $0xe3] sm:$0xff]
      %v6556 = vld [vmem:[%s5956 + $0xf3] sm:$0xff]
      %v6557 = vld [vmem:[%s5956 + $0xfb] sm:$0xff]
      %v6558 = vld [vmem:[%s5956 + $0x10b] sm:$0xff]
      %v6559 = vld [vmem:[%s5956 + $0x113] sm:$0xff]
      %v6560 = vld [vmem:[%s5956 + $0x123] sm:$0xff]
      %v6561 = vld [vmem:[%s5956 + $0x12b] sm:$0xff]
      %v6562 = vld [vmem:[%s5956 + $0x13b] sm:$0xff]
      %v6563 = vld [vmem:[%s5956 + $0x143] sm:$0xff]
      %v6564 = vld [vmem:[%s5956 + $0x153] sm:$0xff]
      %v6565 = vld [vmem:[%s5956 + $0x15b] sm:$0xff]
      %v6566 = vld [vmem:[%s5956 + $0x16b] sm:$0xff]
      %v6567 = vld [vmem:[%s5956 + $0x173] sm:$0xff]
      %6600 = vrot.lane.b32.xlu0 %v6536, 72
      %v6601 = vpop.permute.xlu0 %6600
      %6602 = vrot.lane.b32.xlu0 %v6537, 72
      %v6603 = vpop.permute.xlu0 %6602
      %6604 = vrot.lane.b32.xlu0 %v6538, 72
      %v6605 = vpop.permute.xlu0 %6604
      %6606 = vrot.lane.b32.xlu0 %v6539, 72
      %v6607 = vpop.permute.xlu0 %6606
      %6608 = vrot.lane.b32.xlu0 %v6540, 72
      %v6609 = vpop.permute.xlu0 %6608
      %6610 = vrot.lane.b32.xlu0 %v6541, 72
      %v6611 = vpop.permute.xlu0 %6610
      %6612 = vrot.lane.b32.xlu0 %v6542, 72
      %v6613 = vpop.permute.xlu0 %6612
      %6614 = vrot.lane.b32.xlu0 %v6543, 72
      %v6615 = vpop.permute.xlu0 %6614
      %6616 = vrot.lane.b32.xlu0 %v6544, 72
      %v6617 = vpop.permute.xlu0 %6616
      %6618 = vrot.lane.b32.xlu0 %v6545, 72
      %v6619 = vpop.permute.xlu0 %6618
      %6620 = vrot.lane.b32.xlu0 %v6546, 72
      %v6621 = vpop.permute.xlu0 %6620
      %6622 = vrot.lane.b32.xlu0 %v6547, 72
      %v6623 = vpop.permute.xlu0 %6622
      %6624 = vrot.lane.b32.xlu0 %v6548, 72
      %v6625 = vpop.permute.xlu0 %6624
      %6626 = vrot.lane.b32.xlu0 %v6549, 72
      %v6627 = vpop.permute.xlu0 %6626
      %6628 = vrot.lane.b32.xlu0 %v6550, 72
      %v6629 = vpop.permute.xlu0 %6628
      %6630 = vrot.lane.b32.xlu0 %v6551, 72
      %v6631 = vpop.permute.xlu0 %6630
      %6632 = vrot.lane.b32.xlu0 %v6552, 72
      %v6633 = vpop.permute.xlu0 %6632
      %6634 = vrot.lane.b32.xlu0 %v6553, 72
      %v6635 = vpop.permute.xlu0 %6634
      %6636 = vrot.lane.b32.xlu0 %v6554, 72
      %v6637 = vpop.permute.xlu0 %6636
      %6638 = vrot.lane.b32.xlu0 %v6555, 72
      %v6639 = vpop.permute.xlu0 %6638
      %6640 = vrot.lane.b32.xlu0 %v6556, 72
      %v6641 = vpop.permute.xlu0 %6640
      %6642 = vrot.lane.b32.xlu0 %v6557, 72
      %v6643 = vpop.permute.xlu0 %6642
      %6644 = vrot.lane.b32.xlu0 %v6558, 72
      %v6645 = vpop.permute.xlu0 %6644
      %6646 = vrot.lane.b32.xlu0 %v6559, 72
      %v6647 = vpop.permute.xlu0 %6646
      %6648 = vrot.lane.b32.xlu0 %v6560, 72
      %v6649 = vpop.permute.xlu0 %6648
      %6650 = vrot.lane.b32.xlu0 %v6561, 72
      %v6651 = vpop.permute.xlu0 %6650
      %6652 = vrot.lane.b32.xlu0 %v6562, 72
      %v6653 = vpop.permute.xlu0 %6652
      %6654 = vrot.lane.b32.xlu0 %v6563, 72
      %v6655 = vpop.permute.xlu0 %6654
      %6656 = vrot.lane.b32.xlu0 %v6564, 72
      %v6657 = vpop.permute.xlu0 %6656
      %6658 = vrot.lane.b32.xlu0 %v6565, 72
      %v6659 = vpop.permute.xlu0 %6658
      %6660 = vrot.lane.b32.xlu0 %v6566, 72
      %v6661 = vpop.permute.xlu0 %6660
      %6662 = vrot.lane.b32.xlu0 %v6567, 72
      %v6663 = vpop.permute.xlu0 %6662
      %vm6696 = vcmask 622144
      %6697 = vst.msk [vmem:[#allocation6] sm:$0xff] %vm6696, %v6601
      %6698 = vst.msk [vmem:[#allocation6 + $0x8] sm:$0xff] %vm6696, %v6603
      %6699 = vst.msk [vmem:[#allocation6 + $0x10] sm:$0xff] %vm6696, %v6605
      %6700 = vst.msk [vmem:[#allocation6 + $0x18] sm:$0xff] %vm6696, %v6607
      %6701 = vst.msk [vmem:[#allocation6 + $0x20] sm:$0xff] %vm6696, %v6609
      %6702 = vst.msk [vmem:[#allocation6 + $0x28] sm:$0xff] %vm6696, %v6611
      %6703 = vst.msk [vmem:[#allocation6 + $0x30] sm:$0xff] %vm6696, %v6613
      %6704 = vst.msk [vmem:[#allocation6 + $0x38] sm:$0xff] %vm6696, %v6615
      %6705 = vst.msk [vmem:[#allocation6 + $0x40] sm:$0xff] %vm6696, %v6617
      %6706 = vst.msk [vmem:[#allocation6 + $0x48] sm:$0xff] %vm6696, %v6619
      %6707 = vst.msk [vmem:[#allocation6 + $0x50] sm:$0xff] %vm6696, %v6621
      %6708 = vst.msk [vmem:[#allocation6 + $0x58] sm:$0xff] %vm6696, %v6623
      %6709 = vst.msk [vmem:[#allocation6 + $0x60] sm:$0xff] %vm6696, %v6625
      %6710 = vst.msk [vmem:[#allocation6 + $0x68] sm:$0xff] %vm6696, %v6627
      %6711 = vst.msk [vmem:[#allocation6 + $0x70] sm:$0xff] %vm6696, %v6629
      %6712 = vst.msk [vmem:[#allocation6 + $0x78] sm:$0xff] %vm6696, %v6631
      %6713 = vst.msk [vmem:[#allocation6 + $0x80] sm:$0xff] %vm6696, %v6633
      %6714 = vst.msk [vmem:[#allocation6 + $0x88] sm:$0xff] %vm6696, %v6635
      %6715 = vst.msk [vmem:[#allocation6 + $0x90] sm:$0xff] %vm6696, %v6637
      %6716 = vst.msk [vmem:[#allocation6 + $0x98] sm:$0xff] %vm6696, %v6639
      %6717 = vst.msk [vmem:[#allocation6 + $0xa0] sm:$0xff] %vm6696, %v6641
      %6718 = vst.msk [vmem:[#allocation6 + $0xa8] sm:$0xff] %vm6696, %v6643
      %6719 = vst.msk [vmem:[#allocation6 + $0xb0] sm:$0xff] %vm6696, %v6645
      %6720 = vst.msk [vmem:[#allocation6 + $0xb8] sm:$0xff] %vm6696, %v6647
      %6721 = vst.msk [vmem:[#allocation6 + $0xc0] sm:$0xff] %vm6696, %v6649
      %6722 = vst.msk [vmem:[#allocation6 + $0xc8] sm:$0xff] %vm6696, %v6651
      %6723 = vst.msk [vmem:[#allocation6 + $0xd0] sm:$0xff] %vm6696, %v6653
      %6724 = vst.msk [vmem:[#allocation6 + $0xd8] sm:$0xff] %vm6696, %v6655
      %6725 = vst.msk [vmem:[#allocation6 + $0xe0] sm:$0xff] %vm6696, %v6657
      %6726 = vst.msk [vmem:[#allocation6 + $0xe8] sm:$0xff] %vm6696, %v6659
      %6727 = vst.msk [vmem:[#allocation6 + $0xf0] sm:$0xff] %vm6696, %v6661
      %6728 = vst.msk [vmem:[#allocation6 + $0xf8] sm:$0xff] %vm6696, %v6663
      %v6729 = vld [vmem:[%s5956 + $0x4] sm:$0xff]
      %v6730 = vld [vmem:[%s5956 + $0xc] sm:$0xff]
      %v6731 = vld [vmem:[%s5956 + $0x1c] sm:$0xff]
      %v6732 = vld [vmem:[%s5956 + $0x24] sm:$0xff]
      %v6733 = vld [vmem:[%s5956 + $0x34] sm:$0xff]
      %v6734 = vld [vmem:[%s5956 + $0x3c] sm:$0xff]
      %v6735 = vld [vmem:[%s5956 + $0x4c] sm:$0xff]
      %v6736 = vld [vmem:[%s5956 + $0x54] sm:$0xff]
      %v6737 = vld [vmem:[%s5956 + $0x64] sm:$0xff]
      %v6738 = vld [vmem:[%s5956 + $0x6c] sm:$0xff]
      %v6739 = vld [vmem:[%s5956 + $0x7c] sm:$0xff]
      %v6740 = vld [vmem:[%s5956 + $0x84] sm:$0xff]
      %v6741 = vld [vmem:[%s5956 + $0x94] sm:$0xff]
      %v6742 = vld [vmem:[%s5956 + $0x9c] sm:$0xff]
      %v6743 = vld [vmem:[%s5956 + $0xac] sm:$0xff]
      %v6744 = vld [vmem:[%s5956 + $0xb4] sm:$0xff]
      %v6745 = vld [vmem:[%s5956 + $0xc4] sm:$0xff]
      %v6746 = vld [vmem:[%s5956 + $0xcc] sm:$0xff]
      %v6747 = vld [vmem:[%s5956 + $0xdc] sm:$0xff]
      %v6748 = vld [vmem:[%s5956 + $0xe4] sm:$0xff]
      %v6749 = vld [vmem:[%s5956 + $0xf4] sm:$0xff]
      %v6750 = vld [vmem:[%s5956 + $0xfc] sm:$0xff]
      %v6751 = vld [vmem:[%s5956 + $0x10c] sm:$0xff]
      %v6752 = vld [vmem:[%s5956 + $0x114] sm:$0xff]
      %v6753 = vld [vmem:[%s5956 + $0x124] sm:$0xff]
      %v6754 = vld [vmem:[%s5956 + $0x12c] sm:$0xff]
      %v6755 = vld [vmem:[%s5956 + $0x13c] sm:$0xff]
      %v6756 = vld [vmem:[%s5956 + $0x144] sm:$0xff]
      %v6757 = vld [vmem:[%s5956 + $0x154] sm:$0xff]
      %v6758 = vld [vmem:[%s5956 + $0x15c] sm:$0xff]
      %v6759 = vld [vmem:[%s5956 + $0x16c] sm:$0xff]
      %v6760 = vld [vmem:[%s5956 + $0x174] sm:$0xff]
      %6793 = vrot.lane.b32.xlu0 %v6729, 76
      %v6794 = vpop.permute.xlu0 %6793
      %6795 = vrot.lane.b32.xlu0 %v6730, 76
      %v6796 = vpop.permute.xlu0 %6795
      %6797 = vrot.lane.b32.xlu0 %v6731, 76
      %v6798 = vpop.permute.xlu0 %6797
      %6799 = vrot.lane.b32.xlu0 %v6732, 76
      %v6800 = vpop.permute.xlu0 %6799
      %6801 = vrot.lane.b32.xlu0 %v6733, 76
      %v6802 = vpop.permute.xlu0 %6801
      %6803 = vrot.lane.b32.xlu0 %v6734, 76
      %v6804 = vpop.permute.xlu0 %6803
      %6805 = vrot.lane.b32.xlu0 %v6735, 76
      %v6806 = vpop.permute.xlu0 %6805
      %6807 = vrot.lane.b32.xlu0 %v6736, 76
      %v6808 = vpop.permute.xlu0 %6807
      %6809 = vrot.lane.b32.xlu0 %v6737, 76
      %v6810 = vpop.permute.xlu0 %6809
      %6811 = vrot.lane.b32.xlu0 %v6738, 76
      %v6812 = vpop.permute.xlu0 %6811
      %6813 = vrot.lane.b32.xlu0 %v6739, 76
      %v6814 = vpop.permute.xlu0 %6813
      %6815 = vrot.lane.b32.xlu0 %v6740, 76
      %v6816 = vpop.permute.xlu0 %6815
      %6817 = vrot.lane.b32.xlu0 %v6741, 76
      %v6818 = vpop.permute.xlu0 %6817
      %6819 = vrot.lane.b32.xlu0 %v6742, 76
      %v6820 = vpop.permute.xlu0 %6819
      %6821 = vrot.lane.b32.xlu0 %v6743, 76
      %v6822 = vpop.permute.xlu0 %6821
      %6823 = vrot.lane.b32.xlu0 %v6744, 76
      %v6824 = vpop.permute.xlu0 %6823
      %6825 = vrot.lane.b32.xlu0 %v6745, 76
      %v6826 = vpop.permute.xlu0 %6825
      %6827 = vrot.lane.b32.xlu0 %v6746, 76
      %v6828 = vpop.permute.xlu0 %6827
      %6829 = vrot.lane.b32.xlu0 %v6747, 76
      %v6830 = vpop.permute.xlu0 %6829
      %6831 = vrot.lane.b32.xlu0 %v6748, 76
      %v6832 = vpop.permute.xlu0 %6831
      %6833 = vrot.lane.b32.xlu0 %v6749, 76
      %v6834 = vpop.permute.xlu0 %6833
      %6835 = vrot.lane.b32.xlu0 %v6750, 76
      %v6836 = vpop.permute.xlu0 %6835
      %6837 = vrot.lane.b32.xlu0 %v6751, 76
      %v6838 = vpop.permute.xlu0 %6837
      %6839 = vrot.lane.b32.xlu0 %v6752, 76
      %v6840 = vpop.permute.xlu0 %6839
      %6841 = vrot.lane.b32.xlu0 %v6753, 76
      %v6842 = vpop.permute.xlu0 %6841
      %6843 = vrot.lane.b32.xlu0 %v6754, 76
      %v6844 = vpop.permute.xlu0 %6843
      %6845 = vrot.lane.b32.xlu0 %v6755, 76
      %v6846 = vpop.permute.xlu0 %6845
      %6847 = vrot.lane.b32.xlu0 %v6756, 76
      %v6848 = vpop.permute.xlu0 %6847
      %6849 = vrot.lane.b32.xlu0 %v6757, 76
      %v6850 = vpop.permute.xlu0 %6849
      %6851 = vrot.lane.b32.xlu0 %v6758, 76
      %v6852 = vpop.permute.xlu0 %6851
      %6853 = vrot.lane.b32.xlu0 %v6759, 76
      %v6854 = vpop.permute.xlu0 %6853
      %6855 = vrot.lane.b32.xlu0 %v6760, 76
      %v6856 = vpop.permute.xlu0 %6855
      %vm6889 = vcmask 654944
      %6890 = vst.msk [vmem:[#allocation6] sm:$0xff] %vm6889, %v6794
      %6891 = vst.msk [vmem:[#allocation6 + $0x8] sm:$0xff] %vm6889, %v6796
      %6892 = vst.msk [vmem:[#allocation6 + $0x10] sm:$0xff] %vm6889, %v6798
      %6893 = vst.msk [vmem:[#allocation6 + $0x18] sm:$0xff] %vm6889, %v6800
      %6894 = vst.msk [vmem:[#allocation6 + $0x20] sm:$0xff] %vm6889, %v6802
      %6895 = vst.msk [vmem:[#allocation6 + $0x28] sm:$0xff] %vm6889, %v6804
      %6896 = vst.msk [vmem:[#allocation6 + $0x30] sm:$0xff] %vm6889, %v6806
      %6897 = vst.msk [vmem:[#allocation6 + $0x38] sm:$0xff] %vm6889, %v6808
      %6898 = vst.msk [vmem:[#allocation6 + $0x40] sm:$0xff] %vm6889, %v6810
      %6899 = vst.msk [vmem:[#allocation6 + $0x48] sm:$0xff] %vm6889, %v6812
      %6900 = vst.msk [vmem:[#allocation6 + $0x50] sm:$0xff] %vm6889, %v6814
      %6901 = vst.msk [vmem:[#allocation6 + $0x58] sm:$0xff] %vm6889, %v6816
      %6902 = vst.msk [vmem:[#allocation6 + $0x60] sm:$0xff] %vm6889, %v6818
      %6903 = vst.msk [vmem:[#allocation6 + $0x68] sm:$0xff] %vm6889, %v6820
      %6904 = vst.msk [vmem:[#allocation6 + $0x70] sm:$0xff] %vm6889, %v6822
      %6905 = vst.msk [vmem:[#allocation6 + $0x78] sm:$0xff] %vm6889, %v6824
      %6906 = vst.msk [vmem:[#allocation6 + $0x80] sm:$0xff] %vm6889, %v6826
      %6907 = vst.msk [vmem:[#allocation6 + $0x88] sm:$0xff] %vm6889, %v6828
      %6908 = vst.msk [vmem:[#allocation6 + $0x90] sm:$0xff] %vm6889, %v6830
      %6909 = vst.msk [vmem:[#allocation6 + $0x98] sm:$0xff] %vm6889, %v6832
      %6910 = vst.msk [vmem:[#allocation6 + $0xa0] sm:$0xff] %vm6889, %v6834
      %6911 = vst.msk [vmem:[#allocation6 + $0xa8] sm:$0xff] %vm6889, %v6836
      %6912 = vst.msk [vmem:[#allocation6 + $0xb0] sm:$0xff] %vm6889, %v6838
      %6913 = vst.msk [vmem:[#allocation6 + $0xb8] sm:$0xff] %vm6889, %v6840
      %6914 = vst.msk [vmem:[#allocation6 + $0xc0] sm:$0xff] %vm6889, %v6842
      %6915 = vst.msk [vmem:[#allocation6 + $0xc8] sm:$0xff] %vm6889, %v6844
      %6916 = vst.msk [vmem:[#allocation6 + $0xd0] sm:$0xff] %vm6889, %v6846
      %6917 = vst.msk [vmem:[#allocation6 + $0xd8] sm:$0xff] %vm6889, %v6848
      %6918 = vst.msk [vmem:[#allocation6 + $0xe0] sm:$0xff] %vm6889, %v6850
      %6919 = vst.msk [vmem:[#allocation6 + $0xe8] sm:$0xff] %vm6889, %v6852
      %6920 = vst.msk [vmem:[#allocation6 + $0xf0] sm:$0xff] %vm6889, %v6854
      %6921 = vst.msk [vmem:[#allocation6 + $0xf8] sm:$0xff] %vm6889, %v6856
      %s6922 = scalar_lea.vmem [#allocation3], 96
      %v6923 = vld [vmem:[%s6922] sm:$0xff]
      %v6924 = vld [vmem:[%s6922 + $0x8] sm:$0xff]
      %v6925 = vld [vmem:[%s6922 + $0x18] sm:$0xff]
      %v6926 = vld [vmem:[%s6922 + $0x20] sm:$0xff]
      %v6927 = vld [vmem:[%s6922 + $0x30] sm:$0xff]
      %v6928 = vld [vmem:[%s6922 + $0x38] sm:$0xff]
      %v6929 = vld [vmem:[%s6922 + $0x48] sm:$0xff]
      %v6930 = vld [vmem:[%s6922 + $0x50] sm:$0xff]
      %v6931 = vld [vmem:[%s6922 + $0x60] sm:$0xff]
      %v6932 = vld [vmem:[%s6922 + $0x68] sm:$0xff]
      %v6933 = vld [vmem:[%s6922 + $0x78] sm:$0xff]
      %v6934 = vld [vmem:[%s6922 + $0x80] sm:$0xff]
      %v6935 = vld [vmem:[%s6922 + $0x90] sm:$0xff]
      %v6936 = vld [vmem:[%s6922 + $0x98] sm:$0xff]
      %v6937 = vld [vmem:[%s6922 + $0xa8] sm:$0xff]
      %v6938 = vld [vmem:[%s6922 + $0xb0] sm:$0xff]
      %v6939 = vld [vmem:[%s6922 + $0xc0] sm:$0xff]
      %v6940 = vld [vmem:[%s6922 + $0xc8] sm:$0xff]
      %v6941 = vld [vmem:[%s6922 + $0xd8] sm:$0xff]
      %v6942 = vld [vmem:[%s6922 + $0xe0] sm:$0xff]
      %v6943 = vld [vmem:[%s6922 + $0xf0] sm:$0xff]
      %v6944 = vld [vmem:[%s6922 + $0xf8] sm:$0xff]
      %v6945 = vld [vmem:[%s6922 + $0x108] sm:$0xff]
      %v6946 = vld [vmem:[%s6922 + $0x110] sm:$0xff]
      %v6947 = vld [vmem:[%s6922 + $0x120] sm:$0xff]
      %v6948 = vld [vmem:[%s6922 + $0x128] sm:$0xff]
      %v6949 = vld [vmem:[%s6922 + $0x138] sm:$0xff]
      %v6950 = vld [vmem:[%s6922 + $0x140] sm:$0xff]
      %v6951 = vld [vmem:[%s6922 + $0x150] sm:$0xff]
      %v6952 = vld [vmem:[%s6922 + $0x158] sm:$0xff]
      %v6953 = vld [vmem:[%s6922 + $0x168] sm:$0xff]
      %v6954 = vld [vmem:[%s6922 + $0x170] sm:$0xff]
      %6987 = vrot.lane.b32.xlu0 %v6923, 80
      %v6988 = vpop.permute.xlu0 %6987
      %6989 = vrot.lane.b32.xlu0 %v6924, 80
      %v6990 = vpop.permute.xlu0 %6989
      %6991 = vrot.lane.b32.xlu0 %v6925, 80
      %v6992 = vpop.permute.xlu0 %6991
      %6993 = vrot.lane.b32.xlu0 %v6926, 80
      %v6994 = vpop.permute.xlu0 %6993
      %6995 = vrot.lane.b32.xlu0 %v6927, 80
      %v6996 = vpop.permute.xlu0 %6995
      %6997 = vrot.lane.b32.xlu0 %v6928, 80
      %v6998 = vpop.permute.xlu0 %6997
      %6999 = vrot.lane.b32.xlu0 %v6929, 80
      %v7000 = vpop.permute.xlu0 %6999
      %7001 = vrot.lane.b32.xlu0 %v6930, 80
      %v7002 = vpop.permute.xlu0 %7001
      %7003 = vrot.lane.b32.xlu0 %v6931, 80
      %v7004 = vpop.permute.xlu0 %7003
      %7005 = vrot.lane.b32.xlu0 %v6932, 80
      %v7006 = vpop.permute.xlu0 %7005
      %7007 = vrot.lane.b32.xlu0 %v6933, 80
      %v7008 = vpop.permute.xlu0 %7007
      %7009 = vrot.lane.b32.xlu0 %v6934, 80
      %v7010 = vpop.permute.xlu0 %7009
      %7011 = vrot.lane.b32.xlu0 %v6935, 80
      %v7012 = vpop.permute.xlu0 %7011
      %7013 = vrot.lane.b32.xlu0 %v6936, 80
      %v7014 = vpop.permute.xlu0 %7013
      %7015 = vrot.lane.b32.xlu0 %v6937, 80
      %v7016 = vpop.permute.xlu0 %7015
      %7017 = vrot.lane.b32.xlu0 %v6938, 80
      %v7018 = vpop.permute.xlu0 %7017
      %7019 = vrot.lane.b32.xlu0 %v6939, 80
      %v7020 = vpop.permute.xlu0 %7019
      %7021 = vrot.lane.b32.xlu0 %v6940, 80
      %v7022 = vpop.permute.xlu0 %7021
      %7023 = vrot.lane.b32.xlu0 %v6941, 80
      %v7024 = vpop.permute.xlu0 %7023
      %7025 = vrot.lane.b32.xlu0 %v6942, 80
      %v7026 = vpop.permute.xlu0 %7025
      %7027 = vrot.lane.b32.xlu0 %v6943, 80
      %v7028 = vpop.permute.xlu0 %7027
      %7029 = vrot.lane.b32.xlu0 %v6944, 80
      %v7030 = vpop.permute.xlu0 %7029
      %7031 = vrot.lane.b32.xlu0 %v6945, 80
      %v7032 = vpop.permute.xlu0 %7031
      %7033 = vrot.lane.b32.xlu0 %v6946, 80
      %v7034 = vpop.permute.xlu0 %7033
      %7035 = vrot.lane.b32.xlu0 %v6947, 80
      %v7036 = vpop.permute.xlu0 %7035
      %7037 = vrot.lane.b32.xlu0 %v6948, 80
      %v7038 = vpop.permute.xlu0 %7037
      %7039 = vrot.lane.b32.xlu0 %v6949, 80
      %v7040 = vpop.permute.xlu0 %7039
      %7041 = vrot.lane.b32.xlu0 %v6950, 80
      %v7042 = vpop.permute.xlu0 %7041
      %7043 = vrot.lane.b32.xlu0 %v6951, 80
      %v7044 = vpop.permute.xlu0 %7043
      %7045 = vrot.lane.b32.xlu0 %v6952, 80
      %v7046 = vpop.permute.xlu0 %7045
      %7047 = vrot.lane.b32.xlu0 %v6953, 80
      %v7048 = vpop.permute.xlu0 %7047
      %7049 = vrot.lane.b32.xlu0 %v6954, 80
      %v7050 = vpop.permute.xlu0 %7049
      %vm7083 = vcmask 687744
      %7084 = vst.msk [vmem:[#allocation6] sm:$0xff] %vm7083, %v6988
      %7085 = vst.msk [vmem:[#allocation6 + $0x8] sm:$0xff] %vm7083, %v6990
      %7086 = vst.msk [vmem:[#allocation6 + $0x10] sm:$0xff] %vm7083, %v6992
      %7087 = vst.msk [vmem:[#allocation6 + $0x18] sm:$0xff] %vm7083, %v6994
      %7088 = vst.msk [vmem:[#allocation6 + $0x20] sm:$0xff] %vm7083, %v6996
      %7089 = vst.msk [vmem:[#allocation6 + $0x28] sm:$0xff] %vm7083, %v6998
      %7090 = vst.msk [vmem:[#allocation6 + $0x30] sm:$0xff] %vm7083, %v7000
      %7091 = vst.msk [vmem:[#allocation6 + $0x38] sm:$0xff] %vm7083, %v7002
      %7092 = vst.msk [vmem:[#allocation6 + $0x40] sm:$0xff] %vm7083, %v7004
      %7093 = vst.msk [vmem:[#allocation6 + $0x48] sm:$0xff] %vm7083, %v7006
      %7094 = vst.msk [vmem:[#allocation6 + $0x50] sm:$0xff] %vm7083, %v7008
      %7095 = vst.msk [vmem:[#allocation6 + $0x58] sm:$0xff] %vm7083, %v7010
      %7096 = vst.msk [vmem:[#allocation6 + $0x60] sm:$0xff] %vm7083, %v7012
      %7097 = vst.msk [vmem:[#allocation6 + $0x68] sm:$0xff] %vm7083, %v7014
      %7098 = vst.msk [vmem:[#allocation6 + $0x70] sm:$0xff] %vm7083, %v7016
      %7099 = vst.msk [vmem:[#allocation6 + $0x78] sm:$0xff] %vm7083, %v7018
      %7100 = vst.msk [vmem:[#allocation6 + $0x80] sm:$0xff] %vm7083, %v7020
      %7101 = vst.msk [vmem:[#allocation6 + $0x88] sm:$0xff] %vm7083, %v7022
      %7102 = vst.msk [vmem:[#allocation6 + $0x90] sm:$0xff] %vm7083, %v7024
      %7103 = vst.msk [vmem:[#allocation6 + $0x98] sm:$0xff] %vm7083, %v7026
      %7104 = vst.msk [vmem:[#allocation6 + $0xa0] sm:$0xff] %vm7083, %v7028
      %7105 = vst.msk [vmem:[#allocation6 + $0xa8] sm:$0xff] %vm7083, %v7030
      %7106 = vst.msk [vmem:[#allocation6 + $0xb0] sm:$0xff] %vm7083, %v7032
      %7107 = vst.msk [vmem:[#allocation6 + $0xb8] sm:$0xff] %vm7083, %v7034
      %7108 = vst.msk [vmem:[#allocation6 + $0xc0] sm:$0xff] %vm7083, %v7036
      %7109 = vst.msk [vmem:[#allocation6 + $0xc8] sm:$0xff] %vm7083, %v7038
      %7110 = vst.msk [vmem:[#allocation6 + $0xd0] sm:$0xff] %vm7083, %v7040
      %7111 = vst.msk [vmem:[#allocation6 + $0xd8] sm:$0xff] %vm7083, %v7042
      %7112 = vst.msk [vmem:[#allocation6 + $0xe0] sm:$0xff] %vm7083, %v7044
      %7113 = vst.msk [vmem:[#allocation6 + $0xe8] sm:$0xff] %vm7083, %v7046
      %7114 = vst.msk [vmem:[#allocation6 + $0xf0] sm:$0xff] %vm7083, %v7048
      %7115 = vst.msk [vmem:[#allocation6 + $0xf8] sm:$0xff] %vm7083, %v7050
      %v7116 = vld [vmem:[%s6922 + $0x1] sm:$0xff]
      %v7117 = vld [vmem:[%s6922 + $0x9] sm:$0xff]
      %v7118 = vld [vmem:[%s6922 + $0x19] sm:$0xff]
      %v7119 = vld [vmem:[%s6922 + $0x21] sm:$0xff]
      %v7120 = vld [vmem:[%s6922 + $0x31] sm:$0xff]
      %v7121 = vld [vmem:[%s6922 + $0x39] sm:$0xff]
      %v7122 = vld [vmem:[%s6922 + $0x49] sm:$0xff]
      %v7123 = vld [vmem:[%s6922 + $0x51] sm:$0xff]
      %v7124 = vld [vmem:[%s6922 + $0x61] sm:$0xff]
      %v7125 = vld [vmem:[%s6922 + $0x69] sm:$0xff]
      %v7126 = vld [vmem:[%s6922 + $0x79] sm:$0xff]
      %v7127 = vld [vmem:[%s6922 + $0x81] sm:$0xff]
      %v7128 = vld [vmem:[%s6922 + $0x91] sm:$0xff]
      %v7129 = vld [vmem:[%s6922 + $0x99] sm:$0xff]
      %v7130 = vld [vmem:[%s6922 + $0xa9] sm:$0xff]
      %v7131 = vld [vmem:[%s6922 + $0xb1] sm:$0xff]
      %v7132 = vld [vmem:[%s6922 + $0xc1] sm:$0xff]
      %v7133 = vld [vmem:[%s6922 + $0xc9] sm:$0xff]
      %v7134 = vld [vmem:[%s6922 + $0xd9] sm:$0xff]
      %v7135 = vld [vmem:[%s6922 + $0xe1] sm:$0xff]
      %v7136 = vld [vmem:[%s6922 + $0xf1] sm:$0xff]
      %v7137 = vld [vmem:[%s6922 + $0xf9] sm:$0xff]
      %v7138 = vld [vmem:[%s6922 + $0x109] sm:$0xff]
      %v7139 = vld [vmem:[%s6922 + $0x111] sm:$0xff]
      %v7140 = vld [vmem:[%s6922 + $0x121] sm:$0xff]
      %v7141 = vld [vmem:[%s6922 + $0x129] sm:$0xff]
      %v7142 = vld [vmem:[%s6922 + $0x139] sm:$0xff]
      %v7143 = vld [vmem:[%s6922 + $0x141] sm:$0xff]
      %v7144 = vld [vmem:[%s6922 + $0x151] sm:$0xff]
      %v7145 = vld [vmem:[%s6922 + $0x159] sm:$0xff]
      %v7146 = vld [vmem:[%s6922 + $0x169] sm:$0xff]
      %v7147 = vld [vmem:[%s6922 + $0x171] sm:$0xff]
      %7180 = vrot.lane.b32.xlu0 %v7116, 84
      %v7181 = vpop.permute.xlu0 %7180
      %7182 = vrot.lane.b32.xlu0 %v7117, 84
      %v7183 = vpop.permute.xlu0 %7182
      %7184 = vrot.lane.b32.xlu0 %v7118, 84
      %v7185 = vpop.permute.xlu0 %7184
      %7186 = vrot.lane.b32.xlu0 %v7119, 84
      %v7187 = vpop.permute.xlu0 %7186
      %7188 = vrot.lane.b32.xlu0 %v7120, 84
      %v7189 = vpop.permute.xlu0 %7188
      %7190 = vrot.lane.b32.xlu0 %v7121, 84
      %v7191 = vpop.permute.xlu0 %7190
      %7192 = vrot.lane.b32.xlu0 %v7122, 84
      %v7193 = vpop.permute.xlu0 %7192
      %7194 = vrot.lane.b32.xlu0 %v7123, 84
      %v7195 = vpop.permute.xlu0 %7194
      %7196 = vrot.lane.b32.xlu0 %v7124, 84
      %v7197 = vpop.permute.xlu0 %7196
      %7198 = vrot.lane.b32.xlu0 %v7125, 84
      %v7199 = vpop.permute.xlu0 %7198
      %7200 = vrot.lane.b32.xlu0 %v7126, 84
      %v7201 = vpop.permute.xlu0 %7200
      %7202 = vrot.lane.b32.xlu0 %v7127, 84
      %v7203 = vpop.permute.xlu0 %7202
      %7204 = vrot.lane.b32.xlu0 %v7128, 84
      %v7205 = vpop.permute.xlu0 %7204
      %7206 = vrot.lane.b32.xlu0 %v7129, 84
      %v7207 = vpop.permute.xlu0 %7206
      %7208 = vrot.lane.b32.xlu0 %v7130, 84
      %v7209 = vpop.permute.xlu0 %7208
      %7210 = vrot.lane.b32.xlu0 %v7131, 84
      %v7211 = vpop.permute.xlu0 %7210
      %7212 = vrot.lane.b32.xlu0 %v7132, 84
      %v7213 = vpop.permute.xlu0 %7212
      %7214 = vrot.lane.b32.xlu0 %v7133, 84
      %v7215 = vpop.permute.xlu0 %7214
      %7216 = vrot.lane.b32.xlu0 %v7134, 84
      %v7217 = vpop.permute.xlu0 %7216
      %7218 = vrot.lane.b32.xlu0 %v7135, 84
      %v7219 = vpop.permute.xlu0 %7218
      %7220 = vrot.lane.b32.xlu0 %v7136, 84
      %v7221 = vpop.permute.xlu0 %7220
      %7222 = vrot.lane.b32.xlu0 %v7137, 84
      %v7223 = vpop.permute.xlu0 %7222
      %7224 = vrot.lane.b32.xlu0 %v7138, 84
      %v7225 = vpop.permute.xlu0 %7224
      %7226 = vrot.lane.b32.xlu0 %v7139, 84
      %v7227 = vpop.permute.xlu0 %7226
      %7228 = vrot.lane.b32.xlu0 %v7140, 84
      %v7229 = vpop.permute.xlu0 %7228
      %7230 = vrot.lane.b32.xlu0 %v7141, 84
      %v7231 = vpop.permute.xlu0 %7230
      %7232 = vrot.lane.b32.xlu0 %v7142, 84
      %v7233 = vpop.permute.xlu0 %7232
      %7234 = vrot.lane.b32.xlu0 %v7143, 84
      %v7235 = vpop.permute.xlu0 %7234
      %7236 = vrot.lane.b32.xlu0 %v7144, 84
      %v7237 = vpop.permute.xlu0 %7236
      %7238 = vrot.lane.b32.xlu0 %v7145, 84
      %v7239 = vpop.permute.xlu0 %7238
      %7240 = vrot.lane.b32.xlu0 %v7146, 84
      %v7241 = vpop.permute.xlu0 %7240
      %7242 = vrot.lane.b32.xlu0 %v7147, 84
      %v7243 = vpop.permute.xlu0 %7242
      %vm7276 = vcmask 720544
      %7277 = vst.msk [vmem:[#allocation6] sm:$0xff] %vm7276, %v7181
      %7278 = vst.msk [vmem:[#allocation6 + $0x8] sm:$0xff] %vm7276, %v7183
      %7279 = vst.msk [vmem:[#allocation6 + $0x10] sm:$0xff] %vm7276, %v7185
      %7280 = vst.msk [vmem:[#allocation6 + $0x18] sm:$0xff] %vm7276, %v7187
      %7281 = vst.msk [vmem:[#allocation6 + $0x20] sm:$0xff] %vm7276, %v7189
      %7282 = vst.msk [vmem:[#allocation6 + $0x28] sm:$0xff] %vm7276, %v7191
      %7283 = vst.msk [vmem:[#allocation6 + $0x30] sm:$0xff] %vm7276, %v7193
      %7284 = vst.msk [vmem:[#allocation6 + $0x38] sm:$0xff] %vm7276, %v7195
      %7285 = vst.msk [vmem:[#allocation6 + $0x40] sm:$0xff] %vm7276, %v7197
      %7286 = vst.msk [vmem:[#allocation6 + $0x48] sm:$0xff] %vm7276, %v7199
      %7287 = vst.msk [vmem:[#allocation6 + $0x50] sm:$0xff] %vm7276, %v7201
      %7288 = vst.msk [vmem:[#allocation6 + $0x58] sm:$0xff] %vm7276, %v7203
      %7289 = vst.msk [vmem:[#allocation6 + $0x60] sm:$0xff] %vm7276, %v7205
      %7290 = vst.msk [vmem:[#allocation6 + $0x68] sm:$0xff] %vm7276, %v7207
      %7291 = vst.msk [vmem:[#allocation6 + $0x70] sm:$0xff] %vm7276, %v7209
      %7292 = vst.msk [vmem:[#allocation6 + $0x78] sm:$0xff] %vm7276, %v7211
      %7293 = vst.msk [vmem:[#allocation6 + $0x80] sm:$0xff] %vm7276, %v7213
      %7294 = vst.msk [vmem:[#allocation6 + $0x88] sm:$0xff] %vm7276, %v7215
      %7295 = vst.msk [vmem:[#allocation6 + $0x90] sm:$0xff] %vm7276, %v7217
      %7296 = vst.msk [vmem:[#allocation6 + $0x98] sm:$0xff] %vm7276, %v7219
      %7297 = vst.msk [vmem:[#allocation6 + $0xa0] sm:$0xff] %vm7276, %v7221
      %7298 = vst.msk [vmem:[#allocation6 + $0xa8] sm:$0xff] %vm7276, %v7223
      %7299 = vst.msk [vmem:[#allocation6 + $0xb0] sm:$0xff] %vm7276, %v7225
      %7300 = vst.msk [vmem:[#allocation6 + $0xb8] sm:$0xff] %vm7276, %v7227
      %7301 = vst.msk [vmem:[#allocation6 + $0xc0] sm:$0xff] %vm7276, %v7229
      %7302 = vst.msk [vmem:[#allocation6 + $0xc8] sm:$0xff] %vm7276, %v7231
      %7303 = vst.msk [vmem:[#allocation6 + $0xd0] sm:$0xff] %vm7276, %v7233
      %7304 = vst.msk [vmem:[#allocation6 + $0xd8] sm:$0xff] %vm7276, %v7235
      %7305 = vst.msk [vmem:[#allocation6 + $0xe0] sm:$0xff] %vm7276, %v7237
      %7306 = vst.msk [vmem:[#allocation6 + $0xe8] sm:$0xff] %vm7276, %v7239
      %7307 = vst.msk [vmem:[#allocation6 + $0xf0] sm:$0xff] %vm7276, %v7241
      %7308 = vst.msk [vmem:[#allocation6 + $0xf8] sm:$0xff] %vm7276, %v7243
      %v7309 = vld [vmem:[%s6922 + $0x2] sm:$0xff]
      %v7310 = vld [vmem:[%s6922 + $0xa] sm:$0xff]
      %v7311 = vld [vmem:[%s6922 + $0x1a] sm:$0xff]
      %v7312 = vld [vmem:[%s6922 + $0x22] sm:$0xff]
      %v7313 = vld [vmem:[%s6922 + $0x32] sm:$0xff]
      %v7314 = vld [vmem:[%s6922 + $0x3a] sm:$0xff]
      %v7315 = vld [vmem:[%s6922 + $0x4a] sm:$0xff]
      %v7316 = vld [vmem:[%s6922 + $0x52] sm:$0xff]
      %v7317 = vld [vmem:[%s6922 + $0x62] sm:$0xff]
      %v7318 = vld [vmem:[%s6922 + $0x6a] sm:$0xff]
      %v7319 = vld [vmem:[%s6922 + $0x7a] sm:$0xff]
      %v7320 = vld [vmem:[%s6922 + $0x82] sm:$0xff]
      %v7321 = vld [vmem:[%s6922 + $0x92] sm:$0xff]
      %v7322 = vld [vmem:[%s6922 + $0x9a] sm:$0xff]
      %v7323 = vld [vmem:[%s6922 + $0xaa] sm:$0xff]
      %v7324 = vld [vmem:[%s6922 + $0xb2] sm:$0xff]
      %v7325 = vld [vmem:[%s6922 + $0xc2] sm:$0xff]
      %v7326 = vld [vmem:[%s6922 + $0xca] sm:$0xff]
      %v7327 = vld [vmem:[%s6922 + $0xda] sm:$0xff]
      %v7328 = vld [vmem:[%s6922 + $0xe2] sm:$0xff]
      %v7329 = vld [vmem:[%s6922 + $0xf2] sm:$0xff]
      %v7330 = vld [vmem:[%s6922 + $0xfa] sm:$0xff]
      %v7331 = vld [vmem:[%s6922 + $0x10a] sm:$0xff]
      %v7332 = vld [vmem:[%s6922 + $0x112] sm:$0xff]
      %v7333 = vld [vmem:[%s6922 + $0x122] sm:$0xff]
      %v7334 = vld [vmem:[%s6922 + $0x12a] sm:$0xff]
      %v7335 = vld [vmem:[%s6922 + $0x13a] sm:$0xff]
      %v7336 = vld [vmem:[%s6922 + $0x142] sm:$0xff]
      %v7337 = vld [vmem:[%s6922 + $0x152] sm:$0xff]
      %v7338 = vld [vmem:[%s6922 + $0x15a] sm:$0xff]
      %v7339 = vld [vmem:[%s6922 + $0x16a] sm:$0xff]
      %v7340 = vld [vmem:[%s6922 + $0x172] sm:$0xff]
      %7373 = vrot.lane.b32.xlu0 %v7309, 88
      %v7374 = vpop.permute.xlu0 %7373
      %7375 = vrot.lane.b32.xlu0 %v7310, 88
      %v7376 = vpop.permute.xlu0 %7375
      %7377 = vrot.lane.b32.xlu0 %v7311, 88
      %v7378 = vpop.permute.xlu0 %7377
      %7379 = vrot.lane.b32.xlu0 %v7312, 88
      %v7380 = vpop.permute.xlu0 %7379
      %7381 = vrot.lane.b32.xlu0 %v7313, 88
      %v7382 = vpop.permute.xlu0 %7381
      %7383 = vrot.lane.b32.xlu0 %v7314, 88
      %v7384 = vpop.permute.xlu0 %7383
      %7385 = vrot.lane.b32.xlu0 %v7315, 88
      %v7386 = vpop.permute.xlu0 %7385
      %7387 = vrot.lane.b32.xlu0 %v7316, 88
      %v7388 = vpop.permute.xlu0 %7387
      %7389 = vrot.lane.b32.xlu0 %v7317, 88
      %v7390 = vpop.permute.xlu0 %7389
      %7391 = vrot.lane.b32.xlu0 %v7318, 88
      %v7392 = vpop.permute.xlu0 %7391
      %7393 = vrot.lane.b32.xlu0 %v7319, 88
      %v7394 = vpop.permute.xlu0 %7393
      %7395 = vrot.lane.b32.xlu0 %v7320, 88
      %v7396 = vpop.permute.xlu0 %7395
      %7397 = vrot.lane.b32.xlu0 %v7321, 88
      %v7398 = vpop.permute.xlu0 %7397
      %7399 = vrot.lane.b32.xlu0 %v7322, 88
      %v7400 = vpop.permute.xlu0 %7399
      %7401 = vrot.lane.b32.xlu0 %v7323, 88
      %v7402 = vpop.permute.xlu0 %7401
      %7403 = vrot.lane.b32.xlu0 %v7324, 88
      %v7404 = vpop.permute.xlu0 %7403
      %7405 = vrot.lane.b32.xlu0 %v7325, 88
      %v7406 = vpop.permute.xlu0 %7405
      %7407 = vrot.lane.b32.xlu0 %v7326, 88
      %v7408 = vpop.permute.xlu0 %7407
      %7409 = vrot.lane.b32.xlu0 %v7327, 88
      %v7410 = vpop.permute.xlu0 %7409
      %7411 = vrot.lane.b32.xlu0 %v7328, 88
      %v7412 = vpop.permute.xlu0 %7411
      %7413 = vrot.lane.b32.xlu0 %v7329, 88
      %v7414 = vpop.permute.xlu0 %7413
      %7415 = vrot.lane.b32.xlu0 %v7330, 88
      %v7416 = vpop.permute.xlu0 %7415
      %7417 = vrot.lane.b32.xlu0 %v7331, 88
      %v7418 = vpop.permute.xlu0 %7417
      %7419 = vrot.lane.b32.xlu0 %v7332, 88
      %v7420 = vpop.permute.xlu0 %7419
      %7421 = vrot.lane.b32.xlu0 %v7333, 88
      %v7422 = vpop.permute.xlu0 %7421
      %7423 = vrot.lane.b32.xlu0 %v7334, 88
      %v7424 = vpop.permute.xlu0 %7423
      %7425 = vrot.lane.b32.xlu0 %v7335, 88
      %v7426 = vpop.permute.xlu0 %7425
      %7427 = vrot.lane.b32.xlu0 %v7336, 88
      %v7428 = vpop.permute.xlu0 %7427
      %7429 = vrot.lane.b32.xlu0 %v7337, 88
      %v7430 = vpop.permute.xlu0 %7429
      %7431 = vrot.lane.b32.xlu0 %v7338, 88
      %v7432 = vpop.permute.xlu0 %7431
      %7433 = vrot.lane.b32.xlu0 %v7339, 88
      %v7434 = vpop.permute.xlu0 %7433
      %7435 = vrot.lane.b32.xlu0 %v7340, 88
      %v7436 = vpop.permute.xlu0 %7435
      %vm7469 = vcmask 753344
      %7470 = vst.msk [vmem:[#allocation6] sm:$0xff] %vm7469, %v7374
      %7471 = vst.msk [vmem:[#allocation6 + $0x8] sm:$0xff] %vm7469, %v7376
      %7472 = vst.msk [vmem:[#allocation6 + $0x10] sm:$0xff] %vm7469, %v7378
      %7473 = vst.msk [vmem:[#allocation6 + $0x18] sm:$0xff] %vm7469, %v7380
      %7474 = vst.msk [vmem:[#allocation6 + $0x20] sm:$0xff] %vm7469, %v7382
      %7475 = vst.msk [vmem:[#allocation6 + $0x28] sm:$0xff] %vm7469, %v7384
      %7476 = vst.msk [vmem:[#allocation6 + $0x30] sm:$0xff] %vm7469, %v7386
      %7477 = vst.msk [vmem:[#allocation6 + $0x38] sm:$0xff] %vm7469, %v7388
      %7478 = vst.msk [vmem:[#allocation6 + $0x40] sm:$0xff] %vm7469, %v7390
      %7479 = vst.msk [vmem:[#allocation6 + $0x48] sm:$0xff] %vm7469, %v7392
      %7480 = vst.msk [vmem:[#allocation6 + $0x50] sm:$0xff] %vm7469, %v7394
      %7481 = vst.msk [vmem:[#allocation6 + $0x58] sm:$0xff] %vm7469, %v7396
      %7482 = vst.msk [vmem:[#allocation6 + $0x60] sm:$0xff] %vm7469, %v7398
      %7483 = vst.msk [vmem:[#allocation6 + $0x68] sm:$0xff] %vm7469, %v7400
      %7484 = vst.msk [vmem:[#allocation6 + $0x70] sm:$0xff] %vm7469, %v7402
      %7485 = vst.msk [vmem:[#allocation6 + $0x78] sm:$0xff] %vm7469, %v7404
      %7486 = vst.msk [vmem:[#allocation6 + $0x80] sm:$0xff] %vm7469, %v7406
      %7487 = vst.msk [vmem:[#allocation6 + $0x88] sm:$0xff] %vm7469, %v7408
      %7488 = vst.msk [vmem:[#allocation6 + $0x90] sm:$0xff] %vm7469, %v7410
      %7489 = vst.msk [vmem:[#allocation6 + $0x98] sm:$0xff] %vm7469, %v7412
      %7490 = vst.msk [vmem:[#allocation6 + $0xa0] sm:$0xff] %vm7469, %v7414
      %7491 = vst.msk [vmem:[#allocation6 + $0xa8] sm:$0xff] %vm7469, %v7416
      %7492 = vst.msk [vmem:[#allocation6 + $0xb0] sm:$0xff] %vm7469, %v7418
      %7493 = vst.msk [vmem:[#allocation6 + $0xb8] sm:$0xff] %vm7469, %v7420
      %7494 = vst.msk [vmem:[#allocation6 + $0xc0] sm:$0xff] %vm7469, %v7422
      %7495 = vst.msk [vmem:[#allocation6 + $0xc8] sm:$0xff] %vm7469, %v7424
      %7496 = vst.msk [vmem:[#allocation6 + $0xd0] sm:$0xff] %vm7469, %v7426
      %7497 = vst.msk [vmem:[#allocation6 + $0xd8] sm:$0xff] %vm7469, %v7428
      %7498 = vst.msk [vmem:[#allocation6 + $0xe0] sm:$0xff] %vm7469, %v7430
      %7499 = vst.msk [vmem:[#allocation6 + $0xe8] sm:$0xff] %vm7469, %v7432
      %7500 = vst.msk [vmem:[#allocation6 + $0xf0] sm:$0xff] %vm7469, %v7434
      %7501 = vst.msk [vmem:[#allocation6 + $0xf8] sm:$0xff] %vm7469, %v7436
      %v7502 = vld [vmem:[%s6922 + $0x3] sm:$0xff]
      %v7503 = vld [vmem:[%s6922 + $0xb] sm:$0xff]
      %v7504 = vld [vmem:[%s6922 + $0x1b] sm:$0xff]
      %v7505 = vld [vmem:[%s6922 + $0x23] sm:$0xff]
      %v7506 = vld [vmem:[%s6922 + $0x33] sm:$0xff]
      %v7507 = vld [vmem:[%s6922 + $0x3b] sm:$0xff]
      %v7508 = vld [vmem:[%s6922 + $0x4b] sm:$0xff]
      %v7509 = vld [vmem:[%s6922 + $0x53] sm:$0xff]
      %v7510 = vld [vmem:[%s6922 + $0x63] sm:$0xff]
      %v7511 = vld [vmem:[%s6922 + $0x6b] sm:$0xff]
      %v7512 = vld [vmem:[%s6922 + $0x7b] sm:$0xff]
      %v7513 = vld [vmem:[%s6922 + $0x83] sm:$0xff]
      %v7514 = vld [vmem:[%s6922 + $0x93] sm:$0xff]
      %v7515 = vld [vmem:[%s6922 + $0x9b] sm:$0xff]
      %v7516 = vld [vmem:[%s6922 + $0xab] sm:$0xff]
      %v7517 = vld [vmem:[%s6922 + $0xb3] sm:$0xff]
      %v7518 = vld [vmem:[%s6922 + $0xc3] sm:$0xff]
      %v7519 = vld [vmem:[%s6922 + $0xcb] sm:$0xff]
      %v7520 = vld [vmem:[%s6922 + $0xdb] sm:$0xff]
      %v7521 = vld [vmem:[%s6922 + $0xe3] sm:$0xff]
      %v7522 = vld [vmem:[%s6922 + $0xf3] sm:$0xff]
      %v7523 = vld [vmem:[%s6922 + $0xfb] sm:$0xff]
      %v7524 = vld [vmem:[%s6922 + $0x10b] sm:$0xff]
      %v7525 = vld [vmem:[%s6922 + $0x113] sm:$0xff]
      %v7526 = vld [vmem:[%s6922 + $0x123] sm:$0xff]
      %v7527 = vld [vmem:[%s6922 + $0x12b] sm:$0xff]
      %v7528 = vld [vmem:[%s6922 + $0x13b] sm:$0xff]
      %v7529 = vld [vmem:[%s6922 + $0x143] sm:$0xff]
      %v7530 = vld [vmem:[%s6922 + $0x153] sm:$0xff]
      %v7531 = vld [vmem:[%s6922 + $0x15b] sm:$0xff]
      %v7532 = vld [vmem:[%s6922 + $0x16b] sm:$0xff]
      %v7533 = vld [vmem:[%s6922 + $0x173] sm:$0xff]
      %7566 = vrot.lane.b32.xlu0 %v7502, 92
      %v7567 = vpop.permute.xlu0 %7566
      %7568 = vrot.lane.b32.xlu0 %v7503, 92
      %v7569 = vpop.permute.xlu0 %7568
      %7570 = vrot.lane.b32.xlu0 %v7504, 92
      %v7571 = vpop.permute.xlu0 %7570
      %7572 = vrot.lane.b32.xlu0 %v7505, 92
      %v7573 = vpop.permute.xlu0 %7572
      %7574 = vrot.lane.b32.xlu0 %v7506, 92
      %v7575 = vpop.permute.xlu0 %7574
      %7576 = vrot.lane.b32.xlu0 %v7507, 92
      %v7577 = vpop.permute.xlu0 %7576
      %7578 = vrot.lane.b32.xlu0 %v7508, 92
      %v7579 = vpop.permute.xlu0 %7578
      %7580 = vrot.lane.b32.xlu0 %v7509, 92
      %v7581 = vpop.permute.xlu0 %7580
      %7582 = vrot.lane.b32.xlu0 %v7510, 92
      %v7583 = vpop.permute.xlu0 %7582
      %7584 = vrot.lane.b32.xlu0 %v7511, 92
      %v7585 = vpop.permute.xlu0 %7584
      %7586 = vrot.lane.b32.xlu0 %v7512, 92
      %v7587 = vpop.permute.xlu0 %7586
      %7588 = vrot.lane.b32.xlu0 %v7513, 92
      %v7589 = vpop.permute.xlu0 %7588
      %7590 = vrot.lane.b32.xlu0 %v7514, 92
      %v7591 = vpop.permute.xlu0 %7590
      %7592 = vrot.lane.b32.xlu0 %v7515, 92
      %v7593 = vpop.permute.xlu0 %7592
      %7594 = vrot.lane.b32.xlu0 %v7516, 92
      %v7595 = vpop.permute.xlu0 %7594
      %7596 = vrot.lane.b32.xlu0 %v7517, 92
      %v7597 = vpop.permute.xlu0 %7596
      %7598 = vrot.lane.b32.xlu0 %v7518, 92
      %v7599 = vpop.permute.xlu0 %7598
      %7600 = vrot.lane.b32.xlu0 %v7519, 92
      %v7601 = vpop.permute.xlu0 %7600
      %7602 = vrot.lane.b32.xlu0 %v7520, 92
      %v7603 = vpop.permute.xlu0 %7602
      %7604 = vrot.lane.b32.xlu0 %v7521, 92
      %v7605 = vpop.permute.xlu0 %7604
      %7606 = vrot.lane.b32.xlu0 %v7522, 92
      %v7607 = vpop.permute.xlu0 %7606
      %7608 = vrot.lane.b32.xlu0 %v7523, 92
      %v7609 = vpop.permute.xlu0 %7608
      %7610 = vrot.lane.b32.xlu0 %v7524, 92
      %v7611 = vpop.permute.xlu0 %7610
      %7612 = vrot.lane.b32.xlu0 %v7525, 92
      %v7613 = vpop.permute.xlu0 %7612
      %7614 = vrot.lane.b32.xlu0 %v7526, 92
      %v7615 = vpop.permute.xlu0 %7614
      %7616 = vrot.lane.b32.xlu0 %v7527, 92
      %v7617 = vpop.permute.xlu0 %7616
      %7618 = vrot.lane.b32.xlu0 %v7528, 92
      %v7619 = vpop.permute.xlu0 %7618
      %7620 = vrot.lane.b32.xlu0 %v7529, 92
      %v7621 = vpop.permute.xlu0 %7620
      %7622 = vrot.lane.b32.xlu0 %v7530, 92
      %v7623 = vpop.permute.xlu0 %7622
      %7624 = vrot.lane.b32.xlu0 %v7531, 92
      %v7625 = vpop.permute.xlu0 %7624
      %7626 = vrot.lane.b32.xlu0 %v7532, 92
      %v7627 = vpop.permute.xlu0 %7626
      %7628 = vrot.lane.b32.xlu0 %v7533, 92
      %v7629 = vpop.permute.xlu0 %7628
      %vm7662 = vcmask 786144
      %7663 = vst.msk [vmem:[#allocation6] sm:$0xff] %vm7662, %v7567
      %7664 = vst.msk [vmem:[#allocation6 + $0x8] sm:$0xff] %vm7662, %v7569
      %7665 = vst.msk [vmem:[#allocation6 + $0x10] sm:$0xff] %vm7662, %v7571
      %7666 = vst.msk [vmem:[#allocation6 + $0x18] sm:$0xff] %vm7662, %v7573
      %7667 = vst.msk [vmem:[#allocation6 + $0x20] sm:$0xff] %vm7662, %v7575
      %7668 = vst.msk [vmem:[#allocation6 + $0x28] sm:$0xff] %vm7662, %v7577
      %7669 = vst.msk [vmem:[#allocation6 + $0x30] sm:$0xff] %vm7662, %v7579
      %7670 = vst.msk [vmem:[#allocation6 + $0x38] sm:$0xff] %vm7662, %v7581
      %7671 = vst.msk [vmem:[#allocation6 + $0x40] sm:$0xff] %vm7662, %v7583
      %7672 = vst.msk [vmem:[#allocation6 + $0x48] sm:$0xff] %vm7662, %v7585
      %7673 = vst.msk [vmem:[#allocation6 + $0x50] sm:$0xff] %vm7662, %v7587
      %7674 = vst.msk [vmem:[#allocation6 + $0x58] sm:$0xff] %vm7662, %v7589
      %7675 = vst.msk [vmem:[#allocation6 + $0x60] sm:$0xff] %vm7662, %v7591
      %7676 = vst.msk [vmem:[#allocation6 + $0x68] sm:$0xff] %vm7662, %v7593
      %7677 = vst.msk [vmem:[#allocation6 + $0x70] sm:$0xff] %vm7662, %v7595
      %7678 = vst.msk [vmem:[#allocation6 + $0x78] sm:$0xff] %vm7662, %v7597
      %7679 = vst.msk [vmem:[#allocation6 + $0x80] sm:$0xff] %vm7662, %v7599
      %7680 = vst.msk [vmem:[#allocation6 + $0x88] sm:$0xff] %vm7662, %v7601
      %7681 = vst.msk [vmem:[#allocation6 + $0x90] sm:$0xff] %vm7662, %v7603
      %7682 = vst.msk [vmem:[#allocation6 + $0x98] sm:$0xff] %vm7662, %v7605
      %7683 = vst.msk [vmem:[#allocation6 + $0xa0] sm:$0xff] %vm7662, %v7607
      %7684 = vst.msk [vmem:[#allocation6 + $0xa8] sm:$0xff] %vm7662, %v7609
      %7685 = vst.msk [vmem:[#allocation6 + $0xb0] sm:$0xff] %vm7662, %v7611
      %7686 = vst.msk [vmem:[#allocation6 + $0xb8] sm:$0xff] %vm7662, %v7613
      %7687 = vst.msk [vmem:[#allocation6 + $0xc0] sm:$0xff] %vm7662, %v7615
      %7688 = vst.msk [vmem:[#allocation6 + $0xc8] sm:$0xff] %vm7662, %v7617
      %7689 = vst.msk [vmem:[#allocation6 + $0xd0] sm:$0xff] %vm7662, %v7619
      %7690 = vst.msk [vmem:[#allocation6 + $0xd8] sm:$0xff] %vm7662, %v7621
      %7691 = vst.msk [vmem:[#allocation6 + $0xe0] sm:$0xff] %vm7662, %v7623
      %7692 = vst.msk [vmem:[#allocation6 + $0xe8] sm:$0xff] %vm7662, %v7625
      %7693 = vst.msk [vmem:[#allocation6 + $0xf0] sm:$0xff] %vm7662, %v7627
      %7694 = vst.msk [vmem:[#allocation6 + $0xf8] sm:$0xff] %vm7662, %v7629
      %v7695 = vld [vmem:[%s6922 + $0x4] sm:$0xff]
      %v7696 = vld [vmem:[%s6922 + $0xc] sm:$0xff]
      %v7697 = vld [vmem:[%s6922 + $0x1c] sm:$0xff]
      %v7698 = vld [vmem:[%s6922 + $0x24] sm:$0xff]
      %v7699 = vld [vmem:[%s6922 + $0x34] sm:$0xff]
      %v7700 = vld [vmem:[%s6922 + $0x3c] sm:$0xff]
      %v7701 = vld [vmem:[%s6922 + $0x4c] sm:$0xff]
      %v7702 = vld [vmem:[%s6922 + $0x54] sm:$0xff]
      %v7703 = vld [vmem:[%s6922 + $0x64] sm:$0xff]
      %v7704 = vld [vmem:[%s6922 + $0x6c] sm:$0xff]
      %v7705 = vld [vmem:[%s6922 + $0x7c] sm:$0xff]
      %v7706 = vld [vmem:[%s6922 + $0x84] sm:$0xff]
      %v7707 = vld [vmem:[%s6922 + $0x94] sm:$0xff]
      %v7708 = vld [vmem:[%s6922 + $0x9c] sm:$0xff]
      %v7709 = vld [vmem:[%s6922 + $0xac] sm:$0xff]
      %v7710 = vld [vmem:[%s6922 + $0xb4] sm:$0xff]
      %v7711 = vld [vmem:[%s6922 + $0xc4] sm:$0xff]
      %v7712 = vld [vmem:[%s6922 + $0xcc] sm:$0xff]
      %v7713 = vld [vmem:[%s6922 + $0xdc] sm:$0xff]
      %v7714 = vld [vmem:[%s6922 + $0xe4] sm:$0xff]
      %v7715 = vld [vmem:[%s6922 + $0xf4] sm:$0xff]
      %v7716 = vld [vmem:[%s6922 + $0xfc] sm:$0xff]
      %v7717 = vld [vmem:[%s6922 + $0x10c] sm:$0xff]
      %v7718 = vld [vmem:[%s6922 + $0x114] sm:$0xff]
      %v7719 = vld [vmem:[%s6922 + $0x124] sm:$0xff]
      %v7720 = vld [vmem:[%s6922 + $0x12c] sm:$0xff]
      %v7721 = vld [vmem:[%s6922 + $0x13c] sm:$0xff]
      %v7722 = vld [vmem:[%s6922 + $0x144] sm:$0xff]
      %v7723 = vld [vmem:[%s6922 + $0x154] sm:$0xff]
      %v7724 = vld [vmem:[%s6922 + $0x15c] sm:$0xff]
      %v7725 = vld [vmem:[%s6922 + $0x16c] sm:$0xff]
      %v7726 = vld [vmem:[%s6922 + $0x174] sm:$0xff]
      %7759 = vrot.lane.b32.xlu0 %v7695, 96
      %v7760 = vpop.permute.xlu0 %7759
      %7761 = vrot.lane.b32.xlu0 %v7696, 96
      %v7762 = vpop.permute.xlu0 %7761
      %7763 = vrot.lane.b32.xlu0 %v7697, 96
      %v7764 = vpop.permute.xlu0 %7763
      %7765 = vrot.lane.b32.xlu0 %v7698, 96
      %v7766 = vpop.permute.xlu0 %7765
      %7767 = vrot.lane.b32.xlu0 %v7699, 96
      %v7768 = vpop.permute.xlu0 %7767
      %7769 = vrot.lane.b32.xlu0 %v7700, 96
      %v7770 = vpop.permute.xlu0 %7769
      %7771 = vrot.lane.b32.xlu0 %v7701, 96
      %v7772 = vpop.permute.xlu0 %7771
      %7773 = vrot.lane.b32.xlu0 %v7702, 96
      %v7774 = vpop.permute.xlu0 %7773
      %7775 = vrot.lane.b32.xlu0 %v7703, 96
      %v7776 = vpop.permute.xlu0 %7775
      %7777 = vrot.lane.b32.xlu0 %v7704, 96
      %v7778 = vpop.permute.xlu0 %7777
      %7779 = vrot.lane.b32.xlu0 %v7705, 96
      %v7780 = vpop.permute.xlu0 %7779
      %7781 = vrot.lane.b32.xlu0 %v7706, 96
      %v7782 = vpop.permute.xlu0 %7781
      %7783 = vrot.lane.b32.xlu0 %v7707, 96
      %v7784 = vpop.permute.xlu0 %7783
      %7785 = vrot.lane.b32.xlu0 %v7708, 96
      %v7786 = vpop.permute.xlu0 %7785
      %7787 = vrot.lane.b32.xlu0 %v7709, 96
      %v7788 = vpop.permute.xlu0 %7787
      %7789 = vrot.lane.b32.xlu0 %v7710, 96
      %v7790 = vpop.permute.xlu0 %7789
      %7791 = vrot.lane.b32.xlu0 %v7711, 96
      %v7792 = vpop.permute.xlu0 %7791
      %7793 = vrot.lane.b32.xlu0 %v7712, 96
      %v7794 = vpop.permute.xlu0 %7793
      %7795 = vrot.lane.b32.xlu0 %v7713, 96
      %v7796 = vpop.permute.xlu0 %7795
      %7797 = vrot.lane.b32.xlu0 %v7714, 96
      %v7798 = vpop.permute.xlu0 %7797
      %7799 = vrot.lane.b32.xlu0 %v7715, 96
      %v7800 = vpop.permute.xlu0 %7799
      %7801 = vrot.lane.b32.xlu0 %v7716, 96
      %v7802 = vpop.permute.xlu0 %7801
      %7803 = vrot.lane.b32.xlu0 %v7717, 96
      %v7804 = vpop.permute.xlu0 %7803
      %7805 = vrot.lane.b32.xlu0 %v7718, 96
      %v7806 = vpop.permute.xlu0 %7805
      %7807 = vrot.lane.b32.xlu0 %v7719, 96
      %v7808 = vpop.permute.xlu0 %7807
      %7809 = vrot.lane.b32.xlu0 %v7720, 96
      %v7810 = vpop.permute.xlu0 %7809
      %7811 = vrot.lane.b32.xlu0 %v7721, 96
      %v7812 = vpop.permute.xlu0 %7811
      %7813 = vrot.lane.b32.xlu0 %v7722, 96
      %v7814 = vpop.permute.xlu0 %7813
      %7815 = vrot.lane.b32.xlu0 %v7723, 96
      %v7816 = vpop.permute.xlu0 %7815
      %7817 = vrot.lane.b32.xlu0 %v7724, 96
      %v7818 = vpop.permute.xlu0 %7817
      %7819 = vrot.lane.b32.xlu0 %v7725, 96
      %v7820 = vpop.permute.xlu0 %7819
      %7821 = vrot.lane.b32.xlu0 %v7726, 96
      %v7822 = vpop.permute.xlu0 %7821
      %vm7855 = vcmask 818944
      %7856 = vst.msk [vmem:[#allocation6] sm:$0xff] %vm7855, %v7760
      %7857 = vst.msk [vmem:[#allocation6 + $0x8] sm:$0xff] %vm7855, %v7762
      %7858 = vst.msk [vmem:[#allocation6 + $0x10] sm:$0xff] %vm7855, %v7764
      %7859 = vst.msk [vmem:[#allocation6 + $0x18] sm:$0xff] %vm7855, %v7766
      %7860 = vst.msk [vmem:[#allocation6 + $0x20] sm:$0xff] %vm7855, %v7768
      %7861 = vst.msk [vmem:[#allocation6 + $0x28] sm:$0xff] %vm7855, %v7770
      %7862 = vst.msk [vmem:[#allocation6 + $0x30] sm:$0xff] %vm7855, %v7772
      %7863 = vst.msk [vmem:[#allocation6 + $0x38] sm:$0xff] %vm7855, %v7774
      %7864 = vst.msk [vmem:[#allocation6 + $0x40] sm:$0xff] %vm7855, %v7776
      %7865 = vst.msk [vmem:[#allocation6 + $0x48] sm:$0xff] %vm7855, %v7778
      %7866 = vst.msk [vmem:[#allocation6 + $0x50] sm:$0xff] %vm7855, %v7780
      %7867 = vst.msk [vmem:[#allocation6 + $0x58] sm:$0xff] %vm7855, %v7782
      %7868 = vst.msk [vmem:[#allocation6 + $0x60] sm:$0xff] %vm7855, %v7784
      %7869 = vst.msk [vmem:[#allocation6 + $0x68] sm:$0xff] %vm7855, %v7786
      %7870 = vst.msk [vmem:[#allocation6 + $0x70] sm:$0xff] %vm7855, %v7788
      %7871 = vst.msk [vmem:[#allocation6 + $0x78] sm:$0xff] %vm7855, %v7790
      %7872 = vst.msk [vmem:[#allocation6 + $0x80] sm:$0xff] %vm7855, %v7792
      %7873 = vst.msk [vmem:[#allocation6 + $0x88] sm:$0xff] %vm7855, %v7794
      %7874 = vst.msk [vmem:[#allocation6 + $0x90] sm:$0xff] %vm7855, %v7796
      %7875 = vst.msk [vmem:[#allocation6 + $0x98] sm:$0xff] %vm7855, %v7798
      %7876 = vst.msk [vmem:[#allocation6 + $0xa0] sm:$0xff] %vm7855, %v7800
      %7877 = vst.msk [vmem:[#allocation6 + $0xa8] sm:$0xff] %vm7855, %v7802
      %7878 = vst.msk [vmem:[#allocation6 + $0xb0] sm:$0xff] %vm7855, %v7804
      %7879 = vst.msk [vmem:[#allocation6 + $0xb8] sm:$0xff] %vm7855, %v7806
      %7880 = vst.msk [vmem:[#allocation6 + $0xc0] sm:$0xff] %vm7855, %v7808
      %7881 = vst.msk [vmem:[#allocation6 + $0xc8] sm:$0xff] %vm7855, %v7810
      %7882 = vst.msk [vmem:[#allocation6 + $0xd0] sm:$0xff] %vm7855, %v7812
      %7883 = vst.msk [vmem:[#allocation6 + $0xd8] sm:$0xff] %vm7855, %v7814
      %7884 = vst.msk [vmem:[#allocation6 + $0xe0] sm:$0xff] %vm7855, %v7816
      %7885 = vst.msk [vmem:[#allocation6 + $0xe8] sm:$0xff] %vm7855, %v7818
      %7886 = vst.msk [vmem:[#allocation6 + $0xf0] sm:$0xff] %vm7855, %v7820
      %7887 = vst.msk [vmem:[#allocation6 + $0xf8] sm:$0xff] %vm7855, %v7822
      %v7888 = vld [vmem:[%s9] sm:$0xff]
      %v7889 = vld [vmem:[#allocation6] sm:$0xff]
      %v7890 = vld [vmem:[#allocation6 + $0x8] sm:$0xff]
      %v7891 = vld [vmem:[#allocation6 + $0x10] sm:$0xff]
      %v7892 = vld [vmem:[#allocation6 + $0x18] sm:$0xff]
      %v7893 = vld [vmem:[#allocation6 + $0x20] sm:$0xff]
      %v7894 = vld [vmem:[#allocation6 + $0x28] sm:$0xff]
      %v7895 = vld [vmem:[#allocation6 + $0x30] sm:$0xff]
      %v7896 = vld [vmem:[#allocation6 + $0x38] sm:$0xff]
      %v7897 = vld [vmem:[#allocation6 + $0x40] sm:$0xff]
      %v7898 = vld [vmem:[#allocation6 + $0x48] sm:$0xff]
      %v7899 = vld [vmem:[#allocation6 + $0x50] sm:$0xff]
      %v7900 = vld [vmem:[#allocation6 + $0x58] sm:$0xff]
      %v7901 = vld [vmem:[#allocation6 + $0x60] sm:$0xff]
      %v7902 = vld [vmem:[#allocation6 + $0x68] sm:$0xff]
      %v7903 = vld [vmem:[#allocation6 + $0x70] sm:$0xff]
      %v7904 = vld [vmem:[#allocation6 + $0x78] sm:$0xff]
      %v7905 = vld [vmem:[#allocation6 + $0x80] sm:$0xff]
      %v7906 = vld [vmem:[#allocation6 + $0x88] sm:$0xff]
      %v7907 = vld [vmem:[#allocation6 + $0x90] sm:$0xff]
      %v7908 = vld [vmem:[#allocation6 + $0x98] sm:$0xff]
      %v7909 = vld [vmem:[#allocation6 + $0xa0] sm:$0xff]
      %v7910 = vld [vmem:[#allocation6 + $0xa8] sm:$0xff]
      %v7911 = vld [vmem:[#allocation6 + $0xb0] sm:$0xff]
      %v7912 = vld [vmem:[#allocation6 + $0xb8] sm:$0xff]
      %v7913 = vld [vmem:[#allocation6 + $0xc0] sm:$0xff]
      %v7914 = vld [vmem:[#allocation6 + $0xc8] sm:$0xff]
      %v7915 = vld [vmem:[#allocation6 + $0xd0] sm:$0xff]
      %v7916 = vld [vmem:[#allocation6 + $0xd8] sm:$0xff]
      %v7917 = vld [vmem:[#allocation6 + $0xe0] sm:$0xff]
      %v7918 = vld [vmem:[#allocation6 + $0xe8] sm:$0xff]
      %v7919 = vld [vmem:[#allocation6 + $0xf0] sm:$0xff]
      %v7920 = vld [vmem:[#allocation6 + $0xf8] sm:$0xff]
      %v7921 = vld [vmem:[%s10] sm:$0xff]
      %7923 = vset.pattern.permute.xlu0 0
      %7924 = vperm.xlu0 %7923, %v7921
      %v7925 = vpop.permute.xlu0 %7924
      %vm7927 = vcmask 818176
      %v7929 = vsel %vm7927, %v7888, 0
      %v7932 = vsel %vm7927, %v7889, 0
      %v7935 = vsel %vm7927, %v7890, 0
      %v7938 = vsel %vm7927, %v7891, 0
      %v7941 = vsel %vm7927, %v7892, 0
      %v7944 = vsel %vm7927, %v7893, 0
      %v7947 = vsel %vm7927, %v7894, 0
      %v7950 = vsel %vm7927, %v7895, 0
      %v7953 = vsel %vm7927, %v7896, 0
      %v7956 = vsel %vm7927, %v7897, 0
      %v7959 = vsel %vm7927, %v7898, 0
      %v7962 = vsel %vm7927, %v7899, 0
      %v7965 = vsel %vm7927, %v7900, 0
      %v7968 = vsel %vm7927, %v7901, 0
      %v7971 = vsel %vm7927, %v7902, 0
      %v7974 = vsel %vm7927, %v7903, 0
      %v7977 = vsel %vm7927, %v7904, 0
      %v7980 = vsel %vm7927, %v7905, 0
      %v7983 = vsel %vm7927, %v7906, 0
      %v7986 = vsel %vm7927, %v7907, 0
      %v7989 = vsel %vm7927, %v7908, 0
      %v7992 = vsel %vm7927, %v7909, 0
      %v7995 = vsel %vm7927, %v7910, 0
      %v7998 = vsel %vm7927, %v7911, 0
      %v8001 = vsel %vm7927, %v7912, 0
      %v8004 = vsel %vm7927, %v7913, 0
      %v8007 = vsel %vm7927, %v7914, 0
      %v8010 = vsel %vm7927, %v7915, 0
      %v8013 = vsel %vm7927, %v7916, 0
      %v8016 = vsel %vm7927, %v7917, 0
      %v8019 = vsel %vm7927, %v7918, 0
      %v8022 = vsel %vm7927, %v7919, 0
      %v8025 = vsel %vm7927, %v7920, 0
      %8027 = vmatprep.subr.mxu0 0.0
      %8028 = vmatpush1.xpose.msra.mxu0 %v7932
      %8029 = vmatprep.subr.mxu0 0.0
      %8030 = vmatpush1.xpose.msra.mxu0 %v7935
      %8031 = vmatprep.subr.mxu0 0.0
      %8032 = vmatpush1.xpose.msra.mxu0 %v7938
      %8033 = vmatprep.subr.mxu0 0.0
      %8034 = vmatpush1.xpose.msra.mxu0 %v7941
      %8035 = vmatprep.subr.mxu0 0.0
      %8036 = vmatpush1.xpose.msra.mxu0 %v7944
      %8037 = vmatprep.subr.mxu0 0.0
      %8038 = vmatpush1.xpose.msra.mxu0 %v7947
      %8039 = vmatprep.subr.mxu0 0.0
      %8040 = vmatpush1.xpose.msra.mxu0 %v7950
      %8041 = vmatprep.subr.mxu0 0.0
      %8042 = vmatpush1.xpose.msra.mxu0 %v7953
      %8043 = vmatprep.subr.mxu0 0.0
      %8044 = vmatpush1.xpose.msra.mxu0 %v7956
      %8045 = vmatprep.subr.mxu0 0.0
      %8046 = vmatpush1.xpose.msra.mxu0 %v7959
      %8047 = vmatprep.subr.mxu0 0.0
      %8048 = vmatpush1.xpose.msra.mxu0 %v7962
      %8049 = vmatprep.subr.mxu0 0.0
      %8050 = vmatpush1.xpose.msra.mxu0 %v7965
      %8051 = vmatprep.subr.mxu0 0.0
      %8052 = vmatpush1.xpose.msra.mxu0 %v7968
      %8053 = vmatprep.subr.mxu0 0.0
      %8054 = vmatpush1.xpose.msra.mxu0 %v7971
      %8055 = vmatprep.subr.mxu0 0.0
      %8056 = vmatpush1.xpose.msra.mxu0 %v7974
      %8057 = vmatprep.subr.mxu0 0.0
      %8058 = vmatpush1.xpose.msra.mxu0 %v7977
      %8059 = vmatprep.subr.mxu0 0.0
      %8060 = vmatpush1.xpose.msra.mxu0 %v7980
      %8061 = vmatprep.subr.mxu0 0.0
      %8062 = vmatpush1.xpose.msra.mxu0 %v7983
      %8063 = vmatprep.subr.mxu0 0.0
      %8064 = vmatpush1.xpose.msra.mxu0 %v7986
      %8065 = vmatprep.subr.mxu0 0.0
      %8066 = vmatpush1.xpose.msra.mxu0 %v7989
      %8067 = vmatprep.subr.mxu0 0.0
      %8068 = vmatpush1.xpose.msra.mxu0 %v7992
      %8069 = vmatprep.subr.mxu0 0.0
      %8070 = vmatpush1.xpose.msra.mxu0 %v7995
      %8071 = vmatprep.subr.mxu0 0.0
      %8072 = vmatpush1.xpose.msra.mxu0 %v7998
      %8073 = vmatprep.subr.mxu0 0.0
      %8074 = vmatpush1.xpose.msra.mxu0 %v8001
      %8075 = vmatprep.subr.mxu0 0.0
      %8076 = vmatpush1.xpose.msra.mxu0 %v8004
      %8077 = vmatprep.subr.mxu0 0.0
      %8078 = vmatpush1.xpose.msra.mxu0 %v8007
      %8079 = vmatprep.subr.mxu0 0.0
      %8080 = vmatpush1.xpose.msra.mxu0 %v8010
      %8081 = vmatprep.subr.mxu0 0.0
      %8082 = vmatpush1.xpose.msra.mxu0 %v8013
      %8083 = vmatprep.subr.mxu0 0.0
      %8084 = vmatpush1.xpose.msra.mxu0 %v8016
      %8085 = vmatprep.subr.mxu0 0.0
      %8086 = vmatpush1.xpose.msra.mxu0 %v8019
      %8087 = vmatprep.subr.mxu0 0.0
      %8088 = vmatpush1.xpose.msra.mxu0 %v8022
      %8089 = vmatprep.subr.mxu0 0.0
      %8090 = vmatpush1.xpose.msra.mxu0 %v8025
      %8091 = vmatprep.mubr.f32.mxu0 0.0
      %8092 = vmatmul.mubr.f32.gmra.mrb[0].mxu0 %v7929
      %v8093 = vpop.f32.mrb[0].mxu0
      %v8094 = vadd.f32 %v7925, %v8093
      %v8095 = vpop.f32.mrb[0].mxu0
      %v8096 = vadd.f32 %v7925, %v8095
      %8097 = vdwg.mxu0
      %v8098 = vmax.f32 %v8094, 0.0
      %v8099 = vmax.f32 %v8096, 0.0
      %8100 = vst [vmem:[%s440 + $0x20] sm:$0xff] %v8098
      %8101 = vst [vmem:[%s440 + $0x28] sm:$0xff] %v8099
      %8102 = vst.msk [vmem:[#allocation4] sm:$0xff] %vm480, -inf
      %8103 = vst.msk [vmem:[#allocation4 + $0x8] sm:$0xff] %vm480, -inf
      %8104 = vst.msk [vmem:[#allocation4 + $0x10] sm:$0x3] %vm926, -inf
      %8105 = vst.msk [vmem:[#allocation4 + $0x18] sm:$0xff] %vm480, -inf
      %8106 = vst.msk [vmem:[#allocation4 + $0x20] sm:$0xff] %vm480, -inf
      %8107 = vst.msk [vmem:[#allocation4 + $0x28] sm:$0x3] %vm926, -inf
      %8108 = vst.msk [vmem:[#allocation4 + $0x30] sm:$0xff] %vm480, -inf
      %8109 = vst.msk [vmem:[#allocation4 + $0x38] sm:$0xff] %vm480, -inf
      %8110 = vst.msk [vmem:[#allocation4 + $0x40] sm:$0x3] %vm926, -inf
      %8111 = vst.msk [vmem:[#allocation4 + $0x48] sm:$0xff] %vm480, -inf
      %8112 = vst.msk [vmem:[#allocation4 + $0x50] sm:$0xff] %vm480, -inf
      %8113 = vst.msk [vmem:[#allocation4 + $0x58] sm:$0x3] %vm926, -inf
      %8114 = vst.msk [vmem:[#allocation4 + $0x60] sm:$0xff] %vm480, -inf
      %8115 = vst.msk [vmem:[#allocation4 + $0x68] sm:$0xff] %vm480, -inf
      %8116 = vst.msk [vmem:[#allocation4 + $0x70] sm:$0x3] %vm926, -inf
      %8117 = vst.msk [vmem:[#allocation4 + $0x78] sm:$0xff] %vm480, -inf
      %8118 = vst.msk [vmem:[#allocation4 + $0x80] sm:$0xff] %vm480, -inf
      %8119 = vst.msk [vmem:[#allocation4 + $0x88] sm:$0x3] %vm926, -inf
      %8120 = vst.msk [vmem:[#allocation4 + $0x90] sm:$0xff] %vm480, -inf
      %8121 = vst.msk [vmem:[#allocation4 + $0x98] sm:$0xff] %vm480, -inf
      %8122 = vst.msk [vmem:[#allocation4 + $0xa0] sm:$0x3] %vm926, -inf
      %8123 = vst.msk [vmem:[#allocation4 + $0xa8] sm:$0xff] %vm480, -inf
      %8124 = vst.msk [vmem:[#allocation4 + $0xb0] sm:$0xff] %vm480, -inf
      %8125 = vst.msk [vmem:[#allocation4 + $0xb8] sm:$0x3] %vm926, -inf
      %8126 = vst.msk [vmem:[#allocation4 + $0xc0] sm:$0xff] %vm480, -inf
      %8127 = vst.msk [vmem:[#allocation4 + $0xc8] sm:$0xff] %vm480, -inf
      %8128 = vst.msk [vmem:[#allocation4 + $0xd0] sm:$0x3] %vm926, -inf
      %8129 = vst.msk [vmem:[#allocation4 + $0xd8] sm:$0xff] %vm480, -inf
      %8130 = vst.msk [vmem:[#allocation4 + $0xe0] sm:$0xff] %vm480, -inf
      %8131 = vst.msk [vmem:[#allocation4 + $0xe8] sm:$0x3] %vm926, -inf
      %8132 = vst.msk [vmem:[#allocation4 + $0xf0] sm:$0xff] %vm480, -inf
      %8133 = vst.msk [vmem:[#allocation4 + $0xf8] sm:$0xff] %vm480, -inf
      %8134 = vst.msk [vmem:[#allocation4 + $0x100] sm:$0x3] %vm926, -inf
      %8135 = vst.msk [vmem:[#allocation4 + $0x108] sm:$0xff] %vm480, -inf
      %8136 = vst.msk [vmem:[#allocation4 + $0x110] sm:$0xff] %vm480, -inf
      %8137 = vst.msk [vmem:[#allocation4 + $0x118] sm:$0x3] %vm926, -inf
      %8138 = vst.msk [vmem:[#allocation4 + $0x120] sm:$0xff] %vm480, -inf
      %8139 = vst.msk [vmem:[#allocation4 + $0x128] sm:$0xff] %vm480, -inf
      %8140 = vst.msk [vmem:[#allocation4 + $0x130] sm:$0x3] %vm926, -inf
      %8141 = vst.msk [vmem:[#allocation4 + $0x138] sm:$0xff] %vm480, -inf
      %8142 = vst.msk [vmem:[#allocation4 + $0x140] sm:$0xff] %vm480, -inf
      %8143 = vst.msk [vmem:[#allocation4 + $0x148] sm:$0x3] %vm926, -inf
      %8144 = vst.msk [vmem:[#allocation4 + $0x150] sm:$0xff] %vm480, -inf
      %8145 = vst.msk [vmem:[#allocation4 + $0x158] sm:$0xff] %vm480, -inf
      %8146 = vst.msk [vmem:[#allocation4 + $0x160] sm:$0x3] %vm926, -inf
      %8147 = vst.msk [vmem:[#allocation4 + $0x168] sm:$0xff] %vm480, -inf
      %8148 = vst.msk [vmem:[#allocation4 + $0x170] sm:$0xff] %vm480, -inf
      %8149 = vst.msk [vmem:[#allocation4 + $0x178] sm:$0x3] %vm926, -inf
      %8150 = vst.msk [vmem:[#allocation4 + $0x180] sm:$0xff] %vm480, -inf
      %8151 = vst.msk [vmem:[#allocation4 + $0x188] sm:$0xff] %vm480, -inf
      %8152 = vst.msk [vmem:[#allocation4 + $0x190] sm:$0x3] %vm926, -inf
      %8153 = vst.msk [vmem:[#allocation4 + $0x198] sm:$0xff] %vm480, -inf
      %8154 = vst.msk [vmem:[#allocation4 + $0x1a0] sm:$0xff] %vm480, -inf
      %8155 = vst.msk [vmem:[#allocation4 + $0x1a8] sm:$0x3] %vm926, -inf
      %s8156 = scalar_lea.vmem [#allocation4], 24
      %8157 = vst.msk [vmem:[%s8156 + $0x1] sm:$0xff] %vm480, %v441
      %8158 = vst.msk [vmem:[%s8156 + $0x9] sm:$0xff] %vm480, %v442
      %8159 = vst.msk [vmem:[%s8156 + $0x19] sm:$0xff] %vm480, %v443
      %8160 = vst.msk [vmem:[%s8156 + $0x21] sm:$0xff] %vm480, %v444
      %8161 = vst.msk [vmem:[%s8156 + $0x31] sm:$0xff] %vm480, %v445
      %8162 = vst.msk [vmem:[%s8156 + $0x39] sm:$0xff] %vm480, %v446
      %8163 = vst.msk [vmem:[%s8156 + $0x49] sm:$0xff] %vm480, %v447
      %8164 = vst.msk [vmem:[%s8156 + $0x51] sm:$0xff] %vm480, %v448
      %8165 = vst.msk [vmem:[%s8156 + $0x61] sm:$0xff] %vm480, %v449
      %8166 = vst.msk [vmem:[%s8156 + $0x69] sm:$0xff] %vm480, %v450
      %8167 = vst.msk [vmem:[%s8156 + $0x79] sm:$0xff] %vm480, %v451
      %8168 = vst.msk [vmem:[%s8156 + $0x81] sm:$0xff] %vm480, %v452
      %8169 = vst.msk [vmem:[%s8156 + $0x91] sm:$0xff] %vm480, %v453
      %8170 = vst.msk [vmem:[%s8156 + $0x99] sm:$0xff] %vm480, %v454
      %8171 = vst.msk [vmem:[%s8156 + $0xa9] sm:$0xff] %vm480, %v455
      %8172 = vst.msk [vmem:[%s8156 + $0xb1] sm:$0xff] %vm480, %v456
      %8173 = vst.msk [vmem:[%s8156 + $0xc1] sm:$0xff] %vm480, %v457
      %8174 = vst.msk [vmem:[%s8156 + $0xc9] sm:$0xff] %vm480, %v458
      %8175 = vst.msk [vmem:[%s8156 + $0xd9] sm:$0xff] %vm480, %v459
      %8176 = vst.msk [vmem:[%s8156 + $0xe1] sm:$0xff] %vm480, %v460
      %8177 = vst.msk [vmem:[%s8156 + $0xf1] sm:$0xff] %vm480, %v461
      %8178 = vst.msk [vmem:[%s8156 + $0xf9] sm:$0xff] %vm480, %v462
      %8179 = vst.msk [vmem:[%s8156 + $0x109] sm:$0xff] %vm480, %v463
      %8180 = vst.msk [vmem:[%s8156 + $0x111] sm:$0xff] %vm480, %v464
      %8181 = vst.msk [vmem:[%s8156 + $0x121] sm:$0xff] %vm480, %v465
      %8182 = vst.msk [vmem:[%s8156 + $0x129] sm:$0xff] %vm480, %v466
      %8183 = vst.msk [vmem:[%s8156 + $0x139] sm:$0xff] %vm480, %v467
      %8184 = vst.msk [vmem:[%s8156 + $0x141] sm:$0xff] %vm480, %v468
      %8185 = vst.msk [vmem:[%s8156 + $0x151] sm:$0xff] %vm480, %v469
      %8186 = vst.msk [vmem:[%s8156 + $0x159] sm:$0xff] %vm480, %v470
      %8187 = vst.msk [vmem:[%s8156 + $0x169] sm:$0xff] %vm480, %v471
      %8188 = vst.msk [vmem:[%s8156 + $0x171] sm:$0xff] %vm480, %v472
      %v8189 = vld [vmem:[#allocation4] sm:$0xff]
      %v8190 = vld [vmem:[#allocation4 + $0x8] sm:$0xff]
      %v8191 = vld [vmem:[#allocation4 + $0x18] sm:$0xff]
      %v8192 = vld [vmem:[#allocation4 + $0x20] sm:$0xff]
      %v8193 = vld [vmem:[#allocation4 + $0x30] sm:$0xff]
      %v8194 = vld [vmem:[#allocation4 + $0x38] sm:$0xff]
      %v8195 = vld [vmem:[#allocation4 + $0x48] sm:$0xff]
      %v8196 = vld [vmem:[#allocation4 + $0x50] sm:$0xff]
      %v8197 = vld [vmem:[#allocation4 + $0x60] sm:$0xff]
      %v8198 = vld [vmem:[#allocation4 + $0x68] sm:$0xff]
      %v8199 = vld [vmem:[#allocation4 + $0x78] sm:$0xff]
      %v8200 = vld [vmem:[#allocation4 + $0x80] sm:$0xff]
      %v8201 = vld [vmem:[#allocation4 + $0x90] sm:$0xff]
      %v8202 = vld [vmem:[#allocation4 + $0x98] sm:$0xff]
      %v8203 = vld [vmem:[#allocation4 + $0xa8] sm:$0xff]
      %v8204 = vld [vmem:[#allocation4 + $0xb0] sm:$0xff]
      %v8205 = vld [vmem:[#allocation4 + $0xc0] sm:$0xff]
      %v8206 = vld [vmem:[#allocation4 + $0xc8] sm:$0xff]
      %v8207 = vld [vmem:[#allocation4 + $0xd8] sm:$0xff]
      %v8208 = vld [vmem:[#allocation4 + $0xe0] sm:$0xff]
      %v8209 = vld [vmem:[#allocation4 + $0xf0] sm:$0xff]
      %v8210 = vld [vmem:[#allocation4 + $0xf8] sm:$0xff]
      %v8211 = vld [vmem:[#allocation4 + $0x108] sm:$0xff]
      %v8212 = vld [vmem:[#allocation4 + $0x110] sm:$0xff]
      %v8213 = vld [vmem:[#allocation4 + $0x120] sm:$0xff]
      %v8214 = vld [vmem:[#allocation4 + $0x128] sm:$0xff]
      %v8215 = vld [vmem:[#allocation4 + $0x138] sm:$0xff]
      %v8216 = vld [vmem:[#allocation4 + $0x140] sm:$0xff]
      %v8217 = vld [vmem:[#allocation4 + $0x150] sm:$0xff]
      %v8218 = vld [vmem:[#allocation4 + $0x158] sm:$0xff]
      %v8219 = vld [vmem:[#allocation4 + $0x168] sm:$0xff]
      %v8220 = vld [vmem:[#allocation4 + $0x170] sm:$0xff]
      %v8221 = vld [vmem:[#allocation4 + $0x1] sm:$0xff]
      %v8222 = vld [vmem:[#allocation4 + $0x9] sm:$0xff]
      %v8223 = vld [vmem:[#allocation4 + $0x19] sm:$0xff]
      %v8224 = vld [vmem:[#allocation4 + $0x21] sm:$0xff]
      %v8225 = vld [vmem:[#allocation4 + $0x31] sm:$0xff]
      %v8226 = vld [vmem:[#allocation4 + $0x39] sm:$0xff]
      %v8227 = vld [vmem:[#allocation4 + $0x49] sm:$0xff]
      %v8228 = vld [vmem:[#allocation4 + $0x51] sm:$0xff]
      %v8229 = vld [vmem:[#allocation4 + $0x61] sm:$0xff]
      %v8230 = vld [vmem:[#allocation4 + $0x69] sm:$0xff]
      %v8231 = vld [vmem:[#allocation4 + $0x79] sm:$0xff]
      %v8232 = vld [vmem:[#allocation4 + $0x81] sm:$0xff]
      %v8233 = vld [vmem:[#allocation4 + $0x91] sm:$0xff]
      %v8234 = vld [vmem:[#allocation4 + $0x99] sm:$0xff]
      %v8235 = vld [vmem:[#allocation4 + $0xa9] sm:$0xff]
      %v8236 = vld [vmem:[#allocation4 + $0xb1] sm:$0xff]
      %v8237 = vld [vmem:[#allocation4 + $0xc1] sm:$0xff]
      %v8238 = vld [vmem:[#allocation4 + $0xc9] sm:$0xff]
      %v8239 = vld [vmem:[#allocation4 + $0xd9] sm:$0xff]
      %v8240 = vld [vmem:[#allocation4 + $0xe1] sm:$0xff]
      %v8241 = vld [vmem:[#allocation4 + $0xf1] sm:$0xff]
      %v8242 = vld [vmem:[#allocation4 + $0xf9] sm:$0xff]
      %v8243 = vld [vmem:[#allocation4 + $0x109] sm:$0xff]
      %v8244 = vld [vmem:[#allocation4 + $0x111] sm:$0xff]
      %v8245 = vld [vmem:[#allocation4 + $0x121] sm:$0xff]
      %v8246 = vld [vmem:[#allocation4 + $0x129] sm:$0xff]
      %v8247 = vld [vmem:[#allocation4 + $0x139] sm:$0xff]
      %v8248 = vld [vmem:[#allocation4 + $0x141] sm:$0xff]
      %v8249 = vld [vmem:[#allocation4 + $0x151] sm:$0xff]
      %v8250 = vld [vmem:[#allocation4 + $0x159] sm:$0xff]
      %v8251 = vld [vmem:[#allocation4 + $0x169] sm:$0xff]
      %v8252 = vld [vmem:[#allocation4 + $0x171] sm:$0xff]
      %v8253 = vmax.f32 %v8189, %v8221
      %v8254 = vmax.f32 %v8190, %v8222
      %v8255 = vmax.f32 %v8191, %v8223
      %v8256 = vmax.f32 %v8192, %v8224
      %v8257 = vmax.f32 %v8193, %v8225
      %v8258 = vmax.f32 %v8194, %v8226
      %v8259 = vmax.f32 %v8195, %v8227
      %v8260 = vmax.f32 %v8196, %v8228
      %v8261 = vmax.f32 %v8197, %v8229
      %v8262 = vmax.f32 %v8198, %v8230
      %v8263 = vmax.f32 %v8199, %v8231
      %v8264 = vmax.f32 %v8200, %v8232
      %v8265 = vmax.f32 %v8201, %v8233
      %v8266 = vmax.f32 %v8202, %v8234
      %v8267 = vmax.f32 %v8203, %v8235
      %v8268 = vmax.f32 %v8204, %v8236
      %v8269 = vmax.f32 %v8205, %v8237
      %v8270 = vmax.f32 %v8206, %v8238
      %v8271 = vmax.f32 %v8207, %v8239
      %v8272 = vmax.f32 %v8208, %v8240
      %v8273 = vmax.f32 %v8209, %v8241
      %v8274 = vmax.f32 %v8210, %v8242
      %v8275 = vmax.f32 %v8211, %v8243
      %v8276 = vmax.f32 %v8212, %v8244
      %v8277 = vmax.f32 %v8213, %v8245
      %v8278 = vmax.f32 %v8214, %v8246
      %v8279 = vmax.f32 %v8215, %v8247
      %v8280 = vmax.f32 %v8216, %v8248
      %v8281 = vmax.f32 %v8217, %v8249
      %v8282 = vmax.f32 %v8218, %v8250
      %v8283 = vmax.f32 %v8219, %v8251
      %v8284 = vmax.f32 %v8220, %v8252
      %v8285 = vld [vmem:[#allocation4 + $0x2] sm:$0xff]
      %v8286 = vld [vmem:[#allocation4 + $0xa] sm:$0xff]
      %v8287 = vld [vmem:[#allocation4 + $0x1a] sm:$0xff]
      %v8288 = vld [vmem:[#allocation4 + $0x22] sm:$0xff]
      %v8289 = vld [vmem:[#allocation4 + $0x32] sm:$0xff]
      %v8290 = vld [vmem:[#allocation4 + $0x3a] sm:$0xff]
      %v8291 = vld [vmem:[#allocation4 + $0x4a] sm:$0xff]
      %v8292 = vld [vmem:[#allocation4 + $0x52] sm:$0xff]
      %v8293 = vld [vmem:[#allocation4 + $0x62] sm:$0xff]
      %v8294 = vld [vmem:[#allocation4 + $0x6a] sm:$0xff]
      %v8295 = vld [vmem:[#allocation4 + $0x7a] sm:$0xff]
      %v8296 = vld [vmem:[#allocation4 + $0x82] sm:$0xff]
      %v8297 = vld [vmem:[#allocation4 + $0x92] sm:$0xff]
      %v8298 = vld [vmem:[#allocation4 + $0x9a] sm:$0xff]
      %v8299 = vld [vmem:[#allocation4 + $0xaa] sm:$0xff]
      %v8300 = vld [vmem:[#allocation4 + $0xb2] sm:$0xff]
      %v8301 = vld [vmem:[#allocation4 + $0xc2] sm:$0xff]
      %v8302 = vld [vmem:[#allocation4 + $0xca] sm:$0xff]
      %v8303 = vld [vmem:[#allocation4 + $0xda] sm:$0xff]
      %v8304 = vld [vmem:[#allocation4 + $0xe2] sm:$0xff]
      %v8305 = vld [vmem:[#allocation4 + $0xf2] sm:$0xff]
      %v8306 = vld [vmem:[#allocation4 + $0xfa] sm:$0xff]
      %v8307 = vld [vmem:[#allocation4 + $0x10a] sm:$0xff]
      %v8308 = vld [vmem:[#allocation4 + $0x112] sm:$0xff]
      %v8309 = vld [vmem:[#allocation4 + $0x122] sm:$0xff]
      %v8310 = vld [vmem:[#allocation4 + $0x12a] sm:$0xff]
      %v8311 = vld [vmem:[#allocation4 + $0x13a] sm:$0xff]
      %v8312 = vld [vmem:[#allocation4 + $0x142] sm:$0xff]
      %v8313 = vld [vmem:[#allocation4 + $0x152] sm:$0xff]
      %v8314 = vld [vmem:[#allocation4 + $0x15a] sm:$0xff]
      %v8315 = vld [vmem:[#allocation4 + $0x16a] sm:$0xff]
      %v8316 = vld [vmem:[#allocation4 + $0x172] sm:$0xff]
      %v8317 = vmax.f32 %v8253, %v8285
      %v8318 = vmax.f32 %v8254, %v8286
      %v8319 = vmax.f32 %v8255, %v8287
      %v8320 = vmax.f32 %v8256, %v8288
      %v8321 = vmax.f32 %v8257, %v8289
      %v8322 = vmax.f32 %v8258, %v8290
      %v8323 = vmax.f32 %v8259, %v8291
      %v8324 = vmax.f32 %v8260, %v8292
      %v8325 = vmax.f32 %v8261, %v8293
      %v8326 = vmax.f32 %v8262, %v8294
      %v8327 = vmax.f32 %v8263, %v8295
      %v8328 = vmax.f32 %v8264, %v8296
      %v8329 = vmax.f32 %v8265, %v8297
      %v8330 = vmax.f32 %v8266, %v8298
      %v8331 = vmax.f32 %v8267, %v8299
      %v8332 = vmax.f32 %v8268, %v8300
      %v8333 = vmax.f32 %v8269, %v8301
      %v8334 = vmax.f32 %v8270, %v8302
      %v8335 = vmax.f32 %v8271, %v8303
      %v8336 = vmax.f32 %v8272, %v8304
      %v8337 = vmax.f32 %v8273, %v8305
      %v8338 = vmax.f32 %v8274, %v8306
      %v8339 = vmax.f32 %v8275, %v8307
      %v8340 = vmax.f32 %v8276, %v8308
      %v8341 = vmax.f32 %v8277, %v8309
      %v8342 = vmax.f32 %v8278, %v8310
      %v8343 = vmax.f32 %v8279, %v8311
      %v8344 = vmax.f32 %v8280, %v8312
      %v8345 = vmax.f32 %v8281, %v8313
      %v8346 = vmax.f32 %v8282, %v8314
      %v8347 = vmax.f32 %v8283, %v8315
      %v8348 = vmax.f32 %v8284, %v8316
      %v8349 = vld [vmem:[%s8156] sm:$0xff]
      %v8350 = vld [vmem:[%s8156 + $0x8] sm:$0xff]
      %v8351 = vld [vmem:[%s8156 + $0x18] sm:$0xff]
      %v8352 = vld [vmem:[%s8156 + $0x20] sm:$0xff]
      %v8353 = vld [vmem:[%s8156 + $0x30] sm:$0xff]
      %v8354 = vld [vmem:[%s8156 + $0x38] sm:$0xff]
      %v8355 = vld [vmem:[%s8156 + $0x48] sm:$0xff]
      %v8356 = vld [vmem:[%s8156 + $0x50] sm:$0xff]
      %v8357 = vld [vmem:[%s8156 + $0x60] sm:$0xff]
      %v8358 = vld [vmem:[%s8156 + $0x68] sm:$0xff]
      %v8359 = vld [vmem:[%s8156 + $0x78] sm:$0xff]
      %v8360 = vld [vmem:[%s8156 + $0x80] sm:$0xff]
      %v8361 = vld [vmem:[%s8156 + $0x90] sm:$0xff]
      %v8362 = vld [vmem:[%s8156 + $0x98] sm:$0xff]
      %v8363 = vld [vmem:[%s8156 + $0xa8] sm:$0xff]
      %v8364 = vld [vmem:[%s8156 + $0xb0] sm:$0xff]
      %v8365 = vld [vmem:[%s8156 + $0xc0] sm:$0xff]
      %v8366 = vld [vmem:[%s8156 + $0xc8] sm:$0xff]
      %v8367 = vld [vmem:[%s8156 + $0xd8] sm:$0xff]
      %v8368 = vld [vmem:[%s8156 + $0xe0] sm:$0xff]
      %v8369 = vld [vmem:[%s8156 + $0xf0] sm:$0xff]
      %v8370 = vld [vmem:[%s8156 + $0xf8] sm:$0xff]
      %v8371 = vld [vmem:[%s8156 + $0x108] sm:$0xff]
      %v8372 = vld [vmem:[%s8156 + $0x110] sm:$0xff]
      %v8373 = vld [vmem:[%s8156 + $0x120] sm:$0xff]
      %v8374 = vld [vmem:[%s8156 + $0x128] sm:$0xff]
      %v8375 = vld [vmem:[%s8156 + $0x138] sm:$0xff]
      %v8376 = vld [vmem:[%s8156 + $0x140] sm:$0xff]
      %v8377 = vld [vmem:[%s8156 + $0x150] sm:$0xff]
      %v8378 = vld [vmem:[%s8156 + $0x158] sm:$0xff]
      %v8379 = vld [vmem:[%s8156 + $0x168] sm:$0xff]
      %v8380 = vld [vmem:[%s8156 + $0x170] sm:$0xff]
      %v8381 = vmax.f32 %v8317, %v8349
      %v8382 = vmax.f32 %v8318, %v8350
      %v8383 = vmax.f32 %v8319, %v8351
      %v8384 = vmax.f32 %v8320, %v8352
      %v8385 = vmax.f32 %v8321, %v8353
      %v8386 = vmax.f32 %v8322, %v8354
      %v8387 = vmax.f32 %v8323, %v8355
      %v8388 = vmax.f32 %v8324, %v8356
      %v8389 = vmax.f32 %v8325, %v8357
      %v8390 = vmax.f32 %v8326, %v8358
      %v8391 = vmax.f32 %v8327, %v8359
      %v8392 = vmax.f32 %v8328, %v8360
      %v8393 = vmax.f32 %v8329, %v8361
      %v8394 = vmax.f32 %v8330, %v8362
      %v8395 = vmax.f32 %v8331, %v8363
      %v8396 = vmax.f32 %v8332, %v8364
      %v8397 = vmax.f32 %v8333, %v8365
      %v8398 = vmax.f32 %v8334, %v8366
      %v8399 = vmax.f32 %v8335, %v8367
      %v8400 = vmax.f32 %v8336, %v8368
      %v8401 = vmax.f32 %v8337, %v8369
      %v8402 = vmax.f32 %v8338, %v8370
      %v8403 = vmax.f32 %v8339, %v8371
      %v8404 = vmax.f32 %v8340, %v8372
      %v8405 = vmax.f32 %v8341, %v8373
      %v8406 = vmax.f32 %v8342, %v8374
      %v8407 = vmax.f32 %v8343, %v8375
      %v8408 = vmax.f32 %v8344, %v8376
      %v8409 = vmax.f32 %v8345, %v8377
      %v8410 = vmax.f32 %v8346, %v8378
      %v8411 = vmax.f32 %v8347, %v8379
      %v8412 = vmax.f32 %v8348, %v8380
      %v8413 = vld [vmem:[%s8156 + $0x1] sm:$0xff]
      %v8414 = vld [vmem:[%s8156 + $0x9] sm:$0xff]
      %v8415 = vld [vmem:[%s8156 + $0x19] sm:$0xff]
      %v8416 = vld [vmem:[%s8156 + $0x21] sm:$0xff]
      %v8417 = vld [vmem:[%s8156 + $0x31] sm:$0xff]
      %v8418 = vld [vmem:[%s8156 + $0x39] sm:$0xff]
      %v8419 = vld [vmem:[%s8156 + $0x49] sm:$0xff]
      %v8420 = vld [vmem:[%s8156 + $0x51] sm:$0xff]
      %v8421 = vld [vmem:[%s8156 + $0x61] sm:$0xff]
      %v8422 = vld [vmem:[%s8156 + $0x69] sm:$0xff]
      %v8423 = vld [vmem:[%s8156 + $0x79] sm:$0xff]
      %v8424 = vld [vmem:[%s8156 + $0x81] sm:$0xff]
      %v8425 = vld [vmem:[%s8156 + $0x91] sm:$0xff]
      %v8426 = vld [vmem:[%s8156 + $0x99] sm:$0xff]
      %v8427 = vld [vmem:[%s8156 + $0xa9] sm:$0xff]
      %v8428 = vld [vmem:[%s8156 + $0xb1] sm:$0xff]
      %v8429 = vld [vmem:[%s8156 + $0xc1] sm:$0xff]
      %v8430 = vld [vmem:[%s8156 + $0xc9] sm:$0xff]
      %v8431 = vld [vmem:[%s8156 + $0xd9] sm:$0xff]
      %v8432 = vld [vmem:[%s8156 + $0xe1] sm:$0xff]
      %v8433 = vld [vmem:[%s8156 + $0xf1] sm:$0xff]
      %v8434 = vld [vmem:[%s8156 + $0xf9] sm:$0xff]
      %v8435 = vld [vmem:[%s8156 + $0x109] sm:$0xff]
      %v8436 = vld [vmem:[%s8156 + $0x111] sm:$0xff]
      %v8437 = vld [vmem:[%s8156 + $0x121] sm:$0xff]
      %v8438 = vld [vmem:[%s8156 + $0x129] sm:$0xff]
      %v8439 = vld [vmem:[%s8156 + $0x139] sm:$0xff]
      %v8440 = vld [vmem:[%s8156 + $0x141] sm:$0xff]
      %v8441 = vld [vmem:[%s8156 + $0x151] sm:$0xff]
      %v8442 = vld [vmem:[%s8156 + $0x159] sm:$0xff]
      %v8443 = vld [vmem:[%s8156 + $0x169] sm:$0xff]
      %v8444 = vld [vmem:[%s8156 + $0x171] sm:$0xff]
      %v8445 = vmax.f32 %v8381, %v8413
      %v8446 = vmax.f32 %v8382, %v8414
      %v8447 = vmax.f32 %v8383, %v8415
      %v8448 = vmax.f32 %v8384, %v8416
      %v8449 = vmax.f32 %v8385, %v8417
      %v8450 = vmax.f32 %v8386, %v8418
      %v8451 = vmax.f32 %v8387, %v8419
      %v8452 = vmax.f32 %v8388, %v8420
      %v8453 = vmax.f32 %v8389, %v8421
      %v8454 = vmax.f32 %v8390, %v8422
      %v8455 = vmax.f32 %v8391, %v8423
      %v8456 = vmax.f32 %v8392, %v8424
      %v8457 = vmax.f32 %v8393, %v8425
      %v8458 = vmax.f32 %v8394, %v8426
      %v8459 = vmax.f32 %v8395, %v8427
      %v8460 = vmax.f32 %v8396, %v8428
      %v8461 = vmax.f32 %v8397, %v8429
      %v8462 = vmax.f32 %v8398, %v8430
      %v8463 = vmax.f32 %v8399, %v8431
      %v8464 = vmax.f32 %v8400, %v8432
      %v8465 = vmax.f32 %v8401, %v8433
      %v8466 = vmax.f32 %v8402, %v8434
      %v8467 = vmax.f32 %v8403, %v8435
      %v8468 = vmax.f32 %v8404, %v8436
      %v8469 = vmax.f32 %v8405, %v8437
      %v8470 = vmax.f32 %v8406, %v8438
      %v8471 = vmax.f32 %v8407, %v8439
      %v8472 = vmax.f32 %v8408, %v8440
      %v8473 = vmax.f32 %v8409, %v8441
      %v8474 = vmax.f32 %v8410, %v8442
      %v8475 = vmax.f32 %v8411, %v8443
      %v8476 = vmax.f32 %v8412, %v8444
      %v8477 = vld [vmem:[%s8156 + $0x2] sm:$0xff]
      %v8478 = vld [vmem:[%s8156 + $0xa] sm:$0xff]
      %v8479 = vld [vmem:[%s8156 + $0x1a] sm:$0xff]
      %v8480 = vld [vmem:[%s8156 + $0x22] sm:$0xff]
      %v8481 = vld [vmem:[%s8156 + $0x32] sm:$0xff]
      %v8482 = vld [vmem:[%s8156 + $0x3a] sm:$0xff]
      %v8483 = vld [vmem:[%s8156 + $0x4a] sm:$0xff]
      %v8484 = vld [vmem:[%s8156 + $0x52] sm:$0xff]
      %v8485 = vld [vmem:[%s8156 + $0x62] sm:$0xff]
      %v8486 = vld [vmem:[%s8156 + $0x6a] sm:$0xff]
      %v8487 = vld [vmem:[%s8156 + $0x7a] sm:$0xff]
      %v8488 = vld [vmem:[%s8156 + $0x82] sm:$0xff]
      %v8489 = vld [vmem:[%s8156 + $0x92] sm:$0xff]
      %v8490 = vld [vmem:[%s8156 + $0x9a] sm:$0xff]
      %v8491 = vld [vmem:[%s8156 + $0xaa] sm:$0xff]
      %v8492 = vld [vmem:[%s8156 + $0xb2] sm:$0xff]
      %v8493 = vld [vmem:[%s8156 + $0xc2] sm:$0xff]
      %v8494 = vld [vmem:[%s8156 + $0xca] sm:$0xff]
      %v8495 = vld [vmem:[%s8156 + $0xda] sm:$0xff]
      %v8496 = vld [vmem:[%s8156 + $0xe2] sm:$0xff]
      %v8497 = vld [vmem:[%s8156 + $0xf2] sm:$0xff]
      %v8498 = vld [vmem:[%s8156 + $0xfa] sm:$0xff]
      %v8499 = vld [vmem:[%s8156 + $0x10a] sm:$0xff]
      %v8500 = vld [vmem:[%s8156 + $0x112] sm:$0xff]
      %v8501 = vld [vmem:[%s8156 + $0x122] sm:$0xff]
      %v8502 = vld [vmem:[%s8156 + $0x12a] sm:$0xff]
      %v8503 = vld [vmem:[%s8156 + $0x13a] sm:$0xff]
      %v8504 = vld [vmem:[%s8156 + $0x142] sm:$0xff]
      %v8505 = vld [vmem:[%s8156 + $0x152] sm:$0xff]
      %v8506 = vld [vmem:[%s8156 + $0x15a] sm:$0xff]
      %v8507 = vld [vmem:[%s8156 + $0x16a] sm:$0xff]
      %v8508 = vld [vmem:[%s8156 + $0x172] sm:$0xff]
      %v8509 = vmax.f32 %v8445, %v8477
      %v8510 = vmax.f32 %v8446, %v8478
      %v8511 = vmax.f32 %v8447, %v8479
      %v8512 = vmax.f32 %v8448, %v8480
      %v8513 = vmax.f32 %v8449, %v8481
      %v8514 = vmax.f32 %v8450, %v8482
      %v8515 = vmax.f32 %v8451, %v8483
      %v8516 = vmax.f32 %v8452, %v8484
      %v8517 = vmax.f32 %v8453, %v8485
      %v8518 = vmax.f32 %v8454, %v8486
      %v8519 = vmax.f32 %v8455, %v8487
      %v8520 = vmax.f32 %v8456, %v8488
      %v8521 = vmax.f32 %v8457, %v8489
      %v8522 = vmax.f32 %v8458, %v8490
      %v8523 = vmax.f32 %v8459, %v8491
      %v8524 = vmax.f32 %v8460, %v8492
      %v8525 = vmax.f32 %v8461, %v8493
      %v8526 = vmax.f32 %v8462, %v8494
      %v8527 = vmax.f32 %v8463, %v8495
      %v8528 = vmax.f32 %v8464, %v8496
      %v8529 = vmax.f32 %v8465, %v8497
      %v8530 = vmax.f32 %v8466, %v8498
      %v8531 = vmax.f32 %v8467, %v8499
      %v8532 = vmax.f32 %v8468, %v8500
      %v8533 = vmax.f32 %v8469, %v8501
      %v8534 = vmax.f32 %v8470, %v8502
      %v8535 = vmax.f32 %v8471, %v8503
      %v8536 = vmax.f32 %v8472, %v8504
      %v8537 = vmax.f32 %v8473, %v8505
      %v8538 = vmax.f32 %v8474, %v8506
      %v8539 = vmax.f32 %v8475, %v8507
      %v8540 = vmax.f32 %v8476, %v8508
      %s8541 = scalar_lea.vmem [#allocation4], 48
      %v8542 = vld [vmem:[%s8541] sm:$0xff]
      %v8543 = vld [vmem:[%s8541 + $0x8] sm:$0xff]
      %v8544 = vld [vmem:[%s8541 + $0x18] sm:$0xff]
      %v8545 = vld [vmem:[%s8541 + $0x20] sm:$0xff]
      %v8546 = vld [vmem:[%s8541 + $0x30] sm:$0xff]
      %v8547 = vld [vmem:[%s8541 + $0x38] sm:$0xff]
      %v8548 = vld [vmem:[%s8541 + $0x48] sm:$0xff]
      %v8549 = vld [vmem:[%s8541 + $0x50] sm:$0xff]
      %v8550 = vld [vmem:[%s8541 + $0x60] sm:$0xff]
      %v8551 = vld [vmem:[%s8541 + $0x68] sm:$0xff]
      %v8552 = vld [vmem:[%s8541 + $0x78] sm:$0xff]
      %v8553 = vld [vmem:[%s8541 + $0x80] sm:$0xff]
      %v8554 = vld [vmem:[%s8541 + $0x90] sm:$0xff]
      %v8555 = vld [vmem:[%s8541 + $0x98] sm:$0xff]
      %v8556 = vld [vmem:[%s8541 + $0xa8] sm:$0xff]
      %v8557 = vld [vmem:[%s8541 + $0xb0] sm:$0xff]
      %v8558 = vld [vmem:[%s8541 + $0xc0] sm:$0xff]
      %v8559 = vld [vmem:[%s8541 + $0xc8] sm:$0xff]
      %v8560 = vld [vmem:[%s8541 + $0xd8] sm:$0xff]
      %v8561 = vld [vmem:[%s8541 + $0xe0] sm:$0xff]
      %v8562 = vld [vmem:[%s8541 + $0xf0] sm:$0xff]
      %v8563 = vld [vmem:[%s8541 + $0xf8] sm:$0xff]
      %v8564 = vld [vmem:[%s8541 + $0x108] sm:$0xff]
      %v8565 = vld [vmem:[%s8541 + $0x110] sm:$0xff]
      %v8566 = vld [vmem:[%s8541 + $0x120] sm:$0xff]
      %v8567 = vld [vmem:[%s8541 + $0x128] sm:$0xff]
      %v8568 = vld [vmem:[%s8541 + $0x138] sm:$0xff]
      %v8569 = vld [vmem:[%s8541 + $0x140] sm:$0xff]
      %v8570 = vld [vmem:[%s8541 + $0x150] sm:$0xff]
      %v8571 = vld [vmem:[%s8541 + $0x158] sm:$0xff]
      %v8572 = vld [vmem:[%s8541 + $0x168] sm:$0xff]
      %v8573 = vld [vmem:[%s8541 + $0x170] sm:$0xff]
      %v8574 = vmax.f32 %v8509, %v8542
      %v8575 = vmax.f32 %v8510, %v8543
      %v8576 = vmax.f32 %v8511, %v8544
      %v8577 = vmax.f32 %v8512, %v8545
      %v8578 = vmax.f32 %v8513, %v8546
      %v8579 = vmax.f32 %v8514, %v8547
      %v8580 = vmax.f32 %v8515, %v8548
      %v8581 = vmax.f32 %v8516, %v8549
      %v8582 = vmax.f32 %v8517, %v8550
      %v8583 = vmax.f32 %v8518, %v8551
      %v8584 = vmax.f32 %v8519, %v8552
      %v8585 = vmax.f32 %v8520, %v8553
      %v8586 = vmax.f32 %v8521, %v8554
      %v8587 = vmax.f32 %v8522, %v8555
      %v8588 = vmax.f32 %v8523, %v8556
      %v8589 = vmax.f32 %v8524, %v8557
      %v8590 = vmax.f32 %v8525, %v8558
      %v8591 = vmax.f32 %v8526, %v8559
      %v8592 = vmax.f32 %v8527, %v8560
      %v8593 = vmax.f32 %v8528, %v8561
      %v8594 = vmax.f32 %v8529, %v8562
      %v8595 = vmax.f32 %v8530, %v8563
      %v8596 = vmax.f32 %v8531, %v8564
      %v8597 = vmax.f32 %v8532, %v8565
      %v8598 = vmax.f32 %v8533, %v8566
      %v8599 = vmax.f32 %v8534, %v8567
      %v8600 = vmax.f32 %v8535, %v8568
      %v8601 = vmax.f32 %v8536, %v8569
      %v8602 = vmax.f32 %v8537, %v8570
      %v8603 = vmax.f32 %v8538, %v8571
      %v8604 = vmax.f32 %v8539, %v8572
      %v8605 = vmax.f32 %v8540, %v8573
      %v8606 = vld [vmem:[%s8541 + $0x1] sm:$0xff]
      %v8607 = vld [vmem:[%s8541 + $0x9] sm:$0xff]
      %v8608 = vld [vmem:[%s8541 + $0x19] sm:$0xff]
      %v8609 = vld [vmem:[%s8541 + $0x21] sm:$0xff]
      %v8610 = vld [vmem:[%s8541 + $0x31] sm:$0xff]
      %v8611 = vld [vmem:[%s8541 + $0x39] sm:$0xff]
      %v8612 = vld [vmem:[%s8541 + $0x49] sm:$0xff]
      %v8613 = vld [vmem:[%s8541 + $0x51] sm:$0xff]
      %v8614 = vld [vmem:[%s8541 + $0x61] sm:$0xff]
      %v8615 = vld [vmem:[%s8541 + $0x69] sm:$0xff]
      %v8616 = vld [vmem:[%s8541 + $0x79] sm:$0xff]
      %v8617 = vld [vmem:[%s8541 + $0x81] sm:$0xff]
      %v8618 = vld [vmem:[%s8541 + $0x91] sm:$0xff]
      %v8619 = vld [vmem:[%s8541 + $0x99] sm:$0xff]
      %v8620 = vld [vmem:[%s8541 + $0xa9] sm:$0xff]
      %v8621 = vld [vmem:[%s8541 + $0xb1] sm:$0xff]
      %v8622 = vld [vmem:[%s8541 + $0xc1] sm:$0xff]
      %v8623 = vld [vmem:[%s8541 + $0xc9] sm:$0xff]
      %v8624 = vld [vmem:[%s8541 + $0xd9] sm:$0xff]
      %v8625 = vld [vmem:[%s8541 + $0xe1] sm:$0xff]
      %v8626 = vld [vmem:[%s8541 + $0xf1] sm:$0xff]
      %v8627 = vld [vmem:[%s8541 + $0xf9] sm:$0xff]
      %v8628 = vld [vmem:[%s8541 + $0x109] sm:$0xff]
      %v8629 = vld [vmem:[%s8541 + $0x111] sm:$0xff]
      %v8630 = vld [vmem:[%s8541 + $0x121] sm:$0xff]
      %v8631 = vld [vmem:[%s8541 + $0x129] sm:$0xff]
      %v8632 = vld [vmem:[%s8541 + $0x139] sm:$0xff]
      %v8633 = vld [vmem:[%s8541 + $0x141] sm:$0xff]
      %v8634 = vld [vmem:[%s8541 + $0x151] sm:$0xff]
      %v8635 = vld [vmem:[%s8541 + $0x159] sm:$0xff]
      %v8636 = vld [vmem:[%s8541 + $0x169] sm:$0xff]
      %v8637 = vld [vmem:[%s8541 + $0x171] sm:$0xff]
      %v8638 = vmax.f32 %v8574, %v8606
      %v8639 = vmax.f32 %v8575, %v8607
      %v8640 = vmax.f32 %v8576, %v8608
      %v8641 = vmax.f32 %v8577, %v8609
      %v8642 = vmax.f32 %v8578, %v8610
      %v8643 = vmax.f32 %v8579, %v8611
      %v8644 = vmax.f32 %v8580, %v8612
      %v8645 = vmax.f32 %v8581, %v8613
      %v8646 = vmax.f32 %v8582, %v8614
      %v8647 = vmax.f32 %v8583, %v8615
      %v8648 = vmax.f32 %v8584, %v8616
      %v8649 = vmax.f32 %v8585, %v8617
      %v8650 = vmax.f32 %v8586, %v8618
      %v8651 = vmax.f32 %v8587, %v8619
      %v8652 = vmax.f32 %v8588, %v8620
      %v8653 = vmax.f32 %v8589, %v8621
      %v8654 = vmax.f32 %v8590, %v8622
      %v8655 = vmax.f32 %v8591, %v8623
      %v8656 = vmax.f32 %v8592, %v8624
      %v8657 = vmax.f32 %v8593, %v8625
      %v8658 = vmax.f32 %v8594, %v8626
      %v8659 = vmax.f32 %v8595, %v8627
      %v8660 = vmax.f32 %v8596, %v8628
      %v8661 = vmax.f32 %v8597, %v8629
      %v8662 = vmax.f32 %v8598, %v8630
      %v8663 = vmax.f32 %v8599, %v8631
      %v8664 = vmax.f32 %v8600, %v8632
      %v8665 = vmax.f32 %v8601, %v8633
      %v8666 = vmax.f32 %v8602, %v8634
      %v8667 = vmax.f32 %v8603, %v8635
      %v8668 = vmax.f32 %v8604, %v8636
      %v8669 = vmax.f32 %v8605, %v8637
      %v8670 = vld [vmem:[%s8541 + $0x2] sm:$0xff]
      %v8671 = vld [vmem:[%s8541 + $0xa] sm:$0xff]
      %v8672 = vld [vmem:[%s8541 + $0x1a] sm:$0xff]
      %v8673 = vld [vmem:[%s8541 + $0x22] sm:$0xff]
      %v8674 = vld [vmem:[%s8541 + $0x32] sm:$0xff]
      %v8675 = vld [vmem:[%s8541 + $0x3a] sm:$0xff]
      %v8676 = vld [vmem:[%s8541 + $0x4a] sm:$0xff]
      %v8677 = vld [vmem:[%s8541 + $0x52] sm:$0xff]
      %v8678 = vld [vmem:[%s8541 + $0x62] sm:$0xff]
      %v8679 = vld [vmem:[%s8541 + $0x6a] sm:$0xff]
      %v8680 = vld [vmem:[%s8541 + $0x7a] sm:$0xff]
      %v8681 = vld [vmem:[%s8541 + $0x82] sm:$0xff]
      %v8682 = vld [vmem:[%s8541 + $0x92] sm:$0xff]
      %v8683 = vld [vmem:[%s8541 + $0x9a] sm:$0xff]
      %v8684 = vld [vmem:[%s8541 + $0xaa] sm:$0xff]
      %v8685 = vld [vmem:[%s8541 + $0xb2] sm:$0xff]
      %v8686 = vld [vmem:[%s8541 + $0xc2] sm:$0xff]
      %v8687 = vld [vmem:[%s8541 + $0xca] sm:$0xff]
      %v8688 = vld [vmem:[%s8541 + $0xda] sm:$0xff]
      %v8689 = vld [vmem:[%s8541 + $0xe2] sm:$0xff]
      %v8690 = vld [vmem:[%s8541 + $0xf2] sm:$0xff]
      %v8691 = vld [vmem:[%s8541 + $0xfa] sm:$0xff]
      %v8692 = vld [vmem:[%s8541 + $0x10a] sm:$0xff]
      %v8693 = vld [vmem:[%s8541 + $0x112] sm:$0xff]
      %v8694 = vld [vmem:[%s8541 + $0x122] sm:$0xff]
      %v8695 = vld [vmem:[%s8541 + $0x12a] sm:$0xff]
      %v8696 = vld [vmem:[%s8541 + $0x13a] sm:$0xff]
      %v8697 = vld [vmem:[%s8541 + $0x142] sm:$0xff]
      %v8698 = vld [vmem:[%s8541 + $0x152] sm:$0xff]
      %v8699 = vld [vmem:[%s8541 + $0x15a] sm:$0xff]
      %v8700 = vld [vmem:[%s8541 + $0x16a] sm:$0xff]
      %v8701 = vld [vmem:[%s8541 + $0x172] sm:$0xff]
      %v8702 = vmax.f32 %v8638, %v8670
      %v8703 = vmax.f32 %v8639, %v8671
      %v8704 = vmax.f32 %v8640, %v8672
      %v8705 = vmax.f32 %v8641, %v8673
      %v8706 = vmax.f32 %v8642, %v8674
      %v8707 = vmax.f32 %v8643, %v8675
      %v8708 = vmax.f32 %v8644, %v8676
      %v8709 = vmax.f32 %v8645, %v8677
      %v8710 = vmax.f32 %v8646, %v8678
      %v8711 = vmax.f32 %v8647, %v8679
      %v8712 = vmax.f32 %v8648, %v8680
      %v8713 = vmax.f32 %v8649, %v8681
      %v8714 = vmax.f32 %v8650, %v8682
      %v8715 = vmax.f32 %v8651, %v8683
      %v8716 = vmax.f32 %v8652, %v8684
      %v8717 = vmax.f32 %v8653, %v8685
      %v8718 = vmax.f32 %v8654, %v8686
      %v8719 = vmax.f32 %v8655, %v8687
      %v8720 = vmax.f32 %v8656, %v8688
      %v8721 = vmax.f32 %v8657, %v8689
      %v8722 = vmax.f32 %v8658, %v8690
      %v8723 = vmax.f32 %v8659, %v8691
      %v8724 = vmax.f32 %v8660, %v8692
      %v8725 = vmax.f32 %v8661, %v8693
      %v8726 = vmax.f32 %v8662, %v8694
      %v8727 = vmax.f32 %v8663, %v8695
      %v8728 = vmax.f32 %v8664, %v8696
      %v8729 = vmax.f32 %v8665, %v8697
      %v8730 = vmax.f32 %v8666, %v8698
      %v8731 = vmax.f32 %v8667, %v8699
      %v8732 = vmax.f32 %v8668, %v8700
      %v8733 = vmax.f32 %v8669, %v8701
      %v8734 = vld [vmem:[%s11] sm:$0xff]
      %v8735 = vld [vmem:[%s12] sm:$0xff]
      %8737 = vset.pattern.permute.xlu0 0
      %8738 = vperm.xlu0 %8737, %v8735
      %v8739 = vpop.permute.xlu0 %8738
      %v8742 = vsel %vm480, %v8734, 0
      %v8745 = vsel %vm480, %v8702, 0
      %v8748 = vsel %vm480, %v8703, 0
      %v8751 = vsel %vm480, %v8704, 0
      %v8754 = vsel %vm480, %v8705, 0
      %v8757 = vsel %vm480, %v8706, 0
      %v8760 = vsel %vm480, %v8707, 0
      %v8763 = vsel %vm480, %v8708, 0
      %v8766 = vsel %vm480, %v8709, 0
      %v8769 = vsel %vm480, %v8710, 0
      %v8772 = vsel %vm480, %v8711, 0
      %v8775 = vsel %vm480, %v8712, 0
      %v8778 = vsel %vm480, %v8713, 0
      %v8781 = vsel %vm480, %v8714, 0
      %v8784 = vsel %vm480, %v8715, 0
      %v8787 = vsel %vm480, %v8716, 0
      %v8790 = vsel %vm480, %v8717, 0
      %v8793 = vsel %vm480, %v8718, 0
      %v8796 = vsel %vm480, %v8719, 0
      %v8799 = vsel %vm480, %v8720, 0
      %v8802 = vsel %vm480, %v8721, 0
      %v8805 = vsel %vm480, %v8722, 0
      %v8808 = vsel %vm480, %v8723, 0
      %v8811 = vsel %vm480, %v8724, 0
      %v8814 = vsel %vm480, %v8725, 0
      %v8817 = vsel %vm480, %v8726, 0
      %v8820 = vsel %vm480, %v8727, 0
      %v8823 = vsel %vm480, %v8728, 0
      %v8826 = vsel %vm480, %v8729, 0
      %v8829 = vsel %vm480, %v8730, 0
      %v8832 = vsel %vm480, %v8731, 0
      %v8835 = vsel %vm480, %v8732, 0
      %v8838 = vsel %vm480, %v8733, 0
      %8840 = vmatprep.subr.mxu0 0.0
      %8841 = vmatpush1.xpose.msra.mxu0 %v8745
      %8842 = vmatprep.subr.mxu0 0.0
      %8843 = vmatpush1.xpose.msra.mxu0 %v8748
      %8844 = vmatprep.subr.mxu0 0.0
      %8845 = vmatpush1.xpose.msra.mxu0 %v8751
      %8846 = vmatprep.subr.mxu0 0.0
      %8847 = vmatpush1.xpose.msra.mxu0 %v8754
      %8848 = vmatprep.subr.mxu0 0.0
      %8849 = vmatpush1.xpose.msra.mxu0 %v8757
      %8850 = vmatprep.subr.mxu0 0.0
      %8851 = vmatpush1.xpose.msra.mxu0 %v8760
      %8852 = vmatprep.subr.mxu0 0.0
      %8853 = vmatpush1.xpose.msra.mxu0 %v8763
      %8854 = vmatprep.subr.mxu0 0.0
      %8855 = vmatpush1.xpose.msra.mxu0 %v8766
      %8856 = vmatprep.subr.mxu0 0.0
      %8857 = vmatpush1.xpose.msra.mxu0 %v8769
      %8858 = vmatprep.subr.mxu0 0.0
      %8859 = vmatpush1.xpose.msra.mxu0 %v8772
      %8860 = vmatprep.subr.mxu0 0.0
      %8861 = vmatpush1.xpose.msra.mxu0 %v8775
      %8862 = vmatprep.subr.mxu0 0.0
      %8863 = vmatpush1.xpose.msra.mxu0 %v8778
      %8864 = vmatprep.subr.mxu0 0.0
      %8865 = vmatpush1.xpose.msra.mxu0 %v8781
      %8866 = vmatprep.subr.mxu0 0.0
      %8867 = vmatpush1.xpose.msra.mxu0 %v8784
      %8868 = vmatprep.subr.mxu0 0.0
      %8869 = vmatpush1.xpose.msra.mxu0 %v8787
      %8870 = vmatprep.subr.mxu0 0.0
      %8871 = vmatpush1.xpose.msra.mxu0 %v8790
      %8872 = vmatprep.subr.mxu0 0.0
      %8873 = vmatpush1.xpose.msra.mxu0 %v8793
      %8874 = vmatprep.subr.mxu0 0.0
      %8875 = vmatpush1.xpose.msra.mxu0 %v8796
      %8876 = vmatprep.subr.mxu0 0.0
      %8877 = vmatpush1.xpose.msra.mxu0 %v8799
      %8878 = vmatprep.subr.mxu0 0.0
      %8879 = vmatpush1.xpose.msra.mxu0 %v8802
      %8880 = vmatprep.subr.mxu0 0.0
      %8881 = vmatpush1.xpose.msra.mxu0 %v8805
      %8882 = vmatprep.subr.mxu0 0.0
      %8883 = vmatpush1.xpose.msra.mxu0 %v8808
      %8884 = vmatprep.subr.mxu0 0.0
      %8885 = vmatpush1.xpose.msra.mxu0 %v8811
      %8886 = vmatprep.subr.mxu0 0.0
      %8887 = vmatpush1.xpose.msra.mxu0 %v8814
      %8888 = vmatprep.subr.mxu0 0.0
      %8889 = vmatpush1.xpose.msra.mxu0 %v8817
      %8890 = vmatprep.subr.mxu0 0.0
      %8891 = vmatpush1.xpose.msra.mxu0 %v8820
      %8892 = vmatprep.subr.mxu0 0.0
      %8893 = vmatpush1.xpose.msra.mxu0 %v8823
      %8894 = vmatprep.subr.mxu0 0.0
      %8895 = vmatpush1.xpose.msra.mxu0 %v8826
      %8896 = vmatprep.subr.mxu0 0.0
      %8897 = vmatpush1.xpose.msra.mxu0 %v8829
      %8898 = vmatprep.subr.mxu0 0.0
      %8899 = vmatpush1.xpose.msra.mxu0 %v8832
      %8900 = vmatprep.subr.mxu0 0.0
      %8901 = vmatpush1.xpose.msra.mxu0 %v8835
      %8902 = vmatprep.subr.mxu0 0.0
      %8903 = vmatpush1.xpose.msra.mxu0 %v8838
      %8904 = vmatprep.mubr.f32.mxu0 0.0
      %8905 = vmatmul.mubr.f32.gmra.mrb[0].mxu0 %v8742
      %v8906 = vpop.f32.mrb[0].mxu0
      %v8907 = vadd.f32 %v8739, %v8906
      %v8908 = vpop.f32.mrb[0].mxu0
      %v8909 = vadd.f32 %v8739, %v8908
      %8910 = vdwg.mxu0
      %v8911 = vmax.f32 %v8907, 0.0
      %v8912 = vmax.f32 %v8909, 0.0
      %8913 = vst [vmem:[%s440 + $0x30] sm:$0xff] %v8911
      %8914 = vst [vmem:[%s440 + $0x38] sm:$0xff] %v8912
      %p8915 = scmp.lt.s32.totalorder %s24, 1
      %s8916 = scalar_select %p8915, %s24, 1
      %s8917 = smul.addr %s8916, 8
      %s8918 = smul.addr %s8917, 8
      %s8919 = scalar_lea.vmem %s13, %s8918
      // Predicated region
      $region73: #{inception_forward.1} parent=71 // pred_check
        %p8920 = pneg %p320
      $region74: #{inception_forward.1} parent=71 // pred_check_branch
        %8922 = sbr.rel (%p8920) target = $region76
      $region75: #{inception_forward.1} parent=71 // pred_region
        _
      $region76: #{inception_forward.1} parent=71 // pred_fallthru
        _
    $region72: #{inception_forward.1} parent=5 // pred_fallthru
      _
    %p8923 = scmp.le.s32.totalorder 2, %s19
    // Predicated region
    $region77: #{inception_forward.1} parent=5 // pred_check
      %p8924 = pneg %p8923
    $region78: #{inception_forward.1} parent=5 // pred_check_branch
      %8926 = sbr.rel (%p8924) target = $region80
    $region79: #{inception_forward.1} parent=5 // pred_region
      %s8927 = ssub.s32 %s19, 2
      // Predicated region
      $region81: #{inception_forward.1} parent=79 // pred_check
        %p8928 = pneg %p326
      $region82: #{inception_forward.1} parent=79 // pred_check_branch
        %8930 = sbr.rel (%p8928) target = $region84
      $region83: #{inception_forward.1} parent=79 // pred_region
        %p8931 = scmp.lt.s32.totalorder %s25, 1
        %s8932 = scalar_select %p8931, %s25, 1
        %s8933 = smul.addr %s8932, 8
        %s8934 = smul.addr %s8933, 8
        %s8935 = scalar_lea.vmem %s13, %s8934
      $region84: #{inception_forward.1} parent=79 // pred_fallthru
        _
    $region80: #{inception_forward.1} parent=5 // pred_fallthru
      _
  $region6: #{inception_forward.1} parent=0 // loop_footer
    %s23 = sadd.s32 1, %s19
  $region7: #{inception_forward.1} parent=0 // loop_footer_branch
    %18 = sbr.rel target = $region3
  $region8: #{inception_forward.1} parent=0 // loop_exit
    _

</llo_original>
